<compile_context>
chip_gen: v7x
topology: tpu7x:2x2x1
jax: 0.10.0
libtpu: 0.0.40
codegen_flags: <defaults>
</compile_context>

<pallas_src>
import math
from functools import partial

import jax
import jax.numpy as jnp
from jax.experimental import pallas as pl
from jax.experimental.pallas import tpu as pltpu

LANES = 128


# --------------------------- fused forward kernel -------------------------- #
def _bern_prop_body(h0, L, coef_ref, tmp_ref, K):
    """out = sum_k coef[k] * L^k (2I-L)^{K-k} h0  via Horner (2K matmuls).

    tmp_ref[j] caches coef[K-j] * (2I-L)^j h0 (pre-scaled so the Horner pass
    needs no SMEM reads); the running carry stays in registers throughout.
    """
    h = h0
    tmp_ref[0] = coef_ref[K] * h
    for j in range(1, K + 1):
        # (2I - L) @ h  ==  2h - L@h  (no second (N,N) operand needed)
        h = 2.0 * h - jnp.dot(L, h, preferred_element_type=jnp.float32)
        tmp_ref[j] = coef_ref[K - j] * h
    # Horner:  v = tmp[0];  v <- L@v + tmp[K-k]  for k = K-1 .. 0
    v = tmp_ref[0]
    for k in range(K - 1, -1, -1):
        v = jnp.dot(L, v, preferred_element_type=jnp.float32) + tmp_ref[K - k]
    return v


def _bernnet_kernel(c1_ref, c3_ref, x_ref, w1_ref, b1_ref, w2_ref, b2_ref,
                    l_ref, o_ref, tmp_ref, *, K):
    L = l_ref[...]                                             # (N, N) f32
    # lin1 + relu   (F.dropout is identity in eval mode)
    h = jnp.dot(x_ref[...], w1_ref[...], preferred_element_type=jnp.float32)
    h = jnp.maximum(h + b1_ref[...], 0.0)
    # prop1 (source-domain Bern_prop)
    h = _bern_prop_body(h, L, c1_ref, tmp_ref, K)
    # lin2
    h = jnp.dot(h, w2_ref[...], preferred_element_type=jnp.float32) + b2_ref[...]
    # prop3
    h = _bern_prop_body(h, L, c3_ref, tmp_ref, K)
    o_ref[...] = h.astype(o_ref.dtype)


def _pad2d(a, rows, cols):
    r, c = a.shape
    return jnp.pad(a, ((0, rows - r), (0, cols - c)))


def bernnet_forward(x, lap, params, K):
    N, f_in = x.shape
    hidden = params["w1"].shape[1]
    classes = params["w2"].shape[1]
    # Pad every feature dim to a lane-dense multiple of 128 (exact: zero cols
    # in / zero cols out, sliced off afterwards).
    fp = LANES * pl.cdiv(max(f_in, hidden, classes), LANES)

    x_p = _pad2d(x, N, fp)
    w1_p = _pad2d(params["w1"], fp, fp)
    b1_p = _pad2d(params["b1"], 1, fp)
    w2_p = _pad2d(params["w2"], fp, fp)
    b2_p = _pad2d(params["b2"], 1, fp)

    # relu(temp) * binomial constants (tiny scalar glue work)
    combs = jnp.asarray([math.comb(K, k) / 2.0 ** K for k in range(K + 1)],
                        dtype=jnp.float32)
    c1 = jnp.maximum(params["temp1"], 0.0) * combs
    c3 = jnp.maximum(params["temp3"], 0.0) * combs

    vmem = pl.BlockSpec(memory_space=pltpu.MemorySpace.VMEM)
    smem = pl.BlockSpec(memory_space=pltpu.MemorySpace.SMEM)

    out = pl.pallas_call(
        partial(_bernnet_kernel, K=K),
        out_shape=jax.ShapeDtypeStruct((N, fp), jnp.float32),
        in_specs=[smem, smem,          # coefs (K+1,) for prop1 / prop3
                  vmem,                # x        (N, fp)
                  vmem, vmem,          # w1, b1   (fp, fp), (1, fp)
                  vmem, vmem,          # w2, b2   (fp, fp), (1, fp)
                  vmem],               # L        (N, N)
        out_specs=vmem,
        scratch_shapes=[pltpu.VMEM((K + 1, N, fp), jnp.float32)],
    )(c1, c3, x_p, w1_p, b1_p, w2_p, b2_p, lap)
    return out[:, :classes]


# ------------------------- Graph operator (glue) --------------------------- #
def graph_operator(edge_index, num_nodes):
    src, dst = edge_index
    A = jnp.zeros((num_nodes, num_nodes), jnp.float32).at[src, dst].add(1.0)
    deg = A.sum(axis=1)
    dinv = jnp.where(deg > 0, 1.0 / jnp.sqrt(deg), 0.0)
    Ahat = dinv[:, None] * A * dinv[None, :]
    L = jnp.eye(num_nodes, dtype=jnp.float32) - Ahat   # sym-norm Laplacian
    return L


# ------------------------- Pure-JAX reference ------------------------------ #
def bern_prop_ref(x, lap, p2, temp, K):
    TEMP = jnp.maximum(temp, 0.0)
    tmp = [x]
    h = x
    for _ in range(K):
        h = p2 @ h
        tmp.append(h)
    out = math.comb(K, 0) / 2 ** K * TEMP[0] * tmp[K]
    for i in range(K):
        h = tmp[K - i - 1]
        h = lap @ h
        for _ in range(i):
            h = lap @ h
        out = out + math.comb(K, i + 1) / 2 ** K * TEMP[i + 1] * h
    return out


def bernnet_ref(x, lap, params, K):
    p2 = 2.0 * jnp.eye(lap.shape[0], dtype=jnp.float32) - lap
    h = jnp.maximum(x @ params["w1"] + params["b1"], 0.0)
    h = bern_prop_ref(h, lap, p2, params["temp1"], K)
    h = h @ params["w2"] + params["b2"]
    return bern_prop_ref(h, lap, p2, params["temp3"], K)


# --------------------------------- Main ------------------------------------ #
if __name__ == "__main__":
    N, FEATURES, HIDDEN, CLASSES, K = 32, 16, 32, 8, 15

    key = jax.random.PRNGKey(0)
    kx, kw1, kb1, kw2, kb2, kt1, kt3 = jax.random.split(key, 7)

    # Deterministic small graph: undirected ring + a few chords.
    src = list(range(N)) + [i for i in range(0, N, 4)]
    dst = [(i + 1) % N for i in range(N)] + [(i + 7) % N for i in range(0, N, 4)]
    edge_index = jnp.asarray([src + dst, dst + src], dtype=jnp.int32)
    L = graph_operator(edge_index, N)

    # Deterministic parameter init (shapes from __init__; synthetic values).
    # NB: the module's reset_parameters fills temp with ones (identity filter);
    # we use deterministic non-trivial temps to actually exercise the kernel.
    def uni(k, shape, fan_in):
        b = 1.0 / math.sqrt(fan_in)
        return jax.random.uniform(k, shape, jnp.float32, -b, b)

    params = {
        "w1": uni(kw1, (FEATURES, HIDDEN), FEATURES),
        "b1": uni(kb1, (1, HIDDEN), FEATURES),
        "w2": uni(kw2, (HIDDEN, CLASSES), HIDDEN),
        "b2": uni(kb2, (1, CLASSES), HIDDEN),
        "temp1": jax.random.uniform(kt1, (K + 1,), jnp.float32, 0.25, 1.5),
        "temp3": jax.random.uniform(kt3, (K + 1,), jnp.float32, 0.25, 1.5),
    }

    x = jax.random.normal(kx, (N, FEATURES), jnp.float32)

    out = bernnet_forward(x, L, params, K)
    out = jax.block_until_ready(out)

    ref = bernnet_ref(x, L, params, K)
    rel_err = jnp.max(jnp.abs(out - ref)) / (jnp.max(jnp.abs(ref)) + 1e-8)
    assert out.shape == (N, CLASSES)
    assert bool(rel_err < 1e-3), f"mismatch vs reference: rel_err={rel_err}"

    print("KERNEL_OK")
</pallas_src>

<mosaic_0001>
module attributes {stable_mosaic.version = 11 : i64} {
  func.func @_bernnet_kernel(%arg0: memref<16xf32, #tpu.memory_space<smem>>, %arg1: memref<16xf32, #tpu.memory_space<smem>>, %arg2: memref<32x128xf32, #tpu.memory_space<vmem>>, %arg3: memref<128x128xf32, #tpu.memory_space<vmem>>, %arg4: memref<1x128xf32, #tpu.memory_space<vmem>>, %arg5: memref<128x128xf32, #tpu.memory_space<vmem>>, %arg6: memref<1x128xf32, #tpu.memory_space<vmem>>, %arg7: memref<32x32xf32, #tpu.memory_space<vmem>>, %arg8: memref<32x128xf32, #tpu.memory_space<vmem>>, %arg9: memref<16x32x128xf32, #tpu.memory_space<vmem>>) attributes {dimension_semantics = [], scalar_prefetch = 0 : i64, scratch_operands = 1 : i64, tpu.core_type = #tpu.core_type<tc>} {
    %c0 = arith.constant 0 : index
    %c0_0 = arith.constant 0 : index
    %0 = vector.load %arg7[%c0, %c0_0] : memref<32x32xf32, #tpu.memory_space<vmem>>, vector<32x32xf32>
    %c0_1 = arith.constant 0 : index
    %c0_2 = arith.constant 0 : index
    %1 = vector.load %arg2[%c0_1, %c0_2] : memref<32x128xf32, #tpu.memory_space<vmem>>, vector<32x128xf32>
    %c0_3 = arith.constant 0 : index
    %c0_4 = arith.constant 0 : index
    %2 = vector.load %arg3[%c0_3, %c0_4] : memref<128x128xf32, #tpu.memory_space<vmem>>, vector<128x128xf32>
    %cst = arith.constant dense<0.000000e+00> : vector<32x128xf32>
    %3 = tpu.matmul %1, %2, %cst {dimension_numbers = #tpu.dot_dimension_numbers<[1], [0], [0], [1], [0, 0, 1, 1], [], []>} : vector<32x128xf32>, vector<128x128xf32>, vector<32x128xf32> -> vector<32x128xf32>
    %c0_5 = arith.constant 0 : index
    %c0_6 = arith.constant 0 : index
    %4 = vector.load %arg4[%c0_5, %c0_6] : memref<1x128xf32, #tpu.memory_space<vmem>>, vector<1x128xf32>
    %5 = vector.broadcast %4 : vector<1x128xf32> to vector<32x128xf32>
    %6 = arith.addf %3, %5 : vector<32x128xf32>
    %cst_7 = arith.constant 0.000000e+00 : f32
    %7 = vector.broadcast %cst_7 : f32 to vector<32x128xf32>
    %8 = arith.maximumf %6, %7 : vector<32x128xf32>
    %c15 = arith.constant 15 : index
    %9 = memref.load %arg0[%c15] : memref<16xf32, #tpu.memory_space<smem>>
    %10 = vector.broadcast %9 : f32 to vector<32x128xf32>
    %11 = arith.mulf %10, %8 : vector<32x128xf32>
    %c0_8 = arith.constant 0 : index
    %c0_9 = arith.constant 0 : index
    %c0_10 = arith.constant 0 : index
    %12 = vector.load %arg9[%c0_8, %c0_9, %c0_10] : memref<16x32x128xf32, #tpu.memory_space<vmem>>, vector<1x32x128xf32>
    %13 = vector.shape_cast %12 : vector<1x32x128xf32> to vector<32x128xf32>
    %14 = vector.shape_cast %11 : vector<32x128xf32> to vector<1x32x128xf32>
    tpu.vector_store %arg9[%c0_8, %c0_9, %c0_10], %14 {strides = array<i32>} : memref<16x32x128xf32, #tpu.memory_space<vmem>>, vector<1x32x128xf32>,
    %cst_11 = arith.constant 2.000000e+00 : f32
    %15 = vector.broadcast %cst_11 : f32 to vector<32x128xf32>
    %16 = arith.mulf %15, %8 : vector<32x128xf32>
    %cst_12 = arith.constant dense<0.000000e+00> : vector<32x128xf32>
    %17 = tpu.matmul %0, %8, %cst_12 {dimension_numbers = #tpu.dot_dimension_numbers<[1], [0], [0], [1], [0, 0, 1, 1], [], []>} : vector<32x32xf32>, vector<32x128xf32>, vector<32x128xf32> -> vector<32x128xf32>
    %18 = arith.subf %16, %17 : vector<32x128xf32>
    %c14 = arith.constant 14 : index
    %19 = memref.load %arg0[%c14] : memref<16xf32, #tpu.memory_space<smem>>
    %20 = vector.broadcast %19 : f32 to vector<32x128xf32>
    %21 = arith.mulf %20, %18 : vector<32x128xf32>
    %c1 = arith.constant 1 : index
    %c0_13 = arith.constant 0 : index
    %c0_14 = arith.constant 0 : index
    %22 = vector.load %arg9[%c1, %c0_13, %c0_14] : memref<16x32x128xf32, #tpu.memory_space<vmem>>, vector<1x32x128xf32>
    %23 = vector.shape_cast %22 : vector<1x32x128xf32> to vector<32x128xf32>
    %24 = vector.shape_cast %21 : vector<32x128xf32> to vector<1x32x128xf32>
    tpu.vector_store %arg9[%c1, %c0_13, %c0_14], %24 {strides = array<i32>} : memref<16x32x128xf32, #tpu.memory_space<vmem>>, vector<1x32x128xf32>,
    %cst_15 = arith.constant 2.000000e+00 : f32
    %25 = vector.broadcast %cst_15 : f32 to vector<32x128xf32>
    %26 = arith.mulf %25, %18 : vector<32x128xf32>
    %cst_16 = arith.constant dense<0.000000e+00> : vector<32x128xf32>
    %27 = tpu.matmul %0, %18, %cst_16 {dimension_numbers = #tpu.dot_dimension_numbers<[1], [0], [0], [1], [0, 0, 1, 1], [], []>} : vector<32x32xf32>, vector<32x128xf32>, vector<32x128xf32> -> vector<32x128xf32>
    %28 = arith.subf %26, %27 : vector<32x128xf32>
    %c13 = arith.constant 13 : index
    %29 = memref.load %arg0[%c13] : memref<16xf32, #tpu.memory_space<smem>>
    %30 = vector.broadcast %29 : f32 to vector<32x128xf32>
    %31 = arith.mulf %30, %28 : vector<32x128xf32>
    %c2 = arith.constant 2 : index
    %c0_17 = arith.constant 0 : index
    %c0_18 = arith.constant 0 : index
    %32 = vector.load %arg9[%c2, %c0_17, %c0_18] : memref<16x32x128xf32, #tpu.memory_space<vmem>>, vector<1x32x128xf32>
    %33 = vector.shape_cast %32 : vector<1x32x128xf32> to vector<32x128xf32>
    %34 = vector.shape_cast %31 : vector<32x128xf32> to vector<1x32x128xf32>
    tpu.vector_store %arg9[%c2, %c0_17, %c0_18], %34 {strides = array<i32>} : memref<16x32x128xf32, #tpu.memory_space<vmem>>, vector<1x32x128xf32>,
    %cst_19 = arith.constant 2.000000e+00 : f32
    %35 = vector.broadcast %cst_19 : f32 to vector<32x128xf32>
    %36 = arith.mulf %35, %28 : vector<32x128xf32>
    %cst_20 = arith.constant dense<0.000000e+00> : vector<32x128xf32>
    %37 = tpu.matmul %0, %28, %cst_20 {dimension_numbers = #tpu.dot_dimension_numbers<[1], [0], [0], [1], [0, 0, 1, 1], [], []>} : vector<32x32xf32>, vector<32x128xf32>, vector<32x128xf32> -> vector<32x128xf32>
    %38 = arith.subf %36, %37 : vector<32x128xf32>
    %c12 = arith.constant 12 : index
    %39 = memref.load %arg0[%c12] : memref<16xf32, #tpu.memory_space<smem>>
    %40 = vector.broadcast %39 : f32 to vector<32x128xf32>
    %41 = arith.mulf %40, %38 : vector<32x128xf32>
    %c3 = arith.constant 3 : index
    %c0_21 = arith.constant 0 : index
    %c0_22 = arith.constant 0 : index
    %42 = vector.load %arg9[%c3, %c0_21, %c0_22] : memref<16x32x128xf32, #tpu.memory_space<vmem>>, vector<1x32x128xf32>
    %43 = vector.shape_cast %42 : vector<1x32x128xf32> to vector<32x128xf32>
    %44 = vector.shape_cast %41 : vector<32x128xf32> to vector<1x32x128xf32>
    tpu.vector_store %arg9[%c3, %c0_21, %c0_22], %44 {strides = array<i32>} : memref<16x32x128xf32, #tpu.memory_space<vmem>>, vector<1x32x128xf32>,
    %cst_23 = arith.constant 2.000000e+00 : f32
    %45 = vector.broadcast %cst_23 : f32 to vector<32x128xf32>
    %46 = arith.mulf %45, %38 : vector<32x128xf32>
    %cst_24 = arith.constant dense<0.000000e+00> : vector<32x128xf32>
    %47 = tpu.matmul %0, %38, %cst_24 {dimension_numbers = #tpu.dot_dimension_numbers<[1], [0], [0], [1], [0, 0, 1, 1], [], []>} : vector<32x32xf32>, vector<32x128xf32>, vector<32x128xf32> -> vector<32x128xf32>
    %48 = arith.subf %46, %47 : vector<32x128xf32>
    %c11 = arith.constant 11 : index
    %49 = memref.load %arg0[%c11] : memref<16xf32, #tpu.memory_space<smem>>
    %50 = vector.broadcast %49 : f32 to vector<32x128xf32>
    %51 = arith.mulf %50, %48 : vector<32x128xf32>
    %c4 = arith.constant 4 : index
    %c0_25 = arith.constant 0 : index
    %c0_26 = arith.constant 0 : index
    %52 = vector.load %arg9[%c4, %c0_25, %c0_26] : memref<16x32x128xf32, #tpu.memory_space<vmem>>, vector<1x32x128xf32>
    %53 = vector.shape_cast %52 : vector<1x32x128xf32> to vector<32x128xf32>
    %54 = vector.shape_cast %51 : vector<32x128xf32> to vector<1x32x128xf32>
    tpu.vector_store %arg9[%c4, %c0_25, %c0_26], %54 {strides = array<i32>} : memref<16x32x128xf32, #tpu.memory_space<vmem>>, vector<1x32x128xf32>,
    %cst_27 = arith.constant 2.000000e+00 : f32
    %55 = vector.broadcast %cst_27 : f32 to vector<32x128xf32>
    %56 = arith.mulf %55, %48 : vector<32x128xf32>
    %cst_28 = arith.constant dense<0.000000e+00> : vector<32x128xf32>
    %57 = tpu.matmul %0, %48, %cst_28 {dimension_numbers = #tpu.dot_dimension_numbers<[1], [0], [0], [1], [0, 0, 1, 1], [], []>} : vector<32x32xf32>, vector<32x128xf32>, vector<32x128xf32> -> vector<32x128xf32>
    %58 = arith.subf %56, %57 : vector<32x128xf32>
    %c10 = arith.constant 10 : index
    %59 = memref.load %arg0[%c10] : memref<16xf32, #tpu.memory_space<smem>>
    %60 = vector.broadcast %59 : f32 to vector<32x128xf32>
    %61 = arith.mulf %60, %58 : vector<32x128xf32>
    %c5 = arith.constant 5 : index
    %c0_29 = arith.constant 0 : index
    %c0_30 = arith.constant 0 : index
    %62 = vector.load %arg9[%c5, %c0_29, %c0_30] : memref<16x32x128xf32, #tpu.memory_space<vmem>>, vector<1x32x128xf32>
    %63 = vector.shape_cast %62 : vector<1x32x128xf32> to vector<32x128xf32>
    %64 = vector.shape_cast %61 : vector<32x128xf32> to vector<1x32x128xf32>
    tpu.vector_store %arg9[%c5, %c0_29, %c0_30], %64 {strides = array<i32>} : memref<16x32x128xf32, #tpu.memory_space<vmem>>, vector<1x32x128xf32>,
    %cst_31 = arith.constant 2.000000e+00 : f32
    %65 = vector.broadcast %cst_31 : f32 to vector<32x128xf32>
    %66 = arith.mulf %65, %58 : vector<32x128xf32>
    %cst_32 = arith.constant dense<0.000000e+00> : vector<32x128xf32>
    %67 = tpu.matmul %0, %58, %cst_32 {dimension_numbers = #tpu.dot_dimension_numbers<[1], [0], [0], [1], [0, 0, 1, 1], [], []>} : vector<32x32xf32>, vector<32x128xf32>, vector<32x128xf32> -> vector<32x128xf32>
    %68 = arith.subf %66, %67 : vector<32x128xf32>
    %c9 = arith.constant 9 : index
    %69 = memref.load %arg0[%c9] : memref<16xf32, #tpu.memory_space<smem>>
    %70 = vector.broadcast %69 : f32 to vector<32x128xf32>
    %71 = arith.mulf %70, %68 : vector<32x128xf32>
    %c6 = arith.constant 6 : index
    %c0_33 = arith.constant 0 : index
    %c0_34 = arith.constant 0 : index
    %72 = vector.load %arg9[%c6, %c0_33, %c0_34] : memref<16x32x128xf32, #tpu.memory_space<vmem>>, vector<1x32x128xf32>
    %73 = vector.shape_cast %72 : vector<1x32x128xf32> to vector<32x128xf32>
    %74 = vector.shape_cast %71 : vector<32x128xf32> to vector<1x32x128xf32>
    tpu.vector_store %arg9[%c6, %c0_33, %c0_34], %74 {strides = array<i32>} : memref<16x32x128xf32, #tpu.memory_space<vmem>>, vector<1x32x128xf32>,
    %cst_35 = arith.constant 2.000000e+00 : f32
    %75 = vector.broadcast %cst_35 : f32 to vector<32x128xf32>
    %76 = arith.mulf %75, %68 : vector<32x128xf32>
    %cst_36 = arith.constant dense<0.000000e+00> : vector<32x128xf32>
    %77 = tpu.matmul %0, %68, %cst_36 {dimension_numbers = #tpu.dot_dimension_numbers<[1], [0], [0], [1], [0, 0, 1, 1], [], []>} : vector<32x32xf32>, vector<32x128xf32>, vector<32x128xf32> -> vector<32x128xf32>
    %78 = arith.subf %76, %77 : vector<32x128xf32>
    %c8 = arith.constant 8 : index
    %79 = memref.load %arg0[%c8] : memref<16xf32, #tpu.memory_space<smem>>
    %80 = vector.broadcast %79 : f32 to vector<32x128xf32>
    %81 = arith.mulf %80, %78 : vector<32x128xf32>
    %c7 = arith.constant 7 : index
    %c0_37 = arith.constant 0 : index
    %c0_38 = arith.constant 0 : index
    %82 = vector.load %arg9[%c7, %c0_37, %c0_38] : memref<16x32x128xf32, #tpu.memory_space<vmem>>, vector<1x32x128xf32>
    %83 = vector.shape_cast %82 : vector<1x32x128xf32> to vector<32x128xf32>
    %84 = vector.shape_cast %81 : vector<32x128xf32> to vector<1x32x128xf32>
    tpu.vector_store %arg9[%c7, %c0_37, %c0_38], %84 {strides = array<i32>} : memref<16x32x128xf32, #tpu.memory_space<vmem>>, vector<1x32x128xf32>,
    %cst_39 = arith.constant 2.000000e+00 : f32
    %85 = vector.broadcast %cst_39 : f32 to vector<32x128xf32>
    %86 = arith.mulf %85, %78 : vector<32x128xf32>
    %cst_40 = arith.constant dense<0.000000e+00> : vector<32x128xf32>
    %87 = tpu.matmul %0, %78, %cst_40 {dimension_numbers = #tpu.dot_dimension_numbers<[1], [0], [0], [1], [0, 0, 1, 1], [], []>} : vector<32x32xf32>, vector<32x128xf32>, vector<32x128xf32> -> vector<32x128xf32>
    %88 = arith.subf %86, %87 : vector<32x128xf32>
    %c7_41 = arith.constant 7 : index
    %89 = memref.load %arg0[%c7_41] : memref<16xf32, #tpu.memory_space<smem>>
    %90 = vector.broadcast %89 : f32 to vector<32x128xf32>
    %91 = arith.mulf %90, %88 : vector<32x128xf32>
    %c8_42 = arith.constant 8 : index
    %c0_43 = arith.constant 0 : index
    %c0_44 = arith.constant 0 : index
    %92 = vector.load %arg9[%c8_42, %c0_43, %c0_44] : memref<16x32x128xf32, #tpu.memory_space<vmem>>, vector<1x32x128xf32>
    %93 = vector.shape_cast %92 : vector<1x32x128xf32> to vector<32x128xf32>
    %94 = vector.shape_cast %91 : vector<32x128xf32> to vector<1x32x128xf32>
    tpu.vector_store %arg9[%c8_42, %c0_43, %c0_44], %94 {strides = array<i32>} : memref<16x32x128xf32, #tpu.memory_space<vmem>>, vector<1x32x128xf32>,
    %cst_45 = arith.constant 2.000000e+00 : f32
    %95 = vector.broadcast %cst_45 : f32 to vector<32x128xf32>
    %96 = arith.mulf %95, %88 : vector<32x128xf32>
    %cst_46 = arith.constant dense<0.000000e+00> : vector<32x128xf32>
    %97 = tpu.matmul %0, %88, %cst_46 {dimension_numbers = #tpu.dot_dimension_numbers<[1], [0], [0], [1], [0, 0, 1, 1], [], []>} : vector<32x32xf32>, vector<32x128xf32>, vector<32x128xf32> -> vector<32x128xf32>
    %98 = arith.subf %96, %97 : vector<32x128xf32>
    %c6_47 = arith.constant 6 : index
    %99 = memref.load %arg0[%c6_47] : memref<16xf32, #tpu.memory_space<smem>>
    %100 = vector.broadcast %99 : f32 to vector<32x128xf32>
    %101 = arith.mulf %100, %98 : vector<32x128xf32>
    %c9_48 = arith.constant 9 : index
    %c0_49 = arith.constant 0 : index
    %c0_50 = arith.constant 0 : index
    %102 = vector.load %arg9[%c9_48, %c0_49, %c0_50] : memref<16x32x128xf32, #tpu.memory_space<vmem>>, vector<1x32x128xf32>
    %103 = vector.shape_cast %102 : vector<1x32x128xf32> to vector<32x128xf32>
    %104 = vector.shape_cast %101 : vector<32x128xf32> to vector<1x32x128xf32>
    tpu.vector_store %arg9[%c9_48, %c0_49, %c0_50], %104 {strides = array<i32>} : memref<16x32x128xf32, #tpu.memory_space<vmem>>, vector<1x32x128xf32>,
    %cst_51 = arith.constant 2.000000e+00 : f32
    %105 = vector.broadcast %cst_51 : f32 to vector<32x128xf32>
    %106 = arith.mulf %105, %98 : vector<32x128xf32>
    %cst_52 = arith.constant dense<0.000000e+00> : vector<32x128xf32>
    %107 = tpu.matmul %0, %98, %cst_52 {dimension_numbers = #tpu.dot_dimension_numbers<[1], [0], [0], [1], [0, 0, 1, 1], [], []>} : vector<32x32xf32>, vector<32x128xf32>, vector<32x128xf32> -> vector<32x128xf32>
    %108 = arith.subf %106, %107 : vector<32x128xf32>
    %c5_53 = arith.constant 5 : index
    %109 = memref.load %arg0[%c5_53] : memref<16xf32, #tpu.memory_space<smem>>
    %110 = vector.broadcast %109 : f32 to vector<32x128xf32>
    %111 = arith.mulf %110, %108 : vector<32x128xf32>
    %c10_54 = arith.constant 10 : index
    %c0_55 = arith.constant 0 : index
    %c0_56 = arith.constant 0 : index
    %112 = vector.load %arg9[%c10_54, %c0_55, %c0_56] : memref<16x32x128xf32, #tpu.memory_space<vmem>>, vector<1x32x128xf32>
    %113 = vector.shape_cast %112 : vector<1x32x128xf32> to vector<32x128xf32>
    %114 = vector.shape_cast %111 : vector<32x128xf32> to vector<1x32x128xf32>
    tpu.vector_store %arg9[%c10_54, %c0_55, %c0_56], %114 {strides = array<i32>} : memref<16x32x128xf32, #tpu.memory_space<vmem>>, vector<1x32x128xf32>,
    %cst_57 = arith.constant 2.000000e+00 : f32
    %115 = vector.broadcast %cst_57 : f32 to vector<32x128xf32>
    %116 = arith.mulf %115, %108 : vector<32x128xf32>
    %cst_58 = arith.constant dense<0.000000e+00> : vector<32x128xf32>
    %117 = tpu.matmul %0, %108, %cst_58 {dimension_numbers = #tpu.dot_dimension_numbers<[1], [0], [0], [1], [0, 0, 1, 1], [], []>} : vector<32x32xf32>, vector<32x128xf32>, vector<32x128xf32> -> vector<32x128xf32>
    %118 = arith.subf %116, %117 : vector<32x128xf32>
    %c4_59 = arith.constant 4 : index
    %119 = memref.load %arg0[%c4_59] : memref<16xf32, #tpu.memory_space<smem>>
    %120 = vector.broadcast %119 : f32 to vector<32x128xf32>
    %121 = arith.mulf %120, %118 : vector<32x128xf32>
    %c11_60 = arith.constant 11 : index
    %c0_61 = arith.constant 0 : index
    %c0_62 = arith.constant 0 : index
    %122 = vector.load %arg9[%c11_60, %c0_61, %c0_62] : memref<16x32x128xf32, #tpu.memory_space<vmem>>, vector<1x32x128xf32>
    %123 = vector.shape_cast %122 : vector<1x32x128xf32> to vector<32x128xf32>
    %124 = vector.shape_cast %121 : vector<32x128xf32> to vector<1x32x128xf32>
    tpu.vector_store %arg9[%c11_60, %c0_61, %c0_62], %124 {strides = array<i32>} : memref<16x32x128xf32, #tpu.memory_space<vmem>>, vector<1x32x128xf32>,
    %cst_63 = arith.constant 2.000000e+00 : f32
    %125 = vector.broadcast %cst_63 : f32 to vector<32x128xf32>
    %126 = arith.mulf %125, %118 : vector<32x128xf32>
    %cst_64 = arith.constant dense<0.000000e+00> : vector<32x128xf32>
    %127 = tpu.matmul %0, %118, %cst_64 {dimension_numbers = #tpu.dot_dimension_numbers<[1], [0], [0], [1], [0, 0, 1, 1], [], []>} : vector<32x32xf32>, vector<32x128xf32>, vector<32x128xf32> -> vector<32x128xf32>
    %128 = arith.subf %126, %127 : vector<32x128xf32>
    %c3_65 = arith.constant 3 : index
    %129 = memref.load %arg0[%c3_65] : memref<16xf32, #tpu.memory_space<smem>>
    %130 = vector.broadcast %129 : f32 to vector<32x128xf32>
    %131 = arith.mulf %130, %128 : vector<32x128xf32>
    %c12_66 = arith.constant 12 : index
    %c0_67 = arith.constant 0 : index
    %c0_68 = arith.constant 0 : index
    %132 = vector.load %arg9[%c12_66, %c0_67, %c0_68] : memref<16x32x128xf32, #tpu.memory_space<vmem>>, vector<1x32x128xf32>
    %133 = vector.shape_cast %132 : vector<1x32x128xf32> to vector<32x128xf32>
    %134 = vector.shape_cast %131 : vector<32x128xf32> to vector<1x32x128xf32>
    tpu.vector_store %arg9[%c12_66, %c0_67, %c0_68], %134 {strides = array<i32>} : memref<16x32x128xf32, #tpu.memory_space<vmem>>, vector<1x32x128xf32>,
    %cst_69 = arith.constant 2.000000e+00 : f32
    %135 = vector.broadcast %cst_69 : f32 to vector<32x128xf32>
    %136 = arith.mulf %135, %128 : vector<32x128xf32>
    %cst_70 = arith.constant dense<0.000000e+00> : vector<32x128xf32>
    %137 = tpu.matmul %0, %128, %cst_70 {dimension_numbers = #tpu.dot_dimension_numbers<[1], [0], [0], [1], [0, 0, 1, 1], [], []>} : vector<32x32xf32>, vector<32x128xf32>, vector<32x128xf32> -> vector<32x128xf32>
    %138 = arith.subf %136, %137 : vector<32x128xf32>
    %c2_71 = arith.constant 2 : index
    %139 = memref.load %arg0[%c2_71] : memref<16xf32, #tpu.memory_space<smem>>
    %140 = vector.broadcast %139 : f32 to vector<32x128xf32>
    %141 = arith.mulf %140, %138 : vector<32x128xf32>
    %c13_72 = arith.constant 13 : index
    %c0_73 = arith.constant 0 : index
    %c0_74 = arith.constant 0 : index
    %142 = vector.load %arg9[%c13_72, %c0_73, %c0_74] : memref<16x32x128xf32, #tpu.memory_space<vmem>>, vector<1x32x128xf32>
    %143 = vector.shape_cast %142 : vector<1x32x128xf32> to vector<32x128xf32>
    %144 = vector.shape_cast %141 : vector<32x128xf32> to vector<1x32x128xf32>
    tpu.vector_store %arg9[%c13_72, %c0_73, %c0_74], %144 {strides = array<i32>} : memref<16x32x128xf32, #tpu.memory_space<vmem>>, vector<1x32x128xf32>,
    %cst_75 = arith.constant 2.000000e+00 : f32
    %145 = vector.broadcast %cst_75 : f32 to vector<32x128xf32>
    %146 = arith.mulf %145, %138 : vector<32x128xf32>
    %cst_76 = arith.constant dense<0.000000e+00> : vector<32x128xf32>
    %147 = tpu.matmul %0, %138, %cst_76 {dimension_numbers = #tpu.dot_dimension_numbers<[1], [0], [0], [1], [0, 0, 1, 1], [], []>} : vector<32x32xf32>, vector<32x128xf32>, vector<32x128xf32> -> vector<32x128xf32>
    %148 = arith.subf %146, %147 : vector<32x128xf32>
    %c1_77 = arith.constant 1 : index
    %149 = memref.load %arg0[%c1_77] : memref<16xf32, #tpu.memory_space<smem>>
    %150 = vector.broadcast %149 : f32 to vector<32x128xf32>
    %151 = arith.mulf %150, %148 : vector<32x128xf32>
    %c14_78 = arith.constant 14 : index
    %c0_79 = arith.constant 0 : index
    %c0_80 = arith.constant 0 : index
    %152 = vector.load %arg9[%c14_78, %c0_79, %c0_80] : memref<16x32x128xf32, #tpu.memory_space<vmem>>, vector<1x32x128xf32>
    %153 = vector.shape_cast %152 : vector<1x32x128xf32> to vector<32x128xf32>
    %154 = vector.shape_cast %151 : vector<32x128xf32> to vector<1x32x128xf32>
    tpu.vector_store %arg9[%c14_78, %c0_79, %c0_80], %154 {strides = array<i32>} : memref<16x32x128xf32, #tpu.memory_space<vmem>>, vector<1x32x128xf32>,
    %cst_81 = arith.constant 2.000000e+00 : f32
    %155 = vector.broadcast %cst_81 : f32 to vector<32x128xf32>
    %156 = arith.mulf %155, %148 : vector<32x128xf32>
    %cst_82 = arith.constant dense<0.000000e+00> : vector<32x128xf32>
    %157 = tpu.matmul %0, %148, %cst_82 {dimension_numbers = #tpu.dot_dimension_numbers<[1], [0], [0], [1], [0, 0, 1, 1], [], []>} : vector<32x32xf32>, vector<32x128xf32>, vector<32x128xf32> -> vector<32x128xf32>
    %158 = arith.subf %156, %157 : vector<32x128xf32>
    %c0_83 = arith.constant 0 : index
    %159 = memref.load %arg0[%c0_83] : memref<16xf32, #tpu.memory_space<smem>>
    %160 = vector.broadcast %159 : f32 to vector<32x128xf32>
    %161 = arith.mulf %160, %158 : vector<32x128xf32>
    %c15_84 = arith.constant 15 : index
    %c0_85 = arith.constant 0 : index
    %c0_86 = arith.constant 0 : index
    %162 = vector.load %arg9[%c15_84, %c0_85, %c0_86] : memref<16x32x128xf32, #tpu.memory_space<vmem>>, vector<1x32x128xf32>
    %163 = vector.shape_cast %162 : vector<1x32x128xf32> to vector<32x128xf32>
    %164 = vector.shape_cast %161 : vector<32x128xf32> to vector<1x32x128xf32>
    tpu.vector_store %arg9[%c15_84, %c0_85, %c0_86], %164 {strides = array<i32>} : memref<16x32x128xf32, #tpu.memory_space<vmem>>, vector<1x32x128xf32>,
    %c0_87 = arith.constant 0 : index
    %c0_88 = arith.constant 0 : index
    %c0_89 = arith.constant 0 : index
    %165 = vector.load %arg9[%c0_87, %c0_88, %c0_89] : memref<16x32x128xf32, #tpu.memory_space<vmem>>, vector<1x32x128xf32>
    %166 = vector.shape_cast %165 : vector<1x32x128xf32> to vector<32x128xf32>
    %cst_90 = arith.constant dense<0.000000e+00> : vector<32x128xf32>
    %167 = tpu.matmul %0, %166, %cst_90 {dimension_numbers = #tpu.dot_dimension_numbers<[1], [0], [0], [1], [0, 0, 1, 1], [], []>} : vector<32x32xf32>, vector<32x128xf32>, vector<32x128xf32> -> vector<32x128xf32>
    %c1_91 = arith.constant 1 : index
    %c0_92 = arith.constant 0 : index
    %c0_93 = arith.constant 0 : index
    %168 = vector.load %arg9[%c1_91, %c0_92, %c0_93] : memref<16x32x128xf32, #tpu.memory_space<vmem>>, vector<1x32x128xf32>
    %169 = vector.shape_cast %168 : vector<1x32x128xf32> to vector<32x128xf32>
    %170 = arith.addf %167, %169 : vector<32x128xf32>
    %cst_94 = arith.constant dense<0.000000e+00> : vector<32x128xf32>
    %171 = tpu.matmul %0, %170, %cst_94 {dimension_numbers = #tpu.dot_dimension_numbers<[1], [0], [0], [1], [0, 0, 1, 1], [], []>} : vector<32x32xf32>, vector<32x128xf32>, vector<32x128xf32> -> vector<32x128xf32>
    %c2_95 = arith.constant 2 : index
    %c0_96 = arith.constant 0 : index
    %c0_97 = arith.constant 0 : index
    %172 = vector.load %arg9[%c2_95, %c0_96, %c0_97] : memref<16x32x128xf32, #tpu.memory_space<vmem>>, vector<1x32x128xf32>
    %173 = vector.shape_cast %172 : vector<1x32x128xf32> to vector<32x128xf32>
    %174 = arith.addf %171, %173 : vector<32x128xf32>
    %cst_98 = arith.constant dense<0.000000e+00> : vector<32x128xf32>
    %175 = tpu.matmul %0, %174, %cst_98 {dimension_numbers = #tpu.dot_dimension_numbers<[1], [0], [0], [1], [0, 0, 1, 1], [], []>} : vector<32x32xf32>, vector<32x128xf32>, vector<32x128xf32> -> vector<32x128xf32>
    %c3_99 = arith.constant 3 : index
    %c0_100 = arith.constant 0 : index
    %c0_101 = arith.constant 0 : index
    %176 = vector.load %arg9[%c3_99, %c0_100, %c0_101] : memref<16x32x128xf32, #tpu.memory_space<vmem>>, vector<1x32x128xf32>
    %177 = vector.shape_cast %176 : vector<1x32x128xf32> to vector<32x128xf32>
    %178 = arith.addf %175, %177 : vector<32x128xf32>
    %cst_102 = arith.constant dense<0.000000e+00> : vector<32x128xf32>
    %179 = tpu.matmul %0, %178, %cst_102 {dimension_numbers = #tpu.dot_dimension_numbers<[1], [0], [0], [1], [0, 0, 1, 1], [], []>} : vector<32x32xf32>, vector<32x128xf32>, vector<32x128xf32> -> vector<32x128xf32>
    %c4_103 = arith.constant 4 : index
    %c0_104 = arith.constant 0 : index
    %c0_105 = arith.constant 0 : index
    %180 = vector.load %arg9[%c4_103, %c0_104, %c0_105] : memref<16x32x128xf32, #tpu.memory_space<vmem>>, vector<1x32x128xf32>
    %181 = vector.shape_cast %180 : vector<1x32x128xf32> to vector<32x128xf32>
    %182 = arith.addf %179, %181 : vector<32x128xf32>
    %cst_106 = arith.constant dense<0.000000e+00> : vector<32x128xf32>
    %183 = tpu.matmul %0, %182, %cst_106 {dimension_numbers = #tpu.dot_dimension_numbers<[1], [0], [0], [1], [0, 0, 1, 1], [], []>} : vector<32x32xf32>, vector<32x128xf32>, vector<32x128xf32> -> vector<32x128xf32>
    %c5_107 = arith.constant 5 : index
    %c0_108 = arith.constant 0 : index
    %c0_109 = arith.constant 0 : index
    %184 = vector.load %arg9[%c5_107, %c0_108, %c0_109] : memref<16x32x128xf32, #tpu.memory_space<vmem>>, vector<1x32x128xf32>
    %185 = vector.shape_cast %184 : vector<1x32x128xf32> to vector<32x128xf32>
    %186 = arith.addf %183, %185 : vector<32x128xf32>
    %cst_110 = arith.constant dense<0.000000e+00> : vector<32x128xf32>
    %187 = tpu.matmul %0, %186, %cst_110 {dimension_numbers = #tpu.dot_dimension_numbers<[1], [0], [0], [1], [0, 0, 1, 1], [], []>} : vector<32x32xf32>, vector<32x128xf32>, vector<32x128xf32> -> vector<32x128xf32>
    %c6_111 = arith.constant 6 : index
    %c0_112 = arith.constant 0 : index
    %c0_113 = arith.constant 0 : index
    %188 = vector.load %arg9[%c6_111, %c0_112, %c0_113] : memref<16x32x128xf32, #tpu.memory_space<vmem>>, vector<1x32x128xf32>
    %189 = vector.shape_cast %188 : vector<1x32x128xf32> to vector<32x128xf32>
    %190 = arith.addf %187, %189 : vector<32x128xf32>
    %cst_114 = arith.constant dense<0.000000e+00> : vector<32x128xf32>
    %191 = tpu.matmul %0, %190, %cst_114 {dimension_numbers = #tpu.dot_dimension_numbers<[1], [0], [0], [1], [0, 0, 1, 1], [], []>} : vector<32x32xf32>, vector<32x128xf32>, vector<32x128xf32> -> vector<32x128xf32>
    %c7_115 = arith.constant 7 : index
    %c0_116 = arith.constant 0 : index
    %c0_117 = arith.constant 0 : index
    %192 = vector.load %arg9[%c7_115, %c0_116, %c0_117] : memref<16x32x128xf32, #tpu.memory_space<vmem>>, vector<1x32x128xf32>
    %193 = vector.shape_cast %192 : vector<1x32x128xf32> to vector<32x128xf32>
    %194 = arith.addf %191, %193 : vector<32x128xf32>
    %cst_118 = arith.constant dense<0.000000e+00> : vector<32x128xf32>
    %195 = tpu.matmul %0, %194, %cst_118 {dimension_numbers = #tpu.dot_dimension_numbers<[1], [0], [0], [1], [0, 0, 1, 1], [], []>} : vector<32x32xf32>, vector<32x128xf32>, vector<32x128xf32> -> vector<32x128xf32>
    %c8_119 = arith.constant 8 : index
    %c0_120 = arith.constant 0 : index
    %c0_121 = arith.constant 0 : index
    %196 = vector.load %arg9[%c8_119, %c0_120, %c0_121] : memref<16x32x128xf32, #tpu.memory_space<vmem>>, vector<1x32x128xf32>
    %197 = vector.shape_cast %196 : vector<1x32x128xf32> to vector<32x128xf32>
    %198 = arith.addf %195, %197 : vector<32x128xf32>
    %cst_122 = arith.constant dense<0.000000e+00> : vector<32x128xf32>
    %199 = tpu.matmul %0, %198, %cst_122 {dimension_numbers = #tpu.dot_dimension_numbers<[1], [0], [0], [1], [0, 0, 1, 1], [], []>} : vector<32x32xf32>, vector<32x128xf32>, vector<32x128xf32> -> vector<32x128xf32>
    %c9_123 = arith.constant 9 : index
    %c0_124 = arith.constant 0 : index
    %c0_125 = arith.constant 0 : index
    %200 = vector.load %arg9[%c9_123, %c0_124, %c0_125] : memref<16x32x128xf32, #tpu.memory_space<vmem>>, vector<1x32x128xf32>
    %201 = vector.shape_cast %200 : vector<1x32x128xf32> to vector<32x128xf32>
    %202 = arith.addf %199, %201 : vector<32x128xf32>
    %cst_126 = arith.constant dense<0.000000e+00> : vector<32x128xf32>
    %203 = tpu.matmul %0, %202, %cst_126 {dimension_numbers = #tpu.dot_dimension_numbers<[1], [0], [0], [1], [0, 0, 1, 1], [], []>} : vector<32x32xf32>, vector<32x128xf32>, vector<32x128xf32> -> vector<32x128xf32>
    %c10_127 = arith.constant 10 : index
    %c0_128 = arith.constant 0 : index
    %c0_129 = arith.constant 0 : index
    %204 = vector.load %arg9[%c10_127, %c0_128, %c0_129] : memref<16x32x128xf32, #tpu.memory_space<vmem>>, vector<1x32x128xf32>
    %205 = vector.shape_cast %204 : vector<1x32x128xf32> to vector<32x128xf32>
    %206 = arith.addf %203, %205 : vector<32x128xf32>
    %cst_130 = arith.constant dense<0.000000e+00> : vector<32x128xf32>
    %207 = tpu.matmul %0, %206, %cst_130 {dimension_numbers = #tpu.dot_dimension_numbers<[1], [0], [0], [1], [0, 0, 1, 1], [], []>} : vector<32x32xf32>, vector<32x128xf32>, vector<32x128xf32> -> vector<32x128xf32>
    %c11_131 = arith.constant 11 : index
    %c0_132 = arith.constant 0 : index
    %c0_133 = arith.constant 0 : index
    %208 = vector.load %arg9[%c11_131, %c0_132, %c0_133] : memref<16x32x128xf32, #tpu.memory_space<vmem>>, vector<1x32x128xf32>
    %209 = vector.shape_cast %208 : vector<1x32x128xf32> to vector<32x128xf32>
    %210 = arith.addf %207, %209 : vector<32x128xf32>
    %cst_134 = arith.constant dense<0.000000e+00> : vector<32x128xf32>
    %211 = tpu.matmul %0, %210, %cst_134 {dimension_numbers = #tpu.dot_dimension_numbers<[1], [0], [0], [1], [0, 0, 1, 1], [], []>} : vector<32x32xf32>, vector<32x128xf32>, vector<32x128xf32> -> vector<32x128xf32>
    %c12_135 = arith.constant 12 : index
    %c0_136 = arith.constant 0 : index
    %c0_137 = arith.constant 0 : index
    %212 = vector.load %arg9[%c12_135, %c0_136, %c0_137] : memref<16x32x128xf32, #tpu.memory_space<vmem>>, vector<1x32x128xf32>
    %213 = vector.shape_cast %212 : vector<1x32x128xf32> to vector<32x128xf32>
    %214 = arith.addf %211, %213 : vector<32x128xf32>
    %cst_138 = arith.constant dense<0.000000e+00> : vector<32x128xf32>
    %215 = tpu.matmul %0, %214, %cst_138 {dimension_numbers = #tpu.dot_dimension_numbers<[1], [0], [0], [1], [0, 0, 1, 1], [], []>} : vector<32x32xf32>, vector<32x128xf32>, vector<32x128xf32> -> vector<32x128xf32>
    %c13_139 = arith.constant 13 : index
    %c0_140 = arith.constant 0 : index
    %c0_141 = arith.constant 0 : index
    %216 = vector.load %arg9[%c13_139, %c0_140, %c0_141] : memref<16x32x128xf32, #tpu.memory_space<vmem>>, vector<1x32x128xf32>
    %217 = vector.shape_cast %216 : vector<1x32x128xf32> to vector<32x128xf32>
    %218 = arith.addf %215, %217 : vector<32x128xf32>
    %cst_142 = arith.constant dense<0.000000e+00> : vector<32x128xf32>
    %219 = tpu.matmul %0, %218, %cst_142 {dimension_numbers = #tpu.dot_dimension_numbers<[1], [0], [0], [1], [0, 0, 1, 1], [], []>} : vector<32x32xf32>, vector<32x128xf32>, vector<32x128xf32> -> vector<32x128xf32>
    %c14_143 = arith.constant 14 : index
    %c0_144 = arith.constant 0 : index
    %c0_145 = arith.constant 0 : index
    %220 = vector.load %arg9[%c14_143, %c0_144, %c0_145] : memref<16x32x128xf32, #tpu.memory_space<vmem>>, vector<1x32x128xf32>
    %221 = vector.shape_cast %220 : vector<1x32x128xf32> to vector<32x128xf32>
    %222 = arith.addf %219, %221 : vector<32x128xf32>
    %cst_146 = arith.constant dense<0.000000e+00> : vector<32x128xf32>
    %223 = tpu.matmul %0, %222, %cst_146 {dimension_numbers = #tpu.dot_dimension_numbers<[1], [0], [0], [1], [0, 0, 1, 1], [], []>} : vector<32x32xf32>, vector<32x128xf32>, vector<32x128xf32> -> vector<32x128xf32>
    %c15_147 = arith.constant 15 : index
    %c0_148 = arith.constant 0 : index
    %c0_149 = arith.constant 0 : index
    %224 = vector.load %arg9[%c15_147, %c0_148, %c0_149] : memref<16x32x128xf32, #tpu.memory_space<vmem>>, vector<1x32x128xf32>
    %225 = vector.shape_cast %224 : vector<1x32x128xf32> to vector<32x128xf32>
    %226 = arith.addf %223, %225 : vector<32x128xf32>
    %c0_150 = arith.constant 0 : index
    %c0_151 = arith.constant 0 : index
    %227 = vector.load %arg5[%c0_150, %c0_151] : memref<128x128xf32, #tpu.memory_space<vmem>>, vector<128x128xf32>
    %cst_152 = arith.constant dense<0.000000e+00> : vector<32x128xf32>
    %228 = tpu.matmul %226, %227, %cst_152 {dimension_numbers = #tpu.dot_dimension_numbers<[1], [0], [0], [1], [0, 0, 1, 1], [], []>} : vector<32x128xf32>, vector<128x128xf32>, vector<32x128xf32> -> vector<32x128xf32>
    %c0_153 = arith.constant 0 : index
    %c0_154 = arith.constant 0 : index
    %229 = vector.load %arg6[%c0_153, %c0_154] : memref<1x128xf32, #tpu.memory_space<vmem>>, vector<1x128xf32>
    %230 = vector.broadcast %229 : vector<1x128xf32> to vector<32x128xf32>
    %231 = arith.addf %228, %230 : vector<32x128xf32>
    %c15_155 = arith.constant 15 : index
    %232 = memref.load %arg1[%c15_155] : memref<16xf32, #tpu.memory_space<smem>>
    %233 = vector.broadcast %232 : f32 to vector<32x128xf32>
    %234 = arith.mulf %233, %231 : vector<32x128xf32>
    %c0_156 = arith.constant 0 : index
    %c0_157 = arith.constant 0 : index
    %c0_158 = arith.constant 0 : index
    %235 = vector.load %arg9[%c0_156, %c0_157, %c0_158] : memref<16x32x128xf32, #tpu.memory_space<vmem>>, vector<1x32x128xf32>
    %236 = vector.shape_cast %235 : vector<1x32x128xf32> to vector<32x128xf32>
    %237 = vector.shape_cast %234 : vector<32x128xf32> to vector<1x32x128xf32>
    tpu.vector_store %arg9[%c0_156, %c0_157, %c0_158], %237 {strides = array<i32>} : memref<16x32x128xf32, #tpu.memory_space<vmem>>, vector<1x32x128xf32>,
    %cst_159 = arith.constant 2.000000e+00 : f32
    %238 = vector.broadcast %cst_159 : f32 to vector<32x128xf32>
    %239 = arith.mulf %238, %231 : vector<32x128xf32>
    %cst_160 = arith.constant dense<0.000000e+00> : vector<32x128xf32>
    %240 = tpu.matmul %0, %231, %cst_160 {dimension_numbers = #tpu.dot_dimension_numbers<[1], [0], [0], [1], [0, 0, 1, 1], [], []>} : vector<32x32xf32>, vector<32x128xf32>, vector<32x128xf32> -> vector<32x128xf32>
    %241 = arith.subf %239, %240 : vector<32x128xf32>
    %c14_161 = arith.constant 14 : index
    %242 = memref.load %arg1[%c14_161] : memref<16xf32, #tpu.memory_space<smem>>
    %243 = vector.broadcast %242 : f32 to vector<32x128xf32>
    %244 = arith.mulf %243, %241 : vector<32x128xf32>
    %c1_162 = arith.constant 1 : index
    %c0_163 = arith.constant 0 : index
    %c0_164 = arith.constant 0 : index
    %245 = vector.load %arg9[%c1_162, %c0_163, %c0_164] : memref<16x32x128xf32, #tpu.memory_space<vmem>>, vector<1x32x128xf32>
    %246 = vector.shape_cast %245 : vector<1x32x128xf32> to vector<32x128xf32>
    %247 = vector.shape_cast %244 : vector<32x128xf32> to vector<1x32x128xf32>
    tpu.vector_store %arg9[%c1_162, %c0_163, %c0_164], %247 {strides = array<i32>} : memref<16x32x128xf32, #tpu.memory_space<vmem>>, vector<1x32x128xf32>,
    %cst_165 = arith.constant 2.000000e+00 : f32
    %248 = vector.broadcast %cst_165 : f32 to vector<32x128xf32>
    %249 = arith.mulf %248, %241 : vector<32x128xf32>
    %cst_166 = arith.constant dense<0.000000e+00> : vector<32x128xf32>
    %250 = tpu.matmul %0, %241, %cst_166 {dimension_numbers = #tpu.dot_dimension_numbers<[1], [0], [0], [1], [0, 0, 1, 1], [], []>} : vector<32x32xf32>, vector<32x128xf32>, vector<32x128xf32> -> vector<32x128xf32>
    %251 = arith.subf %249, %250 : vector<32x128xf32>
    %c13_167 = arith.constant 13 : index
    %252 = memref.load %arg1[%c13_167] : memref<16xf32, #tpu.memory_space<smem>>
    %253 = vector.broadcast %252 : f32 to vector<32x128xf32>
    %254 = arith.mulf %253, %251 : vector<32x128xf32>
    %c2_168 = arith.constant 2 : index
    %c0_169 = arith.constant 0 : index
    %c0_170 = arith.constant 0 : index
    %255 = vector.load %arg9[%c2_168, %c0_169, %c0_170] : memref<16x32x128xf32, #tpu.memory_space<vmem>>, vector<1x32x128xf32>
    %256 = vector.shape_cast %255 : vector<1x32x128xf32> to vector<32x128xf32>
    %257 = vector.shape_cast %254 : vector<32x128xf32> to vector<1x32x128xf32>
    tpu.vector_store %arg9[%c2_168, %c0_169, %c0_170], %257 {strides = array<i32>} : memref<16x32x128xf32, #tpu.memory_space<vmem>>, vector<1x32x128xf32>,
    %cst_171 = arith.constant 2.000000e+00 : f32
    %258 = vector.broadcast %cst_171 : f32 to vector<32x128xf32>
    %259 = arith.mulf %258, %251 : vector<32x128xf32>
    %cst_172 = arith.constant dense<0.000000e+00> : vector<32x128xf32>
    %260 = tpu.matmul %0, %251, %cst_172 {dimension_numbers = #tpu.dot_dimension_numbers<[1], [0], [0], [1], [0, 0, 1, 1], [], []>} : vector<32x32xf32>, vector<32x128xf32>, vector<32x128xf32> -> vector<32x128xf32>
    %261 = arith.subf %259, %260 : vector<32x128xf32>
    %c12_173 = arith.constant 12 : index
    %262 = memref.load %arg1[%c12_173] : memref<16xf32, #tpu.memory_space<smem>>
    %263 = vector.broadcast %262 : f32 to vector<32x128xf32>
    %264 = arith.mulf %263, %261 : vector<32x128xf32>
    %c3_174 = arith.constant 3 : index
    %c0_175 = arith.constant 0 : index
    %c0_176 = arith.constant 0 : index
    %265 = vector.load %arg9[%c3_174, %c0_175, %c0_176] : memref<16x32x128xf32, #tpu.memory_space<vmem>>, vector<1x32x128xf32>
    %266 = vector.shape_cast %265 : vector<1x32x128xf32> to vector<32x128xf32>
    %267 = vector.shape_cast %264 : vector<32x128xf32> to vector<1x32x128xf32>
    tpu.vector_store %arg9[%c3_174, %c0_175, %c0_176], %267 {strides = array<i32>} : memref<16x32x128xf32, #tpu.memory_space<vmem>>, vector<1x32x128xf32>,
    %cst_177 = arith.constant 2.000000e+00 : f32
    %268 = vector.broadcast %cst_177 : f32 to vector<32x128xf32>
    %269 = arith.mulf %268, %261 : vector<32x128xf32>
    %cst_178 = arith.constant dense<0.000000e+00> : vector<32x128xf32>
    %270 = tpu.matmul %0, %261, %cst_178 {dimension_numbers = #tpu.dot_dimension_numbers<[1], [0], [0], [1], [0, 0, 1, 1], [], []>} : vector<32x32xf32>, vector<32x128xf32>, vector<32x128xf32> -> vector<32x128xf32>
    %271 = arith.subf %269, %270 : vector<32x128xf32>
    %c11_179 = arith.constant 11 : index
    %272 = memref.load %arg1[%c11_179] : memref<16xf32, #tpu.memory_space<smem>>
    %273 = vector.broadcast %272 : f32 to vector<32x128xf32>
    %274 = arith.mulf %273, %271 : vector<32x128xf32>
    %c4_180 = arith.constant 4 : index
    %c0_181 = arith.constant 0 : index
    %c0_182 = arith.constant 0 : index
    %275 = vector.load %arg9[%c4_180, %c0_181, %c0_182] : memref<16x32x128xf32, #tpu.memory_space<vmem>>, vector<1x32x128xf32>
    %276 = vector.shape_cast %275 : vector<1x32x128xf32> to vector<32x128xf32>
    %277 = vector.shape_cast %274 : vector<32x128xf32> to vector<1x32x128xf32>
    tpu.vector_store %arg9[%c4_180, %c0_181, %c0_182], %277 {strides = array<i32>} : memref<16x32x128xf32, #tpu.memory_space<vmem>>, vector<1x32x128xf32>,
    %cst_183 = arith.constant 2.000000e+00 : f32
    %278 = vector.broadcast %cst_183 : f32 to vector<32x128xf32>
    %279 = arith.mulf %278, %271 : vector<32x128xf32>
    %cst_184 = arith.constant dense<0.000000e+00> : vector<32x128xf32>
    %280 = tpu.matmul %0, %271, %cst_184 {dimension_numbers = #tpu.dot_dimension_numbers<[1], [0], [0], [1], [0, 0, 1, 1], [], []>} : vector<32x32xf32>, vector<32x128xf32>, vector<32x128xf32> -> vector<32x128xf32>
    %281 = arith.subf %279, %280 : vector<32x128xf32>
    %c10_185 = arith.constant 10 : index
    %282 = memref.load %arg1[%c10_185] : memref<16xf32, #tpu.memory_space<smem>>
    %283 = vector.broadcast %282 : f32 to vector<32x128xf32>
    %284 = arith.mulf %283, %281 : vector<32x128xf32>
    %c5_186 = arith.constant 5 : index
    %c0_187 = arith.constant 0 : index
    %c0_188 = arith.constant 0 : index
    %285 = vector.load %arg9[%c5_186, %c0_187, %c0_188] : memref<16x32x128xf32, #tpu.memory_space<vmem>>, vector<1x32x128xf32>
    %286 = vector.shape_cast %285 : vector<1x32x128xf32> to vector<32x128xf32>
    %287 = vector.shape_cast %284 : vector<32x128xf32> to vector<1x32x128xf32>
    tpu.vector_store %arg9[%c5_186, %c0_187, %c0_188], %287 {strides = array<i32>} : memref<16x32x128xf32, #tpu.memory_space<vmem>>, vector<1x32x128xf32>,
    %cst_189 = arith.constant 2.000000e+00 : f32
    %288 = vector.broadcast %cst_189 : f32 to vector<32x128xf32>
    %289 = arith.mulf %288, %281 : vector<32x128xf32>
    %cst_190 = arith.constant dense<0.000000e+00> : vector<32x128xf32>
    %290 = tpu.matmul %0, %281, %cst_190 {dimension_numbers = #tpu.dot_dimension_numbers<[1], [0], [0], [1], [0, 0, 1, 1], [], []>} : vector<32x32xf32>, vector<32x128xf32>, vector<32x128xf32> -> vector<32x128xf32>
    %291 = arith.subf %289, %290 : vector<32x128xf32>
    %c9_191 = arith.constant 9 : index
    %292 = memref.load %arg1[%c9_191] : memref<16xf32, #tpu.memory_space<smem>>
    %293 = vector.broadcast %292 : f32 to vector<32x128xf32>
    %294 = arith.mulf %293, %291 : vector<32x128xf32>
    %c6_192 = arith.constant 6 : index
    %c0_193 = arith.constant 0 : index
    %c0_194 = arith.constant 0 : index
    %295 = vector.load %arg9[%c6_192, %c0_193, %c0_194] : memref<16x32x128xf32, #tpu.memory_space<vmem>>, vector<1x32x128xf32>
    %296 = vector.shape_cast %295 : vector<1x32x128xf32> to vector<32x128xf32>
    %297 = vector.shape_cast %294 : vector<32x128xf32> to vector<1x32x128xf32>
    tpu.vector_store %arg9[%c6_192, %c0_193, %c0_194], %297 {strides = array<i32>} : memref<16x32x128xf32, #tpu.memory_space<vmem>>, vector<1x32x128xf32>,
    %cst_195 = arith.constant 2.000000e+00 : f32
    %298 = vector.broadcast %cst_195 : f32 to vector<32x128xf32>
    %299 = arith.mulf %298, %291 : vector<32x128xf32>
    %cst_196 = arith.constant dense<0.000000e+00> : vector<32x128xf32>
    %300 = tpu.matmul %0, %291, %cst_196 {dimension_numbers = #tpu.dot_dimension_numbers<[1], [0], [0], [1], [0, 0, 1, 1], [], []>} : vector<32x32xf32>, vector<32x128xf32>, vector<32x128xf32> -> vector<32x128xf32>
    %301 = arith.subf %299, %300 : vector<32x128xf32>
    %c8_197 = arith.constant 8 : index
    %302 = memref.load %arg1[%c8_197] : memref<16xf32, #tpu.memory_space<smem>>
    %303 = vector.broadcast %302 : f32 to vector<32x128xf32>
    %304 = arith.mulf %303, %301 : vector<32x128xf32>
    %c7_198 = arith.constant 7 : index
    %c0_199 = arith.constant 0 : index
    %c0_200 = arith.constant 0 : index
    %305 = vector.load %arg9[%c7_198, %c0_199, %c0_200] : memref<16x32x128xf32, #tpu.memory_space<vmem>>, vector<1x32x128xf32>
    %306 = vector.shape_cast %305 : vector<1x32x128xf32> to vector<32x128xf32>
    %307 = vector.shape_cast %304 : vector<32x128xf32> to vector<1x32x128xf32>
    tpu.vector_store %arg9[%c7_198, %c0_199, %c0_200], %307 {strides = array<i32>} : memref<16x32x128xf32, #tpu.memory_space<vmem>>, vector<1x32x128xf32>,
    %cst_201 = arith.constant 2.000000e+00 : f32
    %308 = vector.broadcast %cst_201 : f32 to vector<32x128xf32>
    %309 = arith.mulf %308, %301 : vector<32x128xf32>
    %cst_202 = arith.constant dense<0.000000e+00> : vector<32x128xf32>
    %310 = tpu.matmul %0, %301, %cst_202 {dimension_numbers = #tpu.dot_dimension_numbers<[1], [0], [0], [1], [0, 0, 1, 1], [], []>} : vector<32x32xf32>, vector<32x128xf32>, vector<32x128xf32> -> vector<32x128xf32>
    %311 = arith.subf %309, %310 : vector<32x128xf32>
    %c7_203 = arith.constant 7 : index
    %312 = memref.load %arg1[%c7_203] : memref<16xf32, #tpu.memory_space<smem>>
    %313 = vector.broadcast %312 : f32 to vector<32x128xf32>
    %314 = arith.mulf %313, %311 : vector<32x128xf32>
    %c8_204 = arith.constant 8 : index
    %c0_205 = arith.constant 0 : index
    %c0_206 = arith.constant 0 : index
    %315 = vector.load %arg9[%c8_204, %c0_205, %c0_206] : memref<16x32x128xf32, #tpu.memory_space<vmem>>, vector<1x32x128xf32>
    %316 = vector.shape_cast %315 : vector<1x32x128xf32> to vector<32x128xf32>
    %317 = vector.shape_cast %314 : vector<32x128xf32> to vector<1x32x128xf32>
    tpu.vector_store %arg9[%c8_204, %c0_205, %c0_206], %317 {strides = array<i32>} : memref<16x32x128xf32, #tpu.memory_space<vmem>>, vector<1x32x128xf32>,
    %cst_207 = arith.constant 2.000000e+00 : f32
    %318 = vector.broadcast %cst_207 : f32 to vector<32x128xf32>
    %319 = arith.mulf %318, %311 : vector<32x128xf32>
    %cst_208 = arith.constant dense<0.000000e+00> : vector<32x128xf32>
    %320 = tpu.matmul %0, %311, %cst_208 {dimension_numbers = #tpu.dot_dimension_numbers<[1], [0], [0], [1], [0, 0, 1, 1], [], []>} : vector<32x32xf32>, vector<32x128xf32>, vector<32x128xf32> -> vector<32x128xf32>
    %321 = arith.subf %319, %320 : vector<32x128xf32>
    %c6_209 = arith.constant 6 : index
    %322 = memref.load %arg1[%c6_209] : memref<16xf32, #tpu.memory_space<smem>>
    %323 = vector.broadcast %322 : f32 to vector<32x128xf32>
    %324 = arith.mulf %323, %321 : vector<32x128xf32>
    %c9_210 = arith.constant 9 : index
    %c0_211 = arith.constant 0 : index
    %c0_212 = arith.constant 0 : index
    %325 = vector.load %arg9[%c9_210, %c0_211, %c0_212] : memref<16x32x128xf32, #tpu.memory_space<vmem>>, vector<1x32x128xf32>
    %326 = vector.shape_cast %325 : vector<1x32x128xf32> to vector<32x128xf32>
    %327 = vector.shape_cast %324 : vector<32x128xf32> to vector<1x32x128xf32>
    tpu.vector_store %arg9[%c9_210, %c0_211, %c0_212], %327 {strides = array<i32>} : memref<16x32x128xf32, #tpu.memory_space<vmem>>, vector<1x32x128xf32>,
    %cst_213 = arith.constant 2.000000e+00 : f32
    %328 = vector.broadcast %cst_213 : f32 to vector<32x128xf32>
    %329 = arith.mulf %328, %321 : vector<32x128xf32>
    %cst_214 = arith.constant dense<0.000000e+00> : vector<32x128xf32>
    %330 = tpu.matmul %0, %321, %cst_214 {dimension_numbers = #tpu.dot_dimension_numbers<[1], [0], [0], [1], [0, 0, 1, 1], [], []>} : vector<32x32xf32>, vector<32x128xf32>, vector<32x128xf32> -> vector<32x128xf32>
    %331 = arith.subf %329, %330 : vector<32x128xf32>
    %c5_215 = arith.constant 5 : index
    %332 = memref.load %arg1[%c5_215] : memref<16xf32, #tpu.memory_space<smem>>
    %333 = vector.broadcast %332 : f32 to vector<32x128xf32>
    %334 = arith.mulf %333, %331 : vector<32x128xf32>
    %c10_216 = arith.constant 10 : index
    %c0_217 = arith.constant 0 : index
    %c0_218 = arith.constant 0 : index
    %335 = vector.load %arg9[%c10_216, %c0_217, %c0_218] : memref<16x32x128xf32, #tpu.memory_space<vmem>>, vector<1x32x128xf32>
    %336 = vector.shape_cast %335 : vector<1x32x128xf32> to vector<32x128xf32>
    %337 = vector.shape_cast %334 : vector<32x128xf32> to vector<1x32x128xf32>
    tpu.vector_store %arg9[%c10_216, %c0_217, %c0_218], %337 {strides = array<i32>} : memref<16x32x128xf32, #tpu.memory_space<vmem>>, vector<1x32x128xf32>,
    %cst_219 = arith.constant 2.000000e+00 : f32
    %338 = vector.broadcast %cst_219 : f32 to vector<32x128xf32>
    %339 = arith.mulf %338, %331 : vector<32x128xf32>
    %cst_220 = arith.constant dense<0.000000e+00> : vector<32x128xf32>
    %340 = tpu.matmul %0, %331, %cst_220 {dimension_numbers = #tpu.dot_dimension_numbers<[1], [0], [0], [1], [0, 0, 1, 1], [], []>} : vector<32x32xf32>, vector<32x128xf32>, vector<32x128xf32> -> vector<32x128xf32>
    %341 = arith.subf %339, %340 : vector<32x128xf32>
    %c4_221 = arith.constant 4 : index
    %342 = memref.load %arg1[%c4_221] : memref<16xf32, #tpu.memory_space<smem>>
    %343 = vector.broadcast %342 : f32 to vector<32x128xf32>
    %344 = arith.mulf %343, %341 : vector<32x128xf32>
    %c11_222 = arith.constant 11 : index
    %c0_223 = arith.constant 0 : index
    %c0_224 = arith.constant 0 : index
    %345 = vector.load %arg9[%c11_222, %c0_223, %c0_224] : memref<16x32x128xf32, #tpu.memory_space<vmem>>, vector<1x32x128xf32>
    %346 = vector.shape_cast %345 : vector<1x32x128xf32> to vector<32x128xf32>
    %347 = vector.shape_cast %344 : vector<32x128xf32> to vector<1x32x128xf32>
    tpu.vector_store %arg9[%c11_222, %c0_223, %c0_224], %347 {strides = array<i32>} : memref<16x32x128xf32, #tpu.memory_space<vmem>>, vector<1x32x128xf32>,
    %cst_225 = arith.constant 2.000000e+00 : f32
    %348 = vector.broadcast %cst_225 : f32 to vector<32x128xf32>
    %349 = arith.mulf %348, %341 : vector<32x128xf32>
    %cst_226 = arith.constant dense<0.000000e+00> : vector<32x128xf32>
    %350 = tpu.matmul %0, %341, %cst_226 {dimension_numbers = #tpu.dot_dimension_numbers<[1], [0], [0], [1], [0, 0, 1, 1], [], []>} : vector<32x32xf32>, vector<32x128xf32>, vector<32x128xf32> -> vector<32x128xf32>
    %351 = arith.subf %349, %350 : vector<32x128xf32>
    %c3_227 = arith.constant 3 : index
    %352 = memref.load %arg1[%c3_227] : memref<16xf32, #tpu.memory_space<smem>>
    %353 = vector.broadcast %352 : f32 to vector<32x128xf32>
    %354 = arith.mulf %353, %351 : vector<32x128xf32>
    %c12_228 = arith.constant 12 : index
    %c0_229 = arith.constant 0 : index
    %c0_230 = arith.constant 0 : index
    %355 = vector.load %arg9[%c12_228, %c0_229, %c0_230] : memref<16x32x128xf32, #tpu.memory_space<vmem>>, vector<1x32x128xf32>
    %356 = vector.shape_cast %355 : vector<1x32x128xf32> to vector<32x128xf32>
    %357 = vector.shape_cast %354 : vector<32x128xf32> to vector<1x32x128xf32>
    tpu.vector_store %arg9[%c12_228, %c0_229, %c0_230], %357 {strides = array<i32>} : memref<16x32x128xf32, #tpu.memory_space<vmem>>, vector<1x32x128xf32>,
    %cst_231 = arith.constant 2.000000e+00 : f32
    %358 = vector.broadcast %cst_231 : f32 to vector<32x128xf32>
    %359 = arith.mulf %358, %351 : vector<32x128xf32>
    %cst_232 = arith.constant dense<0.000000e+00> : vector<32x128xf32>
    %360 = tpu.matmul %0, %351, %cst_232 {dimension_numbers = #tpu.dot_dimension_numbers<[1], [0], [0], [1], [0, 0, 1, 1], [], []>} : vector<32x32xf32>, vector<32x128xf32>, vector<32x128xf32> -> vector<32x128xf32>
    %361 = arith.subf %359, %360 : vector<32x128xf32>
    %c2_233 = arith.constant 2 : index
    %362 = memref.load %arg1[%c2_233] : memref<16xf32, #tpu.memory_space<smem>>
    %363 = vector.broadcast %362 : f32 to vector<32x128xf32>
    %364 = arith.mulf %363, %361 : vector<32x128xf32>
    %c13_234 = arith.constant 13 : index
    %c0_235 = arith.constant 0 : index
    %c0_236 = arith.constant 0 : index
    %365 = vector.load %arg9[%c13_234, %c0_235, %c0_236] : memref<16x32x128xf32, #tpu.memory_space<vmem>>, vector<1x32x128xf32>
    %366 = vector.shape_cast %365 : vector<1x32x128xf32> to vector<32x128xf32>
    %367 = vector.shape_cast %364 : vector<32x128xf32> to vector<1x32x128xf32>
    tpu.vector_store %arg9[%c13_234, %c0_235, %c0_236], %367 {strides = array<i32>} : memref<16x32x128xf32, #tpu.memory_space<vmem>>, vector<1x32x128xf32>,
    %cst_237 = arith.constant 2.000000e+00 : f32
    %368 = vector.broadcast %cst_237 : f32 to vector<32x128xf32>
    %369 = arith.mulf %368, %361 : vector<32x128xf32>
    %cst_238 = arith.constant dense<0.000000e+00> : vector<32x128xf32>
    %370 = tpu.matmul %0, %361, %cst_238 {dimension_numbers = #tpu.dot_dimension_numbers<[1], [0], [0], [1], [0, 0, 1, 1], [], []>} : vector<32x32xf32>, vector<32x128xf32>, vector<32x128xf32> -> vector<32x128xf32>
    %371 = arith.subf %369, %370 : vector<32x128xf32>
    %c1_239 = arith.constant 1 : index
    %372 = memref.load %arg1[%c1_239] : memref<16xf32, #tpu.memory_space<smem>>
    %373 = vector.broadcast %372 : f32 to vector<32x128xf32>
    %374 = arith.mulf %373, %371 : vector<32x128xf32>
    %c14_240 = arith.constant 14 : index
    %c0_241 = arith.constant 0 : index
    %c0_242 = arith.constant 0 : index
    %375 = vector.load %arg9[%c14_240, %c0_241, %c0_242] : memref<16x32x128xf32, #tpu.memory_space<vmem>>, vector<1x32x128xf32>
    %376 = vector.shape_cast %375 : vector<1x32x128xf32> to vector<32x128xf32>
    %377 = vector.shape_cast %374 : vector<32x128xf32> to vector<1x32x128xf32>
    tpu.vector_store %arg9[%c14_240, %c0_241, %c0_242], %377 {strides = array<i32>} : memref<16x32x128xf32, #tpu.memory_space<vmem>>, vector<1x32x128xf32>,
    %cst_243 = arith.constant 2.000000e+00 : f32
    %378 = vector.broadcast %cst_243 : f32 to vector<32x128xf32>
    %379 = arith.mulf %378, %371 : vector<32x128xf32>
    %cst_244 = arith.constant dense<0.000000e+00> : vector<32x128xf32>
    %380 = tpu.matmul %0, %371, %cst_244 {dimension_numbers = #tpu.dot_dimension_numbers<[1], [0], [0], [1], [0, 0, 1, 1], [], []>} : vector<32x32xf32>, vector<32x128xf32>, vector<32x128xf32> -> vector<32x128xf32>
    %381 = arith.subf %379, %380 : vector<32x128xf32>
    %c0_245 = arith.constant 0 : index
    %382 = memref.load %arg1[%c0_245] : memref<16xf32, #tpu.memory_space<smem>>
    %383 = vector.broadcast %382 : f32 to vector<32x128xf32>
    %384 = arith.mulf %383, %381 : vector<32x128xf32>
    %c15_246 = arith.constant 15 : index
    %c0_247 = arith.constant 0 : index
    %c0_248 = arith.constant 0 : index
    %385 = vector.load %arg9[%c15_246, %c0_247, %c0_248] : memref<16x32x128xf32, #tpu.memory_space<vmem>>, vector<1x32x128xf32>
    %386 = vector.shape_cast %385 : vector<1x32x128xf32> to vector<32x128xf32>
    %387 = vector.shape_cast %384 : vector<32x128xf32> to vector<1x32x128xf32>
    tpu.vector_store %arg9[%c15_246, %c0_247, %c0_248], %387 {strides = array<i32>} : memref<16x32x128xf32, #tpu.memory_space<vmem>>, vector<1x32x128xf32>,
    %c0_249 = arith.constant 0 : index
    %c0_250 = arith.constant 0 : index
    %c0_251 = arith.constant 0 : index
    %388 = vector.load %arg9[%c0_249, %c0_250, %c0_251] : memref<16x32x128xf32, #tpu.memory_space<vmem>>, vector<1x32x128xf32>
    %389 = vector.shape_cast %388 : vector<1x32x128xf32> to vector<32x128xf32>
    %cst_252 = arith.constant dense<0.000000e+00> : vector<32x128xf32>
    %390 = tpu.matmul %0, %389, %cst_252 {dimension_numbers = #tpu.dot_dimension_numbers<[1], [0], [0], [1], [0, 0, 1, 1], [], []>} : vector<32x32xf32>, vector<32x128xf32>, vector<32x128xf32> -> vector<32x128xf32>
    %c1_253 = arith.constant 1 : index
    %c0_254 = arith.constant 0 : index
    %c0_255 = arith.constant 0 : index
    %391 = vector.load %arg9[%c1_253, %c0_254, %c0_255] : memref<16x32x128xf32, #tpu.memory_space<vmem>>, vector<1x32x128xf32>
    %392 = vector.shape_cast %391 : vector<1x32x128xf32> to vector<32x128xf32>
    %393 = arith.addf %390, %392 : vector<32x128xf32>
    %cst_256 = arith.constant dense<0.000000e+00> : vector<32x128xf32>
    %394 = tpu.matmul %0, %393, %cst_256 {dimension_numbers = #tpu.dot_dimension_numbers<[1], [0], [0], [1], [0, 0, 1, 1], [], []>} : vector<32x32xf32>, vector<32x128xf32>, vector<32x128xf32> -> vector<32x128xf32>
    %c2_257 = arith.constant 2 : index
    %c0_258 = arith.constant 0 : index
    %c0_259 = arith.constant 0 : index
    %395 = vector.load %arg9[%c2_257, %c0_258, %c0_259] : memref<16x32x128xf32, #tpu.memory_space<vmem>>, vector<1x32x128xf32>
    %396 = vector.shape_cast %395 : vector<1x32x128xf32> to vector<32x128xf32>
    %397 = arith.addf %394, %396 : vector<32x128xf32>
    %cst_260 = arith.constant dense<0.000000e+00> : vector<32x128xf32>
    %398 = tpu.matmul %0, %397, %cst_260 {dimension_numbers = #tpu.dot_dimension_numbers<[1], [0], [0], [1], [0, 0, 1, 1], [], []>} : vector<32x32xf32>, vector<32x128xf32>, vector<32x128xf32> -> vector<32x128xf32>
    %c3_261 = arith.constant 3 : index
    %c0_262 = arith.constant 0 : index
    %c0_263 = arith.constant 0 : index
    %399 = vector.load %arg9[%c3_261, %c0_262, %c0_263] : memref<16x32x128xf32, #tpu.memory_space<vmem>>, vector<1x32x128xf32>
    %400 = vector.shape_cast %399 : vector<1x32x128xf32> to vector<32x128xf32>
    %401 = arith.addf %398, %400 : vector<32x128xf32>
    %cst_264 = arith.constant dense<0.000000e+00> : vector<32x128xf32>
    %402 = tpu.matmul %0, %401, %cst_264 {dimension_numbers = #tpu.dot_dimension_numbers<[1], [0], [0], [1], [0, 0, 1, 1], [], []>} : vector<32x32xf32>, vector<32x128xf32>, vector<32x128xf32> -> vector<32x128xf32>
    %c4_265 = arith.constant 4 : index
    %c0_266 = arith.constant 0 : index
    %c0_267 = arith.constant 0 : index
    %403 = vector.load %arg9[%c4_265, %c0_266, %c0_267] : memref<16x32x128xf32, #tpu.memory_space<vmem>>, vector<1x32x128xf32>
    %404 = vector.shape_cast %403 : vector<1x32x128xf32> to vector<32x128xf32>
    %405 = arith.addf %402, %404 : vector<32x128xf32>
    %cst_268 = arith.constant dense<0.000000e+00> : vector<32x128xf32>
    %406 = tpu.matmul %0, %405, %cst_268 {dimension_numbers = #tpu.dot_dimension_numbers<[1], [0], [0], [1], [0, 0, 1, 1], [], []>} : vector<32x32xf32>, vector<32x128xf32>, vector<32x128xf32> -> vector<32x128xf32>
    %c5_269 = arith.constant 5 : index
    %c0_270 = arith.constant 0 : index
    %c0_271 = arith.constant 0 : index
    %407 = vector.load %arg9[%c5_269, %c0_270, %c0_271] : memref<16x32x128xf32, #tpu.memory_space<vmem>>, vector<1x32x128xf32>
    %408 = vector.shape_cast %407 : vector<1x32x128xf32> to vector<32x128xf32>
    %409 = arith.addf %406, %408 : vector<32x128xf32>
    %cst_272 = arith.constant dense<0.000000e+00> : vector<32x128xf32>
    %410 = tpu.matmul %0, %409, %cst_272 {dimension_numbers = #tpu.dot_dimension_numbers<[1], [0], [0], [1], [0, 0, 1, 1], [], []>} : vector<32x32xf32>, vector<32x128xf32>, vector<32x128xf32> -> vector<32x128xf32>
    %c6_273 = arith.constant 6 : index
    %c0_274 = arith.constant 0 : index
    %c0_275 = arith.constant 0 : index
    %411 = vector.load %arg9[%c6_273, %c0_274, %c0_275] : memref<16x32x128xf32, #tpu.memory_space<vmem>>, vector<1x32x128xf32>
    %412 = vector.shape_cast %411 : vector<1x32x128xf32> to vector<32x128xf32>
    %413 = arith.addf %410, %412 : vector<32x128xf32>
    %cst_276 = arith.constant dense<0.000000e+00> : vector<32x128xf32>
    %414 = tpu.matmul %0, %413, %cst_276 {dimension_numbers = #tpu.dot_dimension_numbers<[1], [0], [0], [1], [0, 0, 1, 1], [], []>} : vector<32x32xf32>, vector<32x128xf32>, vector<32x128xf32> -> vector<32x128xf32>
    %c7_277 = arith.constant 7 : index
    %c0_278 = arith.constant 0 : index
    %c0_279 = arith.constant 0 : index
    %415 = vector.load %arg9[%c7_277, %c0_278, %c0_279] : memref<16x32x128xf32, #tpu.memory_space<vmem>>, vector<1x32x128xf32>
    %416 = vector.shape_cast %415 : vector<1x32x128xf32> to vector<32x128xf32>
    %417 = arith.addf %414, %416 : vector<32x128xf32>
    %cst_280 = arith.constant dense<0.000000e+00> : vector<32x128xf32>
    %418 = tpu.matmul %0, %417, %cst_280 {dimension_numbers = #tpu.dot_dimension_numbers<[1], [0], [0], [1], [0, 0, 1, 1], [], []>} : vector<32x32xf32>, vector<32x128xf32>, vector<32x128xf32> -> vector<32x128xf32>
    %c8_281 = arith.constant 8 : index
    %c0_282 = arith.constant 0 : index
    %c0_283 = arith.constant 0 : index
    %419 = vector.load %arg9[%c8_281, %c0_282, %c0_283] : memref<16x32x128xf32, #tpu.memory_space<vmem>>, vector<1x32x128xf32>
    %420 = vector.shape_cast %419 : vector<1x32x128xf32> to vector<32x128xf32>
    %421 = arith.addf %418, %420 : vector<32x128xf32>
    %cst_284 = arith.constant dense<0.000000e+00> : vector<32x128xf32>
    %422 = tpu.matmul %0, %421, %cst_284 {dimension_numbers = #tpu.dot_dimension_numbers<[1], [0], [0], [1], [0, 0, 1, 1], [], []>} : vector<32x32xf32>, vector<32x128xf32>, vector<32x128xf32> -> vector<32x128xf32>
    %c9_285 = arith.constant 9 : index
    %c0_286 = arith.constant 0 : index
    %c0_287 = arith.constant 0 : index
    %423 = vector.load %arg9[%c9_285, %c0_286, %c0_287] : memref<16x32x128xf32, #tpu.memory_space<vmem>>, vector<1x32x128xf32>
    %424 = vector.shape_cast %423 : vector<1x32x128xf32> to vector<32x128xf32>
    %425 = arith.addf %422, %424 : vector<32x128xf32>
    %cst_288 = arith.constant dense<0.000000e+00> : vector<32x128xf32>
    %426 = tpu.matmul %0, %425, %cst_288 {dimension_numbers = #tpu.dot_dimension_numbers<[1], [0], [0], [1], [0, 0, 1, 1], [], []>} : vector<32x32xf32>, vector<32x128xf32>, vector<32x128xf32> -> vector<32x128xf32>
    %c10_289 = arith.constant 10 : index
    %c0_290 = arith.constant 0 : index
    %c0_291 = arith.constant 0 : index
    %427 = vector.load %arg9[%c10_289, %c0_290, %c0_291] : memref<16x32x128xf32, #tpu.memory_space<vmem>>, vector<1x32x128xf32>
    %428 = vector.shape_cast %427 : vector<1x32x128xf32> to vector<32x128xf32>
    %429 = arith.addf %426, %428 : vector<32x128xf32>
    %cst_292 = arith.constant dense<0.000000e+00> : vector<32x128xf32>
    %430 = tpu.matmul %0, %429, %cst_292 {dimension_numbers = #tpu.dot_dimension_numbers<[1], [0], [0], [1], [0, 0, 1, 1], [], []>} : vector<32x32xf32>, vector<32x128xf32>, vector<32x128xf32> -> vector<32x128xf32>
    %c11_293 = arith.constant 11 : index
    %c0_294 = arith.constant 0 : index
    %c0_295 = arith.constant 0 : index
    %431 = vector.load %arg9[%c11_293, %c0_294, %c0_295] : memref<16x32x128xf32, #tpu.memory_space<vmem>>, vector<1x32x128xf32>
    %432 = vector.shape_cast %431 : vector<1x32x128xf32> to vector<32x128xf32>
    %433 = arith.addf %430, %432 : vector<32x128xf32>
    %cst_296 = arith.constant dense<0.000000e+00> : vector<32x128xf32>
    %434 = tpu.matmul %0, %433, %cst_296 {dimension_numbers = #tpu.dot_dimension_numbers<[1], [0], [0], [1], [0, 0, 1, 1], [], []>} : vector<32x32xf32>, vector<32x128xf32>, vector<32x128xf32> -> vector<32x128xf32>
    %c12_297 = arith.constant 12 : index
    %c0_298 = arith.constant 0 : index
    %c0_299 = arith.constant 0 : index
    %435 = vector.load %arg9[%c12_297, %c0_298, %c0_299] : memref<16x32x128xf32, #tpu.memory_space<vmem>>, vector<1x32x128xf32>
    %436 = vector.shape_cast %435 : vector<1x32x128xf32> to vector<32x128xf32>
    %437 = arith.addf %434, %436 : vector<32x128xf32>
    %cst_300 = arith.constant dense<0.000000e+00> : vector<32x128xf32>
    %438 = tpu.matmul %0, %437, %cst_300 {dimension_numbers = #tpu.dot_dimension_numbers<[1], [0], [0], [1], [0, 0, 1, 1], [], []>} : vector<32x32xf32>, vector<32x128xf32>, vector<32x128xf32> -> vector<32x128xf32>
    %c13_301 = arith.constant 13 : index
    %c0_302 = arith.constant 0 : index
    %c0_303 = arith.constant 0 : index
    %439 = vector.load %arg9[%c13_301, %c0_302, %c0_303] : memref<16x32x128xf32, #tpu.memory_space<vmem>>, vector<1x32x128xf32>
    %440 = vector.shape_cast %439 : vector<1x32x128xf32> to vector<32x128xf32>
    %441 = arith.addf %438, %440 : vector<32x128xf32>
    %cst_304 = arith.constant dense<0.000000e+00> : vector<32x128xf32>
    %442 = tpu.matmul %0, %441, %cst_304 {dimension_numbers = #tpu.dot_dimension_numbers<[1], [0], [0], [1], [0, 0, 1, 1], [], []>} : vector<32x32xf32>, vector<32x128xf32>, vector<32x128xf32> -> vector<32x128xf32>
    %c14_305 = arith.constant 14 : index
    %c0_306 = arith.constant 0 : index
    %c0_307 = arith.constant 0 : index
    %443 = vector.load %arg9[%c14_305, %c0_306, %c0_307] : memref<16x32x128xf32, #tpu.memory_space<vmem>>, vector<1x32x128xf32>
    %444 = vector.shape_cast %443 : vector<1x32x128xf32> to vector<32x128xf32>
    %445 = arith.addf %442, %444 : vector<32x128xf32>
    %cst_308 = arith.constant dense<0.000000e+00> : vector<32x128xf32>
    %446 = tpu.matmul %0, %445, %cst_308 {dimension_numbers = #tpu.dot_dimension_numbers<[1], [0], [0], [1], [0, 0, 1, 1], [], []>} : vector<32x32xf32>, vector<32x128xf32>, vector<32x128xf32> -> vector<32x128xf32>
    %c15_309 = arith.constant 15 : index
    %c0_310 = arith.constant 0 : index
    %c0_311 = arith.constant 0 : index
    %447 = vector.load %arg9[%c15_309, %c0_310, %c0_311] : memref<16x32x128xf32, #tpu.memory_space<vmem>>, vector<1x32x128xf32>
    %448 = vector.shape_cast %447 : vector<1x32x128xf32> to vector<32x128xf32>
    %449 = arith.addf %446, %448 : vector<32x128xf32>
    %c0_312 = arith.constant 0 : index
    %c0_313 = arith.constant 0 : index
    %450 = vector.load %arg8[%c0_312, %c0_313] : memref<32x128xf32, #tpu.memory_space<vmem>>, vector<32x128xf32>
    tpu.vector_store %arg8[%c0_312, %c0_313], %449 {strides = array<i32>} : memref<32x128xf32, #tpu.memory_space<vmem>>, vector<32x128xf32>,
    return
  }
}

</mosaic_0001>

<llo_original>
// kernel: tpu_custom_call.1
$region0: #{tpu_custom_call.1}
  #allocation0 [shape = 'u32[]', space=smem, size = 0x4, offset = 0x4, fixed_abs, tag = 'smem constant byte address 0x4 - core index']
  #allocation1 [shape = 'u32[144,128]{1,0:T(1,128)}', space=vmem, size = 0x12000, scoped, tag = 'internal scratch']
  #allocation2 [shape = 'f32[16,32,128]{2,1,0:T(8,128)}', space=vmem, size = 0x40000, scoped, tag = 'scratch operand']
  %s0 = inlined_call_operand.hbm [shape: f32[16], index: 0, kind: input, shape index: {}]
  %s1 = inlined_call_operand.vmem [shape: f32[16], index: 1, kind: input, shape index: {}]
  %s2 = inlined_call_operand.hbm [shape: f32[32,128], index: 2, kind: input, shape index: {}]
  %s3 = inlined_call_operand.hbm [shape: f32[128,128], index: 3, kind: input, shape index: {}]
  %s4 = inlined_call_operand.vmem [shape: f32[1,128], index: 4, kind: input, shape index: {}]
  %s5 = inlined_call_operand.hbm [shape: f32[128,128], index: 5, kind: input, shape index: {}]
  %s6 = inlined_call_operand.vmem [shape: f32[1,128], index: 6, kind: input, shape index: {}]
  %s7 = inlined_call_operand.hbm [shape: f32[32,32], index: 7, kind: input, shape index: {}]
  %s8 = inlined_call_operand.hbm [shape: f32[32,128], index: 8, kind: output, shape index: {}]
  %s9 = sld [smem:[#allocation0]]
  $region66: #{tpu_custom_call.1} parent=0
    _
  %s11 = ssub.s32 1, %s9
  %s12 = scalar_select 0, %s11, %s9
  $region1: #{tpu_custom_call.1} parent=0
    #allocation3 [shape = 'u8[512]{0}', space=smem, size = 0x200, scoped, tag = 'input window, operand 0, single buffered']
    #allocation4 [shape = 's32[1]{0}', space=sflag, size = 0x4, scoped, tag = 'scoped memory for tpu_custom_call.1']
    #allocation5 [shape = 's32[1]{0}', space=sflag, size = 0x4, scoped, tag = 'scoped memory for tpu_custom_call.1']
    #allocation6 [shape = 's32[1]{0}', space=sflag, size = 0x4, scoped, tag = 'scoped memory for tpu_custom_call.1']
    #allocation7 [shape = 's32[1]{0}', space=sflag, size = 0x4, scoped, tag = 'scoped memory for tpu_custom_call.1']
    #allocation8 [shape = 'u8[512]{0}', space=smem, size = 0x200, scoped, tag = 'input window, operand 1, single buffered']
    #allocation9 [shape = 'u8[16384]{0}', space=vmem, size = 0x4000, scoped, tag = 'input window, operand 2, single buffered']
    #allocation10 [shape = 'u8[65536]{0}', space=vmem, size = 0x10000, scoped, tag = 'input window, operand 3, single buffered']
    #allocation11 [shape = 's32[1]{0}', space=sflag, size = 0x4, scoped, tag = 'scoped memory for tpu_custom_call.1']
    #allocation12 [shape = 'u8[65536]{0}', space=vmem, size = 0x10000, scoped, tag = 'input window, operand 5, single buffered']
    #allocation13 [shape = 'u8[16384]{0}', space=vmem, size = 0x4000, scoped, tag = 'input window, operand 7, single buffered']
    #allocation14 [shape = 's32[1]{0}', space=sflag, size = 0x4, scoped, tag = 'scoped memory for tpu_custom_call.1']
    #allocation15 [shape = 'u8[16384]{0}', space=vmem, size = 0x4000, scoped, tag = 'output window, operand 0, single buffered']
    %13 = vsyncpa [#allocation6], 0
    %14 = vsyncpa [#allocation7], 0
    %15 = vsyncpa [#allocation4], 0
    %16 = vsyncpa [#allocation11], 0
    %17 = vsyncpa [#allocation14], 0
    %18 = vsyncpa [#allocation5], 0
    // Predicated region
    $region2: #{tpu_custom_call.1} parent=1 // pred_check
      _
    $region3: #{tpu_custom_call.1} parent=1 // pred_check_branch
      %20 = sbr.rel (0) target = $region5
    $region4: #{tpu_custom_call.1} parent=1 // pred_region
      %s22 = ssub.s32 16, 16
      %23 = vsyncadd [#allocation6], %s22
      %26 = dma.hbm_to_smem %s0, 16, [#allocation3], [#allocation6]
    $region5: #{tpu_custom_call.1} parent=1 // pred_fallthru
      _
    // Predicated region
    $region6: #{tpu_custom_call.1} parent=1 // pred_check
      _
    $region7: #{tpu_custom_call.1} parent=1 // pred_check_branch
      %28 = sbr.rel (0) target = $region9
    $region8: #{tpu_custom_call.1} parent=1 // pred_region
      %s30 = ssub.s32 16, 16
      %31 = vsyncadd [#allocation7], %s30
      %s33 = sshll.u32 %s1, 4
      %s34 = int_to_ptr.vmem [resolvable:$true] %s33
      %36 = dma.vmem_to_smem %s34, 16, [#allocation8], [#allocation7]
    $region9: #{tpu_custom_call.1} parent=1 // pred_fallthru
      _
    // Predicated region
    $region10: #{tpu_custom_call.1} parent=1 // pred_check
      _
    $region11: #{tpu_custom_call.1} parent=1 // pred_check_branch
      %38 = sbr.rel (0) target = $region13
    $region12: #{tpu_custom_call.1} parent=1 // pred_region
      %s40 = ssub.s32 512, 512
      %41 = vsyncadd [#allocation4], %s40
      %s42 = sshll.u32 [#allocation9], 4
      %s43 = int_to_ptr.vmem [resolvable:$true] %s42
      %48 = dma.hbm_to_vmem [thread:$0]  %s2, 512, %s43, [#allocation4], 128, 128, 8
    $region13: #{tpu_custom_call.1} parent=1 // pred_fallthru
      _
    // Predicated region
    $region14: #{tpu_custom_call.1} parent=1 // pred_check
      _
    $region15: #{tpu_custom_call.1} parent=1 // pred_check_branch
      %50 = sbr.rel (0) target = $region17
    $region16: #{tpu_custom_call.1} parent=1 // pred_region
      %s52 = ssub.s32 2048, 2048
      %53 = vsyncadd [#allocation11], %s52
      %s54 = sshll.u32 [#allocation10], 4
      %s55 = int_to_ptr.vmem [resolvable:$true] %s54
      %60 = dma.hbm_to_vmem [thread:$0]  %s3, 2048, %s55, [#allocation11], 128, 128, 8
    $region17: #{tpu_custom_call.1} parent=1 // pred_fallthru
      _
    // Predicated region
    $region18: #{tpu_custom_call.1} parent=1 // pred_check
      _
    $region19: #{tpu_custom_call.1} parent=1 // pred_check_branch
      %62 = sbr.rel (0) target = $region21
    $region20: #{tpu_custom_call.1} parent=1 // pred_region
      _
    $region21: #{tpu_custom_call.1} parent=1 // pred_fallthru
      _
    // Predicated region
    $region22: #{tpu_custom_call.1} parent=1 // pred_check
      _
    $region23: #{tpu_custom_call.1} parent=1 // pred_check_branch
      %64 = sbr.rel (0) target = $region25
    $region24: #{tpu_custom_call.1} parent=1 // pred_region
      %s66 = ssub.s32 2048, 2048
      %67 = vsyncadd [#allocation11], %s66
      %s68 = sshll.u32 [#allocation12], 4
      %s69 = int_to_ptr.vmem [resolvable:$true] %s68
      %74 = dma.hbm_to_vmem [thread:$0]  %s5, 2048, %s69, [#allocation11], 128, 128, 8
    $region25: #{tpu_custom_call.1} parent=1 // pred_fallthru
      _
    // Predicated region
    $region26: #{tpu_custom_call.1} parent=1 // pred_check
      _
    $region27: #{tpu_custom_call.1} parent=1 // pred_check_branch
      %76 = sbr.rel (0) target = $region29
    $region28: #{tpu_custom_call.1} parent=1 // pred_region
      _
    $region29: #{tpu_custom_call.1} parent=1 // pred_fallthru
      _
    // Predicated region
    $region30: #{tpu_custom_call.1} parent=1 // pred_check
      _
    $region31: #{tpu_custom_call.1} parent=1 // pred_check_branch
      %78 = sbr.rel (0) target = $region33
    $region32: #{tpu_custom_call.1} parent=1 // pred_region
      %s80 = ssub.s32 512, 512
      %81 = vsyncadd [#allocation14], %s80
      %s82 = sshll.u32 [#allocation13], 4
      %s83 = int_to_ptr.vmem [resolvable:$true] %s82
      %88 = dma.hbm_to_vmem [thread:$0]  %s7, 512, %s83, [#allocation14], 128, 128, 8
    $region33: #{tpu_custom_call.1} parent=1 // pred_fallthru
      _
    // Predicated region
    $region34: #{tpu_custom_call.1} parent=1 // pred_check
      _
    $region35: #{tpu_custom_call.1} parent=1 // pred_check_branch
      %90 = sbr.rel (0) target = $region37
    $region36: #{tpu_custom_call.1} parent=1 // pred_region
      %91 = dma.done [#allocation6], 16
    $region37: #{tpu_custom_call.1} parent=1 // pred_fallthru
      _
    // Predicated region
    $region38: #{tpu_custom_call.1} parent=1 // pred_check
      _
    $region39: #{tpu_custom_call.1} parent=1 // pred_check_branch
      %93 = sbr.rel (0) target = $region41
    $region40: #{tpu_custom_call.1} parent=1 // pred_region
      %94 = dma.done [#allocation7], 16
    $region41: #{tpu_custom_call.1} parent=1 // pred_fallthru
      _
    // Predicated region
    $region42: #{tpu_custom_call.1} parent=1 // pred_check
      _
    $region43: #{tpu_custom_call.1} parent=1 // pred_check_branch
      %96 = sbr.rel (0) target = $region45
    $region44: #{tpu_custom_call.1} parent=1 // pred_region
      %97 = dma.done [#allocation4], 512
    $region45: #{tpu_custom_call.1} parent=1 // pred_fallthru
      _
    // Predicated region
    $region46: #{tpu_custom_call.1} parent=1 // pred_check
      _
    $region47: #{tpu_custom_call.1} parent=1 // pred_check_branch
      %99 = sbr.rel (0) target = $region49
    $region48: #{tpu_custom_call.1} parent=1 // pred_region
      %100 = dma.done [#allocation11], 2048
    $region49: #{tpu_custom_call.1} parent=1 // pred_fallthru
      _
    // Predicated region
    $region50: #{tpu_custom_call.1} parent=1 // pred_check
      _
    $region51: #{tpu_custom_call.1} parent=1 // pred_check_branch
      %102 = sbr.rel (0) target = $region53
    $region52: #{tpu_custom_call.1} parent=1 // pred_region
      %103 = dma.done [#allocation11], 2048
    $region53: #{tpu_custom_call.1} parent=1 // pred_fallthru
      _
    // Predicated region
    $region54: #{tpu_custom_call.1} parent=1 // pred_check
      _
    $region55: #{tpu_custom_call.1} parent=1 // pred_check_branch
      %105 = sbr.rel (0) target = $region57
    $region56: #{tpu_custom_call.1} parent=1 // pred_region
      %106 = dma.done [#allocation14], 512
    $region57: #{tpu_custom_call.1} parent=1 // pred_fallthru
      _
    %107 = sfence
    %v108 = vld [vmem:[#allocation13] sm:$0xff]
    %v109 = vld [vmem:[#allocation13 + $0x8] sm:$0xff]
    %v110 = vld [vmem:[#allocation13 + $0x10] sm:$0xff]
    %v111 = vld [vmem:[#allocation13 + $0x18] sm:$0xff]
    %v112 = vld [vmem:[#allocation9] sm:$0xff]
    %v113 = vld [vmem:[#allocation9 + $0x8] sm:$0xff]
    %v114 = vld [vmem:[#allocation9 + $0x10] sm:$0xff]
    %v115 = vld [vmem:[#allocation9 + $0x18] sm:$0xff]
    %v116 = vld [vmem:[#allocation10] sm:$0xff]
    %v117 = vld [vmem:[#allocation10 + $0x8] sm:$0xff]
    %v118 = vld [vmem:[#allocation10 + $0x10] sm:$0xff]
    %v119 = vld [vmem:[#allocation10 + $0x18] sm:$0xff]
    %v120 = vld [vmem:[#allocation10 + $0x20] sm:$0xff]
    %v121 = vld [vmem:[#allocation10 + $0x28] sm:$0xff]
    %v122 = vld [vmem:[#allocation10 + $0x30] sm:$0xff]
    %v123 = vld [vmem:[#allocation10 + $0x38] sm:$0xff]
    %v124 = vld [vmem:[#allocation10 + $0x40] sm:$0xff]
    %v125 = vld [vmem:[#allocation10 + $0x48] sm:$0xff]
    %v126 = vld [vmem:[#allocation10 + $0x50] sm:$0xff]
    %v127 = vld [vmem:[#allocation10 + $0x58] sm:$0xff]
    %v128 = vld [vmem:[#allocation10 + $0x60] sm:$0xff]
    %v129 = vld [vmem:[#allocation10 + $0x68] sm:$0xff]
    %v130 = vld [vmem:[#allocation10 + $0x70] sm:$0xff]
    %v131 = vld [vmem:[#allocation10 + $0x78] sm:$0xff]
    %v132 = vld [vmem:[%s4] sm:$0x1]
    %v134 = vlaneseq
    %v135 = vshrl.u32 %v134, 7
    %v136 = vsub.s32 0, %v135
    %v137 = vrot.slane %v132, %v136
    %139 = vmatprep.subr.mxu0 0.0
    %140 = vmatpush1.msra.mxu0 %v116
    %141 = vmatprep.subr.mxu0 0.0
    %142 = vmatpush1.msra.mxu0 %v117
    %143 = vmatprep.subr.mxu0 0.0
    %144 = vmatpush1.msra.mxu0 %v118
    %145 = vmatprep.subr.mxu0 0.0
    %146 = vmatpush1.msra.mxu0 %v119
    %147 = vmatprep.subr.mxu0 0.0
    %148 = vmatpush1.msra.mxu0 %v120
    %149 = vmatprep.subr.mxu0 0.0
    %150 = vmatpush1.msra.mxu0 %v121
    %151 = vmatprep.subr.mxu0 0.0
    %152 = vmatpush1.msra.mxu0 %v122
    %153 = vmatprep.subr.mxu0 0.0
    %154 = vmatpush1.msra.mxu0 %v123
    %155 = vmatprep.subr.mxu0 0.0
    %156 = vmatpush1.msra.mxu0 %v124
    %157 = vmatprep.subr.mxu0 0.0
    %158 = vmatpush1.msra.mxu0 %v125
    %159 = vmatprep.subr.mxu0 0.0
    %160 = vmatpush1.msra.mxu0 %v126
    %161 = vmatprep.subr.mxu0 0.0
    %162 = vmatpush1.msra.mxu0 %v127
    %163 = vmatprep.subr.mxu0 0.0
    %164 = vmatpush1.msra.mxu0 %v128
    %165 = vmatprep.subr.mxu0 0.0
    %166 = vmatpush1.msra.mxu0 %v129
    %167 = vmatprep.subr.mxu0 0.0
    %168 = vmatpush1.msra.mxu0 %v130
    %169 = vmatprep.subr.mxu0 0.0
    %170 = vmatpush1.msra.mxu0 %v131
    %171 = vmatprep.subr.mxu0 0.0
    %172 = vmatpush1.msra.mxu0 0.0
    %173 = vmatprep.subr.mxu0 0.0
    %174 = vmatpush1.msra.mxu0 0.0
    %175 = vmatprep.subr.mxu0 0.0
    %176 = vmatpush1.msra.mxu0 0.0
    %177 = vmatprep.subr.mxu0 0.0
    %178 = vmatpush1.msra.mxu0 0.0
    %179 = vmatprep.subr.mxu0 0.0
    %180 = vmatpush1.msra.mxu0 0.0
    %181 = vmatprep.subr.mxu0 0.0
    %182 = vmatpush1.msra.mxu0 0.0
    %183 = vmatprep.subr.mxu0 0.0
    %184 = vmatpush1.msra.mxu0 0.0
    %185 = vmatprep.subr.mxu0 0.0
    %186 = vmatpush1.msra.mxu0 0.0
    %187 = vmatprep.subr.mxu0 0.0
    %188 = vmatpush1.msra.mxu0 0.0
    %189 = vmatprep.subr.mxu0 0.0
    %190 = vmatpush1.msra.mxu0 0.0
    %191 = vmatprep.subr.mxu0 0.0
    %192 = vmatpush1.msra.mxu0 0.0
    %193 = vmatprep.subr.mxu0 0.0
    %194 = vmatpush1.msra.mxu0 0.0
    %195 = vmatprep.subr.mxu0 0.0
    %196 = vmatpush1.msra.mxu0 0.0
    %197 = vmatprep.subr.mxu0 0.0
    %198 = vmatpush1.msra.mxu0 0.0
    %199 = vmatprep.subr.mxu0 0.0
    %200 = vmatpush1.msra.mxu0 0.0
    %201 = vmatprep.subr.mxu0 0.0
    %202 = vmatpush1.msra.mxu0 0.0
    %203 = vmatprep.mubr.f32.mxu0 0.0
    %204 = vmatmul.mubr.f32.gmra.mrb[0].mxu0 %v112
    %v205 = vpop.f32.mrb[0].mxu0
    %v206 = vadd.f32 %v137, %v205
    %v207 = vpop.f32.mrb[0].mxu0
    %208 = vmatprep.mubr.f32.mxu0 0.0
    %209 = vmatmul.mubr.f32.gmra.mrb[0].mxu0 %v113
    %v210 = vpop.f32.mrb[0].mxu0
    %v211 = vadd.f32 %v137, %v210
    %v212 = vpop.f32.mrb[0].mxu0
    %213 = vmatprep.mubr.f32.mxu0 0.0
    %214 = vmatmul.mubr.f32.gmra.mrb[0].mxu0 %v114
    %v215 = vpop.f32.mrb[0].mxu0
    %v216 = vadd.f32 %v137, %v215
    %v217 = vpop.f32.mrb[0].mxu0
    %218 = vmatprep.mubr.f32.mxu0 0.0
    %219 = vmatmul.mubr.f32.gmra.mrb[0].mxu0 %v115
    %v220 = vpop.f32.mrb[0].mxu0
    %v221 = vadd.f32 %v137, %v220
    %v222 = vpop.f32.mrb[0].mxu0
    %223 = vdwg.mxu0
    %v224 = vmax.f32 %v206, 0.0
    %v225 = vmax.f32 %v211, 0.0
    %v226 = vmax.f32 %v216, 0.0
    %v227 = vmax.f32 %v221, 0.0
    %s228 = sld [smem:[#allocation3 + $0xf]]
    %v229 = vstv %s228
    %v230 = vmul.f32 %v229, %v224
    %v231 = vmul.f32 %v229, %v225
    %v232 = vmul.f32 %v229, %v226
    %v233 = vmul.f32 %v229, %v227
    %234 = vst [vmem:[#allocation2] sm:$0xff] %v230
    %235 = vst [vmem:[#allocation2 + $0x8] sm:$0xff] %v231
    %236 = vst [vmem:[#allocation2 + $0x10] sm:$0xff] %v232
    %237 = vst [vmem:[#allocation2 + $0x18] sm:$0xff] %v233
    %v238 = vmul.f32 %v224, 2.0
    %v239 = vmul.f32 %v225, 2.0
    %v240 = vmul.f32 %v226, 2.0
    %v241 = vmul.f32 %v227, 2.0
    %vm242 = vcmask 261120
    %v244 = vsel %vm242, %v108, 0
    %v247 = vsel %vm242, %v109, 0
    %v250 = vsel %vm242, %v110, 0
    %v253 = vsel %vm242, %v111, 0
    %255 = vmatprep.subr.mxu0 0.0
    %256 = vmatpush1.msra.mxu0 %v224
    %257 = vmatprep.subr.mxu0 0.0
    %258 = vmatpush1.msra.mxu0 %v225
    %259 = vmatprep.subr.mxu0 0.0
    %260 = vmatpush1.msra.mxu0 %v226
    %261 = vmatprep.subr.mxu0 0.0
    %262 = vmatpush1.msra.mxu0 %v227
    %263 = vmatprep.subr.mxu0 0.0
    %264 = vmatpush1.msra.mxu0 0.0
    %265 = vmatprep.subr.mxu0 0.0
    %266 = vmatpush1.msra.mxu0 0.0
    %267 = vmatprep.subr.mxu0 0.0
    %268 = vmatpush1.msra.mxu0 0.0
    %269 = vmatprep.subr.mxu0 0.0
    %270 = vmatpush1.msra.mxu0 0.0
    %271 = vmatprep.subr.mxu0 0.0
    %272 = vmatpush1.msra.mxu0 0.0
    %273 = vmatprep.subr.mxu0 0.0
    %274 = vmatpush1.msra.mxu0 0.0
    %275 = vmatprep.subr.mxu0 0.0
    %276 = vmatpush1.msra.mxu0 0.0
    %277 = vmatprep.subr.mxu0 0.0
    %278 = vmatpush1.msra.mxu0 0.0
    %279 = vmatprep.subr.mxu0 0.0
    %280 = vmatpush1.msra.mxu0 0.0
    %281 = vmatprep.subr.mxu0 0.0
    %282 = vmatpush1.msra.mxu0 0.0
    %283 = vmatprep.subr.mxu0 0.0
    %284 = vmatpush1.msra.mxu0 0.0
    %285 = vmatprep.subr.mxu0 0.0
    %286 = vmatpush1.msra.mxu0 0.0
    %287 = vmatprep.subr.mxu0 0.0
    %288 = vmatpush1.msra.mxu0 0.0
    %289 = vmatprep.subr.mxu0 0.0
    %290 = vmatpush1.msra.mxu0 0.0
    %291 = vmatprep.subr.mxu0 0.0
    %292 = vmatpush1.msra.mxu0 0.0
    %293 = vmatprep.subr.mxu0 0.0
    %294 = vmatpush1.msra.mxu0 0.0
    %295 = vmatprep.subr.mxu0 0.0
    %296 = vmatpush1.msra.mxu0 0.0
    %297 = vmatprep.subr.mxu0 0.0
    %298 = vmatpush1.msra.mxu0 0.0
    %299 = vmatprep.subr.mxu0 0.0
    %300 = vmatpush1.msra.mxu0 0.0
    %301 = vmatprep.subr.mxu0 0.0
    %302 = vmatpush1.msra.mxu0 0.0
    %303 = vmatprep.subr.mxu0 0.0
    %304 = vmatpush1.msra.mxu0 0.0
    %305 = vmatprep.subr.mxu0 0.0
    %306 = vmatpush1.msra.mxu0 0.0
    %307 = vmatprep.subr.mxu0 0.0
    %308 = vmatpush1.msra.mxu0 0.0
    %309 = vmatprep.subr.mxu0 0.0
    %310 = vmatpush1.msra.mxu0 0.0
    %311 = vmatprep.subr.mxu0 0.0
    %312 = vmatpush1.msra.mxu0 0.0
    %313 = vmatprep.subr.mxu0 0.0
    %314 = vmatpush1.msra.mxu0 0.0
    %315 = vmatprep.subr.mxu0 0.0
    %316 = vmatpush1.msra.mxu0 0.0
    %317 = vmatprep.subr.mxu0 0.0
    %318 = vmatpush1.msra.mxu0 0.0
    %319 = vmatprep.mubr.f32.mxu0 0.0
    %320 = vmatmul.mubr.f32.gmra.mrb[0].mxu0 %v244
    %v321 = vpop.f32.mrb[0].mxu0
    %v322 = vadd.f32 0.0, %v321
    %v323 = vpop.f32.mrb[0].mxu0
    %324 = vmatprep.mubr.f32.mxu0 0.0
    %325 = vmatmul.mubr.f32.gmra.mrb[0].mxu0 %v247
    %v326 = vpop.f32.mrb[0].mxu0
    %v327 = vadd.f32 0.0, %v326
    %v328 = vpop.f32.mrb[0].mxu0
    %329 = vmatprep.mubr.f32.mxu0 0.0
    %330 = vmatmul.mubr.f32.gmra.mrb[0].mxu0 %v250
    %v331 = vpop.f32.mrb[0].mxu0
    %v332 = vadd.f32 0.0, %v331
    %v333 = vpop.f32.mrb[0].mxu0
    %334 = vmatprep.mubr.f32.mxu0 0.0
    %335 = vmatmul.mubr.f32.gmra.mrb[0].mxu0 %v253
    %v336 = vpop.f32.mrb[0].mxu0
    %v337 = vadd.f32 0.0, %v336
    %v338 = vpop.f32.mrb[0].mxu0
    %339 = vdwg.mxu0
    %v340 = vsub.f32 %v238, %v322
    %v341 = vsub.f32 %v239, %v327
    %v342 = vsub.f32 %v240, %v332
    %v343 = vsub.f32 %v241, %v337
    %s344 = sld [smem:[#allocation3 + $0xe]]
    %v345 = vstv %s344
    %v346 = vmul.f32 %v345, %v340
    %v347 = vmul.f32 %v345, %v341
    %v348 = vmul.f32 %v345, %v342
    %v349 = vmul.f32 %v345, %v343
    %s350 = scalar_lea.vmem [#allocation2], 32
    %351 = vst [vmem:[%s350] sm:$0xff] %v346
    %352 = vst [vmem:[%s350 + $0x8] sm:$0xff] %v347
    %353 = vst [vmem:[%s350 + $0x10] sm:$0xff] %v348
    %354 = vst [vmem:[%s350 + $0x18] sm:$0xff] %v349
    %v355 = vmul.f32 %v340, 2.0
    %v356 = vmul.f32 %v341, 2.0
    %v357 = vmul.f32 %v342, 2.0
    %v358 = vmul.f32 %v343, 2.0
    %359 = vmatprep.subr.mxu0 0.0
    %360 = vmatpush1.msra.mxu0 %v340
    %361 = vmatprep.subr.mxu0 0.0
    %362 = vmatpush1.msra.mxu0 %v341
    %363 = vmatprep.subr.mxu0 0.0
    %364 = vmatpush1.msra.mxu0 %v342
    %365 = vmatprep.subr.mxu0 0.0
    %366 = vmatpush1.msra.mxu0 %v343
    %367 = vmatprep.subr.mxu0 0.0
    %368 = vmatpush1.msra.mxu0 0.0
    %369 = vmatprep.subr.mxu0 0.0
    %370 = vmatpush1.msra.mxu0 0.0
    %371 = vmatprep.subr.mxu0 0.0
    %372 = vmatpush1.msra.mxu0 0.0
    %373 = vmatprep.subr.mxu0 0.0
    %374 = vmatpush1.msra.mxu0 0.0
    %375 = vmatprep.subr.mxu0 0.0
    %376 = vmatpush1.msra.mxu0 0.0
    %377 = vmatprep.subr.mxu0 0.0
    %378 = vmatpush1.msra.mxu0 0.0
    %379 = vmatprep.subr.mxu0 0.0
    %380 = vmatpush1.msra.mxu0 0.0
    %381 = vmatprep.subr.mxu0 0.0
    %382 = vmatpush1.msra.mxu0 0.0
    %383 = vmatprep.subr.mxu0 0.0
    %384 = vmatpush1.msra.mxu0 0.0
    %385 = vmatprep.subr.mxu0 0.0
    %386 = vmatpush1.msra.mxu0 0.0
    %387 = vmatprep.subr.mxu0 0.0
    %388 = vmatpush1.msra.mxu0 0.0
    %389 = vmatprep.subr.mxu0 0.0
    %390 = vmatpush1.msra.mxu0 0.0
    %391 = vmatprep.subr.mxu0 0.0
    %392 = vmatpush1.msra.mxu0 0.0
    %393 = vmatprep.subr.mxu0 0.0
    %394 = vmatpush1.msra.mxu0 0.0
    %395 = vmatprep.subr.mxu0 0.0
    %396 = vmatpush1.msra.mxu0 0.0
    %397 = vmatprep.subr.mxu0 0.0
    %398 = vmatpush1.msra.mxu0 0.0
    %399 = vmatprep.subr.mxu0 0.0
    %400 = vmatpush1.msra.mxu0 0.0
    %401 = vmatprep.subr.mxu0 0.0
    %402 = vmatpush1.msra.mxu0 0.0
    %403 = vmatprep.subr.mxu0 0.0
    %404 = vmatpush1.msra.mxu0 0.0
    %405 = vmatprep.subr.mxu0 0.0
    %406 = vmatpush1.msra.mxu0 0.0
    %407 = vmatprep.subr.mxu0 0.0
    %408 = vmatpush1.msra.mxu0 0.0
    %409 = vmatprep.subr.mxu0 0.0
    %410 = vmatpush1.msra.mxu0 0.0
    %411 = vmatprep.subr.mxu0 0.0
    %412 = vmatpush1.msra.mxu0 0.0
    %413 = vmatprep.subr.mxu0 0.0
    %414 = vmatpush1.msra.mxu0 0.0
    %415 = vmatprep.subr.mxu0 0.0
    %416 = vmatpush1.msra.mxu0 0.0
    %417 = vmatprep.subr.mxu0 0.0
    %418 = vmatpush1.msra.mxu0 0.0
    %419 = vmatprep.subr.mxu0 0.0
    %420 = vmatpush1.msra.mxu0 0.0
    %421 = vmatprep.subr.mxu0 0.0
    %422 = vmatpush1.msra.mxu0 0.0
    %423 = vmatprep.mubr.f32.mxu0 0.0
    %424 = vmatmul.mubr.f32.gmra.mrb[0].mxu0 %v244
    %v425 = vpop.f32.mrb[0].mxu0
    %v426 = vadd.f32 0.0, %v425
    %v427 = vpop.f32.mrb[0].mxu0
    %428 = vmatprep.mubr.f32.mxu0 0.0
    %429 = vmatmul.mubr.f32.gmra.mrb[0].mxu0 %v247
    %v430 = vpop.f32.mrb[0].mxu0
    %v431 = vadd.f32 0.0, %v430
    %v432 = vpop.f32.mrb[0].mxu0
    %433 = vmatprep.mubr.f32.mxu0 0.0
    %434 = vmatmul.mubr.f32.gmra.mrb[0].mxu0 %v250
    %v435 = vpop.f32.mrb[0].mxu0
    %v436 = vadd.f32 0.0, %v435
    %v437 = vpop.f32.mrb[0].mxu0
    %438 = vmatprep.mubr.f32.mxu0 0.0
    %439 = vmatmul.mubr.f32.gmra.mrb[0].mxu0 %v253
    %v440 = vpop.f32.mrb[0].mxu0
    %v441 = vadd.f32 0.0, %v440
    %v442 = vpop.f32.mrb[0].mxu0
    %443 = vdwg.mxu0
    %v444 = vsub.f32 %v355, %v426
    %v445 = vsub.f32 %v356, %v431
    %v446 = vsub.f32 %v357, %v436
    %v447 = vsub.f32 %v358, %v441
    %s448 = sld [smem:[#allocation3 + $0xd]]
    %v449 = vstv %s448
    %v450 = vmul.f32 %v449, %v444
    %v451 = vmul.f32 %v449, %v445
    %v452 = vmul.f32 %v449, %v446
    %v453 = vmul.f32 %v449, %v447
    %s454 = scalar_lea.vmem [#allocation2], 64
    %455 = vst [vmem:[%s454] sm:$0xff] %v450
    %456 = vst [vmem:[%s454 + $0x8] sm:$0xff] %v451
    %457 = vst [vmem:[%s454 + $0x10] sm:$0xff] %v452
    %458 = vst [vmem:[%s454 + $0x18] sm:$0xff] %v453
    %v459 = vmul.f32 %v444, 2.0
    %v460 = vmul.f32 %v445, 2.0
    %v461 = vmul.f32 %v446, 2.0
    %v462 = vmul.f32 %v447, 2.0
    %463 = vmatprep.subr.mxu0 0.0
    %464 = vmatpush1.msra.mxu0 %v444
    %465 = vmatprep.subr.mxu0 0.0
    %466 = vmatpush1.msra.mxu0 %v445
    %467 = vmatprep.subr.mxu0 0.0
    %468 = vmatpush1.msra.mxu0 %v446
    %469 = vmatprep.subr.mxu0 0.0
    %470 = vmatpush1.msra.mxu0 %v447
    %471 = vmatprep.subr.mxu0 0.0
    %472 = vmatpush1.msra.mxu0 0.0
    %473 = vmatprep.subr.mxu0 0.0
    %474 = vmatpush1.msra.mxu0 0.0
    %475 = vmatprep.subr.mxu0 0.0
    %476 = vmatpush1.msra.mxu0 0.0
    %477 = vmatprep.subr.mxu0 0.0
    %478 = vmatpush1.msra.mxu0 0.0
    %479 = vmatprep.subr.mxu0 0.0
    %480 = vmatpush1.msra.mxu0 0.0
    %481 = vmatprep.subr.mxu0 0.0
    %482 = vmatpush1.msra.mxu0 0.0
    %483 = vmatprep.subr.mxu0 0.0
    %484 = vmatpush1.msra.mxu0 0.0
    %485 = vmatprep.subr.mxu0 0.0
    %486 = vmatpush1.msra.mxu0 0.0
    %487 = vmatprep.subr.mxu0 0.0
    %488 = vmatpush1.msra.mxu0 0.0
    %489 = vmatprep.subr.mxu0 0.0
    %490 = vmatpush1.msra.mxu0 0.0
    %491 = vmatprep.subr.mxu0 0.0
    %492 = vmatpush1.msra.mxu0 0.0
    %493 = vmatprep.subr.mxu0 0.0
    %494 = vmatpush1.msra.mxu0 0.0
    %495 = vmatprep.subr.mxu0 0.0
    %496 = vmatpush1.msra.mxu0 0.0
    %497 = vmatprep.subr.mxu0 0.0
    %498 = vmatpush1.msra.mxu0 0.0
    %499 = vmatprep.subr.mxu0 0.0
    %500 = vmatpush1.msra.mxu0 0.0
    %501 = vmatprep.subr.mxu0 0.0
    %502 = vmatpush1.msra.mxu0 0.0
    %503 = vmatprep.subr.mxu0 0.0
    %504 = vmatpush1.msra.mxu0 0.0
    %505 = vmatprep.subr.mxu0 0.0
    %506 = vmatpush1.msra.mxu0 0.0
    %507 = vmatprep.subr.mxu0 0.0
    %508 = vmatpush1.msra.mxu0 0.0
    %509 = vmatprep.subr.mxu0 0.0
    %510 = vmatpush1.msra.mxu0 0.0
    %511 = vmatprep.subr.mxu0 0.0
    %512 = vmatpush1.msra.mxu0 0.0
    %513 = vmatprep.subr.mxu0 0.0
    %514 = vmatpush1.msra.mxu0 0.0
    %515 = vmatprep.subr.mxu0 0.0
    %516 = vmatpush1.msra.mxu0 0.0
    %517 = vmatprep.subr.mxu0 0.0
    %518 = vmatpush1.msra.mxu0 0.0
    %519 = vmatprep.subr.mxu0 0.0
    %520 = vmatpush1.msra.mxu0 0.0
    %521 = vmatprep.subr.mxu0 0.0
    %522 = vmatpush1.msra.mxu0 0.0
    %523 = vmatprep.subr.mxu0 0.0
    %524 = vmatpush1.msra.mxu0 0.0
    %525 = vmatprep.subr.mxu0 0.0
    %526 = vmatpush1.msra.mxu0 0.0
    %527 = vmatprep.mubr.f32.mxu0 0.0
    %528 = vmatmul.mubr.f32.gmra.mrb[0].mxu0 %v244
    %v529 = vpop.f32.mrb[0].mxu0
    %v530 = vadd.f32 0.0, %v529
    %v531 = vpop.f32.mrb[0].mxu0
    %532 = vmatprep.mubr.f32.mxu0 0.0
    %533 = vmatmul.mubr.f32.gmra.mrb[0].mxu0 %v247
    %v534 = vpop.f32.mrb[0].mxu0
    %v535 = vadd.f32 0.0, %v534
    %v536 = vpop.f32.mrb[0].mxu0
    %537 = vmatprep.mubr.f32.mxu0 0.0
    %538 = vmatmul.mubr.f32.gmra.mrb[0].mxu0 %v250
    %v539 = vpop.f32.mrb[0].mxu0
    %v540 = vadd.f32 0.0, %v539
    %v541 = vpop.f32.mrb[0].mxu0
    %542 = vmatprep.mubr.f32.mxu0 0.0
    %543 = vmatmul.mubr.f32.gmra.mrb[0].mxu0 %v253
    %v544 = vpop.f32.mrb[0].mxu0
    %v545 = vadd.f32 0.0, %v544
    %v546 = vpop.f32.mrb[0].mxu0
    %547 = vdwg.mxu0
    %v548 = vsub.f32 %v459, %v530
    %v549 = vsub.f32 %v460, %v535
    %v550 = vsub.f32 %v461, %v540
    %v551 = vsub.f32 %v462, %v545
    %s552 = sld [smem:[#allocation3 + $0xc]]
    %v553 = vstv %s552
    %v554 = vmul.f32 %v553, %v548
    %v555 = vmul.f32 %v553, %v549
    %v556 = vmul.f32 %v553, %v550
    %v557 = vmul.f32 %v553, %v551
    %s558 = scalar_lea.vmem [#allocation2], 96
    %559 = vst [vmem:[%s558] sm:$0xff] %v554
    %560 = vst [vmem:[%s558 + $0x8] sm:$0xff] %v555
    %561 = vst [vmem:[%s558 + $0x10] sm:$0xff] %v556
    %562 = vst [vmem:[%s558 + $0x18] sm:$0xff] %v557
    %v563 = vmul.f32 %v548, 2.0
    %v564 = vmul.f32 %v549, 2.0
    %v565 = vmul.f32 %v550, 2.0
    %v566 = vmul.f32 %v551, 2.0
    %567 = vmatprep.subr.mxu0 0.0
    %568 = vmatpush1.msra.mxu0 %v548
    %569 = vmatprep.subr.mxu0 0.0
    %570 = vmatpush1.msra.mxu0 %v549
    %571 = vmatprep.subr.mxu0 0.0
    %572 = vmatpush1.msra.mxu0 %v550
    %573 = vmatprep.subr.mxu0 0.0
    %574 = vmatpush1.msra.mxu0 %v551
    %575 = vmatprep.subr.mxu0 0.0
    %576 = vmatpush1.msra.mxu0 0.0
    %577 = vmatprep.subr.mxu0 0.0
    %578 = vmatpush1.msra.mxu0 0.0
    %579 = vmatprep.subr.mxu0 0.0
    %580 = vmatpush1.msra.mxu0 0.0
    %581 = vmatprep.subr.mxu0 0.0
    %582 = vmatpush1.msra.mxu0 0.0
    %583 = vmatprep.subr.mxu0 0.0
    %584 = vmatpush1.msra.mxu0 0.0
    %585 = vmatprep.subr.mxu0 0.0
    %586 = vmatpush1.msra.mxu0 0.0
    %587 = vmatprep.subr.mxu0 0.0
    %588 = vmatpush1.msra.mxu0 0.0
    %589 = vmatprep.subr.mxu0 0.0
    %590 = vmatpush1.msra.mxu0 0.0
    %591 = vmatprep.subr.mxu0 0.0
    %592 = vmatpush1.msra.mxu0 0.0
    %593 = vmatprep.subr.mxu0 0.0
    %594 = vmatpush1.msra.mxu0 0.0
    %595 = vmatprep.subr.mxu0 0.0
    %596 = vmatpush1.msra.mxu0 0.0
    %597 = vmatprep.subr.mxu0 0.0
    %598 = vmatpush1.msra.mxu0 0.0
    %599 = vmatprep.subr.mxu0 0.0
    %600 = vmatpush1.msra.mxu0 0.0
    %601 = vmatprep.subr.mxu0 0.0
    %602 = vmatpush1.msra.mxu0 0.0
    %603 = vmatprep.subr.mxu0 0.0
    %604 = vmatpush1.msra.mxu0 0.0
    %605 = vmatprep.subr.mxu0 0.0
    %606 = vmatpush1.msra.mxu0 0.0
    %607 = vmatprep.subr.mxu0 0.0
    %608 = vmatpush1.msra.mxu0 0.0
    %609 = vmatprep.subr.mxu0 0.0
    %610 = vmatpush1.msra.mxu0 0.0
    %611 = vmatprep.subr.mxu0 0.0
    %612 = vmatpush1.msra.mxu0 0.0
    %613 = vmatprep.subr.mxu0 0.0
    %614 = vmatpush1.msra.mxu0 0.0
    %615 = vmatprep.subr.mxu0 0.0
    %616 = vmatpush1.msra.mxu0 0.0
    %617 = vmatprep.subr.mxu0 0.0
    %618 = vmatpush1.msra.mxu0 0.0
    %619 = vmatprep.subr.mxu0 0.0
    %620 = vmatpush1.msra.mxu0 0.0
    %621 = vmatprep.subr.mxu0 0.0
    %622 = vmatpush1.msra.mxu0 0.0
    %623 = vmatprep.subr.mxu0 0.0
    %624 = vmatpush1.msra.mxu0 0.0
    %625 = vmatprep.subr.mxu0 0.0
    %626 = vmatpush1.msra.mxu0 0.0
    %627 = vmatprep.subr.mxu0 0.0
    %628 = vmatpush1.msra.mxu0 0.0
    %629 = vmatprep.subr.mxu0 0.0
    %630 = vmatpush1.msra.mxu0 0.0
    %631 = vmatprep.mubr.f32.mxu0 0.0
    %632 = vmatmul.mubr.f32.gmra.mrb[0].mxu0 %v244
    %v633 = vpop.f32.mrb[0].mxu0
    %v634 = vadd.f32 0.0, %v633
    %v635 = vpop.f32.mrb[0].mxu0
    %636 = vmatprep.mubr.f32.mxu0 0.0
    %637 = vmatmul.mubr.f32.gmra.mrb[0].mxu0 %v247
    %v638 = vpop.f32.mrb[0].mxu0
    %v639 = vadd.f32 0.0, %v638
    %v640 = vpop.f32.mrb[0].mxu0
    %641 = vmatprep.mubr.f32.mxu0 0.0
    %642 = vmatmul.mubr.f32.gmra.mrb[0].mxu0 %v250
    %v643 = vpop.f32.mrb[0].mxu0
    %v644 = vadd.f32 0.0, %v643
    %v645 = vpop.f32.mrb[0].mxu0
    %646 = vmatprep.mubr.f32.mxu0 0.0
    %647 = vmatmul.mubr.f32.gmra.mrb[0].mxu0 %v253
    %v648 = vpop.f32.mrb[0].mxu0
    %v649 = vadd.f32 0.0, %v648
    %v650 = vpop.f32.mrb[0].mxu0
    %651 = vdwg.mxu0
    %v652 = vsub.f32 %v563, %v634
    %v653 = vsub.f32 %v564, %v639
    %v654 = vsub.f32 %v565, %v644
    %v655 = vsub.f32 %v566, %v649
    %s656 = sld [smem:[#allocation3 + $0xb]]
    %v657 = vstv %s656
    %v658 = vmul.f32 %v657, %v652
    %v659 = vmul.f32 %v657, %v653
    %v660 = vmul.f32 %v657, %v654
    %v661 = vmul.f32 %v657, %v655
    %s662 = scalar_lea.vmem [#allocation2], 128
    %663 = vst [vmem:[%s662] sm:$0xff] %v658
    %664 = vst [vmem:[%s662 + $0x8] sm:$0xff] %v659
    %665 = vst [vmem:[%s662 + $0x10] sm:$0xff] %v660
    %666 = vst [vmem:[%s662 + $0x18] sm:$0xff] %v661
    %v667 = vmul.f32 %v652, 2.0
    %v668 = vmul.f32 %v653, 2.0
    %v669 = vmul.f32 %v654, 2.0
    %v670 = vmul.f32 %v655, 2.0
    %671 = vmatprep.subr.mxu0 0.0
    %672 = vmatpush1.msra.mxu0 %v652
    %673 = vmatprep.subr.mxu0 0.0
    %674 = vmatpush1.msra.mxu0 %v653
    %675 = vmatprep.subr.mxu0 0.0
    %676 = vmatpush1.msra.mxu0 %v654
    %677 = vmatprep.subr.mxu0 0.0
    %678 = vmatpush1.msra.mxu0 %v655
    %679 = vmatprep.subr.mxu0 0.0
    %680 = vmatpush1.msra.mxu0 0.0
    %681 = vmatprep.subr.mxu0 0.0
    %682 = vmatpush1.msra.mxu0 0.0
    %683 = vmatprep.subr.mxu0 0.0
    %684 = vmatpush1.msra.mxu0 0.0
    %685 = vmatprep.subr.mxu0 0.0
    %686 = vmatpush1.msra.mxu0 0.0
    %687 = vmatprep.subr.mxu0 0.0
    %688 = vmatpush1.msra.mxu0 0.0
    %689 = vmatprep.subr.mxu0 0.0
    %690 = vmatpush1.msra.mxu0 0.0
    %691 = vmatprep.subr.mxu0 0.0
    %692 = vmatpush1.msra.mxu0 0.0
    %693 = vmatprep.subr.mxu0 0.0
    %694 = vmatpush1.msra.mxu0 0.0
    %695 = vmatprep.subr.mxu0 0.0
    %696 = vmatpush1.msra.mxu0 0.0
    %697 = vmatprep.subr.mxu0 0.0
    %698 = vmatpush1.msra.mxu0 0.0
    %699 = vmatprep.subr.mxu0 0.0
    %700 = vmatpush1.msra.mxu0 0.0
    %701 = vmatprep.subr.mxu0 0.0
    %702 = vmatpush1.msra.mxu0 0.0
    %703 = vmatprep.subr.mxu0 0.0
    %704 = vmatpush1.msra.mxu0 0.0
    %705 = vmatprep.subr.mxu0 0.0
    %706 = vmatpush1.msra.mxu0 0.0
    %707 = vmatprep.subr.mxu0 0.0
    %708 = vmatpush1.msra.mxu0 0.0
    %709 = vmatprep.subr.mxu0 0.0
    %710 = vmatpush1.msra.mxu0 0.0
    %711 = vmatprep.subr.mxu0 0.0
    %712 = vmatpush1.msra.mxu0 0.0
    %713 = vmatprep.subr.mxu0 0.0
    %714 = vmatpush1.msra.mxu0 0.0
    %715 = vmatprep.subr.mxu0 0.0
    %716 = vmatpush1.msra.mxu0 0.0
    %717 = vmatprep.subr.mxu0 0.0
    %718 = vmatpush1.msra.mxu0 0.0
    %719 = vmatprep.subr.mxu0 0.0
    %720 = vmatpush1.msra.mxu0 0.0
    %721 = vmatprep.subr.mxu0 0.0
    %722 = vmatpush1.msra.mxu0 0.0
    %723 = vmatprep.subr.mxu0 0.0
    %724 = vmatpush1.msra.mxu0 0.0
    %725 = vmatprep.subr.mxu0 0.0
    %726 = vmatpush1.msra.mxu0 0.0
    %727 = vmatprep.subr.mxu0 0.0
    %728 = vmatpush1.msra.mxu0 0.0
    %729 = vmatprep.subr.mxu0 0.0
    %730 = vmatpush1.msra.mxu0 0.0
    %731 = vmatprep.subr.mxu0 0.0
    %732 = vmatpush1.msra.mxu0 0.0
    %733 = vmatprep.subr.mxu0 0.0
    %734 = vmatpush1.msra.mxu0 0.0
    %735 = vmatprep.mubr.f32.mxu0 0.0
    %736 = vmatmul.mubr.f32.gmra.mrb[0].mxu0 %v244
    %v737 = vpop.f32.mrb[0].mxu0
    %v738 = vadd.f32 0.0, %v737
    %v739 = vpop.f32.mrb[0].mxu0
    %740 = vmatprep.mubr.f32.mxu0 0.0
    %741 = vmatmul.mubr.f32.gmra.mrb[0].mxu0 %v247
    %v742 = vpop.f32.mrb[0].mxu0
    %v743 = vadd.f32 0.0, %v742
    %v744 = vpop.f32.mrb[0].mxu0
    %745 = vmatprep.mubr.f32.mxu0 0.0
    %746 = vmatmul.mubr.f32.gmra.mrb[0].mxu0 %v250
    %v747 = vpop.f32.mrb[0].mxu0
    %v748 = vadd.f32 0.0, %v747
    %v749 = vpop.f32.mrb[0].mxu0
    %750 = vmatprep.mubr.f32.mxu0 0.0
    %751 = vmatmul.mubr.f32.gmra.mrb[0].mxu0 %v253
    %v752 = vpop.f32.mrb[0].mxu0
    %v753 = vadd.f32 0.0, %v752
    %v754 = vpop.f32.mrb[0].mxu0
    %755 = vdwg.mxu0
    %v756 = vsub.f32 %v667, %v738
    %v757 = vsub.f32 %v668, %v743
    %v758 = vsub.f32 %v669, %v748
    %v759 = vsub.f32 %v670, %v753
    %s760 = sld [smem:[#allocation3 + $0xa]]
    %v761 = vstv %s760
    %v762 = vmul.f32 %v761, %v756
    %v763 = vmul.f32 %v761, %v757
    %v764 = vmul.f32 %v761, %v758
    %v765 = vmul.f32 %v761, %v759
    %s766 = scalar_lea.vmem [#allocation2], 160
    %767 = vst [vmem:[%s766] sm:$0xff] %v762
    %768 = vst [vmem:[%s766 + $0x8] sm:$0xff] %v763
    %769 = vst [vmem:[%s766 + $0x10] sm:$0xff] %v764
    %770 = vst [vmem:[%s766 + $0x18] sm:$0xff] %v765
    %v771 = vmul.f32 %v756, 2.0
    %v772 = vmul.f32 %v757, 2.0
    %v773 = vmul.f32 %v758, 2.0
    %v774 = vmul.f32 %v759, 2.0
    %775 = vmatprep.subr.mxu0 0.0
    %776 = vmatpush1.msra.mxu0 %v756
    %777 = vmatprep.subr.mxu0 0.0
    %778 = vmatpush1.msra.mxu0 %v757
    %779 = vmatprep.subr.mxu0 0.0
    %780 = vmatpush1.msra.mxu0 %v758
    %781 = vmatprep.subr.mxu0 0.0
    %782 = vmatpush1.msra.mxu0 %v759
    %783 = vmatprep.subr.mxu0 0.0
    %784 = vmatpush1.msra.mxu0 0.0
    %785 = vmatprep.subr.mxu0 0.0
    %786 = vmatpush1.msra.mxu0 0.0
    %787 = vmatprep.subr.mxu0 0.0
    %788 = vmatpush1.msra.mxu0 0.0
    %789 = vmatprep.subr.mxu0 0.0
    %790 = vmatpush1.msra.mxu0 0.0
    %791 = vmatprep.subr.mxu0 0.0
    %792 = vmatpush1.msra.mxu0 0.0
    %793 = vmatprep.subr.mxu0 0.0
    %794 = vmatpush1.msra.mxu0 0.0
    %795 = vmatprep.subr.mxu0 0.0
    %796 = vmatpush1.msra.mxu0 0.0
    %797 = vmatprep.subr.mxu0 0.0
    %798 = vmatpush1.msra.mxu0 0.0
    %799 = vmatprep.subr.mxu0 0.0
    %800 = vmatpush1.msra.mxu0 0.0
    %801 = vmatprep.subr.mxu0 0.0
    %802 = vmatpush1.msra.mxu0 0.0
    %803 = vmatprep.subr.mxu0 0.0
    %804 = vmatpush1.msra.mxu0 0.0
    %805 = vmatprep.subr.mxu0 0.0
    %806 = vmatpush1.msra.mxu0 0.0
    %807 = vmatprep.subr.mxu0 0.0
    %808 = vmatpush1.msra.mxu0 0.0
    %809 = vmatprep.subr.mxu0 0.0
    %810 = vmatpush1.msra.mxu0 0.0
    %811 = vmatprep.subr.mxu0 0.0
    %812 = vmatpush1.msra.mxu0 0.0
    %813 = vmatprep.subr.mxu0 0.0
    %814 = vmatpush1.msra.mxu0 0.0
    %815 = vmatprep.subr.mxu0 0.0
    %816 = vmatpush1.msra.mxu0 0.0
    %817 = vmatprep.subr.mxu0 0.0
    %818 = vmatpush1.msra.mxu0 0.0
    %819 = vmatprep.subr.mxu0 0.0
    %820 = vmatpush1.msra.mxu0 0.0
    %821 = vmatprep.subr.mxu0 0.0
    %822 = vmatpush1.msra.mxu0 0.0
    %823 = vmatprep.subr.mxu0 0.0
    %824 = vmatpush1.msra.mxu0 0.0
    %825 = vmatprep.subr.mxu0 0.0
    %826 = vmatpush1.msra.mxu0 0.0
    %827 = vmatprep.subr.mxu0 0.0
    %828 = vmatpush1.msra.mxu0 0.0
    %829 = vmatprep.subr.mxu0 0.0
    %830 = vmatpush1.msra.mxu0 0.0
    %831 = vmatprep.subr.mxu0 0.0
    %832 = vmatpush1.msra.mxu0 0.0
    %833 = vmatprep.subr.mxu0 0.0
    %834 = vmatpush1.msra.mxu0 0.0
    %835 = vmatprep.subr.mxu0 0.0
    %836 = vmatpush1.msra.mxu0 0.0
    %837 = vmatprep.subr.mxu0 0.0
    %838 = vmatpush1.msra.mxu0 0.0
    %839 = vmatprep.mubr.f32.mxu0 0.0
    %840 = vmatmul.mubr.f32.gmra.mrb[0].mxu0 %v244
    %v841 = vpop.f32.mrb[0].mxu0
    %v842 = vadd.f32 0.0, %v841
    %v843 = vpop.f32.mrb[0].mxu0
    %844 = vmatprep.mubr.f32.mxu0 0.0
    %845 = vmatmul.mubr.f32.gmra.mrb[0].mxu0 %v247
    %v846 = vpop.f32.mrb[0].mxu0
    %v847 = vadd.f32 0.0, %v846
    %v848 = vpop.f32.mrb[0].mxu0
    %849 = vmatprep.mubr.f32.mxu0 0.0
    %850 = vmatmul.mubr.f32.gmra.mrb[0].mxu0 %v250
    %v851 = vpop.f32.mrb[0].mxu0
    %v852 = vadd.f32 0.0, %v851
    %v853 = vpop.f32.mrb[0].mxu0
    %854 = vmatprep.mubr.f32.mxu0 0.0
    %855 = vmatmul.mubr.f32.gmra.mrb[0].mxu0 %v253
    %v856 = vpop.f32.mrb[0].mxu0
    %v857 = vadd.f32 0.0, %v856
    %v858 = vpop.f32.mrb[0].mxu0
    %859 = vdwg.mxu0
    %v860 = vsub.f32 %v771, %v842
    %v861 = vsub.f32 %v772, %v847
    %v862 = vsub.f32 %v773, %v852
    %v863 = vsub.f32 %v774, %v857
    %s864 = sld [smem:[#allocation3 + $0x9]]
    %v865 = vstv %s864
    %v866 = vmul.f32 %v865, %v860
    %v867 = vmul.f32 %v865, %v861
    %v868 = vmul.f32 %v865, %v862
    %v869 = vmul.f32 %v865, %v863
    %s870 = scalar_lea.vmem [#allocation2], 192
    %871 = vst [vmem:[%s870] sm:$0xff] %v866
    %872 = vst [vmem:[%s870 + $0x8] sm:$0xff] %v867
    %873 = vst [vmem:[%s870 + $0x10] sm:$0xff] %v868
    %874 = vst [vmem:[%s870 + $0x18] sm:$0xff] %v869
    %v875 = vmul.f32 %v860, 2.0
    %v876 = vmul.f32 %v861, 2.0
    %v877 = vmul.f32 %v862, 2.0
    %v878 = vmul.f32 %v863, 2.0
    %879 = vmatprep.subr.mxu0 0.0
    %880 = vmatpush1.msra.mxu0 %v860
    %881 = vmatprep.subr.mxu0 0.0
    %882 = vmatpush1.msra.mxu0 %v861
    %883 = vmatprep.subr.mxu0 0.0
    %884 = vmatpush1.msra.mxu0 %v862
    %885 = vmatprep.subr.mxu0 0.0
    %886 = vmatpush1.msra.mxu0 %v863
    %887 = vmatprep.subr.mxu0 0.0
    %888 = vmatpush1.msra.mxu0 0.0
    %889 = vmatprep.subr.mxu0 0.0
    %890 = vmatpush1.msra.mxu0 0.0
    %891 = vmatprep.subr.mxu0 0.0
    %892 = vmatpush1.msra.mxu0 0.0
    %893 = vmatprep.subr.mxu0 0.0
    %894 = vmatpush1.msra.mxu0 0.0
    %895 = vmatprep.subr.mxu0 0.0
    %896 = vmatpush1.msra.mxu0 0.0
    %897 = vmatprep.subr.mxu0 0.0
    %898 = vmatpush1.msra.mxu0 0.0
    %899 = vmatprep.subr.mxu0 0.0
    %900 = vmatpush1.msra.mxu0 0.0
    %901 = vmatprep.subr.mxu0 0.0
    %902 = vmatpush1.msra.mxu0 0.0
    %903 = vmatprep.subr.mxu0 0.0
    %904 = vmatpush1.msra.mxu0 0.0
    %905 = vmatprep.subr.mxu0 0.0
    %906 = vmatpush1.msra.mxu0 0.0
    %907 = vmatprep.subr.mxu0 0.0
    %908 = vmatpush1.msra.mxu0 0.0
    %909 = vmatprep.subr.mxu0 0.0
    %910 = vmatpush1.msra.mxu0 0.0
    %911 = vmatprep.subr.mxu0 0.0
    %912 = vmatpush1.msra.mxu0 0.0
    %913 = vmatprep.subr.mxu0 0.0
    %914 = vmatpush1.msra.mxu0 0.0
    %915 = vmatprep.subr.mxu0 0.0
    %916 = vmatpush1.msra.mxu0 0.0
    %917 = vmatprep.subr.mxu0 0.0
    %918 = vmatpush1.msra.mxu0 0.0
    %919 = vmatprep.subr.mxu0 0.0
    %920 = vmatpush1.msra.mxu0 0.0
    %921 = vmatprep.subr.mxu0 0.0
    %922 = vmatpush1.msra.mxu0 0.0
    %923 = vmatprep.subr.mxu0 0.0
    %924 = vmatpush1.msra.mxu0 0.0
    %925 = vmatprep.subr.mxu0 0.0
    %926 = vmatpush1.msra.mxu0 0.0
    %927 = vmatprep.subr.mxu0 0.0
    %928 = vmatpush1.msra.mxu0 0.0
    %929 = vmatprep.subr.mxu0 0.0
    %930 = vmatpush1.msra.mxu0 0.0
    %931 = vmatprep.subr.mxu0 0.0
    %932 = vmatpush1.msra.mxu0 0.0
    %933 = vmatprep.subr.mxu0 0.0
    %934 = vmatpush1.msra.mxu0 0.0
    %935 = vmatprep.subr.mxu0 0.0
    %936 = vmatpush1.msra.mxu0 0.0
    %937 = vmatprep.subr.mxu0 0.0
    %938 = vmatpush1.msra.mxu0 0.0
    %939 = vmatprep.subr.mxu0 0.0
    %940 = vmatpush1.msra.mxu0 0.0
    %941 = vmatprep.subr.mxu0 0.0
    %942 = vmatpush1.msra.mxu0 0.0
    %943 = vmatprep.mubr.f32.mxu0 0.0
    %944 = vmatmul.mubr.f32.gmra.mrb[0].mxu0 %v244
    %v945 = vpop.f32.mrb[0].mxu0
    %v946 = vadd.f32 0.0, %v945
    %v947 = vpop.f32.mrb[0].mxu0
    %948 = vmatprep.mubr.f32.mxu0 0.0
    %949 = vmatmul.mubr.f32.gmra.mrb[0].mxu0 %v247
    %v950 = vpop.f32.mrb[0].mxu0
    %v951 = vadd.f32 0.0, %v950
    %v952 = vpop.f32.mrb[0].mxu0
    %953 = vmatprep.mubr.f32.mxu0 0.0
    %954 = vmatmul.mubr.f32.gmra.mrb[0].mxu0 %v250
    %v955 = vpop.f32.mrb[0].mxu0
    %v956 = vadd.f32 0.0, %v955
    %v957 = vpop.f32.mrb[0].mxu0
    %958 = vmatprep.mubr.f32.mxu0 0.0
    %959 = vmatmul.mubr.f32.gmra.mrb[0].mxu0 %v253
    %v960 = vpop.f32.mrb[0].mxu0
    %v961 = vadd.f32 0.0, %v960
    %v962 = vpop.f32.mrb[0].mxu0
    %963 = vdwg.mxu0
    %v964 = vsub.f32 %v875, %v946
    %v965 = vsub.f32 %v876, %v951
    %v966 = vsub.f32 %v877, %v956
    %v967 = vsub.f32 %v878, %v961
    %s968 = sld [smem:[#allocation3 + $0x8]]
    %v969 = vstv %s968
    %v970 = vmul.f32 %v969, %v964
    %v971 = vmul.f32 %v969, %v965
    %v972 = vmul.f32 %v969, %v966
    %v973 = vmul.f32 %v969, %v967
    %s974 = scalar_lea.vmem [#allocation2], 224
    %975 = vst [vmem:[%s974] sm:$0xff] %v970
    %976 = vst [vmem:[%s974 + $0x8] sm:$0xff] %v971
    %977 = vst [vmem:[%s974 + $0x10] sm:$0xff] %v972
    %978 = vst [vmem:[%s974 + $0x18] sm:$0xff] %v973
    %v979 = vmul.f32 %v964, 2.0
    %v980 = vmul.f32 %v965, 2.0
    %v981 = vmul.f32 %v966, 2.0
    %v982 = vmul.f32 %v967, 2.0
    %983 = vmatprep.subr.mxu0 0.0
    %984 = vmatpush1.msra.mxu0 %v964
    %985 = vmatprep.subr.mxu0 0.0
    %986 = vmatpush1.msra.mxu0 %v965
    %987 = vmatprep.subr.mxu0 0.0
    %988 = vmatpush1.msra.mxu0 %v966
    %989 = vmatprep.subr.mxu0 0.0
    %990 = vmatpush1.msra.mxu0 %v967
    %991 = vmatprep.subr.mxu0 0.0
    %992 = vmatpush1.msra.mxu0 0.0
    %993 = vmatprep.subr.mxu0 0.0
    %994 = vmatpush1.msra.mxu0 0.0
    %995 = vmatprep.subr.mxu0 0.0
    %996 = vmatpush1.msra.mxu0 0.0
    %997 = vmatprep.subr.mxu0 0.0
    %998 = vmatpush1.msra.mxu0 0.0
    %999 = vmatprep.subr.mxu0 0.0
    %1000 = vmatpush1.msra.mxu0 0.0
    %1001 = vmatprep.subr.mxu0 0.0
    %1002 = vmatpush1.msra.mxu0 0.0
    %1003 = vmatprep.subr.mxu0 0.0
    %1004 = vmatpush1.msra.mxu0 0.0
    %1005 = vmatprep.subr.mxu0 0.0
    %1006 = vmatpush1.msra.mxu0 0.0
    %1007 = vmatprep.subr.mxu0 0.0
    %1008 = vmatpush1.msra.mxu0 0.0
    %1009 = vmatprep.subr.mxu0 0.0
    %1010 = vmatpush1.msra.mxu0 0.0
    %1011 = vmatprep.subr.mxu0 0.0
    %1012 = vmatpush1.msra.mxu0 0.0
    %1013 = vmatprep.subr.mxu0 0.0
    %1014 = vmatpush1.msra.mxu0 0.0
    %1015 = vmatprep.subr.mxu0 0.0
    %1016 = vmatpush1.msra.mxu0 0.0
    %1017 = vmatprep.subr.mxu0 0.0
    %1018 = vmatpush1.msra.mxu0 0.0
    %1019 = vmatprep.subr.mxu0 0.0
    %1020 = vmatpush1.msra.mxu0 0.0
    %1021 = vmatprep.subr.mxu0 0.0
    %1022 = vmatpush1.msra.mxu0 0.0
    %1023 = vmatprep.subr.mxu0 0.0
    %1024 = vmatpush1.msra.mxu0 0.0
    %1025 = vmatprep.subr.mxu0 0.0
    %1026 = vmatpush1.msra.mxu0 0.0
    %1027 = vmatprep.subr.mxu0 0.0
    %1028 = vmatpush1.msra.mxu0 0.0
    %1029 = vmatprep.subr.mxu0 0.0
    %1030 = vmatpush1.msra.mxu0 0.0
    %1031 = vmatprep.subr.mxu0 0.0
    %1032 = vmatpush1.msra.mxu0 0.0
    %1033 = vmatprep.subr.mxu0 0.0
    %1034 = vmatpush1.msra.mxu0 0.0
    %1035 = vmatprep.subr.mxu0 0.0
    %1036 = vmatpush1.msra.mxu0 0.0
    %1037 = vmatprep.subr.mxu0 0.0
    %1038 = vmatpush1.msra.mxu0 0.0
    %1039 = vmatprep.subr.mxu0 0.0
    %1040 = vmatpush1.msra.mxu0 0.0
    %1041 = vmatprep.subr.mxu0 0.0
    %1042 = vmatpush1.msra.mxu0 0.0
    %1043 = vmatprep.subr.mxu0 0.0
    %1044 = vmatpush1.msra.mxu0 0.0
    %1045 = vmatprep.subr.mxu0 0.0
    %1046 = vmatpush1.msra.mxu0 0.0
    %1047 = vmatprep.mubr.f32.mxu0 0.0
    %1048 = vmatmul.mubr.f32.gmra.mrb[0].mxu0 %v244
    %v1049 = vpop.f32.mrb[0].mxu0
    %v1050 = vadd.f32 0.0, %v1049
    %v1051 = vpop.f32.mrb[0].mxu0
    %1052 = vmatprep.mubr.f32.mxu0 0.0
    %1053 = vmatmul.mubr.f32.gmra.mrb[0].mxu0 %v247
    %v1054 = vpop.f32.mrb[0].mxu0
    %v1055 = vadd.f32 0.0, %v1054
    %v1056 = vpop.f32.mrb[0].mxu0
    %1057 = vmatprep.mubr.f32.mxu0 0.0
    %1058 = vmatmul.mubr.f32.gmra.mrb[0].mxu0 %v250
    %v1059 = vpop.f32.mrb[0].mxu0
    %v1060 = vadd.f32 0.0, %v1059
    %v1061 = vpop.f32.mrb[0].mxu0
    %1062 = vmatprep.mubr.f32.mxu0 0.0
    %1063 = vmatmul.mubr.f32.gmra.mrb[0].mxu0 %v253
    %v1064 = vpop.f32.mrb[0].mxu0
    %v1065 = vadd.f32 0.0, %v1064
    %v1066 = vpop.f32.mrb[0].mxu0
    %1067 = vdwg.mxu0
    %v1068 = vsub.f32 %v979, %v1050
    %v1069 = vsub.f32 %v980, %v1055
    %v1070 = vsub.f32 %v981, %v1060
    %v1071 = vsub.f32 %v982, %v1065
    %s1072 = sld [smem:[#allocation3 + $0x7]]
    %v1073 = vstv %s1072
    %v1074 = vmul.f32 %v1073, %v1068
    %v1075 = vmul.f32 %v1073, %v1069
    %v1076 = vmul.f32 %v1073, %v1070
    %v1077 = vmul.f32 %v1073, %v1071
    %s1078 = scalar_lea.vmem [#allocation2], 256
    %1079 = vst [vmem:[%s1078] sm:$0xff] %v1074
    %1080 = vst [vmem:[%s1078 + $0x8] sm:$0xff] %v1075
    %1081 = vst [vmem:[%s1078 + $0x10] sm:$0xff] %v1076
    %1082 = vst [vmem:[%s1078 + $0x18] sm:$0xff] %v1077
    %v1083 = vmul.f32 %v1068, 2.0
    %v1084 = vmul.f32 %v1069, 2.0
    %v1085 = vmul.f32 %v1070, 2.0
    %v1086 = vmul.f32 %v1071, 2.0
    %1087 = vmatprep.subr.mxu0 0.0
    %1088 = vmatpush1.msra.mxu0 %v1068
    %1089 = vmatprep.subr.mxu0 0.0
    %1090 = vmatpush1.msra.mxu0 %v1069
    %1091 = vmatprep.subr.mxu0 0.0
    %1092 = vmatpush1.msra.mxu0 %v1070
    %1093 = vmatprep.subr.mxu0 0.0
    %1094 = vmatpush1.msra.mxu0 %v1071
    %1095 = vmatprep.subr.mxu0 0.0
    %1096 = vmatpush1.msra.mxu0 0.0
    %1097 = vmatprep.subr.mxu0 0.0
    %1098 = vmatpush1.msra.mxu0 0.0
    %1099 = vmatprep.subr.mxu0 0.0
    %1100 = vmatpush1.msra.mxu0 0.0
    %1101 = vmatprep.subr.mxu0 0.0
    %1102 = vmatpush1.msra.mxu0 0.0
    %1103 = vmatprep.subr.mxu0 0.0
    %1104 = vmatpush1.msra.mxu0 0.0
    %1105 = vmatprep.subr.mxu0 0.0
    %1106 = vmatpush1.msra.mxu0 0.0
    %1107 = vmatprep.subr.mxu0 0.0
    %1108 = vmatpush1.msra.mxu0 0.0
    %1109 = vmatprep.subr.mxu0 0.0
    %1110 = vmatpush1.msra.mxu0 0.0
    %1111 = vmatprep.subr.mxu0 0.0
    %1112 = vmatpush1.msra.mxu0 0.0
    %1113 = vmatprep.subr.mxu0 0.0
    %1114 = vmatpush1.msra.mxu0 0.0
    %1115 = vmatprep.subr.mxu0 0.0
    %1116 = vmatpush1.msra.mxu0 0.0
    %1117 = vmatprep.subr.mxu0 0.0
    %1118 = vmatpush1.msra.mxu0 0.0
    %1119 = vmatprep.subr.mxu0 0.0
    %1120 = vmatpush1.msra.mxu0 0.0
    %1121 = vmatprep.subr.mxu0 0.0
    %1122 = vmatpush1.msra.mxu0 0.0
    %1123 = vmatprep.subr.mxu0 0.0
    %1124 = vmatpush1.msra.mxu0 0.0
    %1125 = vmatprep.subr.mxu0 0.0
    %1126 = vmatpush1.msra.mxu0 0.0
    %1127 = vmatprep.subr.mxu0 0.0
    %1128 = vmatpush1.msra.mxu0 0.0
    %1129 = vmatprep.subr.mxu0 0.0
    %1130 = vmatpush1.msra.mxu0 0.0
    %1131 = vmatprep.subr.mxu0 0.0
    %1132 = vmatpush1.msra.mxu0 0.0
    %1133 = vmatprep.subr.mxu0 0.0
    %1134 = vmatpush1.msra.mxu0 0.0
    %1135 = vmatprep.subr.mxu0 0.0
    %1136 = vmatpush1.msra.mxu0 0.0
    %1137 = vmatprep.subr.mxu0 0.0
    %1138 = vmatpush1.msra.mxu0 0.0
    %1139 = vmatprep.subr.mxu0 0.0
    %1140 = vmatpush1.msra.mxu0 0.0
    %1141 = vmatprep.subr.mxu0 0.0
    %1142 = vmatpush1.msra.mxu0 0.0
    %1143 = vmatprep.subr.mxu0 0.0
    %1144 = vmatpush1.msra.mxu0 0.0
    %1145 = vmatprep.subr.mxu0 0.0
    %1146 = vmatpush1.msra.mxu0 0.0
    %1147 = vmatprep.subr.mxu0 0.0
    %1148 = vmatpush1.msra.mxu0 0.0
    %1149 = vmatprep.subr.mxu0 0.0
    %1150 = vmatpush1.msra.mxu0 0.0
    %1151 = vmatprep.mubr.f32.mxu0 0.0
    %1152 = vmatmul.mubr.f32.gmra.mrb[0].mxu0 %v244
    %v1153 = vpop.f32.mrb[0].mxu0
    %v1154 = vadd.f32 0.0, %v1153
    %v1155 = vpop.f32.mrb[0].mxu0
    %1156 = vmatprep.mubr.f32.mxu0 0.0
    %1157 = vmatmul.mubr.f32.gmra.mrb[0].mxu0 %v247
    %v1158 = vpop.f32.mrb[0].mxu0
    %v1159 = vadd.f32 0.0, %v1158
    %v1160 = vpop.f32.mrb[0].mxu0
    %1161 = vmatprep.mubr.f32.mxu0 0.0
    %1162 = vmatmul.mubr.f32.gmra.mrb[0].mxu0 %v250
    %v1163 = vpop.f32.mrb[0].mxu0
    %v1164 = vadd.f32 0.0, %v1163
    %v1165 = vpop.f32.mrb[0].mxu0
    %1166 = vmatprep.mubr.f32.mxu0 0.0
    %1167 = vmatmul.mubr.f32.gmra.mrb[0].mxu0 %v253
    %v1168 = vpop.f32.mrb[0].mxu0
    %v1169 = vadd.f32 0.0, %v1168
    %v1170 = vpop.f32.mrb[0].mxu0
    %1171 = vdwg.mxu0
    %v1172 = vsub.f32 %v1083, %v1154
    %v1173 = vsub.f32 %v1084, %v1159
    %v1174 = vsub.f32 %v1085, %v1164
    %v1175 = vsub.f32 %v1086, %v1169
    %s1176 = sld [smem:[#allocation3 + $0x6]]
    %v1177 = vstv %s1176
    %v1178 = vmul.f32 %v1177, %v1172
    %v1179 = vmul.f32 %v1177, %v1173
    %v1180 = vmul.f32 %v1177, %v1174
    %v1181 = vmul.f32 %v1177, %v1175
    %s1182 = scalar_lea.vmem [#allocation2], 288
    %1183 = vst [vmem:[%s1182] sm:$0xff] %v1178
    %1184 = vst [vmem:[%s1182 + $0x8] sm:$0xff] %v1179
    %1185 = vst [vmem:[%s1182 + $0x10] sm:$0xff] %v1180
    %1186 = vst [vmem:[%s1182 + $0x18] sm:$0xff] %v1181
    %v1187 = vmul.f32 %v1172, 2.0
    %v1188 = vmul.f32 %v1173, 2.0
    %v1189 = vmul.f32 %v1174, 2.0
    %v1190 = vmul.f32 %v1175, 2.0
    %1191 = vmatprep.subr.mxu0 0.0
    %1192 = vmatpush1.msra.mxu0 %v1172
    %1193 = vmatprep.subr.mxu0 0.0
    %1194 = vmatpush1.msra.mxu0 %v1173
    %1195 = vmatprep.subr.mxu0 0.0
    %1196 = vmatpush1.msra.mxu0 %v1174
    %1197 = vmatprep.subr.mxu0 0.0
    %1198 = vmatpush1.msra.mxu0 %v1175
    %1199 = vmatprep.subr.mxu0 0.0
    %1200 = vmatpush1.msra.mxu0 0.0
    %1201 = vmatprep.subr.mxu0 0.0
    %1202 = vmatpush1.msra.mxu0 0.0
    %1203 = vmatprep.subr.mxu0 0.0
    %1204 = vmatpush1.msra.mxu0 0.0
    %1205 = vmatprep.subr.mxu0 0.0
    %1206 = vmatpush1.msra.mxu0 0.0
    %1207 = vmatprep.subr.mxu0 0.0
    %1208 = vmatpush1.msra.mxu0 0.0
    %1209 = vmatprep.subr.mxu0 0.0
    %1210 = vmatpush1.msra.mxu0 0.0
    %1211 = vmatprep.subr.mxu0 0.0
    %1212 = vmatpush1.msra.mxu0 0.0
    %1213 = vmatprep.subr.mxu0 0.0
    %1214 = vmatpush1.msra.mxu0 0.0
    %1215 = vmatprep.subr.mxu0 0.0
    %1216 = vmatpush1.msra.mxu0 0.0
    %1217 = vmatprep.subr.mxu0 0.0
    %1218 = vmatpush1.msra.mxu0 0.0
    %1219 = vmatprep.subr.mxu0 0.0
    %1220 = vmatpush1.msra.mxu0 0.0
    %1221 = vmatprep.subr.mxu0 0.0
    %1222 = vmatpush1.msra.mxu0 0.0
    %1223 = vmatprep.subr.mxu0 0.0
    %1224 = vmatpush1.msra.mxu0 0.0
    %1225 = vmatprep.subr.mxu0 0.0
    %1226 = vmatpush1.msra.mxu0 0.0
    %1227 = vmatprep.subr.mxu0 0.0
    %1228 = vmatpush1.msra.mxu0 0.0
    %1229 = vmatprep.subr.mxu0 0.0
    %1230 = vmatpush1.msra.mxu0 0.0
    %1231 = vmatprep.subr.mxu0 0.0
    %1232 = vmatpush1.msra.mxu0 0.0
    %1233 = vmatprep.subr.mxu0 0.0
    %1234 = vmatpush1.msra.mxu0 0.0
    %1235 = vmatprep.subr.mxu0 0.0
    %1236 = vmatpush1.msra.mxu0 0.0
    %1237 = vmatprep.subr.mxu0 0.0
    %1238 = vmatpush1.msra.mxu0 0.0
    %1239 = vmatprep.subr.mxu0 0.0
    %1240 = vmatpush1.msra.mxu0 0.0
    %1241 = vmatprep.subr.mxu0 0.0
    %1242 = vmatpush1.msra.mxu0 0.0
    %1243 = vmatprep.subr.mxu0 0.0
    %1244 = vmatpush1.msra.mxu0 0.0
    %1245 = vmatprep.subr.mxu0 0.0
    %1246 = vmatpush1.msra.mxu0 0.0
    %1247 = vmatprep.subr.mxu0 0.0
    %1248 = vmatpush1.msra.mxu0 0.0
    %1249 = vmatprep.subr.mxu0 0.0
    %1250 = vmatpush1.msra.mxu0 0.0
    %1251 = vmatprep.subr.mxu0 0.0
    %1252 = vmatpush1.msra.mxu0 0.0
    %1253 = vmatprep.subr.mxu0 0.0
    %1254 = vmatpush1.msra.mxu0 0.0
    %1255 = vmatprep.mubr.f32.mxu0 0.0
    %1256 = vmatmul.mubr.f32.gmra.mrb[0].mxu0 %v244
    %v1257 = vpop.f32.mrb[0].mxu0
    %v1258 = vadd.f32 0.0, %v1257
    %v1259 = vpop.f32.mrb[0].mxu0
    %1260 = vmatprep.mubr.f32.mxu0 0.0
    %1261 = vmatmul.mubr.f32.gmra.mrb[0].mxu0 %v247
    %v1262 = vpop.f32.mrb[0].mxu0
    %v1263 = vadd.f32 0.0, %v1262
    %v1264 = vpop.f32.mrb[0].mxu0
    %1265 = vmatprep.mubr.f32.mxu0 0.0
    %1266 = vmatmul.mubr.f32.gmra.mrb[0].mxu0 %v250
    %v1267 = vpop.f32.mrb[0].mxu0
    %v1268 = vadd.f32 0.0, %v1267
    %v1269 = vpop.f32.mrb[0].mxu0
    %1270 = vmatprep.mubr.f32.mxu0 0.0
    %1271 = vmatmul.mubr.f32.gmra.mrb[0].mxu0 %v253
    %v1272 = vpop.f32.mrb[0].mxu0
    %v1273 = vadd.f32 0.0, %v1272
    %v1274 = vpop.f32.mrb[0].mxu0
    %1275 = vdwg.mxu0
    %v1276 = vsub.f32 %v1187, %v1258
    %v1277 = vsub.f32 %v1188, %v1263
    %v1278 = vsub.f32 %v1189, %v1268
    %v1279 = vsub.f32 %v1190, %v1273
    %s1280 = sld [smem:[#allocation3 + $0x5]]
    %v1281 = vstv %s1280
    %v1282 = vmul.f32 %v1281, %v1276
    %v1283 = vmul.f32 %v1281, %v1277
    %v1284 = vmul.f32 %v1281, %v1278
    %v1285 = vmul.f32 %v1281, %v1279
    %s1286 = scalar_lea.vmem [#allocation2], 320
    %1287 = vst [vmem:[%s1286] sm:$0xff] %v1282
    %1288 = vst [vmem:[%s1286 + $0x8] sm:$0xff] %v1283
    %1289 = vst [vmem:[%s1286 + $0x10] sm:$0xff] %v1284
    %1290 = vst [vmem:[%s1286 + $0x18] sm:$0xff] %v1285
    %v1291 = vmul.f32 %v1276, 2.0
    %v1292 = vmul.f32 %v1277, 2.0
    %v1293 = vmul.f32 %v1278, 2.0
    %v1294 = vmul.f32 %v1279, 2.0
    %1295 = vmatprep.subr.mxu0 0.0
    %1296 = vmatpush1.msra.mxu0 %v1276
    %1297 = vmatprep.subr.mxu0 0.0
    %1298 = vmatpush1.msra.mxu0 %v1277
    %1299 = vmatprep.subr.mxu0 0.0
    %1300 = vmatpush1.msra.mxu0 %v1278
    %1301 = vmatprep.subr.mxu0 0.0
    %1302 = vmatpush1.msra.mxu0 %v1279
    %1303 = vmatprep.subr.mxu0 0.0
    %1304 = vmatpush1.msra.mxu0 0.0
    %1305 = vmatprep.subr.mxu0 0.0
    %1306 = vmatpush1.msra.mxu0 0.0
    %1307 = vmatprep.subr.mxu0 0.0
    %1308 = vmatpush1.msra.mxu0 0.0
    %1309 = vmatprep.subr.mxu0 0.0
    %1310 = vmatpush1.msra.mxu0 0.0
    %1311 = vmatprep.subr.mxu0 0.0
    %1312 = vmatpush1.msra.mxu0 0.0
    %1313 = vmatprep.subr.mxu0 0.0
    %1314 = vmatpush1.msra.mxu0 0.0
    %1315 = vmatprep.subr.mxu0 0.0
    %1316 = vmatpush1.msra.mxu0 0.0
    %1317 = vmatprep.subr.mxu0 0.0
    %1318 = vmatpush1.msra.mxu0 0.0
    %1319 = vmatprep.subr.mxu0 0.0
    %1320 = vmatpush1.msra.mxu0 0.0
    %1321 = vmatprep.subr.mxu0 0.0
    %1322 = vmatpush1.msra.mxu0 0.0
    %1323 = vmatprep.subr.mxu0 0.0
    %1324 = vmatpush1.msra.mxu0 0.0
    %1325 = vmatprep.subr.mxu0 0.0
    %1326 = vmatpush1.msra.mxu0 0.0
    %1327 = vmatprep.subr.mxu0 0.0
    %1328 = vmatpush1.msra.mxu0 0.0
    %1329 = vmatprep.subr.mxu0 0.0
    %1330 = vmatpush1.msra.mxu0 0.0
    %1331 = vmatprep.subr.mxu0 0.0
    %1332 = vmatpush1.msra.mxu0 0.0
    %1333 = vmatprep.subr.mxu0 0.0
    %1334 = vmatpush1.msra.mxu0 0.0
    %1335 = vmatprep.subr.mxu0 0.0
    %1336 = vmatpush1.msra.mxu0 0.0
    %1337 = vmatprep.subr.mxu0 0.0
    %1338 = vmatpush1.msra.mxu0 0.0
    %1339 = vmatprep.subr.mxu0 0.0
    %1340 = vmatpush1.msra.mxu0 0.0
    %1341 = vmatprep.subr.mxu0 0.0
    %1342 = vmatpush1.msra.mxu0 0.0
    %1343 = vmatprep.subr.mxu0 0.0
    %1344 = vmatpush1.msra.mxu0 0.0
    %1345 = vmatprep.subr.mxu0 0.0
    %1346 = vmatpush1.msra.mxu0 0.0
    %1347 = vmatprep.subr.mxu0 0.0
    %1348 = vmatpush1.msra.mxu0 0.0
    %1349 = vmatprep.subr.mxu0 0.0
    %1350 = vmatpush1.msra.mxu0 0.0
    %1351 = vmatprep.subr.mxu0 0.0
    %1352 = vmatpush1.msra.mxu0 0.0
    %1353 = vmatprep.subr.mxu0 0.0
    %1354 = vmatpush1.msra.mxu0 0.0
    %1355 = vmatprep.subr.mxu0 0.0
    %1356 = vmatpush1.msra.mxu0 0.0
    %1357 = vmatprep.subr.mxu0 0.0
    %1358 = vmatpush1.msra.mxu0 0.0
    %1359 = vmatprep.mubr.f32.mxu0 0.0
    %1360 = vmatmul.mubr.f32.gmra.mrb[0].mxu0 %v244
    %v1361 = vpop.f32.mrb[0].mxu0
    %v1362 = vadd.f32 0.0, %v1361
    %v1363 = vpop.f32.mrb[0].mxu0
    %1364 = vmatprep.mubr.f32.mxu0 0.0
    %1365 = vmatmul.mubr.f32.gmra.mrb[0].mxu0 %v247
    %v1366 = vpop.f32.mrb[0].mxu0
    %v1367 = vadd.f32 0.0, %v1366
    %v1368 = vpop.f32.mrb[0].mxu0
    %1369 = vmatprep.mubr.f32.mxu0 0.0
    %1370 = vmatmul.mubr.f32.gmra.mrb[0].mxu0 %v250
    %v1371 = vpop.f32.mrb[0].mxu0
    %v1372 = vadd.f32 0.0, %v1371
    %v1373 = vpop.f32.mrb[0].mxu0
    %1374 = vmatprep.mubr.f32.mxu0 0.0
    %1375 = vmatmul.mubr.f32.gmra.mrb[0].mxu0 %v253
    %v1376 = vpop.f32.mrb[0].mxu0
    %v1377 = vadd.f32 0.0, %v1376
    %v1378 = vpop.f32.mrb[0].mxu0
    %1379 = vdwg.mxu0
    %v1380 = vsub.f32 %v1291, %v1362
    %v1381 = vsub.f32 %v1292, %v1367
    %v1382 = vsub.f32 %v1293, %v1372
    %v1383 = vsub.f32 %v1294, %v1377
    %s1384 = sld [smem:[#allocation3 + $0x4]]
    %v1385 = vstv %s1384
    %v1386 = vmul.f32 %v1385, %v1380
    %v1387 = vmul.f32 %v1385, %v1381
    %v1388 = vmul.f32 %v1385, %v1382
    %v1389 = vmul.f32 %v1385, %v1383
    %s1390 = scalar_lea.vmem [#allocation2], 352
    %1391 = vst [vmem:[%s1390] sm:$0xff] %v1386
    %1392 = vst [vmem:[%s1390 + $0x8] sm:$0xff] %v1387
    %1393 = vst [vmem:[%s1390 + $0x10] sm:$0xff] %v1388
    %1394 = vst [vmem:[%s1390 + $0x18] sm:$0xff] %v1389
    %v1395 = vmul.f32 %v1380, 2.0
    %v1396 = vmul.f32 %v1381, 2.0
    %v1397 = vmul.f32 %v1382, 2.0
    %v1398 = vmul.f32 %v1383, 2.0
    %1399 = vmatprep.subr.mxu0 0.0
    %1400 = vmatpush1.msra.mxu0 %v1380
    %1401 = vmatprep.subr.mxu0 0.0
    %1402 = vmatpush1.msra.mxu0 %v1381
    %1403 = vmatprep.subr.mxu0 0.0
    %1404 = vmatpush1.msra.mxu0 %v1382
    %1405 = vmatprep.subr.mxu0 0.0
    %1406 = vmatpush1.msra.mxu0 %v1383
    %1407 = vmatprep.subr.mxu0 0.0
    %1408 = vmatpush1.msra.mxu0 0.0
    %1409 = vmatprep.subr.mxu0 0.0
    %1410 = vmatpush1.msra.mxu0 0.0
    %1411 = vmatprep.subr.mxu0 0.0
    %1412 = vmatpush1.msra.mxu0 0.0
    %1413 = vmatprep.subr.mxu0 0.0
    %1414 = vmatpush1.msra.mxu0 0.0
    %1415 = vmatprep.subr.mxu0 0.0
    %1416 = vmatpush1.msra.mxu0 0.0
    %1417 = vmatprep.subr.mxu0 0.0
    %1418 = vmatpush1.msra.mxu0 0.0
    %1419 = vmatprep.subr.mxu0 0.0
    %1420 = vmatpush1.msra.mxu0 0.0
    %1421 = vmatprep.subr.mxu0 0.0
    %1422 = vmatpush1.msra.mxu0 0.0
    %1423 = vmatprep.subr.mxu0 0.0
    %1424 = vmatpush1.msra.mxu0 0.0
    %1425 = vmatprep.subr.mxu0 0.0
    %1426 = vmatpush1.msra.mxu0 0.0
    %1427 = vmatprep.subr.mxu0 0.0
    %1428 = vmatpush1.msra.mxu0 0.0
    %1429 = vmatprep.subr.mxu0 0.0
    %1430 = vmatpush1.msra.mxu0 0.0
    %1431 = vmatprep.subr.mxu0 0.0
    %1432 = vmatpush1.msra.mxu0 0.0
    %1433 = vmatprep.subr.mxu0 0.0
    %1434 = vmatpush1.msra.mxu0 0.0
    %1435 = vmatprep.subr.mxu0 0.0
    %1436 = vmatpush1.msra.mxu0 0.0
    %1437 = vmatprep.subr.mxu0 0.0
    %1438 = vmatpush1.msra.mxu0 0.0
    %1439 = vmatprep.subr.mxu0 0.0
    %1440 = vmatpush1.msra.mxu0 0.0
    %1441 = vmatprep.subr.mxu0 0.0
    %1442 = vmatpush1.msra.mxu0 0.0
    %1443 = vmatprep.subr.mxu0 0.0
    %1444 = vmatpush1.msra.mxu0 0.0
    %1445 = vmatprep.subr.mxu0 0.0
    %1446 = vmatpush1.msra.mxu0 0.0
    %1447 = vmatprep.subr.mxu0 0.0
    %1448 = vmatpush1.msra.mxu0 0.0
    %1449 = vmatprep.subr.mxu0 0.0
    %1450 = vmatpush1.msra.mxu0 0.0
    %1451 = vmatprep.subr.mxu0 0.0
    %1452 = vmatpush1.msra.mxu0 0.0
    %1453 = vmatprep.subr.mxu0 0.0
    %1454 = vmatpush1.msra.mxu0 0.0
    %1455 = vmatprep.subr.mxu0 0.0
    %1456 = vmatpush1.msra.mxu0 0.0
    %1457 = vmatprep.subr.mxu0 0.0
    %1458 = vmatpush1.msra.mxu0 0.0
    %1459 = vmatprep.subr.mxu0 0.0
    %1460 = vmatpush1.msra.mxu0 0.0
    %1461 = vmatprep.subr.mxu0 0.0
    %1462 = vmatpush1.msra.mxu0 0.0
    %1463 = vmatprep.mubr.f32.mxu0 0.0
    %1464 = vmatmul.mubr.f32.gmra.mrb[0].mxu0 %v244
    %v1465 = vpop.f32.mrb[0].mxu0
    %v1466 = vadd.f32 0.0, %v1465
    %v1467 = vpop.f32.mrb[0].mxu0
    %1468 = vmatprep.mubr.f32.mxu0 0.0
    %1469 = vmatmul.mubr.f32.gmra.mrb[0].mxu0 %v247
    %v1470 = vpop.f32.mrb[0].mxu0
    %v1471 = vadd.f32 0.0, %v1470
    %v1472 = vpop.f32.mrb[0].mxu0
    %1473 = vmatprep.mubr.f32.mxu0 0.0
    %1474 = vmatmul.mubr.f32.gmra.mrb[0].mxu0 %v250
    %v1475 = vpop.f32.mrb[0].mxu0
    %v1476 = vadd.f32 0.0, %v1475
    %v1477 = vpop.f32.mrb[0].mxu0
    %1478 = vmatprep.mubr.f32.mxu0 0.0
    %1479 = vmatmul.mubr.f32.gmra.mrb[0].mxu0 %v253
    %v1480 = vpop.f32.mrb[0].mxu0
    %v1481 = vadd.f32 0.0, %v1480
    %v1482 = vpop.f32.mrb[0].mxu0
    %1483 = vdwg.mxu0
    %v1484 = vsub.f32 %v1395, %v1466
    %v1485 = vsub.f32 %v1396, %v1471
    %v1486 = vsub.f32 %v1397, %v1476
    %v1487 = vsub.f32 %v1398, %v1481
    %s1488 = sld [smem:[#allocation3 + $0x3]]
    %v1489 = vstv %s1488
    %v1490 = vmul.f32 %v1489, %v1484
    %v1491 = vmul.f32 %v1489, %v1485
    %v1492 = vmul.f32 %v1489, %v1486
    %v1493 = vmul.f32 %v1489, %v1487
    %s1494 = scalar_lea.vmem [#allocation2], 384
    %1495 = vst [vmem:[%s1494] sm:$0xff] %v1490
    %1496 = vst [vmem:[%s1494 + $0x8] sm:$0xff] %v1491
    %1497 = vst [vmem:[%s1494 + $0x10] sm:$0xff] %v1492
    %1498 = vst [vmem:[%s1494 + $0x18] sm:$0xff] %v1493
    %v1499 = vmul.f32 %v1484, 2.0
    %v1500 = vmul.f32 %v1485, 2.0
    %v1501 = vmul.f32 %v1486, 2.0
    %v1502 = vmul.f32 %v1487, 2.0
    %1503 = vmatprep.subr.mxu0 0.0
    %1504 = vmatpush1.msra.mxu0 %v1484
    %1505 = vmatprep.subr.mxu0 0.0
    %1506 = vmatpush1.msra.mxu0 %v1485
    %1507 = vmatprep.subr.mxu0 0.0
    %1508 = vmatpush1.msra.mxu0 %v1486
    %1509 = vmatprep.subr.mxu0 0.0
    %1510 = vmatpush1.msra.mxu0 %v1487
    %1511 = vmatprep.subr.mxu0 0.0
    %1512 = vmatpush1.msra.mxu0 0.0
    %1513 = vmatprep.subr.mxu0 0.0
    %1514 = vmatpush1.msra.mxu0 0.0
    %1515 = vmatprep.subr.mxu0 0.0
    %1516 = vmatpush1.msra.mxu0 0.0
    %1517 = vmatprep.subr.mxu0 0.0
    %1518 = vmatpush1.msra.mxu0 0.0
    %1519 = vmatprep.subr.mxu0 0.0
    %1520 = vmatpush1.msra.mxu0 0.0
    %1521 = vmatprep.subr.mxu0 0.0
    %1522 = vmatpush1.msra.mxu0 0.0
    %1523 = vmatprep.subr.mxu0 0.0
    %1524 = vmatpush1.msra.mxu0 0.0
    %1525 = vmatprep.subr.mxu0 0.0
    %1526 = vmatpush1.msra.mxu0 0.0
    %1527 = vmatprep.subr.mxu0 0.0
    %1528 = vmatpush1.msra.mxu0 0.0
    %1529 = vmatprep.subr.mxu0 0.0
    %1530 = vmatpush1.msra.mxu0 0.0
    %1531 = vmatprep.subr.mxu0 0.0
    %1532 = vmatpush1.msra.mxu0 0.0
    %1533 = vmatprep.subr.mxu0 0.0
    %1534 = vmatpush1.msra.mxu0 0.0
    %1535 = vmatprep.subr.mxu0 0.0
    %1536 = vmatpush1.msra.mxu0 0.0
    %1537 = vmatprep.subr.mxu0 0.0
    %1538 = vmatpush1.msra.mxu0 0.0
    %1539 = vmatprep.subr.mxu0 0.0
    %1540 = vmatpush1.msra.mxu0 0.0
    %1541 = vmatprep.subr.mxu0 0.0
    %1542 = vmatpush1.msra.mxu0 0.0
    %1543 = vmatprep.subr.mxu0 0.0
    %1544 = vmatpush1.msra.mxu0 0.0
    %1545 = vmatprep.subr.mxu0 0.0
    %1546 = vmatpush1.msra.mxu0 0.0
    %1547 = vmatprep.subr.mxu0 0.0
    %1548 = vmatpush1.msra.mxu0 0.0
    %1549 = vmatprep.subr.mxu0 0.0
    %1550 = vmatpush1.msra.mxu0 0.0
    %1551 = vmatprep.subr.mxu0 0.0
    %1552 = vmatpush1.msra.mxu0 0.0
    %1553 = vmatprep.subr.mxu0 0.0
    %1554 = vmatpush1.msra.mxu0 0.0
    %1555 = vmatprep.subr.mxu0 0.0
    %1556 = vmatpush1.msra.mxu0 0.0
    %1557 = vmatprep.subr.mxu0 0.0
    %1558 = vmatpush1.msra.mxu0 0.0
    %1559 = vmatprep.subr.mxu0 0.0
    %1560 = vmatpush1.msra.mxu0 0.0
    %1561 = vmatprep.subr.mxu0 0.0
    %1562 = vmatpush1.msra.mxu0 0.0
    %1563 = vmatprep.subr.mxu0 0.0
    %1564 = vmatpush1.msra.mxu0 0.0
    %1565 = vmatprep.subr.mxu0 0.0
    %1566 = vmatpush1.msra.mxu0 0.0
    %1567 = vmatprep.mubr.f32.mxu0 0.0
    %1568 = vmatmul.mubr.f32.gmra.mrb[0].mxu0 %v244
    %v1569 = vpop.f32.mrb[0].mxu0
    %v1570 = vadd.f32 0.0, %v1569
    %v1571 = vpop.f32.mrb[0].mxu0
    %1572 = vmatprep.mubr.f32.mxu0 0.0
    %1573 = vmatmul.mubr.f32.gmra.mrb[0].mxu0 %v247
    %v1574 = vpop.f32.mrb[0].mxu0
    %v1575 = vadd.f32 0.0, %v1574
    %v1576 = vpop.f32.mrb[0].mxu0
    %1577 = vmatprep.mubr.f32.mxu0 0.0
    %1578 = vmatmul.mubr.f32.gmra.mrb[0].mxu0 %v250
    %v1579 = vpop.f32.mrb[0].mxu0
    %v1580 = vadd.f32 0.0, %v1579
    %v1581 = vpop.f32.mrb[0].mxu0
    %1582 = vmatprep.mubr.f32.mxu0 0.0
    %1583 = vmatmul.mubr.f32.gmra.mrb[0].mxu0 %v253
    %v1584 = vpop.f32.mrb[0].mxu0
    %v1585 = vadd.f32 0.0, %v1584
    %v1586 = vpop.f32.mrb[0].mxu0
    %1587 = vdwg.mxu0
    %v1588 = vsub.f32 %v1499, %v1570
    %v1589 = vsub.f32 %v1500, %v1575
    %v1590 = vsub.f32 %v1501, %v1580
    %v1591 = vsub.f32 %v1502, %v1585
    %s1592 = sld [smem:[#allocation3 + $0x2]]
    %v1593 = vstv %s1592
    %v1594 = vmul.f32 %v1593, %v1588
    %v1595 = vmul.f32 %v1593, %v1589
    %v1596 = vmul.f32 %v1593, %v1590
    %v1597 = vmul.f32 %v1593, %v1591
    %s1598 = scalar_lea.vmem [#allocation2], 416
    %1599 = vst [vmem:[%s1598] sm:$0xff] %v1594
    %1600 = vst [vmem:[%s1598 + $0x8] sm:$0xff] %v1595
    %1601 = vst [vmem:[%s1598 + $0x10] sm:$0xff] %v1596
    %1602 = vst [vmem:[%s1598 + $0x18] sm:$0xff] %v1597
    %v1603 = vmul.f32 %v1588, 2.0
    %v1604 = vmul.f32 %v1589, 2.0
    %v1605 = vmul.f32 %v1590, 2.0
    %v1606 = vmul.f32 %v1591, 2.0
    %1607 = vmatprep.subr.mxu0 0.0
    %1608 = vmatpush1.msra.mxu0 %v1588
    %1609 = vmatprep.subr.mxu0 0.0
    %1610 = vmatpush1.msra.mxu0 %v1589
    %1611 = vmatprep.subr.mxu0 0.0
    %1612 = vmatpush1.msra.mxu0 %v1590
    %1613 = vmatprep.subr.mxu0 0.0
    %1614 = vmatpush1.msra.mxu0 %v1591
    %1615 = vmatprep.subr.mxu0 0.0
    %1616 = vmatpush1.msra.mxu0 0.0
    %1617 = vmatprep.subr.mxu0 0.0
    %1618 = vmatpush1.msra.mxu0 0.0
    %1619 = vmatprep.subr.mxu0 0.0
    %1620 = vmatpush1.msra.mxu0 0.0
    %1621 = vmatprep.subr.mxu0 0.0
    %1622 = vmatpush1.msra.mxu0 0.0
    %1623 = vmatprep.subr.mxu0 0.0
    %1624 = vmatpush1.msra.mxu0 0.0
    %1625 = vmatprep.subr.mxu0 0.0
    %1626 = vmatpush1.msra.mxu0 0.0
    %1627 = vmatprep.subr.mxu0 0.0
    %1628 = vmatpush1.msra.mxu0 0.0
    %1629 = vmatprep.subr.mxu0 0.0
    %1630 = vmatpush1.msra.mxu0 0.0
    %1631 = vmatprep.subr.mxu0 0.0
    %1632 = vmatpush1.msra.mxu0 0.0
    %1633 = vmatprep.subr.mxu0 0.0
    %1634 = vmatpush1.msra.mxu0 0.0
    %1635 = vmatprep.subr.mxu0 0.0
    %1636 = vmatpush1.msra.mxu0 0.0
    %1637 = vmatprep.subr.mxu0 0.0
    %1638 = vmatpush1.msra.mxu0 0.0
    %1639 = vmatprep.subr.mxu0 0.0
    %1640 = vmatpush1.msra.mxu0 0.0
    %1641 = vmatprep.subr.mxu0 0.0
    %1642 = vmatpush1.msra.mxu0 0.0
    %1643 = vmatprep.subr.mxu0 0.0
    %1644 = vmatpush1.msra.mxu0 0.0
    %1645 = vmatprep.subr.mxu0 0.0
    %1646 = vmatpush1.msra.mxu0 0.0
    %1647 = vmatprep.subr.mxu0 0.0
    %1648 = vmatpush1.msra.mxu0 0.0
    %1649 = vmatprep.subr.mxu0 0.0
    %1650 = vmatpush1.msra.mxu0 0.0
    %1651 = vmatprep.subr.mxu0 0.0
    %1652 = vmatpush1.msra.mxu0 0.0
    %1653 = vmatprep.subr.mxu0 0.0
    %1654 = vmatpush1.msra.mxu0 0.0
    %1655 = vmatprep.subr.mxu0 0.0
    %1656 = vmatpush1.msra.mxu0 0.0
    %1657 = vmatprep.subr.mxu0 0.0
    %1658 = vmatpush1.msra.mxu0 0.0
    %1659 = vmatprep.subr.mxu0 0.0
    %1660 = vmatpush1.msra.mxu0 0.0
    %1661 = vmatprep.subr.mxu0 0.0
    %1662 = vmatpush1.msra.mxu0 0.0
    %1663 = vmatprep.subr.mxu0 0.0
    %1664 = vmatpush1.msra.mxu0 0.0
    %1665 = vmatprep.subr.mxu0 0.0
    %1666 = vmatpush1.msra.mxu0 0.0
    %1667 = vmatprep.subr.mxu0 0.0
    %1668 = vmatpush1.msra.mxu0 0.0
    %1669 = vmatprep.subr.mxu0 0.0
    %1670 = vmatpush1.msra.mxu0 0.0
    %1671 = vmatprep.mubr.f32.mxu0 0.0
    %1672 = vmatmul.mubr.f32.gmra.mrb[0].mxu0 %v244
    %v1673 = vpop.f32.mrb[0].mxu0
    %v1674 = vadd.f32 0.0, %v1673
    %v1675 = vpop.f32.mrb[0].mxu0
    %1676 = vmatprep.mubr.f32.mxu0 0.0
    %1677 = vmatmul.mubr.f32.gmra.mrb[0].mxu0 %v247
    %v1678 = vpop.f32.mrb[0].mxu0
    %v1679 = vadd.f32 0.0, %v1678
    %v1680 = vpop.f32.mrb[0].mxu0
    %1681 = vmatprep.mubr.f32.mxu0 0.0
    %1682 = vmatmul.mubr.f32.gmra.mrb[0].mxu0 %v250
    %v1683 = vpop.f32.mrb[0].mxu0
    %v1684 = vadd.f32 0.0, %v1683
    %v1685 = vpop.f32.mrb[0].mxu0
    %1686 = vmatprep.mubr.f32.mxu0 0.0
    %1687 = vmatmul.mubr.f32.gmra.mrb[0].mxu0 %v253
    %v1688 = vpop.f32.mrb[0].mxu0
    %v1689 = vadd.f32 0.0, %v1688
    %v1690 = vpop.f32.mrb[0].mxu0
    %1691 = vdwg.mxu0
    %v1692 = vsub.f32 %v1603, %v1674
    %v1693 = vsub.f32 %v1604, %v1679
    %v1694 = vsub.f32 %v1605, %v1684
    %v1695 = vsub.f32 %v1606, %v1689
    %s1696 = sld [smem:[#allocation3 + $0x1]]
    %v1697 = vstv %s1696
    %v1698 = vmul.f32 %v1697, %v1692
    %v1699 = vmul.f32 %v1697, %v1693
    %v1700 = vmul.f32 %v1697, %v1694
    %v1701 = vmul.f32 %v1697, %v1695
    %s1702 = scalar_lea.vmem [#allocation2], 448
    %1703 = vst [vmem:[%s1702] sm:$0xff] %v1698
    %1704 = vst [vmem:[%s1702 + $0x8] sm:$0xff] %v1699
    %1705 = vst [vmem:[%s1702 + $0x10] sm:$0xff] %v1700
    %1706 = vst [vmem:[%s1702 + $0x18] sm:$0xff] %v1701
    %v1707 = vmul.f32 %v1692, 2.0
    %v1708 = vmul.f32 %v1693, 2.0
    %v1709 = vmul.f32 %v1694, 2.0
    %v1710 = vmul.f32 %v1695, 2.0
    %1711 = vmatprep.subr.mxu0 0.0
    %1712 = vmatpush1.msra.mxu0 %v1692
    %1713 = vmatprep.subr.mxu0 0.0
    %1714 = vmatpush1.msra.mxu0 %v1693
    %1715 = vmatprep.subr.mxu0 0.0
    %1716 = vmatpush1.msra.mxu0 %v1694
    %1717 = vmatprep.subr.mxu0 0.0
    %1718 = vmatpush1.msra.mxu0 %v1695
    %1719 = vmatprep.subr.mxu0 0.0
    %1720 = vmatpush1.msra.mxu0 0.0
    %1721 = vmatprep.subr.mxu0 0.0
    %1722 = vmatpush1.msra.mxu0 0.0
    %1723 = vmatprep.subr.mxu0 0.0
    %1724 = vmatpush1.msra.mxu0 0.0
    %1725 = vmatprep.subr.mxu0 0.0
    %1726 = vmatpush1.msra.mxu0 0.0
    %1727 = vmatprep.subr.mxu0 0.0
    %1728 = vmatpush1.msra.mxu0 0.0
    %1729 = vmatprep.subr.mxu0 0.0
    %1730 = vmatpush1.msra.mxu0 0.0
    %1731 = vmatprep.subr.mxu0 0.0
    %1732 = vmatpush1.msra.mxu0 0.0
    %1733 = vmatprep.subr.mxu0 0.0
    %1734 = vmatpush1.msra.mxu0 0.0
    %1735 = vmatprep.subr.mxu0 0.0
    %1736 = vmatpush1.msra.mxu0 0.0
    %1737 = vmatprep.subr.mxu0 0.0
    %1738 = vmatpush1.msra.mxu0 0.0
    %1739 = vmatprep.subr.mxu0 0.0
    %1740 = vmatpush1.msra.mxu0 0.0
    %1741 = vmatprep.subr.mxu0 0.0
    %1742 = vmatpush1.msra.mxu0 0.0
    %1743 = vmatprep.subr.mxu0 0.0
    %1744 = vmatpush1.msra.mxu0 0.0
    %1745 = vmatprep.subr.mxu0 0.0
    %1746 = vmatpush1.msra.mxu0 0.0
    %1747 = vmatprep.subr.mxu0 0.0
    %1748 = vmatpush1.msra.mxu0 0.0
    %1749 = vmatprep.subr.mxu0 0.0
    %1750 = vmatpush1.msra.mxu0 0.0
    %1751 = vmatprep.subr.mxu0 0.0
    %1752 = vmatpush1.msra.mxu0 0.0
    %1753 = vmatprep.subr.mxu0 0.0
    %1754 = vmatpush1.msra.mxu0 0.0
    %1755 = vmatprep.subr.mxu0 0.0
    %1756 = vmatpush1.msra.mxu0 0.0
    %1757 = vmatprep.subr.mxu0 0.0
    %1758 = vmatpush1.msra.mxu0 0.0
    %1759 = vmatprep.subr.mxu0 0.0
    %1760 = vmatpush1.msra.mxu0 0.0
    %1761 = vmatprep.subr.mxu0 0.0
    %1762 = vmatpush1.msra.mxu0 0.0
    %1763 = vmatprep.subr.mxu0 0.0
    %1764 = vmatpush1.msra.mxu0 0.0
    %1765 = vmatprep.subr.mxu0 0.0
    %1766 = vmatpush1.msra.mxu0 0.0
    %1767 = vmatprep.subr.mxu0 0.0
    %1768 = vmatpush1.msra.mxu0 0.0
    %1769 = vmatprep.subr.mxu0 0.0
    %1770 = vmatpush1.msra.mxu0 0.0
    %1771 = vmatprep.subr.mxu0 0.0
    %1772 = vmatpush1.msra.mxu0 0.0
    %1773 = vmatprep.subr.mxu0 0.0
    %1774 = vmatpush1.msra.mxu0 0.0
    %1775 = vmatprep.mubr.f32.mxu0 0.0
    %1776 = vmatmul.mubr.f32.gmra.mrb[0].mxu0 %v244
    %v1777 = vpop.f32.mrb[0].mxu0
    %v1778 = vadd.f32 0.0, %v1777
    %v1779 = vpop.f32.mrb[0].mxu0
    %1780 = vmatprep.mubr.f32.mxu0 0.0
    %1781 = vmatmul.mubr.f32.gmra.mrb[0].mxu0 %v247
    %v1782 = vpop.f32.mrb[0].mxu0
    %v1783 = vadd.f32 0.0, %v1782
    %v1784 = vpop.f32.mrb[0].mxu0
    %1785 = vmatprep.mubr.f32.mxu0 0.0
    %1786 = vmatmul.mubr.f32.gmra.mrb[0].mxu0 %v250
    %v1787 = vpop.f32.mrb[0].mxu0
    %v1788 = vadd.f32 0.0, %v1787
    %v1789 = vpop.f32.mrb[0].mxu0
    %1790 = vmatprep.mubr.f32.mxu0 0.0
    %1791 = vmatmul.mubr.f32.gmra.mrb[0].mxu0 %v253
    %v1792 = vpop.f32.mrb[0].mxu0
    %v1793 = vadd.f32 0.0, %v1792
    %v1794 = vpop.f32.mrb[0].mxu0
    %1795 = vdwg.mxu0
    %v1796 = vsub.f32 %v1707, %v1778
    %v1797 = vsub.f32 %v1708, %v1783
    %v1798 = vsub.f32 %v1709, %v1788
    %v1799 = vsub.f32 %v1710, %v1793
    %s1800 = sld [smem:[#allocation3]]
    %v1801 = vstv %s1800
    %v1802 = vmul.f32 %v1801, %v1796
    %v1803 = vmul.f32 %v1801, %v1797
    %v1804 = vmul.f32 %v1801, %v1798
    %v1805 = vmul.f32 %v1801, %v1799
    %s1806 = scalar_lea.vmem [#allocation2], 480
    %1807 = vst [vmem:[%s1806] sm:$0xff] %v1802
    %1808 = vst [vmem:[%s1806 + $0x8] sm:$0xff] %v1803
    %1809 = vst [vmem:[%s1806 + $0x10] sm:$0xff] %v1804
    %1810 = vst [vmem:[%s1806 + $0x18] sm:$0xff] %v1805
    %v1811 = vld [vmem:[#allocation2] sm:$0xff]
    %v1812 = vld [vmem:[#allocation2 + $0x8] sm:$0xff]
    %v1813 = vld [vmem:[#allocation2 + $0x10] sm:$0xff]
    %v1814 = vld [vmem:[#allocation2 + $0x18] sm:$0xff]
    %v1815 = vld [vmem:[%s350] sm:$0xff]
    %v1816 = vld [vmem:[%s350 + $0x8] sm:$0xff]
    %v1817 = vld [vmem:[%s350 + $0x10] sm:$0xff]
    %v1818 = vld [vmem:[%s350 + $0x18] sm:$0xff]
    %1819 = vmatprep.subr.mxu0 0.0
    %1820 = vmatpush1.msra.mxu0 %v1811
    %1821 = vmatprep.subr.mxu0 0.0
    %1822 = vmatpush1.msra.mxu0 %v1812
    %1823 = vmatprep.subr.mxu0 0.0
    %1824 = vmatpush1.msra.mxu0 %v1813
    %1825 = vmatprep.subr.mxu0 0.0
    %1826 = vmatpush1.msra.mxu0 %v1814
    %1827 = vmatprep.subr.mxu0 0.0
    %1828 = vmatpush1.msra.mxu0 0.0
    %1829 = vmatprep.subr.mxu0 0.0
    %1830 = vmatpush1.msra.mxu0 0.0
    %1831 = vmatprep.subr.mxu0 0.0
    %1832 = vmatpush1.msra.mxu0 0.0
    %1833 = vmatprep.subr.mxu0 0.0
    %1834 = vmatpush1.msra.mxu0 0.0
    %1835 = vmatprep.subr.mxu0 0.0
    %1836 = vmatpush1.msra.mxu0 0.0
    %1837 = vmatprep.subr.mxu0 0.0
    %1838 = vmatpush1.msra.mxu0 0.0
    %1839 = vmatprep.subr.mxu0 0.0
    %1840 = vmatpush1.msra.mxu0 0.0
    %1841 = vmatprep.subr.mxu0 0.0
    %1842 = vmatpush1.msra.mxu0 0.0
    %1843 = vmatprep.subr.mxu0 0.0
    %1844 = vmatpush1.msra.mxu0 0.0
    %1845 = vmatprep.subr.mxu0 0.0
    %1846 = vmatpush1.msra.mxu0 0.0
    %1847 = vmatprep.subr.mxu0 0.0
    %1848 = vmatpush1.msra.mxu0 0.0
    %1849 = vmatprep.subr.mxu0 0.0
    %1850 = vmatpush1.msra.mxu0 0.0
    %1851 = vmatprep.subr.mxu0 0.0
    %1852 = vmatpush1.msra.mxu0 0.0
    %1853 = vmatprep.subr.mxu0 0.0
    %1854 = vmatpush1.msra.mxu0 0.0
    %1855 = vmatprep.subr.mxu0 0.0
    %1856 = vmatpush1.msra.mxu0 0.0
    %1857 = vmatprep.subr.mxu0 0.0
    %1858 = vmatpush1.msra.mxu0 0.0
    %1859 = vmatprep.subr.mxu0 0.0
    %1860 = vmatpush1.msra.mxu0 0.0
    %1861 = vmatprep.subr.mxu0 0.0
    %1862 = vmatpush1.msra.mxu0 0.0
    %1863 = vmatprep.subr.mxu0 0.0
    %1864 = vmatpush1.msra.mxu0 0.0
    %1865 = vmatprep.subr.mxu0 0.0
    %1866 = vmatpush1.msra.mxu0 0.0
    %1867 = vmatprep.subr.mxu0 0.0
    %1868 = vmatpush1.msra.mxu0 0.0
    %1869 = vmatprep.subr.mxu0 0.0
    %1870 = vmatpush1.msra.mxu0 0.0
    %1871 = vmatprep.subr.mxu0 0.0
    %1872 = vmatpush1.msra.mxu0 0.0
    %1873 = vmatprep.subr.mxu0 0.0
    %1874 = vmatpush1.msra.mxu0 0.0
    %1875 = vmatprep.subr.mxu0 0.0
    %1876 = vmatpush1.msra.mxu0 0.0
    %1877 = vmatprep.subr.mxu0 0.0
    %1878 = vmatpush1.msra.mxu0 0.0
    %1879 = vmatprep.subr.mxu0 0.0
    %1880 = vmatpush1.msra.mxu0 0.0
    %1881 = vmatprep.subr.mxu0 0.0
    %1882 = vmatpush1.msra.mxu0 0.0
    %1883 = vmatprep.mubr.f32.mxu0 0.0
    %1884 = vmatmul.mubr.f32.gmra.mrb[0].mxu0 %v244
    %v1885 = vpop.f32.mrb[0].mxu0
    %v1886 = vadd.f32 %v1815, %v1885
    %v1887 = vpop.f32.mrb[0].mxu0
    %1888 = vmatprep.mubr.f32.mxu0 0.0
    %1889 = vmatmul.mubr.f32.gmra.mrb[0].mxu0 %v247
    %v1890 = vpop.f32.mrb[0].mxu0
    %v1891 = vadd.f32 %v1816, %v1890
    %v1892 = vpop.f32.mrb[0].mxu0
    %1893 = vmatprep.mubr.f32.mxu0 0.0
    %1894 = vmatmul.mubr.f32.gmra.mrb[0].mxu0 %v250
    %v1895 = vpop.f32.mrb[0].mxu0
    %v1896 = vadd.f32 %v1817, %v1895
    %v1897 = vpop.f32.mrb[0].mxu0
    %1898 = vmatprep.mubr.f32.mxu0 0.0
    %1899 = vmatmul.mubr.f32.gmra.mrb[0].mxu0 %v253
    %v1900 = vpop.f32.mrb[0].mxu0
    %v1901 = vadd.f32 %v1818, %v1900
    %v1902 = vpop.f32.mrb[0].mxu0
    %1903 = vdwg.mxu0
    %v1904 = vld [vmem:[%s454] sm:$0xff]
    %v1905 = vld [vmem:[%s454 + $0x8] sm:$0xff]
    %v1906 = vld [vmem:[%s454 + $0x10] sm:$0xff]
    %v1907 = vld [vmem:[%s454 + $0x18] sm:$0xff]
    %1908 = vmatprep.subr.mxu0 0.0
    %1909 = vmatpush1.msra.mxu0 %v1886
    %1910 = vmatprep.subr.mxu0 0.0
    %1911 = vmatpush1.msra.mxu0 %v1891
    %1912 = vmatprep.subr.mxu0 0.0
    %1913 = vmatpush1.msra.mxu0 %v1896
    %1914 = vmatprep.subr.mxu0 0.0
    %1915 = vmatpush1.msra.mxu0 %v1901
    %1916 = vmatprep.subr.mxu0 0.0
    %1917 = vmatpush1.msra.mxu0 0.0
    %1918 = vmatprep.subr.mxu0 0.0
    %1919 = vmatpush1.msra.mxu0 0.0
    %1920 = vmatprep.subr.mxu0 0.0
    %1921 = vmatpush1.msra.mxu0 0.0
    %1922 = vmatprep.subr.mxu0 0.0
    %1923 = vmatpush1.msra.mxu0 0.0
    %1924 = vmatprep.subr.mxu0 0.0
    %1925 = vmatpush1.msra.mxu0 0.0
    %1926 = vmatprep.subr.mxu0 0.0
    %1927 = vmatpush1.msra.mxu0 0.0
    %1928 = vmatprep.subr.mxu0 0.0
    %1929 = vmatpush1.msra.mxu0 0.0
    %1930 = vmatprep.subr.mxu0 0.0
    %1931 = vmatpush1.msra.mxu0 0.0
    %1932 = vmatprep.subr.mxu0 0.0
    %1933 = vmatpush1.msra.mxu0 0.0
    %1934 = vmatprep.subr.mxu0 0.0
    %1935 = vmatpush1.msra.mxu0 0.0
    %1936 = vmatprep.subr.mxu0 0.0
    %1937 = vmatpush1.msra.mxu0 0.0
    %1938 = vmatprep.subr.mxu0 0.0
    %1939 = vmatpush1.msra.mxu0 0.0
    %1940 = vmatprep.subr.mxu0 0.0
    %1941 = vmatpush1.msra.mxu0 0.0
    %1942 = vmatprep.subr.mxu0 0.0
    %1943 = vmatpush1.msra.mxu0 0.0
    %1944 = vmatprep.subr.mxu0 0.0
    %1945 = vmatpush1.msra.mxu0 0.0
    %1946 = vmatprep.subr.mxu0 0.0
    %1947 = vmatpush1.msra.mxu0 0.0
    %1948 = vmatprep.subr.mxu0 0.0
    %1949 = vmatpush1.msra.mxu0 0.0
    %1950 = vmatprep.subr.mxu0 0.0
    %1951 = vmatpush1.msra.mxu0 0.0
    %1952 = vmatprep.subr.mxu0 0.0
    %1953 = vmatpush1.msra.mxu0 0.0
    %1954 = vmatprep.subr.mxu0 0.0
    %1955 = vmatpush1.msra.mxu0 0.0
    %1956 = vmatprep.subr.mxu0 0.0
    %1957 = vmatpush1.msra.mxu0 0.0
    %1958 = vmatprep.subr.mxu0 0.0
    %1959 = vmatpush1.msra.mxu0 0.0
    %1960 = vmatprep.subr.mxu0 0.0
    %1961 = vmatpush1.msra.mxu0 0.0
    %1962 = vmatprep.subr.mxu0 0.0
    %1963 = vmatpush1.msra.mxu0 0.0
    %1964 = vmatprep.subr.mxu0 0.0
    %1965 = vmatpush1.msra.mxu0 0.0
    %1966 = vmatprep.subr.mxu0 0.0
    %1967 = vmatpush1.msra.mxu0 0.0
    %1968 = vmatprep.subr.mxu0 0.0
    %1969 = vmatpush1.msra.mxu0 0.0
    %1970 = vmatprep.subr.mxu0 0.0
    %1971 = vmatpush1.msra.mxu0 0.0
    %1972 = vmatprep.mubr.f32.mxu0 0.0
    %1973 = vmatmul.mubr.f32.gmra.mrb[0].mxu0 %v244
    %v1974 = vpop.f32.mrb[0].mxu0
    %v1975 = vadd.f32 %v1904, %v1974
    %v1976 = vpop.f32.mrb[0].mxu0
    %1977 = vmatprep.mubr.f32.mxu0 0.0
    %1978 = vmatmul.mubr.f32.gmra.mrb[0].mxu0 %v247
    %v1979 = vpop.f32.mrb[0].mxu0
    %v1980 = vadd.f32 %v1905, %v1979
    %v1981 = vpop.f32.mrb[0].mxu0
    %1982 = vmatprep.mubr.f32.mxu0 0.0
    %1983 = vmatmul.mubr.f32.gmra.mrb[0].mxu0 %v250
    %v1984 = vpop.f32.mrb[0].mxu0
    %v1985 = vadd.f32 %v1906, %v1984
    %v1986 = vpop.f32.mrb[0].mxu0
    %1987 = vmatprep.mubr.f32.mxu0 0.0
    %1988 = vmatmul.mubr.f32.gmra.mrb[0].mxu0 %v253
    %v1989 = vpop.f32.mrb[0].mxu0
    %v1990 = vadd.f32 %v1907, %v1989
    %v1991 = vpop.f32.mrb[0].mxu0
    %1992 = vdwg.mxu0
    %v1993 = vld [vmem:[%s558] sm:$0xff]
    %v1994 = vld [vmem:[%s558 + $0x8] sm:$0xff]
    %v1995 = vld [vmem:[%s558 + $0x10] sm:$0xff]
    %v1996 = vld [vmem:[%s558 + $0x18] sm:$0xff]
    %1997 = vmatprep.subr.mxu0 0.0
    %1998 = vmatpush1.msra.mxu0 %v1975
    %1999 = vmatprep.subr.mxu0 0.0
    %2000 = vmatpush1.msra.mxu0 %v1980
    %2001 = vmatprep.subr.mxu0 0.0
    %2002 = vmatpush1.msra.mxu0 %v1985
    %2003 = vmatprep.subr.mxu0 0.0
    %2004 = vmatpush1.msra.mxu0 %v1990
    %2005 = vmatprep.subr.mxu0 0.0
    %2006 = vmatpush1.msra.mxu0 0.0
    %2007 = vmatprep.subr.mxu0 0.0
    %2008 = vmatpush1.msra.mxu0 0.0
    %2009 = vmatprep.subr.mxu0 0.0
    %2010 = vmatpush1.msra.mxu0 0.0
    %2011 = vmatprep.subr.mxu0 0.0
    %2012 = vmatpush1.msra.mxu0 0.0
    %2013 = vmatprep.subr.mxu0 0.0
    %2014 = vmatpush1.msra.mxu0 0.0
    %2015 = vmatprep.subr.mxu0 0.0
    %2016 = vmatpush1.msra.mxu0 0.0
    %2017 = vmatprep.subr.mxu0 0.0
    %2018 = vmatpush1.msra.mxu0 0.0
    %2019 = vmatprep.subr.mxu0 0.0
    %2020 = vmatpush1.msra.mxu0 0.0
    %2021 = vmatprep.subr.mxu0 0.0
    %2022 = vmatpush1.msra.mxu0 0.0
    %2023 = vmatprep.subr.mxu0 0.0
    %2024 = vmatpush1.msra.mxu0 0.0
    %2025 = vmatprep.subr.mxu0 0.0
    %2026 = vmatpush1.msra.mxu0 0.0
    %2027 = vmatprep.subr.mxu0 0.0
    %2028 = vmatpush1.msra.mxu0 0.0
    %2029 = vmatprep.subr.mxu0 0.0
    %2030 = vmatpush1.msra.mxu0 0.0
    %2031 = vmatprep.subr.mxu0 0.0
    %2032 = vmatpush1.msra.mxu0 0.0
    %2033 = vmatprep.subr.mxu0 0.0
    %2034 = vmatpush1.msra.mxu0 0.0
    %2035 = vmatprep.subr.mxu0 0.0
    %2036 = vmatpush1.msra.mxu0 0.0
    %2037 = vmatprep.subr.mxu0 0.0
    %2038 = vmatpush1.msra.mxu0 0.0
    %2039 = vmatprep.subr.mxu0 0.0
    %2040 = vmatpush1.msra.mxu0 0.0
    %2041 = vmatprep.subr.mxu0 0.0
    %2042 = vmatpush1.msra.mxu0 0.0
    %2043 = vmatprep.subr.mxu0 0.0
    %2044 = vmatpush1.msra.mxu0 0.0
    %2045 = vmatprep.subr.mxu0 0.0
    %2046 = vmatpush1.msra.mxu0 0.0
    %2047 = vmatprep.subr.mxu0 0.0
    %2048 = vmatpush1.msra.mxu0 0.0
    %2049 = vmatprep.subr.mxu0 0.0
    %2050 = vmatpush1.msra.mxu0 0.0
    %2051 = vmatprep.subr.mxu0 0.0
    %2052 = vmatpush1.msra.mxu0 0.0
    %2053 = vmatprep.subr.mxu0 0.0
    %2054 = vmatpush1.msra.mxu0 0.0
    %2055 = vmatprep.subr.mxu0 0.0
    %2056 = vmatpush1.msra.mxu0 0.0
    %2057 = vmatprep.subr.mxu0 0.0
    %2058 = vmatpush1.msra.mxu0 0.0
    %2059 = vmatprep.subr.mxu0 0.0
    %2060 = vmatpush1.msra.mxu0 0.0
    %2061 = vmatprep.mubr.f32.mxu0 0.0
    %2062 = vmatmul.mubr.f32.gmra.mrb[0].mxu0 %v244
    %v2063 = vpop.f32.mrb[0].mxu0
    %v2064 = vadd.f32 %v1993, %v2063
    %v2065 = vpop.f32.mrb[0].mxu0
    %2066 = vmatprep.mubr.f32.mxu0 0.0
    %2067 = vmatmul.mubr.f32.gmra.mrb[0].mxu0 %v247
    %v2068 = vpop.f32.mrb[0].mxu0
    %v2069 = vadd.f32 %v1994, %v2068
    %v2070 = vpop.f32.mrb[0].mxu0
    %2071 = vmatprep.mubr.f32.mxu0 0.0
    %2072 = vmatmul.mubr.f32.gmra.mrb[0].mxu0 %v250
    %v2073 = vpop.f32.mrb[0].mxu0
    %v2074 = vadd.f32 %v1995, %v2073
    %v2075 = vpop.f32.mrb[0].mxu0
    %2076 = vmatprep.mubr.f32.mxu0 0.0
    %2077 = vmatmul.mubr.f32.gmra.mrb[0].mxu0 %v253
    %v2078 = vpop.f32.mrb[0].mxu0
    %v2079 = vadd.f32 %v1996, %v2078
    %v2080 = vpop.f32.mrb[0].mxu0
    %2081 = vdwg.mxu0
    %v2082 = vld [vmem:[%s662] sm:$0xff]
    %v2083 = vld [vmem:[%s662 + $0x8] sm:$0xff]
    %v2084 = vld [vmem:[%s662 + $0x10] sm:$0xff]
    %v2085 = vld [vmem:[%s662 + $0x18] sm:$0xff]
    %2086 = vmatprep.subr.mxu0 0.0
    %2087 = vmatpush1.msra.mxu0 %v2064
    %2088 = vmatprep.subr.mxu0 0.0
    %2089 = vmatpush1.msra.mxu0 %v2069
    %2090 = vmatprep.subr.mxu0 0.0
    %2091 = vmatpush1.msra.mxu0 %v2074
    %2092 = vmatprep.subr.mxu0 0.0
    %2093 = vmatpush1.msra.mxu0 %v2079
    %2094 = vmatprep.subr.mxu0 0.0
    %2095 = vmatpush1.msra.mxu0 0.0
    %2096 = vmatprep.subr.mxu0 0.0
    %2097 = vmatpush1.msra.mxu0 0.0
    %2098 = vmatprep.subr.mxu0 0.0
    %2099 = vmatpush1.msra.mxu0 0.0
    %2100 = vmatprep.subr.mxu0 0.0
    %2101 = vmatpush1.msra.mxu0 0.0
    %2102 = vmatprep.subr.mxu0 0.0
    %2103 = vmatpush1.msra.mxu0 0.0
    %2104 = vmatprep.subr.mxu0 0.0
    %2105 = vmatpush1.msra.mxu0 0.0
    %2106 = vmatprep.subr.mxu0 0.0
    %2107 = vmatpush1.msra.mxu0 0.0
    %2108 = vmatprep.subr.mxu0 0.0
    %2109 = vmatpush1.msra.mxu0 0.0
    %2110 = vmatprep.subr.mxu0 0.0
    %2111 = vmatpush1.msra.mxu0 0.0
    %2112 = vmatprep.subr.mxu0 0.0
    %2113 = vmatpush1.msra.mxu0 0.0
    %2114 = vmatprep.subr.mxu0 0.0
    %2115 = vmatpush1.msra.mxu0 0.0
    %2116 = vmatprep.subr.mxu0 0.0
    %2117 = vmatpush1.msra.mxu0 0.0
    %2118 = vmatprep.subr.mxu0 0.0
    %2119 = vmatpush1.msra.mxu0 0.0
    %2120 = vmatprep.subr.mxu0 0.0
    %2121 = vmatpush1.msra.mxu0 0.0
    %2122 = vmatprep.subr.mxu0 0.0
    %2123 = vmatpush1.msra.mxu0 0.0
    %2124 = vmatprep.subr.mxu0 0.0
    %2125 = vmatpush1.msra.mxu0 0.0
    %2126 = vmatprep.subr.mxu0 0.0
    %2127 = vmatpush1.msra.mxu0 0.0
    %2128 = vmatprep.subr.mxu0 0.0
    %2129 = vmatpush1.msra.mxu0 0.0
    %2130 = vmatprep.subr.mxu0 0.0
    %2131 = vmatpush1.msra.mxu0 0.0
    %2132 = vmatprep.subr.mxu0 0.0
    %2133 = vmatpush1.msra.mxu0 0.0
    %2134 = vmatprep.subr.mxu0 0.0
    %2135 = vmatpush1.msra.mxu0 0.0
    %2136 = vmatprep.subr.mxu0 0.0
    %2137 = vmatpush1.msra.mxu0 0.0
    %2138 = vmatprep.subr.mxu0 0.0
    %2139 = vmatpush1.msra.mxu0 0.0
    %2140 = vmatprep.subr.mxu0 0.0
    %2141 = vmatpush1.msra.mxu0 0.0
    %2142 = vmatprep.subr.mxu0 0.0
    %2143 = vmatpush1.msra.mxu0 0.0
    %2144 = vmatprep.subr.mxu0 0.0
    %2145 = vmatpush1.msra.mxu0 0.0
    %2146 = vmatprep.subr.mxu0 0.0
    %2147 = vmatpush1.msra.mxu0 0.0
    %2148 = vmatprep.subr.mxu0 0.0
    %2149 = vmatpush1.msra.mxu0 0.0
    %2150 = vmatprep.mubr.f32.mxu0 0.0
    %2151 = vmatmul.mubr.f32.gmra.mrb[0].mxu0 %v244
    %v2152 = vpop.f32.mrb[0].mxu0
    %v2153 = vadd.f32 %v2082, %v2152
    %v2154 = vpop.f32.mrb[0].mxu0
    %2155 = vmatprep.mubr.f32.mxu0 0.0
    %2156 = vmatmul.mubr.f32.gmra.mrb[0].mxu0 %v247
    %v2157 = vpop.f32.mrb[0].mxu0
    %v2158 = vadd.f32 %v2083, %v2157
    %v2159 = vpop.f32.mrb[0].mxu0
    %2160 = vmatprep.mubr.f32.mxu0 0.0
    %2161 = vmatmul.mubr.f32.gmra.mrb[0].mxu0 %v250
    %v2162 = vpop.f32.mrb[0].mxu0
    %v2163 = vadd.f32 %v2084, %v2162
    %v2164 = vpop.f32.mrb[0].mxu0
    %2165 = vmatprep.mubr.f32.mxu0 0.0
    %2166 = vmatmul.mubr.f32.gmra.mrb[0].mxu0 %v253
    %v2167 = vpop.f32.mrb[0].mxu0
    %v2168 = vadd.f32 %v2085, %v2167
    %v2169 = vpop.f32.mrb[0].mxu0
    %2170 = vdwg.mxu0
    %v2171 = vld [vmem:[%s766] sm:$0xff]
    %v2172 = vld [vmem:[%s766 + $0x8] sm:$0xff]
    %v2173 = vld [vmem:[%s766 + $0x10] sm:$0xff]
    %v2174 = vld [vmem:[%s766 + $0x18] sm:$0xff]
    %2175 = vmatprep.subr.mxu0 0.0
    %2176 = vmatpush1.msra.mxu0 %v2153
    %2177 = vmatprep.subr.mxu0 0.0
    %2178 = vmatpush1.msra.mxu0 %v2158
    %2179 = vmatprep.subr.mxu0 0.0
    %2180 = vmatpush1.msra.mxu0 %v2163
    %2181 = vmatprep.subr.mxu0 0.0
    %2182 = vmatpush1.msra.mxu0 %v2168
    %2183 = vmatprep.subr.mxu0 0.0
    %2184 = vmatpush1.msra.mxu0 0.0
    %2185 = vmatprep.subr.mxu0 0.0
    %2186 = vmatpush1.msra.mxu0 0.0
    %2187 = vmatprep.subr.mxu0 0.0
    %2188 = vmatpush1.msra.mxu0 0.0
    %2189 = vmatprep.subr.mxu0 0.0
    %2190 = vmatpush1.msra.mxu0 0.0
    %2191 = vmatprep.subr.mxu0 0.0
    %2192 = vmatpush1.msra.mxu0 0.0
    %2193 = vmatprep.subr.mxu0 0.0
    %2194 = vmatpush1.msra.mxu0 0.0
    %2195 = vmatprep.subr.mxu0 0.0
    %2196 = vmatpush1.msra.mxu0 0.0
    %2197 = vmatprep.subr.mxu0 0.0
    %2198 = vmatpush1.msra.mxu0 0.0
    %2199 = vmatprep.subr.mxu0 0.0
    %2200 = vmatpush1.msra.mxu0 0.0
    %2201 = vmatprep.subr.mxu0 0.0
    %2202 = vmatpush1.msra.mxu0 0.0
    %2203 = vmatprep.subr.mxu0 0.0
    %2204 = vmatpush1.msra.mxu0 0.0
    %2205 = vmatprep.subr.mxu0 0.0
    %2206 = vmatpush1.msra.mxu0 0.0
    %2207 = vmatprep.subr.mxu0 0.0
    %2208 = vmatpush1.msra.mxu0 0.0
    %2209 = vmatprep.subr.mxu0 0.0
    %2210 = vmatpush1.msra.mxu0 0.0
    %2211 = vmatprep.subr.mxu0 0.0
    %2212 = vmatpush1.msra.mxu0 0.0
    %2213 = vmatprep.subr.mxu0 0.0
    %2214 = vmatpush1.msra.mxu0 0.0
    %2215 = vmatprep.subr.mxu0 0.0
    %2216 = vmatpush1.msra.mxu0 0.0
    %2217 = vmatprep.subr.mxu0 0.0
    %2218 = vmatpush1.msra.mxu0 0.0
    %2219 = vmatprep.subr.mxu0 0.0
    %2220 = vmatpush1.msra.mxu0 0.0
    %2221 = vmatprep.subr.mxu0 0.0
    %2222 = vmatpush1.msra.mxu0 0.0
    %2223 = vmatprep.subr.mxu0 0.0
    %2224 = vmatpush1.msra.mxu0 0.0
    %2225 = vmatprep.subr.mxu0 0.0
    %2226 = vmatpush1.msra.mxu0 0.0
    %2227 = vmatprep.subr.mxu0 0.0
    %2228 = vmatpush1.msra.mxu0 0.0
    %2229 = vmatprep.subr.mxu0 0.0
    %2230 = vmatpush1.msra.mxu0 0.0
    %2231 = vmatprep.subr.mxu0 0.0
    %2232 = vmatpush1.msra.mxu0 0.0
    %2233 = vmatprep.subr.mxu0 0.0
    %2234 = vmatpush1.msra.mxu0 0.0
    %2235 = vmatprep.subr.mxu0 0.0
    %2236 = vmatpush1.msra.mxu0 0.0
    %2237 = vmatprep.subr.mxu0 0.0
    %2238 = vmatpush1.msra.mxu0 0.0
    %2239 = vmatprep.mubr.f32.mxu0 0.0
    %2240 = vmatmul.mubr.f32.gmra.mrb[0].mxu0 %v244
    %v2241 = vpop.f32.mrb[0].mxu0
    %v2242 = vadd.f32 %v2171, %v2241
    %v2243 = vpop.f32.mrb[0].mxu0
    %2244 = vmatprep.mubr.f32.mxu0 0.0
    %2245 = vmatmul.mubr.f32.gmra.mrb[0].mxu0 %v247
    %v2246 = vpop.f32.mrb[0].mxu0
    %v2247 = vadd.f32 %v2172, %v2246
    %v2248 = vpop.f32.mrb[0].mxu0
    %2249 = vmatprep.mubr.f32.mxu0 0.0
    %2250 = vmatmul.mubr.f32.gmra.mrb[0].mxu0 %v250
    %v2251 = vpop.f32.mrb[0].mxu0
    %v2252 = vadd.f32 %v2173, %v2251
    %v2253 = vpop.f32.mrb[0].mxu0
    %2254 = vmatprep.mubr.f32.mxu0 0.0
    %2255 = vmatmul.mubr.f32.gmra.mrb[0].mxu0 %v253
    %v2256 = vpop.f32.mrb[0].mxu0
    %v2257 = vadd.f32 %v2174, %v2256
    %v2258 = vpop.f32.mrb[0].mxu0
    %2259 = vdwg.mxu0
    %v2260 = vld [vmem:[%s870] sm:$0xff]
    %v2261 = vld [vmem:[%s870 + $0x8] sm:$0xff]
    %v2262 = vld [vmem:[%s870 + $0x10] sm:$0xff]
    %v2263 = vld [vmem:[%s870 + $0x18] sm:$0xff]
    %2264 = vmatprep.subr.mxu0 0.0
    %2265 = vmatpush1.msra.mxu0 %v2242
    %2266 = vmatprep.subr.mxu0 0.0
    %2267 = vmatpush1.msra.mxu0 %v2247
    %2268 = vmatprep.subr.mxu0 0.0
    %2269 = vmatpush1.msra.mxu0 %v2252
    %2270 = vmatprep.subr.mxu0 0.0
    %2271 = vmatpush1.msra.mxu0 %v2257
    %2272 = vmatprep.subr.mxu0 0.0
    %2273 = vmatpush1.msra.mxu0 0.0
    %2274 = vmatprep.subr.mxu0 0.0
    %2275 = vmatpush1.msra.mxu0 0.0
    %2276 = vmatprep.subr.mxu0 0.0
    %2277 = vmatpush1.msra.mxu0 0.0
    %2278 = vmatprep.subr.mxu0 0.0
    %2279 = vmatpush1.msra.mxu0 0.0
    %2280 = vmatprep.subr.mxu0 0.0
    %2281 = vmatpush1.msra.mxu0 0.0
    %2282 = vmatprep.subr.mxu0 0.0
    %2283 = vmatpush1.msra.mxu0 0.0
    %2284 = vmatprep.subr.mxu0 0.0
    %2285 = vmatpush1.msra.mxu0 0.0
    %2286 = vmatprep.subr.mxu0 0.0
    %2287 = vmatpush1.msra.mxu0 0.0
    %2288 = vmatprep.subr.mxu0 0.0
    %2289 = vmatpush1.msra.mxu0 0.0
    %2290 = vmatprep.subr.mxu0 0.0
    %2291 = vmatpush1.msra.mxu0 0.0
    %2292 = vmatprep.subr.mxu0 0.0
    %2293 = vmatpush1.msra.mxu0 0.0
    %2294 = vmatprep.subr.mxu0 0.0
    %2295 = vmatpush1.msra.mxu0 0.0
    %2296 = vmatprep.subr.mxu0 0.0
    %2297 = vmatpush1.msra.mxu0 0.0
    %2298 = vmatprep.subr.mxu0 0.0
    %2299 = vmatpush1.msra.mxu0 0.0
    %2300 = vmatprep.subr.mxu0 0.0
    %2301 = vmatpush1.msra.mxu0 0.0
    %2302 = vmatprep.subr.mxu0 0.0
    %2303 = vmatpush1.msra.mxu0 0.0
    %2304 = vmatprep.subr.mxu0 0.0
    %2305 = vmatpush1.msra.mxu0 0.0
    %2306 = vmatprep.subr.mxu0 0.0
    %2307 = vmatpush1.msra.mxu0 0.0
    %2308 = vmatprep.subr.mxu0 0.0
    %2309 = vmatpush1.msra.mxu0 0.0
    %2310 = vmatprep.subr.mxu0 0.0
    %2311 = vmatpush1.msra.mxu0 0.0
    %2312 = vmatprep.subr.mxu0 0.0
    %2313 = vmatpush1.msra.mxu0 0.0
    %2314 = vmatprep.subr.mxu0 0.0
    %2315 = vmatpush1.msra.mxu0 0.0
    %2316 = vmatprep.subr.mxu0 0.0
    %2317 = vmatpush1.msra.mxu0 0.0
    %2318 = vmatprep.subr.mxu0 0.0
    %2319 = vmatpush1.msra.mxu0 0.0
    %2320 = vmatprep.subr.mxu0 0.0
    %2321 = vmatpush1.msra.mxu0 0.0
    %2322 = vmatprep.subr.mxu0 0.0
    %2323 = vmatpush1.msra.mxu0 0.0
    %2324 = vmatprep.subr.mxu0 0.0
    %2325 = vmatpush1.msra.mxu0 0.0
    %2326 = vmatprep.subr.mxu0 0.0
    %2327 = vmatpush1.msra.mxu0 0.0
    %2328 = vmatprep.mubr.f32.mxu0 0.0
    %2329 = vmatmul.mubr.f32.gmra.mrb[0].mxu0 %v244
    %v2330 = vpop.f32.mrb[0].mxu0
    %v2331 = vadd.f32 %v2260, %v2330
    %v2332 = vpop.f32.mrb[0].mxu0
    %2333 = vmatprep.mubr.f32.mxu0 0.0
    %2334 = vmatmul.mubr.f32.gmra.mrb[0].mxu0 %v247
    %v2335 = vpop.f32.mrb[0].mxu0
    %v2336 = vadd.f32 %v2261, %v2335
    %v2337 = vpop.f32.mrb[0].mxu0
    %2338 = vmatprep.mubr.f32.mxu0 0.0
    %2339 = vmatmul.mubr.f32.gmra.mrb[0].mxu0 %v250
    %v2340 = vpop.f32.mrb[0].mxu0
    %v2341 = vadd.f32 %v2262, %v2340
    %v2342 = vpop.f32.mrb[0].mxu0
    %2343 = vmatprep.mubr.f32.mxu0 0.0
    %2344 = vmatmul.mubr.f32.gmra.mrb[0].mxu0 %v253
    %v2345 = vpop.f32.mrb[0].mxu0
    %v2346 = vadd.f32 %v2263, %v2345
    %v2347 = vpop.f32.mrb[0].mxu0
    %2348 = vdwg.mxu0
    %v2349 = vld [vmem:[%s974] sm:$0xff]
    %v2350 = vld [vmem:[%s974 + $0x8] sm:$0xff]
    %v2351 = vld [vmem:[%s974 + $0x10] sm:$0xff]
    %v2352 = vld [vmem:[%s974 + $0x18] sm:$0xff]
    %2353 = vmatprep.subr.mxu0 0.0
    %2354 = vmatpush1.msra.mxu0 %v2331
    %2355 = vmatprep.subr.mxu0 0.0
    %2356 = vmatpush1.msra.mxu0 %v2336
    %2357 = vmatprep.subr.mxu0 0.0
    %2358 = vmatpush1.msra.mxu0 %v2341
    %2359 = vmatprep.subr.mxu0 0.0
    %2360 = vmatpush1.msra.mxu0 %v2346
    %2361 = vmatprep.subr.mxu0 0.0
    %2362 = vmatpush1.msra.mxu0 0.0
    %2363 = vmatprep.subr.mxu0 0.0
    %2364 = vmatpush1.msra.mxu0 0.0
    %2365 = vmatprep.subr.mxu0 0.0
    %2366 = vmatpush1.msra.mxu0 0.0
    %2367 = vmatprep.subr.mxu0 0.0
    %2368 = vmatpush1.msra.mxu0 0.0
    %2369 = vmatprep.subr.mxu0 0.0
    %2370 = vmatpush1.msra.mxu0 0.0
    %2371 = vmatprep.subr.mxu0 0.0
    %2372 = vmatpush1.msra.mxu0 0.0
    %2373 = vmatprep.subr.mxu0 0.0
    %2374 = vmatpush1.msra.mxu0 0.0
    %2375 = vmatprep.subr.mxu0 0.0
    %2376 = vmatpush1.msra.mxu0 0.0
    %2377 = vmatprep.subr.mxu0 0.0
    %2378 = vmatpush1.msra.mxu0 0.0
    %2379 = vmatprep.subr.mxu0 0.0
    %2380 = vmatpush1.msra.mxu0 0.0
    %2381 = vmatprep.subr.mxu0 0.0
    %2382 = vmatpush1.msra.mxu0 0.0
    %2383 = vmatprep.subr.mxu0 0.0
    %2384 = vmatpush1.msra.mxu0 0.0
    %2385 = vmatprep.subr.mxu0 0.0
    %2386 = vmatpush1.msra.mxu0 0.0
    %2387 = vmatprep.subr.mxu0 0.0
    %2388 = vmatpush1.msra.mxu0 0.0
    %2389 = vmatprep.subr.mxu0 0.0
    %2390 = vmatpush1.msra.mxu0 0.0
    %2391 = vmatprep.subr.mxu0 0.0
    %2392 = vmatpush1.msra.mxu0 0.0
    %2393 = vmatprep.subr.mxu0 0.0
    %2394 = vmatpush1.msra.mxu0 0.0
    %2395 = vmatprep.subr.mxu0 0.0
    %2396 = vmatpush1.msra.mxu0 0.0
    %2397 = vmatprep.subr.mxu0 0.0
    %2398 = vmatpush1.msra.mxu0 0.0
    %2399 = vmatprep.subr.mxu0 0.0
    %2400 = vmatpush1.msra.mxu0 0.0
    %2401 = vmatprep.subr.mxu0 0.0
    %2402 = vmatpush1.msra.mxu0 0.0
    %2403 = vmatprep.subr.mxu0 0.0
    %2404 = vmatpush1.msra.mxu0 0.0
    %2405 = vmatprep.subr.mxu0 0.0
    %2406 = vmatpush1.msra.mxu0 0.0
    %2407 = vmatprep.subr.mxu0 0.0
    %2408 = vmatpush1.msra.mxu0 0.0
    %2409 = vmatprep.subr.mxu0 0.0
    %2410 = vmatpush1.msra.mxu0 0.0
    %2411 = vmatprep.subr.mxu0 0.0
    %2412 = vmatpush1.msra.mxu0 0.0
    %2413 = vmatprep.subr.mxu0 0.0
    %2414 = vmatpush1.msra.mxu0 0.0
    %2415 = vmatprep.subr.mxu0 0.0
    %2416 = vmatpush1.msra.mxu0 0.0
    %2417 = vmatprep.mubr.f32.mxu0 0.0
    %2418 = vmatmul.mubr.f32.gmra.mrb[0].mxu0 %v244
    %v2419 = vpop.f32.mrb[0].mxu0
    %v2420 = vadd.f32 %v2349, %v2419
    %v2421 = vpop.f32.mrb[0].mxu0
    %2422 = vmatprep.mubr.f32.mxu0 0.0
    %2423 = vmatmul.mubr.f32.gmra.mrb[0].mxu0 %v247
    %v2424 = vpop.f32.mrb[0].mxu0
    %v2425 = vadd.f32 %v2350, %v2424
    %v2426 = vpop.f32.mrb[0].mxu0
    %2427 = vmatprep.mubr.f32.mxu0 0.0
    %2428 = vmatmul.mubr.f32.gmra.mrb[0].mxu0 %v250
    %v2429 = vpop.f32.mrb[0].mxu0
    %v2430 = vadd.f32 %v2351, %v2429
    %v2431 = vpop.f32.mrb[0].mxu0
    %2432 = vmatprep.mubr.f32.mxu0 0.0
    %2433 = vmatmul.mubr.f32.gmra.mrb[0].mxu0 %v253
    %v2434 = vpop.f32.mrb[0].mxu0
    %v2435 = vadd.f32 %v2352, %v2434
    %v2436 = vpop.f32.mrb[0].mxu0
    %2437 = vdwg.mxu0
    %v2438 = vld [vmem:[%s1078] sm:$0xff]
    %v2439 = vld [vmem:[%s1078 + $0x8] sm:$0xff]
    %v2440 = vld [vmem:[%s1078 + $0x10] sm:$0xff]
    %v2441 = vld [vmem:[%s1078 + $0x18] sm:$0xff]
    %2442 = vmatprep.subr.mxu0 0.0
    %2443 = vmatpush1.msra.mxu0 %v2420
    %2444 = vmatprep.subr.mxu0 0.0
    %2445 = vmatpush1.msra.mxu0 %v2425
    %2446 = vmatprep.subr.mxu0 0.0
    %2447 = vmatpush1.msra.mxu0 %v2430
    %2448 = vmatprep.subr.mxu0 0.0
    %2449 = vmatpush1.msra.mxu0 %v2435
    %2450 = vmatprep.subr.mxu0 0.0
    %2451 = vmatpush1.msra.mxu0 0.0
    %2452 = vmatprep.subr.mxu0 0.0
    %2453 = vmatpush1.msra.mxu0 0.0
    %2454 = vmatprep.subr.mxu0 0.0
    %2455 = vmatpush1.msra.mxu0 0.0
    %2456 = vmatprep.subr.mxu0 0.0
    %2457 = vmatpush1.msra.mxu0 0.0
    %2458 = vmatprep.subr.mxu0 0.0
    %2459 = vmatpush1.msra.mxu0 0.0
    %2460 = vmatprep.subr.mxu0 0.0
    %2461 = vmatpush1.msra.mxu0 0.0
    %2462 = vmatprep.subr.mxu0 0.0
    %2463 = vmatpush1.msra.mxu0 0.0
    %2464 = vmatprep.subr.mxu0 0.0
    %2465 = vmatpush1.msra.mxu0 0.0
    %2466 = vmatprep.subr.mxu0 0.0
    %2467 = vmatpush1.msra.mxu0 0.0
    %2468 = vmatprep.subr.mxu0 0.0
    %2469 = vmatpush1.msra.mxu0 0.0
    %2470 = vmatprep.subr.mxu0 0.0
    %2471 = vmatpush1.msra.mxu0 0.0
    %2472 = vmatprep.subr.mxu0 0.0
    %2473 = vmatpush1.msra.mxu0 0.0
    %2474 = vmatprep.subr.mxu0 0.0
    %2475 = vmatpush1.msra.mxu0 0.0
    %2476 = vmatprep.subr.mxu0 0.0
    %2477 = vmatpush1.msra.mxu0 0.0
    %2478 = vmatprep.subr.mxu0 0.0
    %2479 = vmatpush1.msra.mxu0 0.0
    %2480 = vmatprep.subr.mxu0 0.0
    %2481 = vmatpush1.msra.mxu0 0.0
    %2482 = vmatprep.subr.mxu0 0.0
    %2483 = vmatpush1.msra.mxu0 0.0
    %2484 = vmatprep.subr.mxu0 0.0
    %2485 = vmatpush1.msra.mxu0 0.0
    %2486 = vmatprep.subr.mxu0 0.0
    %2487 = vmatpush1.msra.mxu0 0.0
    %2488 = vmatprep.subr.mxu0 0.0
    %2489 = vmatpush1.msra.mxu0 0.0
    %2490 = vmatprep.subr.mxu0 0.0
    %2491 = vmatpush1.msra.mxu0 0.0
    %2492 = vmatprep.subr.mxu0 0.0
    %2493 = vmatpush1.msra.mxu0 0.0
    %2494 = vmatprep.subr.mxu0 0.0
    %2495 = vmatpush1.msra.mxu0 0.0
    %2496 = vmatprep.subr.mxu0 0.0
    %2497 = vmatpush1.msra.mxu0 0.0
    %2498 = vmatprep.subr.mxu0 0.0
    %2499 = vmatpush1.msra.mxu0 0.0
    %2500 = vmatprep.subr.mxu0 0.0
    %2501 = vmatpush1.msra.mxu0 0.0
    %2502 = vmatprep.subr.mxu0 0.0
    %2503 = vmatpush1.msra.mxu0 0.0
    %2504 = vmatprep.subr.mxu0 0.0
    %2505 = vmatpush1.msra.mxu0 0.0
    %2506 = vmatprep.mubr.f32.mxu0 0.0
    %2507 = vmatmul.mubr.f32.gmra.mrb[0].mxu0 %v244
    %v2508 = vpop.f32.mrb[0].mxu0
    %v2509 = vadd.f32 %v2438, %v2508
    %v2510 = vpop.f32.mrb[0].mxu0
    %2511 = vmatprep.mubr.f32.mxu0 0.0
    %2512 = vmatmul.mubr.f32.gmra.mrb[0].mxu0 %v247
    %v2513 = vpop.f32.mrb[0].mxu0
    %v2514 = vadd.f32 %v2439, %v2513
    %v2515 = vpop.f32.mrb[0].mxu0
    %2516 = vmatprep.mubr.f32.mxu0 0.0
    %2517 = vmatmul.mubr.f32.gmra.mrb[0].mxu0 %v250
    %v2518 = vpop.f32.mrb[0].mxu0
    %v2519 = vadd.f32 %v2440, %v2518
    %v2520 = vpop.f32.mrb[0].mxu0
    %2521 = vmatprep.mubr.f32.mxu0 0.0
    %2522 = vmatmul.mubr.f32.gmra.mrb[0].mxu0 %v253
    %v2523 = vpop.f32.mrb[0].mxu0
    %v2524 = vadd.f32 %v2441, %v2523
    %v2525 = vpop.f32.mrb[0].mxu0
    %2526 = vdwg.mxu0
    %v2527 = vld [vmem:[%s1182] sm:$0xff]
    %v2528 = vld [vmem:[%s1182 + $0x8] sm:$0xff]
    %v2529 = vld [vmem:[%s1182 + $0x10] sm:$0xff]
    %v2530 = vld [vmem:[%s1182 + $0x18] sm:$0xff]
    %2531 = vmatprep.subr.mxu0 0.0
    %2532 = vmatpush1.msra.mxu0 %v2509
    %2533 = vmatprep.subr.mxu0 0.0
    %2534 = vmatpush1.msra.mxu0 %v2514
    %2535 = vmatprep.subr.mxu0 0.0
    %2536 = vmatpush1.msra.mxu0 %v2519
    %2537 = vmatprep.subr.mxu0 0.0
    %2538 = vmatpush1.msra.mxu0 %v2524
    %2539 = vmatprep.subr.mxu0 0.0
    %2540 = vmatpush1.msra.mxu0 0.0
    %2541 = vmatprep.subr.mxu0 0.0
    %2542 = vmatpush1.msra.mxu0 0.0
    %2543 = vmatprep.subr.mxu0 0.0
    %2544 = vmatpush1.msra.mxu0 0.0
    %2545 = vmatprep.subr.mxu0 0.0
    %2546 = vmatpush1.msra.mxu0 0.0
    %2547 = vmatprep.subr.mxu0 0.0
    %2548 = vmatpush1.msra.mxu0 0.0
    %2549 = vmatprep.subr.mxu0 0.0
    %2550 = vmatpush1.msra.mxu0 0.0
    %2551 = vmatprep.subr.mxu0 0.0
    %2552 = vmatpush1.msra.mxu0 0.0
    %2553 = vmatprep.subr.mxu0 0.0
    %2554 = vmatpush1.msra.mxu0 0.0
    %2555 = vmatprep.subr.mxu0 0.0
    %2556 = vmatpush1.msra.mxu0 0.0
    %2557 = vmatprep.subr.mxu0 0.0
    %2558 = vmatpush1.msra.mxu0 0.0
    %2559 = vmatprep.subr.mxu0 0.0
    %2560 = vmatpush1.msra.mxu0 0.0
    %2561 = vmatprep.subr.mxu0 0.0
    %2562 = vmatpush1.msra.mxu0 0.0
    %2563 = vmatprep.subr.mxu0 0.0
    %2564 = vmatpush1.msra.mxu0 0.0
    %2565 = vmatprep.subr.mxu0 0.0
    %2566 = vmatpush1.msra.mxu0 0.0
    %2567 = vmatprep.subr.mxu0 0.0
    %2568 = vmatpush1.msra.mxu0 0.0
    %2569 = vmatprep.subr.mxu0 0.0
    %2570 = vmatpush1.msra.mxu0 0.0
    %2571 = vmatprep.subr.mxu0 0.0
    %2572 = vmatpush1.msra.mxu0 0.0
    %2573 = vmatprep.subr.mxu0 0.0
    %2574 = vmatpush1.msra.mxu0 0.0
    %2575 = vmatprep.subr.mxu0 0.0
    %2576 = vmatpush1.msra.mxu0 0.0
    %2577 = vmatprep.subr.mxu0 0.0
    %2578 = vmatpush1.msra.mxu0 0.0
    %2579 = vmatprep.subr.mxu0 0.0
    %2580 = vmatpush1.msra.mxu0 0.0
    %2581 = vmatprep.subr.mxu0 0.0
    %2582 = vmatpush1.msra.mxu0 0.0
    %2583 = vmatprep.subr.mxu0 0.0
    %2584 = vmatpush1.msra.mxu0 0.0
    %2585 = vmatprep.subr.mxu0 0.0
    %2586 = vmatpush1.msra.mxu0 0.0
    %2587 = vmatprep.subr.mxu0 0.0
    %2588 = vmatpush1.msra.mxu0 0.0
    %2589 = vmatprep.subr.mxu0 0.0
    %2590 = vmatpush1.msra.mxu0 0.0
    %2591 = vmatprep.subr.mxu0 0.0
    %2592 = vmatpush1.msra.mxu0 0.0
    %2593 = vmatprep.subr.mxu0 0.0
    %2594 = vmatpush1.msra.mxu0 0.0
    %2595 = vmatprep.mubr.f32.mxu0 0.0
    %2596 = vmatmul.mubr.f32.gmra.mrb[0].mxu0 %v244
    %v2597 = vpop.f32.mrb[0].mxu0
    %v2598 = vadd.f32 %v2527, %v2597
    %v2599 = vpop.f32.mrb[0].mxu0
    %2600 = vmatprep.mubr.f32.mxu0 0.0
    %2601 = vmatmul.mubr.f32.gmra.mrb[0].mxu0 %v247
    %v2602 = vpop.f32.mrb[0].mxu0
    %v2603 = vadd.f32 %v2528, %v2602
    %v2604 = vpop.f32.mrb[0].mxu0
    %2605 = vmatprep.mubr.f32.mxu0 0.0
    %2606 = vmatmul.mubr.f32.gmra.mrb[0].mxu0 %v250
    %v2607 = vpop.f32.mrb[0].mxu0
    %v2608 = vadd.f32 %v2529, %v2607
    %v2609 = vpop.f32.mrb[0].mxu0
    %2610 = vmatprep.mubr.f32.mxu0 0.0
    %2611 = vmatmul.mubr.f32.gmra.mrb[0].mxu0 %v253
    %v2612 = vpop.f32.mrb[0].mxu0
    %v2613 = vadd.f32 %v2530, %v2612
    %v2614 = vpop.f32.mrb[0].mxu0
    %2615 = vdwg.mxu0
    %v2616 = vld [vmem:[%s1286] sm:$0xff]
    %v2617 = vld [vmem:[%s1286 + $0x8] sm:$0xff]
    %v2618 = vld [vmem:[%s1286 + $0x10] sm:$0xff]
    %v2619 = vld [vmem:[%s1286 + $0x18] sm:$0xff]
    %2620 = vmatprep.subr.mxu0 0.0
    %2621 = vmatpush1.msra.mxu0 %v2598
    %2622 = vmatprep.subr.mxu0 0.0
    %2623 = vmatpush1.msra.mxu0 %v2603
    %2624 = vmatprep.subr.mxu0 0.0
    %2625 = vmatpush1.msra.mxu0 %v2608
    %2626 = vmatprep.subr.mxu0 0.0
    %2627 = vmatpush1.msra.mxu0 %v2613
    %2628 = vmatprep.subr.mxu0 0.0
    %2629 = vmatpush1.msra.mxu0 0.0
    %2630 = vmatprep.subr.mxu0 0.0
    %2631 = vmatpush1.msra.mxu0 0.0
    %2632 = vmatprep.subr.mxu0 0.0
    %2633 = vmatpush1.msra.mxu0 0.0
    %2634 = vmatprep.subr.mxu0 0.0
    %2635 = vmatpush1.msra.mxu0 0.0
    %2636 = vmatprep.subr.mxu0 0.0
    %2637 = vmatpush1.msra.mxu0 0.0
    %2638 = vmatprep.subr.mxu0 0.0
    %2639 = vmatpush1.msra.mxu0 0.0
    %2640 = vmatprep.subr.mxu0 0.0
    %2641 = vmatpush1.msra.mxu0 0.0
    %2642 = vmatprep.subr.mxu0 0.0
    %2643 = vmatpush1.msra.mxu0 0.0
    %2644 = vmatprep.subr.mxu0 0.0
    %2645 = vmatpush1.msra.mxu0 0.0
    %2646 = vmatprep.subr.mxu0 0.0
    %2647 = vmatpush1.msra.mxu0 0.0
    %2648 = vmatprep.subr.mxu0 0.0
    %2649 = vmatpush1.msra.mxu0 0.0
    %2650 = vmatprep.subr.mxu0 0.0
    %2651 = vmatpush1.msra.mxu0 0.0
    %2652 = vmatprep.subr.mxu0 0.0
    %2653 = vmatpush1.msra.mxu0 0.0
    %2654 = vmatprep.subr.mxu0 0.0
    %2655 = vmatpush1.msra.mxu0 0.0
    %2656 = vmatprep.subr.mxu0 0.0
    %2657 = vmatpush1.msra.mxu0 0.0
    %2658 = vmatprep.subr.mxu0 0.0
    %2659 = vmatpush1.msra.mxu0 0.0
    %2660 = vmatprep.subr.mxu0 0.0
    %2661 = vmatpush1.msra.mxu0 0.0
    %2662 = vmatprep.subr.mxu0 0.0
    %2663 = vmatpush1.msra.mxu0 0.0
    %2664 = vmatprep.subr.mxu0 0.0
    %2665 = vmatpush1.msra.mxu0 0.0
    %2666 = vmatprep.subr.mxu0 0.0
    %2667 = vmatpush1.msra.mxu0 0.0
    %2668 = vmatprep.subr.mxu0 0.0
    %2669 = vmatpush1.msra.mxu0 0.0
    %2670 = vmatprep.subr.mxu0 0.0
    %2671 = vmatpush1.msra.mxu0 0.0
    %2672 = vmatprep.subr.mxu0 0.0
    %2673 = vmatpush1.msra.mxu0 0.0
    %2674 = vmatprep.subr.mxu0 0.0
    %2675 = vmatpush1.msra.mxu0 0.0
    %2676 = vmatprep.subr.mxu0 0.0
    %2677 = vmatpush1.msra.mxu0 0.0
    %2678 = vmatprep.subr.mxu0 0.0
    %2679 = vmatpush1.msra.mxu0 0.0
    %2680 = vmatprep.subr.mxu0 0.0
    %2681 = vmatpush1.msra.mxu0 0.0
    %2682 = vmatprep.subr.mxu0 0.0
    %2683 = vmatpush1.msra.mxu0 0.0
    %2684 = vmatprep.mubr.f32.mxu0 0.0
    %2685 = vmatmul.mubr.f32.gmra.mrb[0].mxu0 %v244
    %v2686 = vpop.f32.mrb[0].mxu0
    %v2687 = vadd.f32 %v2616, %v2686
    %v2688 = vpop.f32.mrb[0].mxu0
    %2689 = vmatprep.mubr.f32.mxu0 0.0
    %2690 = vmatmul.mubr.f32.gmra.mrb[0].mxu0 %v247
    %v2691 = vpop.f32.mrb[0].mxu0
    %v2692 = vadd.f32 %v2617, %v2691
    %v2693 = vpop.f32.mrb[0].mxu0
    %2694 = vmatprep.mubr.f32.mxu0 0.0
    %2695 = vmatmul.mubr.f32.gmra.mrb[0].mxu0 %v250
    %v2696 = vpop.f32.mrb[0].mxu0
    %v2697 = vadd.f32 %v2618, %v2696
    %v2698 = vpop.f32.mrb[0].mxu0
    %2699 = vmatprep.mubr.f32.mxu0 0.0
    %2700 = vmatmul.mubr.f32.gmra.mrb[0].mxu0 %v253
    %v2701 = vpop.f32.mrb[0].mxu0
    %v2702 = vadd.f32 %v2619, %v2701
    %v2703 = vpop.f32.mrb[0].mxu0
    %2704 = vdwg.mxu0
    %v2705 = vld [vmem:[%s1390] sm:$0xff]
    %v2706 = vld [vmem:[%s1390 + $0x8] sm:$0xff]
    %v2707 = vld [vmem:[%s1390 + $0x10] sm:$0xff]
    %v2708 = vld [vmem:[%s1390 + $0x18] sm:$0xff]
    %2709 = vmatprep.subr.mxu0 0.0
    %2710 = vmatpush1.msra.mxu0 %v2687
    %2711 = vmatprep.subr.mxu0 0.0
    %2712 = vmatpush1.msra.mxu0 %v2692
    %2713 = vmatprep.subr.mxu0 0.0
    %2714 = vmatpush1.msra.mxu0 %v2697
    %2715 = vmatprep.subr.mxu0 0.0
    %2716 = vmatpush1.msra.mxu0 %v2702
    %2717 = vmatprep.subr.mxu0 0.0
    %2718 = vmatpush1.msra.mxu0 0.0
    %2719 = vmatprep.subr.mxu0 0.0
    %2720 = vmatpush1.msra.mxu0 0.0
    %2721 = vmatprep.subr.mxu0 0.0
    %2722 = vmatpush1.msra.mxu0 0.0
    %2723 = vmatprep.subr.mxu0 0.0
    %2724 = vmatpush1.msra.mxu0 0.0
    %2725 = vmatprep.subr.mxu0 0.0
    %2726 = vmatpush1.msra.mxu0 0.0
    %2727 = vmatprep.subr.mxu0 0.0
    %2728 = vmatpush1.msra.mxu0 0.0
    %2729 = vmatprep.subr.mxu0 0.0
    %2730 = vmatpush1.msra.mxu0 0.0
    %2731 = vmatprep.subr.mxu0 0.0
    %2732 = vmatpush1.msra.mxu0 0.0
    %2733 = vmatprep.subr.mxu0 0.0
    %2734 = vmatpush1.msra.mxu0 0.0
    %2735 = vmatprep.subr.mxu0 0.0
    %2736 = vmatpush1.msra.mxu0 0.0
    %2737 = vmatprep.subr.mxu0 0.0
    %2738 = vmatpush1.msra.mxu0 0.0
    %2739 = vmatprep.subr.mxu0 0.0
    %2740 = vmatpush1.msra.mxu0 0.0
    %2741 = vmatprep.subr.mxu0 0.0
    %2742 = vmatpush1.msra.mxu0 0.0
    %2743 = vmatprep.subr.mxu0 0.0
    %2744 = vmatpush1.msra.mxu0 0.0
    %2745 = vmatprep.subr.mxu0 0.0
    %2746 = vmatpush1.msra.mxu0 0.0
    %2747 = vmatprep.subr.mxu0 0.0
    %2748 = vmatpush1.msra.mxu0 0.0
    %2749 = vmatprep.subr.mxu0 0.0
    %2750 = vmatpush1.msra.mxu0 0.0
    %2751 = vmatprep.subr.mxu0 0.0
    %2752 = vmatpush1.msra.mxu0 0.0
    %2753 = vmatprep.subr.mxu0 0.0
    %2754 = vmatpush1.msra.mxu0 0.0
    %2755 = vmatprep.subr.mxu0 0.0
    %2756 = vmatpush1.msra.mxu0 0.0
    %2757 = vmatprep.subr.mxu0 0.0
    %2758 = vmatpush1.msra.mxu0 0.0
    %2759 = vmatprep.subr.mxu0 0.0
    %2760 = vmatpush1.msra.mxu0 0.0
    %2761 = vmatprep.subr.mxu0 0.0
    %2762 = vmatpush1.msra.mxu0 0.0
    %2763 = vmatprep.subr.mxu0 0.0
    %2764 = vmatpush1.msra.mxu0 0.0
    %2765 = vmatprep.subr.mxu0 0.0
    %2766 = vmatpush1.msra.mxu0 0.0
    %2767 = vmatprep.subr.mxu0 0.0
    %2768 = vmatpush1.msra.mxu0 0.0
    %2769 = vmatprep.subr.mxu0 0.0
    %2770 = vmatpush1.msra.mxu0 0.0
    %2771 = vmatprep.subr.mxu0 0.0
    %2772 = vmatpush1.msra.mxu0 0.0
    %2773 = vmatprep.mubr.f32.mxu0 0.0
    %2774 = vmatmul.mubr.f32.gmra.mrb[0].mxu0 %v244
    %v2775 = vpop.f32.mrb[0].mxu0
    %v2776 = vadd.f32 %v2705, %v2775
    %v2777 = vpop.f32.mrb[0].mxu0
    %2778 = vmatprep.mubr.f32.mxu0 0.0
    %2779 = vmatmul.mubr.f32.gmra.mrb[0].mxu0 %v247
    %v2780 = vpop.f32.mrb[0].mxu0
    %v2781 = vadd.f32 %v2706, %v2780
    %v2782 = vpop.f32.mrb[0].mxu0
    %2783 = vmatprep.mubr.f32.mxu0 0.0
    %2784 = vmatmul.mubr.f32.gmra.mrb[0].mxu0 %v250
    %v2785 = vpop.f32.mrb[0].mxu0
    %v2786 = vadd.f32 %v2707, %v2785
    %v2787 = vpop.f32.mrb[0].mxu0
    %2788 = vmatprep.mubr.f32.mxu0 0.0
    %2789 = vmatmul.mubr.f32.gmra.mrb[0].mxu0 %v253
    %v2790 = vpop.f32.mrb[0].mxu0
    %v2791 = vadd.f32 %v2708, %v2790
    %v2792 = vpop.f32.mrb[0].mxu0
    %2793 = vdwg.mxu0
    %v2794 = vld [vmem:[%s1494] sm:$0xff]
    %v2795 = vld [vmem:[%s1494 + $0x8] sm:$0xff]
    %v2796 = vld [vmem:[%s1494 + $0x10] sm:$0xff]
    %v2797 = vld [vmem:[%s1494 + $0x18] sm:$0xff]
    %2798 = vmatprep.subr.mxu0 0.0
    %2799 = vmatpush1.msra.mxu0 %v2776
    %2800 = vmatprep.subr.mxu0 0.0
    %2801 = vmatpush1.msra.mxu0 %v2781
    %2802 = vmatprep.subr.mxu0 0.0
    %2803 = vmatpush1.msra.mxu0 %v2786
    %2804 = vmatprep.subr.mxu0 0.0
    %2805 = vmatpush1.msra.mxu0 %v2791
    %2806 = vmatprep.subr.mxu0 0.0
    %2807 = vmatpush1.msra.mxu0 0.0
    %2808 = vmatprep.subr.mxu0 0.0
    %2809 = vmatpush1.msra.mxu0 0.0
    %2810 = vmatprep.subr.mxu0 0.0
    %2811 = vmatpush1.msra.mxu0 0.0
    %2812 = vmatprep.subr.mxu0 0.0
    %2813 = vmatpush1.msra.mxu0 0.0
    %2814 = vmatprep.subr.mxu0 0.0
    %2815 = vmatpush1.msra.mxu0 0.0
    %2816 = vmatprep.subr.mxu0 0.0
    %2817 = vmatpush1.msra.mxu0 0.0
    %2818 = vmatprep.subr.mxu0 0.0
    %2819 = vmatpush1.msra.mxu0 0.0
    %2820 = vmatprep.subr.mxu0 0.0
    %2821 = vmatpush1.msra.mxu0 0.0
    %2822 = vmatprep.subr.mxu0 0.0
    %2823 = vmatpush1.msra.mxu0 0.0
    %2824 = vmatprep.subr.mxu0 0.0
    %2825 = vmatpush1.msra.mxu0 0.0
    %2826 = vmatprep.subr.mxu0 0.0
    %2827 = vmatpush1.msra.mxu0 0.0
    %2828 = vmatprep.subr.mxu0 0.0
    %2829 = vmatpush1.msra.mxu0 0.0
    %2830 = vmatprep.subr.mxu0 0.0
    %2831 = vmatpush1.msra.mxu0 0.0
    %2832 = vmatprep.subr.mxu0 0.0
    %2833 = vmatpush1.msra.mxu0 0.0
    %2834 = vmatprep.subr.mxu0 0.0
    %2835 = vmatpush1.msra.mxu0 0.0
    %2836 = vmatprep.subr.mxu0 0.0
    %2837 = vmatpush1.msra.mxu0 0.0
    %2838 = vmatprep.subr.mxu0 0.0
    %2839 = vmatpush1.msra.mxu0 0.0
    %2840 = vmatprep.subr.mxu0 0.0
    %2841 = vmatpush1.msra.mxu0 0.0
    %2842 = vmatprep.subr.mxu0 0.0
    %2843 = vmatpush1.msra.mxu0 0.0
    %2844 = vmatprep.subr.mxu0 0.0
    %2845 = vmatpush1.msra.mxu0 0.0
    %2846 = vmatprep.subr.mxu0 0.0
    %2847 = vmatpush1.msra.mxu0 0.0
    %2848 = vmatprep.subr.mxu0 0.0
    %2849 = vmatpush1.msra.mxu0 0.0
    %2850 = vmatprep.subr.mxu0 0.0
    %2851 = vmatpush1.msra.mxu0 0.0
    %2852 = vmatprep.subr.mxu0 0.0
    %2853 = vmatpush1.msra.mxu0 0.0
    %2854 = vmatprep.subr.mxu0 0.0
    %2855 = vmatpush1.msra.mxu0 0.0
    %2856 = vmatprep.subr.mxu0 0.0
    %2857 = vmatpush1.msra.mxu0 0.0
    %2858 = vmatprep.subr.mxu0 0.0
    %2859 = vmatpush1.msra.mxu0 0.0
    %2860 = vmatprep.subr.mxu0 0.0
    %2861 = vmatpush1.msra.mxu0 0.0
    %2862 = vmatprep.mubr.f32.mxu0 0.0
    %2863 = vmatmul.mubr.f32.gmra.mrb[0].mxu0 %v244
    %v2864 = vpop.f32.mrb[0].mxu0
    %v2865 = vadd.f32 %v2794, %v2864
    %v2866 = vpop.f32.mrb[0].mxu0
    %2867 = vmatprep.mubr.f32.mxu0 0.0
    %2868 = vmatmul.mubr.f32.gmra.mrb[0].mxu0 %v247
    %v2869 = vpop.f32.mrb[0].mxu0
    %v2870 = vadd.f32 %v2795, %v2869
    %v2871 = vpop.f32.mrb[0].mxu0
    %2872 = vmatprep.mubr.f32.mxu0 0.0
    %2873 = vmatmul.mubr.f32.gmra.mrb[0].mxu0 %v250
    %v2874 = vpop.f32.mrb[0].mxu0
    %v2875 = vadd.f32 %v2796, %v2874
    %v2876 = vpop.f32.mrb[0].mxu0
    %2877 = vmatprep.mubr.f32.mxu0 0.0
    %2878 = vmatmul.mubr.f32.gmra.mrb[0].mxu0 %v253
    %v2879 = vpop.f32.mrb[0].mxu0
    %v2880 = vadd.f32 %v2797, %v2879
    %v2881 = vpop.f32.mrb[0].mxu0
    %2882 = vdwg.mxu0
    %v2883 = vld [vmem:[%s1598] sm:$0xff]
    %v2884 = vld [vmem:[%s1598 + $0x8] sm:$0xff]
    %v2885 = vld [vmem:[%s1598 + $0x10] sm:$0xff]
    %v2886 = vld [vmem:[%s1598 + $0x18] sm:$0xff]
    %2887 = vmatprep.subr.mxu0 0.0
    %2888 = vmatpush1.msra.mxu0 %v2865
    %2889 = vmatprep.subr.mxu0 0.0
    %2890 = vmatpush1.msra.mxu0 %v2870
    %2891 = vmatprep.subr.mxu0 0.0
    %2892 = vmatpush1.msra.mxu0 %v2875
    %2893 = vmatprep.subr.mxu0 0.0
    %2894 = vmatpush1.msra.mxu0 %v2880
    %2895 = vmatprep.subr.mxu0 0.0
    %2896 = vmatpush1.msra.mxu0 0.0
    %2897 = vmatprep.subr.mxu0 0.0
    %2898 = vmatpush1.msra.mxu0 0.0
    %2899 = vmatprep.subr.mxu0 0.0
    %2900 = vmatpush1.msra.mxu0 0.0
    %2901 = vmatprep.subr.mxu0 0.0
    %2902 = vmatpush1.msra.mxu0 0.0
    %2903 = vmatprep.subr.mxu0 0.0
    %2904 = vmatpush1.msra.mxu0 0.0
    %2905 = vmatprep.subr.mxu0 0.0
    %2906 = vmatpush1.msra.mxu0 0.0
    %2907 = vmatprep.subr.mxu0 0.0
    %2908 = vmatpush1.msra.mxu0 0.0
    %2909 = vmatprep.subr.mxu0 0.0
    %2910 = vmatpush1.msra.mxu0 0.0
    %2911 = vmatprep.subr.mxu0 0.0
    %2912 = vmatpush1.msra.mxu0 0.0
    %2913 = vmatprep.subr.mxu0 0.0
    %2914 = vmatpush1.msra.mxu0 0.0
    %2915 = vmatprep.subr.mxu0 0.0
    %2916 = vmatpush1.msra.mxu0 0.0
    %2917 = vmatprep.subr.mxu0 0.0
    %2918 = vmatpush1.msra.mxu0 0.0
    %2919 = vmatprep.subr.mxu0 0.0
    %2920 = vmatpush1.msra.mxu0 0.0
    %2921 = vmatprep.subr.mxu0 0.0
    %2922 = vmatpush1.msra.mxu0 0.0
    %2923 = vmatprep.subr.mxu0 0.0
    %2924 = vmatpush1.msra.mxu0 0.0
    %2925 = vmatprep.subr.mxu0 0.0
    %2926 = vmatpush1.msra.mxu0 0.0
    %2927 = vmatprep.subr.mxu0 0.0
    %2928 = vmatpush1.msra.mxu0 0.0
    %2929 = vmatprep.subr.mxu0 0.0
    %2930 = vmatpush1.msra.mxu0 0.0
    %2931 = vmatprep.subr.mxu0 0.0
    %2932 = vmatpush1.msra.mxu0 0.0
    %2933 = vmatprep.subr.mxu0 0.0
    %2934 = vmatpush1.msra.mxu0 0.0
    %2935 = vmatprep.subr.mxu0 0.0
    %2936 = vmatpush1.msra.mxu0 0.0
    %2937 = vmatprep.subr.mxu0 0.0
    %2938 = vmatpush1.msra.mxu0 0.0
    %2939 = vmatprep.subr.mxu0 0.0
    %2940 = vmatpush1.msra.mxu0 0.0
    %2941 = vmatprep.subr.mxu0 0.0
    %2942 = vmatpush1.msra.mxu0 0.0
    %2943 = vmatprep.subr.mxu0 0.0
    %2944 = vmatpush1.msra.mxu0 0.0
    %2945 = vmatprep.subr.mxu0 0.0
    %2946 = vmatpush1.msra.mxu0 0.0
    %2947 = vmatprep.subr.mxu0 0.0
    %2948 = vmatpush1.msra.mxu0 0.0
    %2949 = vmatprep.subr.mxu0 0.0
    %2950 = vmatpush1.msra.mxu0 0.0
    %2951 = vmatprep.mubr.f32.mxu0 0.0
    %2952 = vmatmul.mubr.f32.gmra.mrb[0].mxu0 %v244
    %v2953 = vpop.f32.mrb[0].mxu0
    %v2954 = vadd.f32 %v2883, %v2953
    %v2955 = vpop.f32.mrb[0].mxu0
    %2956 = vmatprep.mubr.f32.mxu0 0.0
    %2957 = vmatmul.mubr.f32.gmra.mrb[0].mxu0 %v247
    %v2958 = vpop.f32.mrb[0].mxu0
    %v2959 = vadd.f32 %v2884, %v2958
    %v2960 = vpop.f32.mrb[0].mxu0
    %2961 = vmatprep.mubr.f32.mxu0 0.0
    %2962 = vmatmul.mubr.f32.gmra.mrb[0].mxu0 %v250
    %v2963 = vpop.f32.mrb[0].mxu0
    %v2964 = vadd.f32 %v2885, %v2963
    %v2965 = vpop.f32.mrb[0].mxu0
    %2966 = vmatprep.mubr.f32.mxu0 0.0
    %2967 = vmatmul.mubr.f32.gmra.mrb[0].mxu0 %v253
    %v2968 = vpop.f32.mrb[0].mxu0
    %v2969 = vadd.f32 %v2886, %v2968
    %v2970 = vpop.f32.mrb[0].mxu0
    %2971 = vdwg.mxu0
    %v2972 = vld [vmem:[%s1702] sm:$0xff]
    %v2973 = vld [vmem:[%s1702 + $0x8] sm:$0xff]
    %v2974 = vld [vmem:[%s1702 + $0x10] sm:$0xff]
    %v2975 = vld [vmem:[%s1702 + $0x18] sm:$0xff]
    %2976 = vmatprep.subr.mxu0 0.0
    %2977 = vmatpush1.msra.mxu0 %v2954
    %2978 = vmatprep.subr.mxu0 0.0
    %2979 = vmatpush1.msra.mxu0 %v2959
    %2980 = vmatprep.subr.mxu0 0.0
    %2981 = vmatpush1.msra.mxu0 %v2964
    %2982 = vmatprep.subr.mxu0 0.0
    %2983 = vmatpush1.msra.mxu0 %v2969
    %2984 = vmatprep.subr.mxu0 0.0
    %2985 = vmatpush1.msra.mxu0 0.0
    %2986 = vmatprep.subr.mxu0 0.0
    %2987 = vmatpush1.msra.mxu0 0.0
    %2988 = vmatprep.subr.mxu0 0.0
    %2989 = vmatpush1.msra.mxu0 0.0
    %2990 = vmatprep.subr.mxu0 0.0
    %2991 = vmatpush1.msra.mxu0 0.0
    %2992 = vmatprep.subr.mxu0 0.0
    %2993 = vmatpush1.msra.mxu0 0.0
    %2994 = vmatprep.subr.mxu0 0.0
    %2995 = vmatpush1.msra.mxu0 0.0
    %2996 = vmatprep.subr.mxu0 0.0
    %2997 = vmatpush1.msra.mxu0 0.0
    %2998 = vmatprep.subr.mxu0 0.0
    %2999 = vmatpush1.msra.mxu0 0.0
    %3000 = vmatprep.subr.mxu0 0.0
    %3001 = vmatpush1.msra.mxu0 0.0
    %3002 = vmatprep.subr.mxu0 0.0
    %3003 = vmatpush1.msra.mxu0 0.0
    %3004 = vmatprep.subr.mxu0 0.0
    %3005 = vmatpush1.msra.mxu0 0.0
    %3006 = vmatprep.subr.mxu0 0.0
    %3007 = vmatpush1.msra.mxu0 0.0
    %3008 = vmatprep.subr.mxu0 0.0
    %3009 = vmatpush1.msra.mxu0 0.0
    %3010 = vmatprep.subr.mxu0 0.0
    %3011 = vmatpush1.msra.mxu0 0.0
    %3012 = vmatprep.subr.mxu0 0.0
    %3013 = vmatpush1.msra.mxu0 0.0
    %3014 = vmatprep.subr.mxu0 0.0
    %3015 = vmatpush1.msra.mxu0 0.0
    %3016 = vmatprep.subr.mxu0 0.0
    %3017 = vmatpush1.msra.mxu0 0.0
    %3018 = vmatprep.subr.mxu0 0.0
    %3019 = vmatpush1.msra.mxu0 0.0
    %3020 = vmatprep.subr.mxu0 0.0
    %3021 = vmatpush1.msra.mxu0 0.0
    %3022 = vmatprep.subr.mxu0 0.0
    %3023 = vmatpush1.msra.mxu0 0.0
    %3024 = vmatprep.subr.mxu0 0.0
    %3025 = vmatpush1.msra.mxu0 0.0
    %3026 = vmatprep.subr.mxu0 0.0
    %3027 = vmatpush1.msra.mxu0 0.0
    %3028 = vmatprep.subr.mxu0 0.0
    %3029 = vmatpush1.msra.mxu0 0.0
    %3030 = vmatprep.subr.mxu0 0.0
    %3031 = vmatpush1.msra.mxu0 0.0
    %3032 = vmatprep.subr.mxu0 0.0
    %3033 = vmatpush1.msra.mxu0 0.0
    %3034 = vmatprep.subr.mxu0 0.0
    %3035 = vmatpush1.msra.mxu0 0.0
    %3036 = vmatprep.subr.mxu0 0.0
    %3037 = vmatpush1.msra.mxu0 0.0
    %3038 = vmatprep.subr.mxu0 0.0
    %3039 = vmatpush1.msra.mxu0 0.0
    %3040 = vmatprep.mubr.f32.mxu0 0.0
    %3041 = vmatmul.mubr.f32.gmra.mrb[0].mxu0 %v244
    %v3042 = vpop.f32.mrb[0].mxu0
    %v3043 = vadd.f32 %v2972, %v3042
    %v3044 = vpop.f32.mrb[0].mxu0
    %3045 = vmatprep.mubr.f32.mxu0 0.0
    %3046 = vmatmul.mubr.f32.gmra.mrb[0].mxu0 %v247
    %v3047 = vpop.f32.mrb[0].mxu0
    %v3048 = vadd.f32 %v2973, %v3047
    %v3049 = vpop.f32.mrb[0].mxu0
    %3050 = vmatprep.mubr.f32.mxu0 0.0
    %3051 = vmatmul.mubr.f32.gmra.mrb[0].mxu0 %v250
    %v3052 = vpop.f32.mrb[0].mxu0
    %v3053 = vadd.f32 %v2974, %v3052
    %v3054 = vpop.f32.mrb[0].mxu0
    %3055 = vmatprep.mubr.f32.mxu0 0.0
    %3056 = vmatmul.mubr.f32.gmra.mrb[0].mxu0 %v253
    %v3057 = vpop.f32.mrb[0].mxu0
    %v3058 = vadd.f32 %v2975, %v3057
    %v3059 = vpop.f32.mrb[0].mxu0
    %3060 = vdwg.mxu0
    %v3061 = vld [vmem:[%s1806] sm:$0xff]
    %v3062 = vld [vmem:[%s1806 + $0x8] sm:$0xff]
    %v3063 = vld [vmem:[%s1806 + $0x10] sm:$0xff]
    %v3064 = vld [vmem:[%s1806 + $0x18] sm:$0xff]
    %3065 = vmatprep.subr.mxu0 0.0
    %3066 = vmatpush1.msra.mxu0 %v3043
    %3067 = vmatprep.subr.mxu0 0.0
    %3068 = vmatpush1.msra.mxu0 %v3048
    %3069 = vmatprep.subr.mxu0 0.0
    %3070 = vmatpush1.msra.mxu0 %v3053
    %3071 = vmatprep.subr.mxu0 0.0
    %3072 = vmatpush1.msra.mxu0 %v3058
    %3073 = vmatprep.subr.mxu0 0.0
    %3074 = vmatpush1.msra.mxu0 0.0
    %3075 = vmatprep.subr.mxu0 0.0
    %3076 = vmatpush1.msra.mxu0 0.0
    %3077 = vmatprep.subr.mxu0 0.0
    %3078 = vmatpush1.msra.mxu0 0.0
    %3079 = vmatprep.subr.mxu0 0.0
    %3080 = vmatpush1.msra.mxu0 0.0
    %3081 = vmatprep.subr.mxu0 0.0
    %3082 = vmatpush1.msra.mxu0 0.0
    %3083 = vmatprep.subr.mxu0 0.0
    %3084 = vmatpush1.msra.mxu0 0.0
    %3085 = vmatprep.subr.mxu0 0.0
    %3086 = vmatpush1.msra.mxu0 0.0
    %3087 = vmatprep.subr.mxu0 0.0
    %3088 = vmatpush1.msra.mxu0 0.0
    %3089 = vmatprep.subr.mxu0 0.0
    %3090 = vmatpush1.msra.mxu0 0.0
    %3091 = vmatprep.subr.mxu0 0.0
    %3092 = vmatpush1.msra.mxu0 0.0
    %3093 = vmatprep.subr.mxu0 0.0
    %3094 = vmatpush1.msra.mxu0 0.0
    %3095 = vmatprep.subr.mxu0 0.0
    %3096 = vmatpush1.msra.mxu0 0.0
    %3097 = vmatprep.subr.mxu0 0.0
    %3098 = vmatpush1.msra.mxu0 0.0
    %3099 = vmatprep.subr.mxu0 0.0
    %3100 = vmatpush1.msra.mxu0 0.0
    %3101 = vmatprep.subr.mxu0 0.0
    %3102 = vmatpush1.msra.mxu0 0.0
    %3103 = vmatprep.subr.mxu0 0.0
    %3104 = vmatpush1.msra.mxu0 0.0
    %3105 = vmatprep.subr.mxu0 0.0
    %3106 = vmatpush1.msra.mxu0 0.0
    %3107 = vmatprep.subr.mxu0 0.0
    %3108 = vmatpush1.msra.mxu0 0.0
    %3109 = vmatprep.subr.mxu0 0.0
    %3110 = vmatpush1.msra.mxu0 0.0
    %3111 = vmatprep.subr.mxu0 0.0
    %3112 = vmatpush1.msra.mxu0 0.0
    %3113 = vmatprep.subr.mxu0 0.0
    %3114 = vmatpush1.msra.mxu0 0.0
    %3115 = vmatprep.subr.mxu0 0.0
    %3116 = vmatpush1.msra.mxu0 0.0
    %3117 = vmatprep.subr.mxu0 0.0
    %3118 = vmatpush1.msra.mxu0 0.0
    %3119 = vmatprep.subr.mxu0 0.0
    %3120 = vmatpush1.msra.mxu0 0.0
    %3121 = vmatprep.subr.mxu0 0.0
    %3122 = vmatpush1.msra.mxu0 0.0
    %3123 = vmatprep.subr.mxu0 0.0
    %3124 = vmatpush1.msra.mxu0 0.0
    %3125 = vmatprep.subr.mxu0 0.0
    %3126 = vmatpush1.msra.mxu0 0.0
    %3127 = vmatprep.subr.mxu0 0.0
    %3128 = vmatpush1.msra.mxu0 0.0
    %3129 = vmatprep.mubr.f32.mxu0 0.0
    %3130 = vmatmul.mubr.f32.gmra.mrb[0].mxu0 %v244
    %v3131 = vpop.f32.mrb[0].mxu0
    %v3132 = vadd.f32 %v3061, %v3131
    %v3133 = vpop.f32.mrb[0].mxu0
    %3134 = vmatprep.mubr.f32.mxu0 0.0
    %3135 = vmatmul.mubr.f32.gmra.mrb[0].mxu0 %v247
    %v3136 = vpop.f32.mrb[0].mxu0
    %v3137 = vadd.f32 %v3062, %v3136
    %v3138 = vpop.f32.mrb[0].mxu0
    %3139 = vmatprep.mubr.f32.mxu0 0.0
    %3140 = vmatmul.mubr.f32.gmra.mrb[0].mxu0 %v250
    %v3141 = vpop.f32.mrb[0].mxu0
    %v3142 = vadd.f32 %v3063, %v3141
    %v3143 = vpop.f32.mrb[0].mxu0
    %3144 = vmatprep.mubr.f32.mxu0 0.0
    %3145 = vmatmul.mubr.f32.gmra.mrb[0].mxu0 %v253
    %v3146 = vpop.f32.mrb[0].mxu0
    %v3147 = vadd.f32 %v3064, %v3146
    %v3148 = vpop.f32.mrb[0].mxu0
    %3149 = vdwg.mxu0
    %v3150 = vld [vmem:[#allocation12] sm:$0xff]
    %v3151 = vld [vmem:[#allocation12 + $0x8] sm:$0xff]
    %v3152 = vld [vmem:[#allocation12 + $0x10] sm:$0xff]
    %v3153 = vld [vmem:[#allocation12 + $0x18] sm:$0xff]
    %v3154 = vld [vmem:[#allocation12 + $0x20] sm:$0xff]
    %v3155 = vld [vmem:[#allocation12 + $0x28] sm:$0xff]
    %v3156 = vld [vmem:[#allocation12 + $0x30] sm:$0xff]
    %v3157 = vld [vmem:[#allocation12 + $0x38] sm:$0xff]
    %v3158 = vld [vmem:[#allocation12 + $0x40] sm:$0xff]
    %v3159 = vld [vmem:[#allocation12 + $0x48] sm:$0xff]
    %v3160 = vld [vmem:[#allocation12 + $0x50] sm:$0xff]
    %v3161 = vld [vmem:[#allocation12 + $0x58] sm:$0xff]
    %v3162 = vld [vmem:[#allocation12 + $0x60] sm:$0xff]
    %v3163 = vld [vmem:[#allocation12 + $0x68] sm:$0xff]
    %v3164 = vld [vmem:[#allocation12 + $0x70] sm:$0xff]
    %v3165 = vld [vmem:[#allocation12 + $0x78] sm:$0xff]
    %v3166 = vld [vmem:[%s6] sm:$0x1]
    %v3168 = vlaneseq
    %v3169 = vshrl.u32 %v3168, 7
    %v3170 = vsub.s32 0, %v3169
    %v3171 = vrot.slane %v3166, %v3170
    %3173 = vmatprep.subr.mxu0 0.0
    %3174 = vmatpush1.msra.mxu0 %v3150
    %3175 = vmatprep.subr.mxu0 0.0
    %3176 = vmatpush1.msra.mxu0 %v3151
    %3177 = vmatprep.subr.mxu0 0.0
    %3178 = vmatpush1.msra.mxu0 %v3152
    %3179 = vmatprep.subr.mxu0 0.0
    %3180 = vmatpush1.msra.mxu0 %v3153
    %3181 = vmatprep.subr.mxu0 0.0
    %3182 = vmatpush1.msra.mxu0 %v3154
    %3183 = vmatprep.subr.mxu0 0.0
    %3184 = vmatpush1.msra.mxu0 %v3155
    %3185 = vmatprep.subr.mxu0 0.0
    %3186 = vmatpush1.msra.mxu0 %v3156
    %3187 = vmatprep.subr.mxu0 0.0
    %3188 = vmatpush1.msra.mxu0 %v3157
    %3189 = vmatprep.subr.mxu0 0.0
    %3190 = vmatpush1.msra.mxu0 %v3158
    %3191 = vmatprep.subr.mxu0 0.0
    %3192 = vmatpush1.msra.mxu0 %v3159
    %3193 = vmatprep.subr.mxu0 0.0
    %3194 = vmatpush1.msra.mxu0 %v3160
    %3195 = vmatprep.subr.mxu0 0.0
    %3196 = vmatpush1.msra.mxu0 %v3161
    %3197 = vmatprep.subr.mxu0 0.0
    %3198 = vmatpush1.msra.mxu0 %v3162
    %3199 = vmatprep.subr.mxu0 0.0
    %3200 = vmatpush1.msra.mxu0 %v3163
    %3201 = vmatprep.subr.mxu0 0.0
    %3202 = vmatpush1.msra.mxu0 %v3164
    %3203 = vmatprep.subr.mxu0 0.0
    %3204 = vmatpush1.msra.mxu0 %v3165
    %3205 = vmatprep.subr.mxu0 0.0
    %3206 = vmatpush1.msra.mxu0 0.0
    %3207 = vmatprep.subr.mxu0 0.0
    %3208 = vmatpush1.msra.mxu0 0.0
    %3209 = vmatprep.subr.mxu0 0.0
    %3210 = vmatpush1.msra.mxu0 0.0
    %3211 = vmatprep.subr.mxu0 0.0
    %3212 = vmatpush1.msra.mxu0 0.0
    %3213 = vmatprep.subr.mxu0 0.0
    %3214 = vmatpush1.msra.mxu0 0.0
    %3215 = vmatprep.subr.mxu0 0.0
    %3216 = vmatpush1.msra.mxu0 0.0
    %3217 = vmatprep.subr.mxu0 0.0
    %3218 = vmatpush1.msra.mxu0 0.0
    %3219 = vmatprep.subr.mxu0 0.0
    %3220 = vmatpush1.msra.mxu0 0.0
    %3221 = vmatprep.subr.mxu0 0.0
    %3222 = vmatpush1.msra.mxu0 0.0
    %3223 = vmatprep.subr.mxu0 0.0
    %3224 = vmatpush1.msra.mxu0 0.0
    %3225 = vmatprep.subr.mxu0 0.0
    %3226 = vmatpush1.msra.mxu0 0.0
    %3227 = vmatprep.subr.mxu0 0.0
    %3228 = vmatpush1.msra.mxu0 0.0
    %3229 = vmatprep.subr.mxu0 0.0
    %3230 = vmatpush1.msra.mxu0 0.0
    %3231 = vmatprep.subr.mxu0 0.0
    %3232 = vmatpush1.msra.mxu0 0.0
    %3233 = vmatprep.subr.mxu0 0.0
    %3234 = vmatpush1.msra.mxu0 0.0
    %3235 = vmatprep.subr.mxu0 0.0
    %3236 = vmatpush1.msra.mxu0 0.0
    %3237 = vmatprep.mubr.f32.mxu0 0.0
    %3238 = vmatmul.mubr.f32.gmra.mrb[0].mxu0 %v3132
    %v3239 = vpop.f32.mrb[0].mxu0
    %v3240 = vadd.f32 %v3171, %v3239
    %v3241 = vpop.f32.mrb[0].mxu0
    %3242 = vmatprep.mubr.f32.mxu0 0.0
    %3243 = vmatmul.mubr.f32.gmra.mrb[0].mxu0 %v3137
    %v3244 = vpop.f32.mrb[0].mxu0
    %v3245 = vadd.f32 %v3171, %v3244
    %v3246 = vpop.f32.mrb[0].mxu0
    %3247 = vmatprep.mubr.f32.mxu0 0.0
    %3248 = vmatmul.mubr.f32.gmra.mrb[0].mxu0 %v3142
    %v3249 = vpop.f32.mrb[0].mxu0
    %v3250 = vadd.f32 %v3171, %v3249
    %v3251 = vpop.f32.mrb[0].mxu0
    %3252 = vmatprep.mubr.f32.mxu0 0.0
    %3253 = vmatmul.mubr.f32.gmra.mrb[0].mxu0 %v3147
    %v3254 = vpop.f32.mrb[0].mxu0
    %v3255 = vadd.f32 %v3171, %v3254
    %v3256 = vpop.f32.mrb[0].mxu0
    %3257 = vdwg.mxu0
    %s3258 = sld [smem:[#allocation8 + $0xf]]
    %v3259 = vstv %s3258
    %v3260 = vmul.f32 %v3259, %v3240
    %v3261 = vmul.f32 %v3259, %v3245
    %v3262 = vmul.f32 %v3259, %v3250
    %v3263 = vmul.f32 %v3259, %v3255
    %3264 = vst [vmem:[#allocation2] sm:$0xff] %v3260
    %3265 = vst [vmem:[#allocation2 + $0x8] sm:$0xff] %v3261
    %3266 = vst [vmem:[#allocation2 + $0x10] sm:$0xff] %v3262
    %3267 = vst [vmem:[#allocation2 + $0x18] sm:$0xff] %v3263
    %v3268 = vmul.f32 %v3240, 2.0
    %v3269 = vmul.f32 %v3245, 2.0
    %v3270 = vmul.f32 %v3250, 2.0
    %v3271 = vmul.f32 %v3255, 2.0
    %3272 = vmatprep.subr.mxu0 0.0
    %3273 = vmatpush1.msra.mxu0 %v3240
    %3274 = vmatprep.subr.mxu0 0.0
    %3275 = vmatpush1.msra.mxu0 %v3245
    %3276 = vmatprep.subr.mxu0 0.0
    %3277 = vmatpush1.msra.mxu0 %v3250
    %3278 = vmatprep.subr.mxu0 0.0
    %3279 = vmatpush1.msra.mxu0 %v3255
    %3280 = vmatprep.subr.mxu0 0.0
    %3281 = vmatpush1.msra.mxu0 0.0
    %3282 = vmatprep.subr.mxu0 0.0
    %3283 = vmatpush1.msra.mxu0 0.0
    %3284 = vmatprep.subr.mxu0 0.0
    %3285 = vmatpush1.msra.mxu0 0.0
    %3286 = vmatprep.subr.mxu0 0.0
    %3287 = vmatpush1.msra.mxu0 0.0
    %3288 = vmatprep.subr.mxu0 0.0
    %3289 = vmatpush1.msra.mxu0 0.0
    %3290 = vmatprep.subr.mxu0 0.0
    %3291 = vmatpush1.msra.mxu0 0.0
    %3292 = vmatprep.subr.mxu0 0.0
    %3293 = vmatpush1.msra.mxu0 0.0
    %3294 = vmatprep.subr.mxu0 0.0
    %3295 = vmatpush1.msra.mxu0 0.0
    %3296 = vmatprep.subr.mxu0 0.0
    %3297 = vmatpush1.msra.mxu0 0.0
    %3298 = vmatprep.subr.mxu0 0.0
    %3299 = vmatpush1.msra.mxu0 0.0
    %3300 = vmatprep.subr.mxu0 0.0
    %3301 = vmatpush1.msra.mxu0 0.0
    %3302 = vmatprep.subr.mxu0 0.0
    %3303 = vmatpush1.msra.mxu0 0.0
    %3304 = vmatprep.subr.mxu0 0.0
    %3305 = vmatpush1.msra.mxu0 0.0
    %3306 = vmatprep.subr.mxu0 0.0
    %3307 = vmatpush1.msra.mxu0 0.0
    %3308 = vmatprep.subr.mxu0 0.0
    %3309 = vmatpush1.msra.mxu0 0.0
    %3310 = vmatprep.subr.mxu0 0.0
    %3311 = vmatpush1.msra.mxu0 0.0
    %3312 = vmatprep.subr.mxu0 0.0
    %3313 = vmatpush1.msra.mxu0 0.0
    %3314 = vmatprep.subr.mxu0 0.0
    %3315 = vmatpush1.msra.mxu0 0.0
    %3316 = vmatprep.subr.mxu0 0.0
    %3317 = vmatpush1.msra.mxu0 0.0
    %3318 = vmatprep.subr.mxu0 0.0
    %3319 = vmatpush1.msra.mxu0 0.0
    %3320 = vmatprep.subr.mxu0 0.0
    %3321 = vmatpush1.msra.mxu0 0.0
    %3322 = vmatprep.subr.mxu0 0.0
    %3323 = vmatpush1.msra.mxu0 0.0
    %3324 = vmatprep.subr.mxu0 0.0
    %3325 = vmatpush1.msra.mxu0 0.0
    %3326 = vmatprep.subr.mxu0 0.0
    %3327 = vmatpush1.msra.mxu0 0.0
    %3328 = vmatprep.subr.mxu0 0.0
    %3329 = vmatpush1.msra.mxu0 0.0
    %3330 = vmatprep.subr.mxu0 0.0
    %3331 = vmatpush1.msra.mxu0 0.0
    %3332 = vmatprep.subr.mxu0 0.0
    %3333 = vmatpush1.msra.mxu0 0.0
    %3334 = vmatprep.subr.mxu0 0.0
    %3335 = vmatpush1.msra.mxu0 0.0
    %3336 = vmatprep.mubr.f32.mxu0 0.0
    %3337 = vmatmul.mubr.f32.gmra.mrb[0].mxu0 %v244
    %v3338 = vpop.f32.mrb[0].mxu0
    %v3339 = vadd.f32 0.0, %v3338
    %v3340 = vpop.f32.mrb[0].mxu0
    %3341 = vmatprep.mubr.f32.mxu0 0.0
    %3342 = vmatmul.mubr.f32.gmra.mrb[0].mxu0 %v247
    %v3343 = vpop.f32.mrb[0].mxu0
    %v3344 = vadd.f32 0.0, %v3343
    %v3345 = vpop.f32.mrb[0].mxu0
    %3346 = vmatprep.mubr.f32.mxu0 0.0
    %3347 = vmatmul.mubr.f32.gmra.mrb[0].mxu0 %v250
    %v3348 = vpop.f32.mrb[0].mxu0
    %v3349 = vadd.f32 0.0, %v3348
    %v3350 = vpop.f32.mrb[0].mxu0
    %3351 = vmatprep.mubr.f32.mxu0 0.0
    %3352 = vmatmul.mubr.f32.gmra.mrb[0].mxu0 %v253
    %v3353 = vpop.f32.mrb[0].mxu0
    %v3354 = vadd.f32 0.0, %v3353
    %v3355 = vpop.f32.mrb[0].mxu0
    %3356 = vdwg.mxu0
    %v3357 = vsub.f32 %v3268, %v3339
    %v3358 = vsub.f32 %v3269, %v3344
    %v3359 = vsub.f32 %v3270, %v3349
    %v3360 = vsub.f32 %v3271, %v3354
    %s3361 = sld [smem:[#allocation8 + $0xe]]
    %v3362 = vstv %s3361
    %v3363 = vmul.f32 %v3362, %v3357
    %v3364 = vmul.f32 %v3362, %v3358
    %v3365 = vmul.f32 %v3362, %v3359
    %v3366 = vmul.f32 %v3362, %v3360
    %3367 = vst [vmem:[%s350] sm:$0xff] %v3363
    %3368 = vst [vmem:[%s350 + $0x8] sm:$0xff] %v3364
    %3369 = vst [vmem:[%s350 + $0x10] sm:$0xff] %v3365
    %3370 = vst [vmem:[%s350 + $0x18] sm:$0xff] %v3366
    %v3371 = vmul.f32 %v3357, 2.0
    %v3372 = vmul.f32 %v3358, 2.0
    %v3373 = vmul.f32 %v3359, 2.0
    %v3374 = vmul.f32 %v3360, 2.0
    %3375 = vmatprep.subr.mxu0 0.0
    %3376 = vmatpush1.msra.mxu0 %v3357
    %3377 = vmatprep.subr.mxu0 0.0
    %3378 = vmatpush1.msra.mxu0 %v3358
    %3379 = vmatprep.subr.mxu0 0.0
    %3380 = vmatpush1.msra.mxu0 %v3359
    %3381 = vmatprep.subr.mxu0 0.0
    %3382 = vmatpush1.msra.mxu0 %v3360
    %3383 = vmatprep.subr.mxu0 0.0
    %3384 = vmatpush1.msra.mxu0 0.0
    %3385 = vmatprep.subr.mxu0 0.0
    %3386 = vmatpush1.msra.mxu0 0.0
    %3387 = vmatprep.subr.mxu0 0.0
    %3388 = vmatpush1.msra.mxu0 0.0
    %3389 = vmatprep.subr.mxu0 0.0
    %3390 = vmatpush1.msra.mxu0 0.0
    %3391 = vmatprep.subr.mxu0 0.0
    %3392 = vmatpush1.msra.mxu0 0.0
    %3393 = vmatprep.subr.mxu0 0.0
    %3394 = vmatpush1.msra.mxu0 0.0
    %3395 = vmatprep.subr.mxu0 0.0
    %3396 = vmatpush1.msra.mxu0 0.0
    %3397 = vmatprep.subr.mxu0 0.0
    %3398 = vmatpush1.msra.mxu0 0.0
    %3399 = vmatprep.subr.mxu0 0.0
    %3400 = vmatpush1.msra.mxu0 0.0
    %3401 = vmatprep.subr.mxu0 0.0
    %3402 = vmatpush1.msra.mxu0 0.0
    %3403 = vmatprep.subr.mxu0 0.0
    %3404 = vmatpush1.msra.mxu0 0.0
    %3405 = vmatprep.subr.mxu0 0.0
    %3406 = vmatpush1.msra.mxu0 0.0
    %3407 = vmatprep.subr.mxu0 0.0
    %3408 = vmatpush1.msra.mxu0 0.0
    %3409 = vmatprep.subr.mxu0 0.0
    %3410 = vmatpush1.msra.mxu0 0.0
    %3411 = vmatprep.subr.mxu0 0.0
    %3412 = vmatpush1.msra.mxu0 0.0
    %3413 = vmatprep.subr.mxu0 0.0
    %3414 = vmatpush1.msra.mxu0 0.0
    %3415 = vmatprep.subr.mxu0 0.0
    %3416 = vmatpush1.msra.mxu0 0.0
    %3417 = vmatprep.subr.mxu0 0.0
    %3418 = vmatpush1.msra.mxu0 0.0
    %3419 = vmatprep.subr.mxu0 0.0
    %3420 = vmatpush1.msra.mxu0 0.0
    %3421 = vmatprep.subr.mxu0 0.0
    %3422 = vmatpush1.msra.mxu0 0.0
    %3423 = vmatprep.subr.mxu0 0.0
    %3424 = vmatpush1.msra.mxu0 0.0
    %3425 = vmatprep.subr.mxu0 0.0
    %3426 = vmatpush1.msra.mxu0 0.0
    %3427 = vmatprep.subr.mxu0 0.0
    %3428 = vmatpush1.msra.mxu0 0.0
    %3429 = vmatprep.subr.mxu0 0.0
    %3430 = vmatpush1.msra.mxu0 0.0
    %3431 = vmatprep.subr.mxu0 0.0
    %3432 = vmatpush1.msra.mxu0 0.0
    %3433 = vmatprep.subr.mxu0 0.0
    %3434 = vmatpush1.msra.mxu0 0.0
    %3435 = vmatprep.subr.mxu0 0.0
    %3436 = vmatpush1.msra.mxu0 0.0
    %3437 = vmatprep.subr.mxu0 0.0
    %3438 = vmatpush1.msra.mxu0 0.0
    %3439 = vmatprep.mubr.f32.mxu0 0.0
    %3440 = vmatmul.mubr.f32.gmra.mrb[0].mxu0 %v244
    %v3441 = vpop.f32.mrb[0].mxu0
    %v3442 = vadd.f32 0.0, %v3441
    %v3443 = vpop.f32.mrb[0].mxu0
    %3444 = vmatprep.mubr.f32.mxu0 0.0
    %3445 = vmatmul.mubr.f32.gmra.mrb[0].mxu0 %v247
    %v3446 = vpop.f32.mrb[0].mxu0
    %v3447 = vadd.f32 0.0, %v3446
    %v3448 = vpop.f32.mrb[0].mxu0
    %3449 = vmatprep.mubr.f32.mxu0 0.0
    %3450 = vmatmul.mubr.f32.gmra.mrb[0].mxu0 %v250
    %v3451 = vpop.f32.mrb[0].mxu0
    %v3452 = vadd.f32 0.0, %v3451
    %v3453 = vpop.f32.mrb[0].mxu0
    %3454 = vmatprep.mubr.f32.mxu0 0.0
    %3455 = vmatmul.mubr.f32.gmra.mrb[0].mxu0 %v253
    %v3456 = vpop.f32.mrb[0].mxu0
    %v3457 = vadd.f32 0.0, %v3456
    %v3458 = vpop.f32.mrb[0].mxu0
    %3459 = vdwg.mxu0
    %v3460 = vsub.f32 %v3371, %v3442
    %v3461 = vsub.f32 %v3372, %v3447
    %v3462 = vsub.f32 %v3373, %v3452
    %v3463 = vsub.f32 %v3374, %v3457
    %s3464 = sld [smem:[#allocation8 + $0xd]]
    %v3465 = vstv %s3464
    %v3466 = vmul.f32 %v3465, %v3460
    %v3467 = vmul.f32 %v3465, %v3461
    %v3468 = vmul.f32 %v3465, %v3462
    %v3469 = vmul.f32 %v3465, %v3463
    %3470 = vst [vmem:[%s454] sm:$0xff] %v3466
    %3471 = vst [vmem:[%s454 + $0x8] sm:$0xff] %v3467
    %3472 = vst [vmem:[%s454 + $0x10] sm:$0xff] %v3468
    %3473 = vst [vmem:[%s454 + $0x18] sm:$0xff] %v3469
    %v3474 = vmul.f32 %v3460, 2.0
    %v3475 = vmul.f32 %v3461, 2.0
    %v3476 = vmul.f32 %v3462, 2.0
    %v3477 = vmul.f32 %v3463, 2.0
    %3478 = vmatprep.subr.mxu0 0.0
    %3479 = vmatpush1.msra.mxu0 %v3460
    %3480 = vmatprep.subr.mxu0 0.0
    %3481 = vmatpush1.msra.mxu0 %v3461
    %3482 = vmatprep.subr.mxu0 0.0
    %3483 = vmatpush1.msra.mxu0 %v3462
    %3484 = vmatprep.subr.mxu0 0.0
    %3485 = vmatpush1.msra.mxu0 %v3463
    %3486 = vmatprep.subr.mxu0 0.0
    %3487 = vmatpush1.msra.mxu0 0.0
    %3488 = vmatprep.subr.mxu0 0.0
    %3489 = vmatpush1.msra.mxu0 0.0
    %3490 = vmatprep.subr.mxu0 0.0
    %3491 = vmatpush1.msra.mxu0 0.0
    %3492 = vmatprep.subr.mxu0 0.0
    %3493 = vmatpush1.msra.mxu0 0.0
    %3494 = vmatprep.subr.mxu0 0.0
    %3495 = vmatpush1.msra.mxu0 0.0
    %3496 = vmatprep.subr.mxu0 0.0
    %3497 = vmatpush1.msra.mxu0 0.0
    %3498 = vmatprep.subr.mxu0 0.0
    %3499 = vmatpush1.msra.mxu0 0.0
    %3500 = vmatprep.subr.mxu0 0.0
    %3501 = vmatpush1.msra.mxu0 0.0
    %3502 = vmatprep.subr.mxu0 0.0
    %3503 = vmatpush1.msra.mxu0 0.0
    %3504 = vmatprep.subr.mxu0 0.0
    %3505 = vmatpush1.msra.mxu0 0.0
    %3506 = vmatprep.subr.mxu0 0.0
    %3507 = vmatpush1.msra.mxu0 0.0
    %3508 = vmatprep.subr.mxu0 0.0
    %3509 = vmatpush1.msra.mxu0 0.0
    %3510 = vmatprep.subr.mxu0 0.0
    %3511 = vmatpush1.msra.mxu0 0.0
    %3512 = vmatprep.subr.mxu0 0.0
    %3513 = vmatpush1.msra.mxu0 0.0
    %3514 = vmatprep.subr.mxu0 0.0
    %3515 = vmatpush1.msra.mxu0 0.0
    %3516 = vmatprep.subr.mxu0 0.0
    %3517 = vmatpush1.msra.mxu0 0.0
    %3518 = vmatprep.subr.mxu0 0.0
    %3519 = vmatpush1.msra.mxu0 0.0
    %3520 = vmatprep.subr.mxu0 0.0
    %3521 = vmatpush1.msra.mxu0 0.0
    %3522 = vmatprep.subr.mxu0 0.0
    %3523 = vmatpush1.msra.mxu0 0.0
    %3524 = vmatprep.subr.mxu0 0.0
    %3525 = vmatpush1.msra.mxu0 0.0
    %3526 = vmatprep.subr.mxu0 0.0
    %3527 = vmatpush1.msra.mxu0 0.0
    %3528 = vmatprep.subr.mxu0 0.0
    %3529 = vmatpush1.msra.mxu0 0.0
    %3530 = vmatprep.subr.mxu0 0.0
    %3531 = vmatpush1.msra.mxu0 0.0
    %3532 = vmatprep.subr.mxu0 0.0
    %3533 = vmatpush1.msra.mxu0 0.0
    %3534 = vmatprep.subr.mxu0 0.0
    %3535 = vmatpush1.msra.mxu0 0.0
    %3536 = vmatprep.subr.mxu0 0.0
    %3537 = vmatpush1.msra.mxu0 0.0
    %3538 = vmatprep.subr.mxu0 0.0
    %3539 = vmatpush1.msra.mxu0 0.0
    %3540 = vmatprep.subr.mxu0 0.0
    %3541 = vmatpush1.msra.mxu0 0.0
    %3542 = vmatprep.mubr.f32.mxu0 0.0
    %3543 = vmatmul.mubr.f32.gmra.mrb[0].mxu0 %v244
    %v3544 = vpop.f32.mrb[0].mxu0
    %v3545 = vadd.f32 0.0, %v3544
    %v3546 = vpop.f32.mrb[0].mxu0
    %3547 = vmatprep.mubr.f32.mxu0 0.0
    %3548 = vmatmul.mubr.f32.gmra.mrb[0].mxu0 %v247
    %v3549 = vpop.f32.mrb[0].mxu0
    %v3550 = vadd.f32 0.0, %v3549
    %v3551 = vpop.f32.mrb[0].mxu0
    %3552 = vmatprep.mubr.f32.mxu0 0.0
    %3553 = vmatmul.mubr.f32.gmra.mrb[0].mxu0 %v250
    %v3554 = vpop.f32.mrb[0].mxu0
    %v3555 = vadd.f32 0.0, %v3554
    %v3556 = vpop.f32.mrb[0].mxu0
    %3557 = vmatprep.mubr.f32.mxu0 0.0
    %3558 = vmatmul.mubr.f32.gmra.mrb[0].mxu0 %v253
    %v3559 = vpop.f32.mrb[0].mxu0
    %v3560 = vadd.f32 0.0, %v3559
    %v3561 = vpop.f32.mrb[0].mxu0
    %3562 = vdwg.mxu0
    %v3563 = vsub.f32 %v3474, %v3545
    %v3564 = vsub.f32 %v3475, %v3550
    %v3565 = vsub.f32 %v3476, %v3555
    %v3566 = vsub.f32 %v3477, %v3560
    %s3567 = sld [smem:[#allocation8 + $0xc]]
    %v3568 = vstv %s3567
    %v3569 = vmul.f32 %v3568, %v3563
    %v3570 = vmul.f32 %v3568, %v3564
    %v3571 = vmul.f32 %v3568, %v3565
    %v3572 = vmul.f32 %v3568, %v3566
    %3573 = vst [vmem:[%s558] sm:$0xff] %v3569
    %3574 = vst [vmem:[%s558 + $0x8] sm:$0xff] %v3570
    %3575 = vst [vmem:[%s558 + $0x10] sm:$0xff] %v3571
    %3576 = vst [vmem:[%s558 + $0x18] sm:$0xff] %v3572
    %v3577 = vmul.f32 %v3563, 2.0
    %v3578 = vmul.f32 %v3564, 2.0
    %v3579 = vmul.f32 %v3565, 2.0
    %v3580 = vmul.f32 %v3566, 2.0
    %3581 = vmatprep.subr.mxu0 0.0
    %3582 = vmatpush1.msra.mxu0 %v3563
    %3583 = vmatprep.subr.mxu0 0.0
    %3584 = vmatpush1.msra.mxu0 %v3564
    %3585 = vmatprep.subr.mxu0 0.0
    %3586 = vmatpush1.msra.mxu0 %v3565
    %3587 = vmatprep.subr.mxu0 0.0
    %3588 = vmatpush1.msra.mxu0 %v3566
    %3589 = vmatprep.subr.mxu0 0.0
    %3590 = vmatpush1.msra.mxu0 0.0
    %3591 = vmatprep.subr.mxu0 0.0
    %3592 = vmatpush1.msra.mxu0 0.0
    %3593 = vmatprep.subr.mxu0 0.0
    %3594 = vmatpush1.msra.mxu0 0.0
    %3595 = vmatprep.subr.mxu0 0.0
    %3596 = vmatpush1.msra.mxu0 0.0
    %3597 = vmatprep.subr.mxu0 0.0
    %3598 = vmatpush1.msra.mxu0 0.0
    %3599 = vmatprep.subr.mxu0 0.0
    %3600 = vmatpush1.msra.mxu0 0.0
    %3601 = vmatprep.subr.mxu0 0.0
    %3602 = vmatpush1.msra.mxu0 0.0
    %3603 = vmatprep.subr.mxu0 0.0
    %3604 = vmatpush1.msra.mxu0 0.0
    %3605 = vmatprep.subr.mxu0 0.0
    %3606 = vmatpush1.msra.mxu0 0.0
    %3607 = vmatprep.subr.mxu0 0.0
    %3608 = vmatpush1.msra.mxu0 0.0
    %3609 = vmatprep.subr.mxu0 0.0
    %3610 = vmatpush1.msra.mxu0 0.0
    %3611 = vmatprep.subr.mxu0 0.0
    %3612 = vmatpush1.msra.mxu0 0.0
    %3613 = vmatprep.subr.mxu0 0.0
    %3614 = vmatpush1.msra.mxu0 0.0
    %3615 = vmatprep.subr.mxu0 0.0
    %3616 = vmatpush1.msra.mxu0 0.0
    %3617 = vmatprep.subr.mxu0 0.0
    %3618 = vmatpush1.msra.mxu0 0.0
    %3619 = vmatprep.subr.mxu0 0.0
    %3620 = vmatpush1.msra.mxu0 0.0
    %3621 = vmatprep.subr.mxu0 0.0
    %3622 = vmatpush1.msra.mxu0 0.0
    %3623 = vmatprep.subr.mxu0 0.0
    %3624 = vmatpush1.msra.mxu0 0.0
    %3625 = vmatprep.subr.mxu0 0.0
    %3626 = vmatpush1.msra.mxu0 0.0
    %3627 = vmatprep.subr.mxu0 0.0
    %3628 = vmatpush1.msra.mxu0 0.0
    %3629 = vmatprep.subr.mxu0 0.0
    %3630 = vmatpush1.msra.mxu0 0.0
    %3631 = vmatprep.subr.mxu0 0.0
    %3632 = vmatpush1.msra.mxu0 0.0
    %3633 = vmatprep.subr.mxu0 0.0
    %3634 = vmatpush1.msra.mxu0 0.0
    %3635 = vmatprep.subr.mxu0 0.0
    %3636 = vmatpush1.msra.mxu0 0.0
    %3637 = vmatprep.subr.mxu0 0.0
    %3638 = vmatpush1.msra.mxu0 0.0
    %3639 = vmatprep.subr.mxu0 0.0
    %3640 = vmatpush1.msra.mxu0 0.0
    %3641 = vmatprep.subr.mxu0 0.0
    %3642 = vmatpush1.msra.mxu0 0.0
    %3643 = vmatprep.subr.mxu0 0.0
    %3644 = vmatpush1.msra.mxu0 0.0
    %3645 = vmatprep.mubr.f32.mxu0 0.0
    %3646 = vmatmul.mubr.f32.gmra.mrb[0].mxu0 %v244
    %v3647 = vpop.f32.mrb[0].mxu0
    %v3648 = vadd.f32 0.0, %v3647
    %v3649 = vpop.f32.mrb[0].mxu0
    %3650 = vmatprep.mubr.f32.mxu0 0.0
    %3651 = vmatmul.mubr.f32.gmra.mrb[0].mxu0 %v247
    %v3652 = vpop.f32.mrb[0].mxu0
    %v3653 = vadd.f32 0.0, %v3652
    %v3654 = vpop.f32.mrb[0].mxu0
    %3655 = vmatprep.mubr.f32.mxu0 0.0
    %3656 = vmatmul.mubr.f32.gmra.mrb[0].mxu0 %v250
    %v3657 = vpop.f32.mrb[0].mxu0
    %v3658 = vadd.f32 0.0, %v3657
    %v3659 = vpop.f32.mrb[0].mxu0
    %3660 = vmatprep.mubr.f32.mxu0 0.0
    %3661 = vmatmul.mubr.f32.gmra.mrb[0].mxu0 %v253
    %v3662 = vpop.f32.mrb[0].mxu0
    %v3663 = vadd.f32 0.0, %v3662
    %v3664 = vpop.f32.mrb[0].mxu0
    %3665 = vdwg.mxu0
    %v3666 = vsub.f32 %v3577, %v3648
    %v3667 = vsub.f32 %v3578, %v3653
    %v3668 = vsub.f32 %v3579, %v3658
    %v3669 = vsub.f32 %v3580, %v3663
    %s3670 = sld [smem:[#allocation8 + $0xb]]
    %v3671 = vstv %s3670
    %v3672 = vmul.f32 %v3671, %v3666
    %v3673 = vmul.f32 %v3671, %v3667
    %v3674 = vmul.f32 %v3671, %v3668
    %v3675 = vmul.f32 %v3671, %v3669
    %3676 = vst [vmem:[%s662] sm:$0xff] %v3672
    %3677 = vst [vmem:[%s662 + $0x8] sm:$0xff] %v3673
    %3678 = vst [vmem:[%s662 + $0x10] sm:$0xff] %v3674
    %3679 = vst [vmem:[%s662 + $0x18] sm:$0xff] %v3675
    %v3680 = vmul.f32 %v3666, 2.0
    %v3681 = vmul.f32 %v3667, 2.0
    %v3682 = vmul.f32 %v3668, 2.0
    %v3683 = vmul.f32 %v3669, 2.0
    %3684 = vmatprep.subr.mxu0 0.0
    %3685 = vmatpush1.msra.mxu0 %v3666
    %3686 = vmatprep.subr.mxu0 0.0
    %3687 = vmatpush1.msra.mxu0 %v3667
    %3688 = vmatprep.subr.mxu0 0.0
    %3689 = vmatpush1.msra.mxu0 %v3668
    %3690 = vmatprep.subr.mxu0 0.0
    %3691 = vmatpush1.msra.mxu0 %v3669
    %3692 = vmatprep.subr.mxu0 0.0
    %3693 = vmatpush1.msra.mxu0 0.0
    %3694 = vmatprep.subr.mxu0 0.0
    %3695 = vmatpush1.msra.mxu0 0.0
    %3696 = vmatprep.subr.mxu0 0.0
    %3697 = vmatpush1.msra.mxu0 0.0
    %3698 = vmatprep.subr.mxu0 0.0
    %3699 = vmatpush1.msra.mxu0 0.0
    %3700 = vmatprep.subr.mxu0 0.0
    %3701 = vmatpush1.msra.mxu0 0.0
    %3702 = vmatprep.subr.mxu0 0.0
    %3703 = vmatpush1.msra.mxu0 0.0
    %3704 = vmatprep.subr.mxu0 0.0
    %3705 = vmatpush1.msra.mxu0 0.0
    %3706 = vmatprep.subr.mxu0 0.0
    %3707 = vmatpush1.msra.mxu0 0.0
    %3708 = vmatprep.subr.mxu0 0.0
    %3709 = vmatpush1.msra.mxu0 0.0
    %3710 = vmatprep.subr.mxu0 0.0
    %3711 = vmatpush1.msra.mxu0 0.0
    %3712 = vmatprep.subr.mxu0 0.0
    %3713 = vmatpush1.msra.mxu0 0.0
    %3714 = vmatprep.subr.mxu0 0.0
    %3715 = vmatpush1.msra.mxu0 0.0
    %3716 = vmatprep.subr.mxu0 0.0
    %3717 = vmatpush1.msra.mxu0 0.0
    %3718 = vmatprep.subr.mxu0 0.0
    %3719 = vmatpush1.msra.mxu0 0.0
    %3720 = vmatprep.subr.mxu0 0.0
    %3721 = vmatpush1.msra.mxu0 0.0
    %3722 = vmatprep.subr.mxu0 0.0
    %3723 = vmatpush1.msra.mxu0 0.0
    %3724 = vmatprep.subr.mxu0 0.0
    %3725 = vmatpush1.msra.mxu0 0.0
    %3726 = vmatprep.subr.mxu0 0.0
    %3727 = vmatpush1.msra.mxu0 0.0
    %3728 = vmatprep.subr.mxu0 0.0
    %3729 = vmatpush1.msra.mxu0 0.0
    %3730 = vmatprep.subr.mxu0 0.0
    %3731 = vmatpush1.msra.mxu0 0.0
    %3732 = vmatprep.subr.mxu0 0.0
    %3733 = vmatpush1.msra.mxu0 0.0
    %3734 = vmatprep.subr.mxu0 0.0
    %3735 = vmatpush1.msra.mxu0 0.0
    %3736 = vmatprep.subr.mxu0 0.0
    %3737 = vmatpush1.msra.mxu0 0.0
    %3738 = vmatprep.subr.mxu0 0.0
    %3739 = vmatpush1.msra.mxu0 0.0
    %3740 = vmatprep.subr.mxu0 0.0
    %3741 = vmatpush1.msra.mxu0 0.0
    %3742 = vmatprep.subr.mxu0 0.0
    %3743 = vmatpush1.msra.mxu0 0.0
    %3744 = vmatprep.subr.mxu0 0.0
    %3745 = vmatpush1.msra.mxu0 0.0
    %3746 = vmatprep.subr.mxu0 0.0
    %3747 = vmatpush1.msra.mxu0 0.0
    %3748 = vmatprep.mubr.f32.mxu0 0.0
    %3749 = vmatmul.mubr.f32.gmra.mrb[0].mxu0 %v244
    %v3750 = vpop.f32.mrb[0].mxu0
    %v3751 = vadd.f32 0.0, %v3750
    %v3752 = vpop.f32.mrb[0].mxu0
    %3753 = vmatprep.mubr.f32.mxu0 0.0
    %3754 = vmatmul.mubr.f32.gmra.mrb[0].mxu0 %v247
    %v3755 = vpop.f32.mrb[0].mxu0
    %v3756 = vadd.f32 0.0, %v3755
    %v3757 = vpop.f32.mrb[0].mxu0
    %3758 = vmatprep.mubr.f32.mxu0 0.0
    %3759 = vmatmul.mubr.f32.gmra.mrb[0].mxu0 %v250
    %v3760 = vpop.f32.mrb[0].mxu0
    %v3761 = vadd.f32 0.0, %v3760
    %v3762 = vpop.f32.mrb[0].mxu0
    %3763 = vmatprep.mubr.f32.mxu0 0.0
    %3764 = vmatmul.mubr.f32.gmra.mrb[0].mxu0 %v253
    %v3765 = vpop.f32.mrb[0].mxu0
    %v3766 = vadd.f32 0.0, %v3765
    %v3767 = vpop.f32.mrb[0].mxu0
    %3768 = vdwg.mxu0
    %v3769 = vsub.f32 %v3680, %v3751
    %v3770 = vsub.f32 %v3681, %v3756
    %v3771 = vsub.f32 %v3682, %v3761
    %v3772 = vsub.f32 %v3683, %v3766
    %s3773 = sld [smem:[#allocation8 + $0xa]]
    %v3774 = vstv %s3773
    %v3775 = vmul.f32 %v3774, %v3769
    %v3776 = vmul.f32 %v3774, %v3770
    %v3777 = vmul.f32 %v3774, %v3771
    %v3778 = vmul.f32 %v3774, %v3772
    %3779 = vst [vmem:[%s766] sm:$0xff] %v3775
    %3780 = vst [vmem:[%s766 + $0x8] sm:$0xff] %v3776
    %3781 = vst [vmem:[%s766 + $0x10] sm:$0xff] %v3777
    %3782 = vst [vmem:[%s766 + $0x18] sm:$0xff] %v3778
    %v3783 = vmul.f32 %v3769, 2.0
    %v3784 = vmul.f32 %v3770, 2.0
    %v3785 = vmul.f32 %v3771, 2.0
    %v3786 = vmul.f32 %v3772, 2.0
    %3787 = vmatprep.subr.mxu0 0.0
    %3788 = vmatpush1.msra.mxu0 %v3769
    %3789 = vmatprep.subr.mxu0 0.0
    %3790 = vmatpush1.msra.mxu0 %v3770
    %3791 = vmatprep.subr.mxu0 0.0
    %3792 = vmatpush1.msra.mxu0 %v3771
    %3793 = vmatprep.subr.mxu0 0.0
    %3794 = vmatpush1.msra.mxu0 %v3772
    %3795 = vmatprep.subr.mxu0 0.0
    %3796 = vmatpush1.msra.mxu0 0.0
    %3797 = vmatprep.subr.mxu0 0.0
    %3798 = vmatpush1.msra.mxu0 0.0
    %3799 = vmatprep.subr.mxu0 0.0
    %3800 = vmatpush1.msra.mxu0 0.0
    %3801 = vmatprep.subr.mxu0 0.0
    %3802 = vmatpush1.msra.mxu0 0.0
    %3803 = vmatprep.subr.mxu0 0.0
    %3804 = vmatpush1.msra.mxu0 0.0
    %3805 = vmatprep.subr.mxu0 0.0
    %3806 = vmatpush1.msra.mxu0 0.0
    %3807 = vmatprep.subr.mxu0 0.0
    %3808 = vmatpush1.msra.mxu0 0.0
    %3809 = vmatprep.subr.mxu0 0.0
    %3810 = vmatpush1.msra.mxu0 0.0
    %3811 = vmatprep.subr.mxu0 0.0
    %3812 = vmatpush1.msra.mxu0 0.0
    %3813 = vmatprep.subr.mxu0 0.0
    %3814 = vmatpush1.msra.mxu0 0.0
    %3815 = vmatprep.subr.mxu0 0.0
    %3816 = vmatpush1.msra.mxu0 0.0
    %3817 = vmatprep.subr.mxu0 0.0
    %3818 = vmatpush1.msra.mxu0 0.0
    %3819 = vmatprep.subr.mxu0 0.0
    %3820 = vmatpush1.msra.mxu0 0.0
    %3821 = vmatprep.subr.mxu0 0.0
    %3822 = vmatpush1.msra.mxu0 0.0
    %3823 = vmatprep.subr.mxu0 0.0
    %3824 = vmatpush1.msra.mxu0 0.0
    %3825 = vmatprep.subr.mxu0 0.0
    %3826 = vmatpush1.msra.mxu0 0.0
    %3827 = vmatprep.subr.mxu0 0.0
    %3828 = vmatpush1.msra.mxu0 0.0
    %3829 = vmatprep.subr.mxu0 0.0
    %3830 = vmatpush1.msra.mxu0 0.0
    %3831 = vmatprep.subr.mxu0 0.0
    %3832 = vmatpush1.msra.mxu0 0.0
    %3833 = vmatprep.subr.mxu0 0.0
    %3834 = vmatpush1.msra.mxu0 0.0
    %3835 = vmatprep.subr.mxu0 0.0
    %3836 = vmatpush1.msra.mxu0 0.0
    %3837 = vmatprep.subr.mxu0 0.0
    %3838 = vmatpush1.msra.mxu0 0.0
    %3839 = vmatprep.subr.mxu0 0.0
    %3840 = vmatpush1.msra.mxu0 0.0
    %3841 = vmatprep.subr.mxu0 0.0
    %3842 = vmatpush1.msra.mxu0 0.0
    %3843 = vmatprep.subr.mxu0 0.0
    %3844 = vmatpush1.msra.mxu0 0.0
    %3845 = vmatprep.subr.mxu0 0.0
    %3846 = vmatpush1.msra.mxu0 0.0
    %3847 = vmatprep.subr.mxu0 0.0
    %3848 = vmatpush1.msra.mxu0 0.0
    %3849 = vmatprep.subr.mxu0 0.0
    %3850 = vmatpush1.msra.mxu0 0.0
    %3851 = vmatprep.mubr.f32.mxu0 0.0
    %3852 = vmatmul.mubr.f32.gmra.mrb[0].mxu0 %v244
    %v3853 = vpop.f32.mrb[0].mxu0
    %v3854 = vadd.f32 0.0, %v3853
    %v3855 = vpop.f32.mrb[0].mxu0
    %3856 = vmatprep.mubr.f32.mxu0 0.0
    %3857 = vmatmul.mubr.f32.gmra.mrb[0].mxu0 %v247
    %v3858 = vpop.f32.mrb[0].mxu0
    %v3859 = vadd.f32 0.0, %v3858
    %v3860 = vpop.f32.mrb[0].mxu0
    %3861 = vmatprep.mubr.f32.mxu0 0.0
    %3862 = vmatmul.mubr.f32.gmra.mrb[0].mxu0 %v250
    %v3863 = vpop.f32.mrb[0].mxu0
    %v3864 = vadd.f32 0.0, %v3863
    %v3865 = vpop.f32.mrb[0].mxu0
    %3866 = vmatprep.mubr.f32.mxu0 0.0
    %3867 = vmatmul.mubr.f32.gmra.mrb[0].mxu0 %v253
    %v3868 = vpop.f32.mrb[0].mxu0
    %v3869 = vadd.f32 0.0, %v3868
    %v3870 = vpop.f32.mrb[0].mxu0
    %3871 = vdwg.mxu0
    %v3872 = vsub.f32 %v3783, %v3854
    %v3873 = vsub.f32 %v3784, %v3859
    %v3874 = vsub.f32 %v3785, %v3864
    %v3875 = vsub.f32 %v3786, %v3869
    %s3876 = sld [smem:[#allocation8 + $0x9]]
    %v3877 = vstv %s3876
    %v3878 = vmul.f32 %v3877, %v3872
    %v3879 = vmul.f32 %v3877, %v3873
    %v3880 = vmul.f32 %v3877, %v3874
    %v3881 = vmul.f32 %v3877, %v3875
    %3882 = vst [vmem:[%s870] sm:$0xff] %v3878
    %3883 = vst [vmem:[%s870 + $0x8] sm:$0xff] %v3879
    %3884 = vst [vmem:[%s870 + $0x10] sm:$0xff] %v3880
    %3885 = vst [vmem:[%s870 + $0x18] sm:$0xff] %v3881
    %v3886 = vmul.f32 %v3872, 2.0
    %v3887 = vmul.f32 %v3873, 2.0
    %v3888 = vmul.f32 %v3874, 2.0
    %v3889 = vmul.f32 %v3875, 2.0
    %3890 = vmatprep.subr.mxu0 0.0
    %3891 = vmatpush1.msra.mxu0 %v3872
    %3892 = vmatprep.subr.mxu0 0.0
    %3893 = vmatpush1.msra.mxu0 %v3873
    %3894 = vmatprep.subr.mxu0 0.0
    %3895 = vmatpush1.msra.mxu0 %v3874
    %3896 = vmatprep.subr.mxu0 0.0
    %3897 = vmatpush1.msra.mxu0 %v3875
    %3898 = vmatprep.subr.mxu0 0.0
    %3899 = vmatpush1.msra.mxu0 0.0
    %3900 = vmatprep.subr.mxu0 0.0
    %3901 = vmatpush1.msra.mxu0 0.0
    %3902 = vmatprep.subr.mxu0 0.0
    %3903 = vmatpush1.msra.mxu0 0.0
    %3904 = vmatprep.subr.mxu0 0.0
    %3905 = vmatpush1.msra.mxu0 0.0
    %3906 = vmatprep.subr.mxu0 0.0
    %3907 = vmatpush1.msra.mxu0 0.0
    %3908 = vmatprep.subr.mxu0 0.0
    %3909 = vmatpush1.msra.mxu0 0.0
    %3910 = vmatprep.subr.mxu0 0.0
    %3911 = vmatpush1.msra.mxu0 0.0
    %3912 = vmatprep.subr.mxu0 0.0
    %3913 = vmatpush1.msra.mxu0 0.0
    %3914 = vmatprep.subr.mxu0 0.0
    %3915 = vmatpush1.msra.mxu0 0.0
    %3916 = vmatprep.subr.mxu0 0.0
    %3917 = vmatpush1.msra.mxu0 0.0
    %3918 = vmatprep.subr.mxu0 0.0
    %3919 = vmatpush1.msra.mxu0 0.0
    %3920 = vmatprep.subr.mxu0 0.0
    %3921 = vmatpush1.msra.mxu0 0.0
    %3922 = vmatprep.subr.mxu0 0.0
    %3923 = vmatpush1.msra.mxu0 0.0
    %3924 = vmatprep.subr.mxu0 0.0
    %3925 = vmatpush1.msra.mxu0 0.0
    %3926 = vmatprep.subr.mxu0 0.0
    %3927 = vmatpush1.msra.mxu0 0.0
    %3928 = vmatprep.subr.mxu0 0.0
    %3929 = vmatpush1.msra.mxu0 0.0
    %3930 = vmatprep.subr.mxu0 0.0
    %3931 = vmatpush1.msra.mxu0 0.0
    %3932 = vmatprep.subr.mxu0 0.0
    %3933 = vmatpush1.msra.mxu0 0.0
    %3934 = vmatprep.subr.mxu0 0.0
    %3935 = vmatpush1.msra.mxu0 0.0
    %3936 = vmatprep.subr.mxu0 0.0
    %3937 = vmatpush1.msra.mxu0 0.0
    %3938 = vmatprep.subr.mxu0 0.0
    %3939 = vmatpush1.msra.mxu0 0.0
    %3940 = vmatprep.subr.mxu0 0.0
    %3941 = vmatpush1.msra.mxu0 0.0
    %3942 = vmatprep.subr.mxu0 0.0
    %3943 = vmatpush1.msra.mxu0 0.0
    %3944 = vmatprep.subr.mxu0 0.0
    %3945 = vmatpush1.msra.mxu0 0.0
    %3946 = vmatprep.subr.mxu0 0.0
    %3947 = vmatpush1.msra.mxu0 0.0
    %3948 = vmatprep.subr.mxu0 0.0
    %3949 = vmatpush1.msra.mxu0 0.0
    %3950 = vmatprep.subr.mxu0 0.0
    %3951 = vmatpush1.msra.mxu0 0.0
    %3952 = vmatprep.subr.mxu0 0.0
    %3953 = vmatpush1.msra.mxu0 0.0
    %3954 = vmatprep.mubr.f32.mxu0 0.0
    %3955 = vmatmul.mubr.f32.gmra.mrb[0].mxu0 %v244
    %v3956 = vpop.f32.mrb[0].mxu0
    %v3957 = vadd.f32 0.0, %v3956
    %v3958 = vpop.f32.mrb[0].mxu0
    %3959 = vmatprep.mubr.f32.mxu0 0.0
    %3960 = vmatmul.mubr.f32.gmra.mrb[0].mxu0 %v247
    %v3961 = vpop.f32.mrb[0].mxu0
    %v3962 = vadd.f32 0.0, %v3961
    %v3963 = vpop.f32.mrb[0].mxu0
    %3964 = vmatprep.mubr.f32.mxu0 0.0
    %3965 = vmatmul.mubr.f32.gmra.mrb[0].mxu0 %v250
    %v3966 = vpop.f32.mrb[0].mxu0
    %v3967 = vadd.f32 0.0, %v3966
    %v3968 = vpop.f32.mrb[0].mxu0
    %3969 = vmatprep.mubr.f32.mxu0 0.0
    %3970 = vmatmul.mubr.f32.gmra.mrb[0].mxu0 %v253
    %v3971 = vpop.f32.mrb[0].mxu0
    %v3972 = vadd.f32 0.0, %v3971
    %v3973 = vpop.f32.mrb[0].mxu0
    %3974 = vdwg.mxu0
    %v3975 = vsub.f32 %v3886, %v3957
    %v3976 = vsub.f32 %v3887, %v3962
    %v3977 = vsub.f32 %v3888, %v3967
    %v3978 = vsub.f32 %v3889, %v3972
    %s3979 = sld [smem:[#allocation8 + $0x8]]
    %v3980 = vstv %s3979
    %v3981 = vmul.f32 %v3980, %v3975
    %v3982 = vmul.f32 %v3980, %v3976
    %v3983 = vmul.f32 %v3980, %v3977
    %v3984 = vmul.f32 %v3980, %v3978
    %3985 = vst [vmem:[%s974] sm:$0xff] %v3981
    %3986 = vst [vmem:[%s974 + $0x8] sm:$0xff] %v3982
    %3987 = vst [vmem:[%s974 + $0x10] sm:$0xff] %v3983
    %3988 = vst [vmem:[%s974 + $0x18] sm:$0xff] %v3984
    %v3989 = vmul.f32 %v3975, 2.0
    %v3990 = vmul.f32 %v3976, 2.0
    %v3991 = vmul.f32 %v3977, 2.0
    %v3992 = vmul.f32 %v3978, 2.0
    %3993 = vmatprep.subr.mxu0 0.0
    %3994 = vmatpush1.msra.mxu0 %v3975
    %3995 = vmatprep.subr.mxu0 0.0
    %3996 = vmatpush1.msra.mxu0 %v3976
    %3997 = vmatprep.subr.mxu0 0.0
    %3998 = vmatpush1.msra.mxu0 %v3977
    %3999 = vmatprep.subr.mxu0 0.0
    %4000 = vmatpush1.msra.mxu0 %v3978
    %4001 = vmatprep.subr.mxu0 0.0
    %4002 = vmatpush1.msra.mxu0 0.0
    %4003 = vmatprep.subr.mxu0 0.0
    %4004 = vmatpush1.msra.mxu0 0.0
    %4005 = vmatprep.subr.mxu0 0.0
    %4006 = vmatpush1.msra.mxu0 0.0
    %4007 = vmatprep.subr.mxu0 0.0
    %4008 = vmatpush1.msra.mxu0 0.0
    %4009 = vmatprep.subr.mxu0 0.0
    %4010 = vmatpush1.msra.mxu0 0.0
    %4011 = vmatprep.subr.mxu0 0.0
    %4012 = vmatpush1.msra.mxu0 0.0
    %4013 = vmatprep.subr.mxu0 0.0
    %4014 = vmatpush1.msra.mxu0 0.0
    %4015 = vmatprep.subr.mxu0 0.0
    %4016 = vmatpush1.msra.mxu0 0.0
    %4017 = vmatprep.subr.mxu0 0.0
    %4018 = vmatpush1.msra.mxu0 0.0
    %4019 = vmatprep.subr.mxu0 0.0
    %4020 = vmatpush1.msra.mxu0 0.0
    %4021 = vmatprep.subr.mxu0 0.0
    %4022 = vmatpush1.msra.mxu0 0.0
    %4023 = vmatprep.subr.mxu0 0.0
    %4024 = vmatpush1.msra.mxu0 0.0
    %4025 = vmatprep.subr.mxu0 0.0
    %4026 = vmatpush1.msra.mxu0 0.0
    %4027 = vmatprep.subr.mxu0 0.0
    %4028 = vmatpush1.msra.mxu0 0.0
    %4029 = vmatprep.subr.mxu0 0.0
    %4030 = vmatpush1.msra.mxu0 0.0
    %4031 = vmatprep.subr.mxu0 0.0
    %4032 = vmatpush1.msra.mxu0 0.0
    %4033 = vmatprep.subr.mxu0 0.0
    %4034 = vmatpush1.msra.mxu0 0.0
    %4035 = vmatprep.subr.mxu0 0.0
    %4036 = vmatpush1.msra.mxu0 0.0
    %4037 = vmatprep.subr.mxu0 0.0
    %4038 = vmatpush1.msra.mxu0 0.0
    %4039 = vmatprep.subr.mxu0 0.0
    %4040 = vmatpush1.msra.mxu0 0.0
    %4041 = vmatprep.subr.mxu0 0.0
    %4042 = vmatpush1.msra.mxu0 0.0
    %4043 = vmatprep.subr.mxu0 0.0
    %4044 = vmatpush1.msra.mxu0 0.0
    %4045 = vmatprep.subr.mxu0 0.0
    %4046 = vmatpush1.msra.mxu0 0.0
    %4047 = vmatprep.subr.mxu0 0.0
    %4048 = vmatpush1.msra.mxu0 0.0
    %4049 = vmatprep.subr.mxu0 0.0
    %4050 = vmatpush1.msra.mxu0 0.0
    %4051 = vmatprep.subr.mxu0 0.0
    %4052 = vmatpush1.msra.mxu0 0.0
    %4053 = vmatprep.subr.mxu0 0.0
    %4054 = vmatpush1.msra.mxu0 0.0
    %4055 = vmatprep.subr.mxu0 0.0
    %4056 = vmatpush1.msra.mxu0 0.0
    %4057 = vmatprep.mubr.f32.mxu0 0.0
    %4058 = vmatmul.mubr.f32.gmra.mrb[0].mxu0 %v244
    %v4059 = vpop.f32.mrb[0].mxu0
    %v4060 = vadd.f32 0.0, %v4059
    %v4061 = vpop.f32.mrb[0].mxu0
    %4062 = vmatprep.mubr.f32.mxu0 0.0
    %4063 = vmatmul.mubr.f32.gmra.mrb[0].mxu0 %v247
    %v4064 = vpop.f32.mrb[0].mxu0
    %v4065 = vadd.f32 0.0, %v4064
    %v4066 = vpop.f32.mrb[0].mxu0
    %4067 = vmatprep.mubr.f32.mxu0 0.0
    %4068 = vmatmul.mubr.f32.gmra.mrb[0].mxu0 %v250
    %v4069 = vpop.f32.mrb[0].mxu0
    %v4070 = vadd.f32 0.0, %v4069
    %v4071 = vpop.f32.mrb[0].mxu0
    %4072 = vmatprep.mubr.f32.mxu0 0.0
    %4073 = vmatmul.mubr.f32.gmra.mrb[0].mxu0 %v253
    %v4074 = vpop.f32.mrb[0].mxu0
    %v4075 = vadd.f32 0.0, %v4074
    %v4076 = vpop.f32.mrb[0].mxu0
    %4077 = vdwg.mxu0
    %v4078 = vsub.f32 %v3989, %v4060
    %v4079 = vsub.f32 %v3990, %v4065
    %v4080 = vsub.f32 %v3991, %v4070
    %v4081 = vsub.f32 %v3992, %v4075
    %s4082 = sld [smem:[#allocation8 + $0x7]]
    %v4083 = vstv %s4082
    %v4084 = vmul.f32 %v4083, %v4078
    %v4085 = vmul.f32 %v4083, %v4079
    %v4086 = vmul.f32 %v4083, %v4080
    %v4087 = vmul.f32 %v4083, %v4081
    %4088 = vst [vmem:[%s1078] sm:$0xff] %v4084
    %4089 = vst [vmem:[%s1078 + $0x8] sm:$0xff] %v4085
    %4090 = vst [vmem:[%s1078 + $0x10] sm:$0xff] %v4086
    %4091 = vst [vmem:[%s1078 + $0x18] sm:$0xff] %v4087
    %v4092 = vmul.f32 %v4078, 2.0
    %v4093 = vmul.f32 %v4079, 2.0
    %v4094 = vmul.f32 %v4080, 2.0
    %v4095 = vmul.f32 %v4081, 2.0
    %4096 = vmatprep.subr.mxu0 0.0
    %4097 = vmatpush1.msra.mxu0 %v4078
    %4098 = vmatprep.subr.mxu0 0.0
    %4099 = vmatpush1.msra.mxu0 %v4079
    %4100 = vmatprep.subr.mxu0 0.0
    %4101 = vmatpush1.msra.mxu0 %v4080
    %4102 = vmatprep.subr.mxu0 0.0
    %4103 = vmatpush1.msra.mxu0 %v4081
    %4104 = vmatprep.subr.mxu0 0.0
    %4105 = vmatpush1.msra.mxu0 0.0
    %4106 = vmatprep.subr.mxu0 0.0
    %4107 = vmatpush1.msra.mxu0 0.0
    %4108 = vmatprep.subr.mxu0 0.0
    %4109 = vmatpush1.msra.mxu0 0.0
    %4110 = vmatprep.subr.mxu0 0.0
    %4111 = vmatpush1.msra.mxu0 0.0
    %4112 = vmatprep.subr.mxu0 0.0
    %4113 = vmatpush1.msra.mxu0 0.0
    %4114 = vmatprep.subr.mxu0 0.0
    %4115 = vmatpush1.msra.mxu0 0.0
    %4116 = vmatprep.subr.mxu0 0.0
    %4117 = vmatpush1.msra.mxu0 0.0
    %4118 = vmatprep.subr.mxu0 0.0
    %4119 = vmatpush1.msra.mxu0 0.0
    %4120 = vmatprep.subr.mxu0 0.0
    %4121 = vmatpush1.msra.mxu0 0.0
    %4122 = vmatprep.subr.mxu0 0.0
    %4123 = vmatpush1.msra.mxu0 0.0
    %4124 = vmatprep.subr.mxu0 0.0
    %4125 = vmatpush1.msra.mxu0 0.0
    %4126 = vmatprep.subr.mxu0 0.0
    %4127 = vmatpush1.msra.mxu0 0.0
    %4128 = vmatprep.subr.mxu0 0.0
    %4129 = vmatpush1.msra.mxu0 0.0
    %4130 = vmatprep.subr.mxu0 0.0
    %4131 = vmatpush1.msra.mxu0 0.0
    %4132 = vmatprep.subr.mxu0 0.0
    %4133 = vmatpush1.msra.mxu0 0.0
    %4134 = vmatprep.subr.mxu0 0.0
    %4135 = vmatpush1.msra.mxu0 0.0
    %4136 = vmatprep.subr.mxu0 0.0
    %4137 = vmatpush1.msra.mxu0 0.0
    %4138 = vmatprep.subr.mxu0 0.0
    %4139 = vmatpush1.msra.mxu0 0.0
    %4140 = vmatprep.subr.mxu0 0.0
    %4141 = vmatpush1.msra.mxu0 0.0
    %4142 = vmatprep.subr.mxu0 0.0
    %4143 = vmatpush1.msra.mxu0 0.0
    %4144 = vmatprep.subr.mxu0 0.0
    %4145 = vmatpush1.msra.mxu0 0.0
    %4146 = vmatprep.subr.mxu0 0.0
    %4147 = vmatpush1.msra.mxu0 0.0
    %4148 = vmatprep.subr.mxu0 0.0
    %4149 = vmatpush1.msra.mxu0 0.0
    %4150 = vmatprep.subr.mxu0 0.0
    %4151 = vmatpush1.msra.mxu0 0.0
    %4152 = vmatprep.subr.mxu0 0.0
    %4153 = vmatpush1.msra.mxu0 0.0
    %4154 = vmatprep.subr.mxu0 0.0
    %4155 = vmatpush1.msra.mxu0 0.0
    %4156 = vmatprep.subr.mxu0 0.0
    %4157 = vmatpush1.msra.mxu0 0.0
    %4158 = vmatprep.subr.mxu0 0.0
    %4159 = vmatpush1.msra.mxu0 0.0
    %4160 = vmatprep.mubr.f32.mxu0 0.0
    %4161 = vmatmul.mubr.f32.gmra.mrb[0].mxu0 %v244
    %v4162 = vpop.f32.mrb[0].mxu0
    %v4163 = vadd.f32 0.0, %v4162
    %v4164 = vpop.f32.mrb[0].mxu0
    %4165 = vmatprep.mubr.f32.mxu0 0.0
    %4166 = vmatmul.mubr.f32.gmra.mrb[0].mxu0 %v247
    %v4167 = vpop.f32.mrb[0].mxu0
    %v4168 = vadd.f32 0.0, %v4167
    %v4169 = vpop.f32.mrb[0].mxu0
    %4170 = vmatprep.mubr.f32.mxu0 0.0
    %4171 = vmatmul.mubr.f32.gmra.mrb[0].mxu0 %v250
    %v4172 = vpop.f32.mrb[0].mxu0
    %v4173 = vadd.f32 0.0, %v4172
    %v4174 = vpop.f32.mrb[0].mxu0
    %4175 = vmatprep.mubr.f32.mxu0 0.0
    %4176 = vmatmul.mubr.f32.gmra.mrb[0].mxu0 %v253
    %v4177 = vpop.f32.mrb[0].mxu0
    %v4178 = vadd.f32 0.0, %v4177
    %v4179 = vpop.f32.mrb[0].mxu0
    %4180 = vdwg.mxu0
    %v4181 = vsub.f32 %v4092, %v4163
    %v4182 = vsub.f32 %v4093, %v4168
    %v4183 = vsub.f32 %v4094, %v4173
    %v4184 = vsub.f32 %v4095, %v4178
    %s4185 = sld [smem:[#allocation8 + $0x6]]
    %v4186 = vstv %s4185
    %v4187 = vmul.f32 %v4186, %v4181
    %v4188 = vmul.f32 %v4186, %v4182
    %v4189 = vmul.f32 %v4186, %v4183
    %v4190 = vmul.f32 %v4186, %v4184
    %4191 = vst [vmem:[%s1182] sm:$0xff] %v4187
    %4192 = vst [vmem:[%s1182 + $0x8] sm:$0xff] %v4188
    %4193 = vst [vmem:[%s1182 + $0x10] sm:$0xff] %v4189
    %4194 = vst [vmem:[%s1182 + $0x18] sm:$0xff] %v4190
    %v4195 = vmul.f32 %v4181, 2.0
    %v4196 = vmul.f32 %v4182, 2.0
    %v4197 = vmul.f32 %v4183, 2.0
    %v4198 = vmul.f32 %v4184, 2.0
    %4199 = vmatprep.subr.mxu0 0.0
    %4200 = vmatpush1.msra.mxu0 %v4181
    %4201 = vmatprep.subr.mxu0 0.0
    %4202 = vmatpush1.msra.mxu0 %v4182
    %4203 = vmatprep.subr.mxu0 0.0
    %4204 = vmatpush1.msra.mxu0 %v4183
    %4205 = vmatprep.subr.mxu0 0.0
    %4206 = vmatpush1.msra.mxu0 %v4184
    %4207 = vmatprep.subr.mxu0 0.0
    %4208 = vmatpush1.msra.mxu0 0.0
    %4209 = vmatprep.subr.mxu0 0.0
    %4210 = vmatpush1.msra.mxu0 0.0
    %4211 = vmatprep.subr.mxu0 0.0
    %4212 = vmatpush1.msra.mxu0 0.0
    %4213 = vmatprep.subr.mxu0 0.0
    %4214 = vmatpush1.msra.mxu0 0.0
    %4215 = vmatprep.subr.mxu0 0.0
    %4216 = vmatpush1.msra.mxu0 0.0
    %4217 = vmatprep.subr.mxu0 0.0
    %4218 = vmatpush1.msra.mxu0 0.0
    %4219 = vmatprep.subr.mxu0 0.0
    %4220 = vmatpush1.msra.mxu0 0.0
    %4221 = vmatprep.subr.mxu0 0.0
    %4222 = vmatpush1.msra.mxu0 0.0
    %4223 = vmatprep.subr.mxu0 0.0
    %4224 = vmatpush1.msra.mxu0 0.0
    %4225 = vmatprep.subr.mxu0 0.0
    %4226 = vmatpush1.msra.mxu0 0.0
    %4227 = vmatprep.subr.mxu0 0.0
    %4228 = vmatpush1.msra.mxu0 0.0
    %4229 = vmatprep.subr.mxu0 0.0
    %4230 = vmatpush1.msra.mxu0 0.0
    %4231 = vmatprep.subr.mxu0 0.0
    %4232 = vmatpush1.msra.mxu0 0.0
    %4233 = vmatprep.subr.mxu0 0.0
    %4234 = vmatpush1.msra.mxu0 0.0
    %4235 = vmatprep.subr.mxu0 0.0
    %4236 = vmatpush1.msra.mxu0 0.0
    %4237 = vmatprep.subr.mxu0 0.0
    %4238 = vmatpush1.msra.mxu0 0.0
    %4239 = vmatprep.subr.mxu0 0.0
    %4240 = vmatpush1.msra.mxu0 0.0
    %4241 = vmatprep.subr.mxu0 0.0
    %4242 = vmatpush1.msra.mxu0 0.0
    %4243 = vmatprep.subr.mxu0 0.0
    %4244 = vmatpush1.msra.mxu0 0.0
    %4245 = vmatprep.subr.mxu0 0.0
    %4246 = vmatpush1.msra.mxu0 0.0
    %4247 = vmatprep.subr.mxu0 0.0
    %4248 = vmatpush1.msra.mxu0 0.0
    %4249 = vmatprep.subr.mxu0 0.0
    %4250 = vmatpush1.msra.mxu0 0.0
    %4251 = vmatprep.subr.mxu0 0.0
    %4252 = vmatpush1.msra.mxu0 0.0
    %4253 = vmatprep.subr.mxu0 0.0
    %4254 = vmatpush1.msra.mxu0 0.0
    %4255 = vmatprep.subr.mxu0 0.0
    %4256 = vmatpush1.msra.mxu0 0.0
    %4257 = vmatprep.subr.mxu0 0.0
    %4258 = vmatpush1.msra.mxu0 0.0
    %4259 = vmatprep.subr.mxu0 0.0
    %4260 = vmatpush1.msra.mxu0 0.0
    %4261 = vmatprep.subr.mxu0 0.0
    %4262 = vmatpush1.msra.mxu0 0.0
    %4263 = vmatprep.mubr.f32.mxu0 0.0
    %4264 = vmatmul.mubr.f32.gmra.mrb[0].mxu0 %v244
    %v4265 = vpop.f32.mrb[0].mxu0
    %v4266 = vadd.f32 0.0, %v4265
    %v4267 = vpop.f32.mrb[0].mxu0
    %4268 = vmatprep.mubr.f32.mxu0 0.0
    %4269 = vmatmul.mubr.f32.gmra.mrb[0].mxu0 %v247
    %v4270 = vpop.f32.mrb[0].mxu0
    %v4271 = vadd.f32 0.0, %v4270
    %v4272 = vpop.f32.mrb[0].mxu0
    %4273 = vmatprep.mubr.f32.mxu0 0.0
    %4274 = vmatmul.mubr.f32.gmra.mrb[0].mxu0 %v250
    %v4275 = vpop.f32.mrb[0].mxu0
    %v4276 = vadd.f32 0.0, %v4275
    %v4277 = vpop.f32.mrb[0].mxu0
    %4278 = vmatprep.mubr.f32.mxu0 0.0
    %4279 = vmatmul.mubr.f32.gmra.mrb[0].mxu0 %v253
    %v4280 = vpop.f32.mrb[0].mxu0
    %v4281 = vadd.f32 0.0, %v4280
    %v4282 = vpop.f32.mrb[0].mxu0
    %4283 = vdwg.mxu0
    %v4284 = vsub.f32 %v4195, %v4266
    %v4285 = vsub.f32 %v4196, %v4271
    %v4286 = vsub.f32 %v4197, %v4276
    %v4287 = vsub.f32 %v4198, %v4281
    %s4288 = sld [smem:[#allocation8 + $0x5]]
    %v4289 = vstv %s4288
    %v4290 = vmul.f32 %v4289, %v4284
    %v4291 = vmul.f32 %v4289, %v4285
    %v4292 = vmul.f32 %v4289, %v4286
    %v4293 = vmul.f32 %v4289, %v4287
    %4294 = vst [vmem:[%s1286] sm:$0xff] %v4290
    %4295 = vst [vmem:[%s1286 + $0x8] sm:$0xff] %v4291
    %4296 = vst [vmem:[%s1286 + $0x10] sm:$0xff] %v4292
    %4297 = vst [vmem:[%s1286 + $0x18] sm:$0xff] %v4293
    %v4298 = vmul.f32 %v4284, 2.0
    %v4299 = vmul.f32 %v4285, 2.0
    %v4300 = vmul.f32 %v4286, 2.0
    %v4301 = vmul.f32 %v4287, 2.0
    %4302 = vmatprep.subr.mxu0 0.0
    %4303 = vmatpush1.msra.mxu0 %v4284
    %4304 = vmatprep.subr.mxu0 0.0
    %4305 = vmatpush1.msra.mxu0 %v4285
    %4306 = vmatprep.subr.mxu0 0.0
    %4307 = vmatpush1.msra.mxu0 %v4286
    %4308 = vmatprep.subr.mxu0 0.0
    %4309 = vmatpush1.msra.mxu0 %v4287
    %4310 = vmatprep.subr.mxu0 0.0
    %4311 = vmatpush1.msra.mxu0 0.0
    %4312 = vmatprep.subr.mxu0 0.0
    %4313 = vmatpush1.msra.mxu0 0.0
    %4314 = vmatprep.subr.mxu0 0.0
    %4315 = vmatpush1.msra.mxu0 0.0
    %4316 = vmatprep.subr.mxu0 0.0
    %4317 = vmatpush1.msra.mxu0 0.0
    %4318 = vmatprep.subr.mxu0 0.0
    %4319 = vmatpush1.msra.mxu0 0.0
    %4320 = vmatprep.subr.mxu0 0.0
    %4321 = vmatpush1.msra.mxu0 0.0
    %4322 = vmatprep.subr.mxu0 0.0
    %4323 = vmatpush1.msra.mxu0 0.0
    %4324 = vmatprep.subr.mxu0 0.0
    %4325 = vmatpush1.msra.mxu0 0.0
    %4326 = vmatprep.subr.mxu0 0.0
    %4327 = vmatpush1.msra.mxu0 0.0
    %4328 = vmatprep.subr.mxu0 0.0
    %4329 = vmatpush1.msra.mxu0 0.0
    %4330 = vmatprep.subr.mxu0 0.0
    %4331 = vmatpush1.msra.mxu0 0.0
    %4332 = vmatprep.subr.mxu0 0.0
    %4333 = vmatpush1.msra.mxu0 0.0
    %4334 = vmatprep.subr.mxu0 0.0
    %4335 = vmatpush1.msra.mxu0 0.0
    %4336 = vmatprep.subr.mxu0 0.0
    %4337 = vmatpush1.msra.mxu0 0.0
    %4338 = vmatprep.subr.mxu0 0.0
    %4339 = vmatpush1.msra.mxu0 0.0
    %4340 = vmatprep.subr.mxu0 0.0
    %4341 = vmatpush1.msra.mxu0 0.0
    %4342 = vmatprep.subr.mxu0 0.0
    %4343 = vmatpush1.msra.mxu0 0.0
    %4344 = vmatprep.subr.mxu0 0.0
    %4345 = vmatpush1.msra.mxu0 0.0
    %4346 = vmatprep.subr.mxu0 0.0
    %4347 = vmatpush1.msra.mxu0 0.0
    %4348 = vmatprep.subr.mxu0 0.0
    %4349 = vmatpush1.msra.mxu0 0.0
    %4350 = vmatprep.subr.mxu0 0.0
    %4351 = vmatpush1.msra.mxu0 0.0
    %4352 = vmatprep.subr.mxu0 0.0
    %4353 = vmatpush1.msra.mxu0 0.0
    %4354 = vmatprep.subr.mxu0 0.0
    %4355 = vmatpush1.msra.mxu0 0.0
    %4356 = vmatprep.subr.mxu0 0.0
    %4357 = vmatpush1.msra.mxu0 0.0
    %4358 = vmatprep.subr.mxu0 0.0
    %4359 = vmatpush1.msra.mxu0 0.0
    %4360 = vmatprep.subr.mxu0 0.0
    %4361 = vmatpush1.msra.mxu0 0.0
    %4362 = vmatprep.subr.mxu0 0.0
    %4363 = vmatpush1.msra.mxu0 0.0
    %4364 = vmatprep.subr.mxu0 0.0
    %4365 = vmatpush1.msra.mxu0 0.0
    %4366 = vmatprep.mubr.f32.mxu0 0.0
    %4367 = vmatmul.mubr.f32.gmra.mrb[0].mxu0 %v244
    %v4368 = vpop.f32.mrb[0].mxu0
    %v4369 = vadd.f32 0.0, %v4368
    %v4370 = vpop.f32.mrb[0].mxu0
    %4371 = vmatprep.mubr.f32.mxu0 0.0
    %4372 = vmatmul.mubr.f32.gmra.mrb[0].mxu0 %v247
    %v4373 = vpop.f32.mrb[0].mxu0
    %v4374 = vadd.f32 0.0, %v4373
    %v4375 = vpop.f32.mrb[0].mxu0
    %4376 = vmatprep.mubr.f32.mxu0 0.0
    %4377 = vmatmul.mubr.f32.gmra.mrb[0].mxu0 %v250
    %v4378 = vpop.f32.mrb[0].mxu0
    %v4379 = vadd.f32 0.0, %v4378
    %v4380 = vpop.f32.mrb[0].mxu0
    %4381 = vmatprep.mubr.f32.mxu0 0.0
    %4382 = vmatmul.mubr.f32.gmra.mrb[0].mxu0 %v253
    %v4383 = vpop.f32.mrb[0].mxu0
    %v4384 = vadd.f32 0.0, %v4383
    %v4385 = vpop.f32.mrb[0].mxu0
    %4386 = vdwg.mxu0
    %v4387 = vsub.f32 %v4298, %v4369
    %v4388 = vsub.f32 %v4299, %v4374
    %v4389 = vsub.f32 %v4300, %v4379
    %v4390 = vsub.f32 %v4301, %v4384
    %s4391 = sld [smem:[#allocation8 + $0x4]]
    %v4392 = vstv %s4391
    %v4393 = vmul.f32 %v4392, %v4387
    %v4394 = vmul.f32 %v4392, %v4388
    %v4395 = vmul.f32 %v4392, %v4389
    %v4396 = vmul.f32 %v4392, %v4390
    %4397 = vst [vmem:[%s1390] sm:$0xff] %v4393
    %4398 = vst [vmem:[%s1390 + $0x8] sm:$0xff] %v4394
    %4399 = vst [vmem:[%s1390 + $0x10] sm:$0xff] %v4395
    %4400 = vst [vmem:[%s1390 + $0x18] sm:$0xff] %v4396
    %v4401 = vmul.f32 %v4387, 2.0
    %v4402 = vmul.f32 %v4388, 2.0
    %v4403 = vmul.f32 %v4389, 2.0
    %v4404 = vmul.f32 %v4390, 2.0
    %4405 = vmatprep.subr.mxu0 0.0
    %4406 = vmatpush1.msra.mxu0 %v4387
    %4407 = vmatprep.subr.mxu0 0.0
    %4408 = vmatpush1.msra.mxu0 %v4388
    %4409 = vmatprep.subr.mxu0 0.0
    %4410 = vmatpush1.msra.mxu0 %v4389
    %4411 = vmatprep.subr.mxu0 0.0
    %4412 = vmatpush1.msra.mxu0 %v4390
    %4413 = vmatprep.subr.mxu0 0.0
    %4414 = vmatpush1.msra.mxu0 0.0
    %4415 = vmatprep.subr.mxu0 0.0
    %4416 = vmatpush1.msra.mxu0 0.0
    %4417 = vmatprep.subr.mxu0 0.0
    %4418 = vmatpush1.msra.mxu0 0.0
    %4419 = vmatprep.subr.mxu0 0.0
    %4420 = vmatpush1.msra.mxu0 0.0
    %4421 = vmatprep.subr.mxu0 0.0
    %4422 = vmatpush1.msra.mxu0 0.0
    %4423 = vmatprep.subr.mxu0 0.0
    %4424 = vmatpush1.msra.mxu0 0.0
    %4425 = vmatprep.subr.mxu0 0.0
    %4426 = vmatpush1.msra.mxu0 0.0
    %4427 = vmatprep.subr.mxu0 0.0
    %4428 = vmatpush1.msra.mxu0 0.0
    %4429 = vmatprep.subr.mxu0 0.0
    %4430 = vmatpush1.msra.mxu0 0.0
    %4431 = vmatprep.subr.mxu0 0.0
    %4432 = vmatpush1.msra.mxu0 0.0
    %4433 = vmatprep.subr.mxu0 0.0
    %4434 = vmatpush1.msra.mxu0 0.0
    %4435 = vmatprep.subr.mxu0 0.0
    %4436 = vmatpush1.msra.mxu0 0.0
    %4437 = vmatprep.subr.mxu0 0.0
    %4438 = vmatpush1.msra.mxu0 0.0
    %4439 = vmatprep.subr.mxu0 0.0
    %4440 = vmatpush1.msra.mxu0 0.0
    %4441 = vmatprep.subr.mxu0 0.0
    %4442 = vmatpush1.msra.mxu0 0.0
    %4443 = vmatprep.subr.mxu0 0.0
    %4444 = vmatpush1.msra.mxu0 0.0
    %4445 = vmatprep.subr.mxu0 0.0
    %4446 = vmatpush1.msra.mxu0 0.0
    %4447 = vmatprep.subr.mxu0 0.0
    %4448 = vmatpush1.msra.mxu0 0.0
    %4449 = vmatprep.subr.mxu0 0.0
    %4450 = vmatpush1.msra.mxu0 0.0
    %4451 = vmatprep.subr.mxu0 0.0
    %4452 = vmatpush1.msra.mxu0 0.0
    %4453 = vmatprep.subr.mxu0 0.0
    %4454 = vmatpush1.msra.mxu0 0.0
    %4455 = vmatprep.subr.mxu0 0.0
    %4456 = vmatpush1.msra.mxu0 0.0
    %4457 = vmatprep.subr.mxu0 0.0
    %4458 = vmatpush1.msra.mxu0 0.0
    %4459 = vmatprep.subr.mxu0 0.0
    %4460 = vmatpush1.msra.mxu0 0.0
    %4461 = vmatprep.subr.mxu0 0.0
    %4462 = vmatpush1.msra.mxu0 0.0
    %4463 = vmatprep.subr.mxu0 0.0
    %4464 = vmatpush1.msra.mxu0 0.0
    %4465 = vmatprep.subr.mxu0 0.0
    %4466 = vmatpush1.msra.mxu0 0.0
    %4467 = vmatprep.subr.mxu0 0.0
    %4468 = vmatpush1.msra.mxu0 0.0
    %4469 = vmatprep.mubr.f32.mxu0 0.0
    %4470 = vmatmul.mubr.f32.gmra.mrb[0].mxu0 %v244
    %v4471 = vpop.f32.mrb[0].mxu0
    %v4472 = vadd.f32 0.0, %v4471
    %v4473 = vpop.f32.mrb[0].mxu0
    %4474 = vmatprep.mubr.f32.mxu0 0.0
    %4475 = vmatmul.mubr.f32.gmra.mrb[0].mxu0 %v247
    %v4476 = vpop.f32.mrb[0].mxu0
    %v4477 = vadd.f32 0.0, %v4476
    %v4478 = vpop.f32.mrb[0].mxu0
    %4479 = vmatprep.mubr.f32.mxu0 0.0
    %4480 = vmatmul.mubr.f32.gmra.mrb[0].mxu0 %v250
    %v4481 = vpop.f32.mrb[0].mxu0
    %v4482 = vadd.f32 0.0, %v4481
    %v4483 = vpop.f32.mrb[0].mxu0
    %4484 = vmatprep.mubr.f32.mxu0 0.0
    %4485 = vmatmul.mubr.f32.gmra.mrb[0].mxu0 %v253
    %v4486 = vpop.f32.mrb[0].mxu0
    %v4487 = vadd.f32 0.0, %v4486
    %v4488 = vpop.f32.mrb[0].mxu0
    %4489 = vdwg.mxu0
    %v4490 = vsub.f32 %v4401, %v4472
    %v4491 = vsub.f32 %v4402, %v4477
    %v4492 = vsub.f32 %v4403, %v4482
    %v4493 = vsub.f32 %v4404, %v4487
    %s4494 = sld [smem:[#allocation8 + $0x3]]
    %v4495 = vstv %s4494
    %v4496 = vmul.f32 %v4495, %v4490
    %v4497 = vmul.f32 %v4495, %v4491
    %v4498 = vmul.f32 %v4495, %v4492
    %v4499 = vmul.f32 %v4495, %v4493
    %4500 = vst [vmem:[%s1494] sm:$0xff] %v4496
    %4501 = vst [vmem:[%s1494 + $0x8] sm:$0xff] %v4497
    %4502 = vst [vmem:[%s1494 + $0x10] sm:$0xff] %v4498
    %4503 = vst [vmem:[%s1494 + $0x18] sm:$0xff] %v4499
    %v4504 = vmul.f32 %v4490, 2.0
    %v4505 = vmul.f32 %v4491, 2.0
    %v4506 = vmul.f32 %v4492, 2.0
    %v4507 = vmul.f32 %v4493, 2.0
    %4508 = vmatprep.subr.mxu0 0.0
    %4509 = vmatpush1.msra.mxu0 %v4490
    %4510 = vmatprep.subr.mxu0 0.0
    %4511 = vmatpush1.msra.mxu0 %v4491
    %4512 = vmatprep.subr.mxu0 0.0
    %4513 = vmatpush1.msra.mxu0 %v4492
    %4514 = vmatprep.subr.mxu0 0.0
    %4515 = vmatpush1.msra.mxu0 %v4493
    %4516 = vmatprep.subr.mxu0 0.0
    %4517 = vmatpush1.msra.mxu0 0.0
    %4518 = vmatprep.subr.mxu0 0.0
    %4519 = vmatpush1.msra.mxu0 0.0
    %4520 = vmatprep.subr.mxu0 0.0
    %4521 = vmatpush1.msra.mxu0 0.0
    %4522 = vmatprep.subr.mxu0 0.0
    %4523 = vmatpush1.msra.mxu0 0.0
    %4524 = vmatprep.subr.mxu0 0.0
    %4525 = vmatpush1.msra.mxu0 0.0
    %4526 = vmatprep.subr.mxu0 0.0
    %4527 = vmatpush1.msra.mxu0 0.0
    %4528 = vmatprep.subr.mxu0 0.0
    %4529 = vmatpush1.msra.mxu0 0.0
    %4530 = vmatprep.subr.mxu0 0.0
    %4531 = vmatpush1.msra.mxu0 0.0
    %4532 = vmatprep.subr.mxu0 0.0
    %4533 = vmatpush1.msra.mxu0 0.0
    %4534 = vmatprep.subr.mxu0 0.0
    %4535 = vmatpush1.msra.mxu0 0.0
    %4536 = vmatprep.subr.mxu0 0.0
    %4537 = vmatpush1.msra.mxu0 0.0
    %4538 = vmatprep.subr.mxu0 0.0
    %4539 = vmatpush1.msra.mxu0 0.0
    %4540 = vmatprep.subr.mxu0 0.0
    %4541 = vmatpush1.msra.mxu0 0.0
    %4542 = vmatprep.subr.mxu0 0.0
    %4543 = vmatpush1.msra.mxu0 0.0
    %4544 = vmatprep.subr.mxu0 0.0
    %4545 = vmatpush1.msra.mxu0 0.0
    %4546 = vmatprep.subr.mxu0 0.0
    %4547 = vmatpush1.msra.mxu0 0.0
    %4548 = vmatprep.subr.mxu0 0.0
    %4549 = vmatpush1.msra.mxu0 0.0
    %4550 = vmatprep.subr.mxu0 0.0
    %4551 = vmatpush1.msra.mxu0 0.0
    %4552 = vmatprep.subr.mxu0 0.0
    %4553 = vmatpush1.msra.mxu0 0.0
    %4554 = vmatprep.subr.mxu0 0.0
    %4555 = vmatpush1.msra.mxu0 0.0
    %4556 = vmatprep.subr.mxu0 0.0
    %4557 = vmatpush1.msra.mxu0 0.0
    %4558 = vmatprep.subr.mxu0 0.0
    %4559 = vmatpush1.msra.mxu0 0.0
    %4560 = vmatprep.subr.mxu0 0.0
    %4561 = vmatpush1.msra.mxu0 0.0
    %4562 = vmatprep.subr.mxu0 0.0
    %4563 = vmatpush1.msra.mxu0 0.0
    %4564 = vmatprep.subr.mxu0 0.0
    %4565 = vmatpush1.msra.mxu0 0.0
    %4566 = vmatprep.subr.mxu0 0.0
    %4567 = vmatpush1.msra.mxu0 0.0
    %4568 = vmatprep.subr.mxu0 0.0
    %4569 = vmatpush1.msra.mxu0 0.0
    %4570 = vmatprep.subr.mxu0 0.0
    %4571 = vmatpush1.msra.mxu0 0.0
    %4572 = vmatprep.mubr.f32.mxu0 0.0
    %4573 = vmatmul.mubr.f32.gmra.mrb[0].mxu0 %v244
    %v4574 = vpop.f32.mrb[0].mxu0
    %v4575 = vadd.f32 0.0, %v4574
    %v4576 = vpop.f32.mrb[0].mxu0
    %4577 = vmatprep.mubr.f32.mxu0 0.0
    %4578 = vmatmul.mubr.f32.gmra.mrb[0].mxu0 %v247
    %v4579 = vpop.f32.mrb[0].mxu0
    %v4580 = vadd.f32 0.0, %v4579
    %v4581 = vpop.f32.mrb[0].mxu0
    %4582 = vmatprep.mubr.f32.mxu0 0.0
    %4583 = vmatmul.mubr.f32.gmra.mrb[0].mxu0 %v250
    %v4584 = vpop.f32.mrb[0].mxu0
    %v4585 = vadd.f32 0.0, %v4584
    %v4586 = vpop.f32.mrb[0].mxu0
    %4587 = vmatprep.mubr.f32.mxu0 0.0
    %4588 = vmatmul.mubr.f32.gmra.mrb[0].mxu0 %v253
    %v4589 = vpop.f32.mrb[0].mxu0
    %v4590 = vadd.f32 0.0, %v4589
    %v4591 = vpop.f32.mrb[0].mxu0
    %4592 = vdwg.mxu0
    %v4593 = vsub.f32 %v4504, %v4575
    %v4594 = vsub.f32 %v4505, %v4580
    %v4595 = vsub.f32 %v4506, %v4585
    %v4596 = vsub.f32 %v4507, %v4590
    %s4597 = sld [smem:[#allocation8 + $0x2]]
    %v4598 = vstv %s4597
    %v4599 = vmul.f32 %v4598, %v4593
    %v4600 = vmul.f32 %v4598, %v4594
    %v4601 = vmul.f32 %v4598, %v4595
    %v4602 = vmul.f32 %v4598, %v4596
    %4603 = vst [vmem:[%s1598] sm:$0xff] %v4599
    %4604 = vst [vmem:[%s1598 + $0x8] sm:$0xff] %v4600
    %4605 = vst [vmem:[%s1598 + $0x10] sm:$0xff] %v4601
    %4606 = vst [vmem:[%s1598 + $0x18] sm:$0xff] %v4602
    %v4607 = vmul.f32 %v4593, 2.0
    %v4608 = vmul.f32 %v4594, 2.0
    %v4609 = vmul.f32 %v4595, 2.0
    %v4610 = vmul.f32 %v4596, 2.0
    %4611 = vmatprep.subr.mxu0 0.0
    %4612 = vmatpush1.msra.mxu0 %v4593
    %4613 = vmatprep.subr.mxu0 0.0
    %4614 = vmatpush1.msra.mxu0 %v4594
    %4615 = vmatprep.subr.mxu0 0.0
    %4616 = vmatpush1.msra.mxu0 %v4595
    %4617 = vmatprep.subr.mxu0 0.0
    %4618 = vmatpush1.msra.mxu0 %v4596
    %4619 = vmatprep.subr.mxu0 0.0
    %4620 = vmatpush1.msra.mxu0 0.0
    %4621 = vmatprep.subr.mxu0 0.0
    %4622 = vmatpush1.msra.mxu0 0.0
    %4623 = vmatprep.subr.mxu0 0.0
    %4624 = vmatpush1.msra.mxu0 0.0
    %4625 = vmatprep.subr.mxu0 0.0
    %4626 = vmatpush1.msra.mxu0 0.0
    %4627 = vmatprep.subr.mxu0 0.0
    %4628 = vmatpush1.msra.mxu0 0.0
    %4629 = vmatprep.subr.mxu0 0.0
    %4630 = vmatpush1.msra.mxu0 0.0
    %4631 = vmatprep.subr.mxu0 0.0
    %4632 = vmatpush1.msra.mxu0 0.0
    %4633 = vmatprep.subr.mxu0 0.0
    %4634 = vmatpush1.msra.mxu0 0.0
    %4635 = vmatprep.subr.mxu0 0.0
    %4636 = vmatpush1.msra.mxu0 0.0
    %4637 = vmatprep.subr.mxu0 0.0
    %4638 = vmatpush1.msra.mxu0 0.0
    %4639 = vmatprep.subr.mxu0 0.0
    %4640 = vmatpush1.msra.mxu0 0.0
    %4641 = vmatprep.subr.mxu0 0.0
    %4642 = vmatpush1.msra.mxu0 0.0
    %4643 = vmatprep.subr.mxu0 0.0
    %4644 = vmatpush1.msra.mxu0 0.0
    %4645 = vmatprep.subr.mxu0 0.0
    %4646 = vmatpush1.msra.mxu0 0.0
    %4647 = vmatprep.subr.mxu0 0.0
    %4648 = vmatpush1.msra.mxu0 0.0
    %4649 = vmatprep.subr.mxu0 0.0
    %4650 = vmatpush1.msra.mxu0 0.0
    %4651 = vmatprep.subr.mxu0 0.0
    %4652 = vmatpush1.msra.mxu0 0.0
    %4653 = vmatprep.subr.mxu0 0.0
    %4654 = vmatpush1.msra.mxu0 0.0
    %4655 = vmatprep.subr.mxu0 0.0
    %4656 = vmatpush1.msra.mxu0 0.0
    %4657 = vmatprep.subr.mxu0 0.0
    %4658 = vmatpush1.msra.mxu0 0.0
    %4659 = vmatprep.subr.mxu0 0.0
    %4660 = vmatpush1.msra.mxu0 0.0
    %4661 = vmatprep.subr.mxu0 0.0
    %4662 = vmatpush1.msra.mxu0 0.0
    %4663 = vmatprep.subr.mxu0 0.0
    %4664 = vmatpush1.msra.mxu0 0.0
    %4665 = vmatprep.subr.mxu0 0.0
    %4666 = vmatpush1.msra.mxu0 0.0
    %4667 = vmatprep.subr.mxu0 0.0
    %4668 = vmatpush1.msra.mxu0 0.0
    %4669 = vmatprep.subr.mxu0 0.0
    %4670 = vmatpush1.msra.mxu0 0.0
    %4671 = vmatprep.subr.mxu0 0.0
    %4672 = vmatpush1.msra.mxu0 0.0
    %4673 = vmatprep.subr.mxu0 0.0
    %4674 = vmatpush1.msra.mxu0 0.0
    %4675 = vmatprep.mubr.f32.mxu0 0.0
    %4676 = vmatmul.mubr.f32.gmra.mrb[0].mxu0 %v244
    %v4677 = vpop.f32.mrb[0].mxu0
    %v4678 = vadd.f32 0.0, %v4677
    %v4679 = vpop.f32.mrb[0].mxu0
    %4680 = vmatprep.mubr.f32.mxu0 0.0
    %4681 = vmatmul.mubr.f32.gmra.mrb[0].mxu0 %v247
    %v4682 = vpop.f32.mrb[0].mxu0
    %v4683 = vadd.f32 0.0, %v4682
    %v4684 = vpop.f32.mrb[0].mxu0
    %4685 = vmatprep.mubr.f32.mxu0 0.0
    %4686 = vmatmul.mubr.f32.gmra.mrb[0].mxu0 %v250
    %v4687 = vpop.f32.mrb[0].mxu0
    %v4688 = vadd.f32 0.0, %v4687
    %v4689 = vpop.f32.mrb[0].mxu0
    %4690 = vmatprep.mubr.f32.mxu0 0.0
    %4691 = vmatmul.mubr.f32.gmra.mrb[0].mxu0 %v253
    %v4692 = vpop.f32.mrb[0].mxu0
    %v4693 = vadd.f32 0.0, %v4692
    %v4694 = vpop.f32.mrb[0].mxu0
    %4695 = vdwg.mxu0
    %v4696 = vsub.f32 %v4607, %v4678
    %v4697 = vsub.f32 %v4608, %v4683
    %v4698 = vsub.f32 %v4609, %v4688
    %v4699 = vsub.f32 %v4610, %v4693
    %s4700 = sld [smem:[#allocation8 + $0x1]]
    %v4701 = vstv %s4700
    %v4702 = vmul.f32 %v4701, %v4696
    %v4703 = vmul.f32 %v4701, %v4697
    %v4704 = vmul.f32 %v4701, %v4698
    %v4705 = vmul.f32 %v4701, %v4699
    %4706 = vst [vmem:[%s1702] sm:$0xff] %v4702
    %4707 = vst [vmem:[%s1702 + $0x8] sm:$0xff] %v4703
    %4708 = vst [vmem:[%s1702 + $0x10] sm:$0xff] %v4704
    %4709 = vst [vmem:[%s1702 + $0x18] sm:$0xff] %v4705
    %v4710 = vmul.f32 %v4696, 2.0
    %v4711 = vmul.f32 %v4697, 2.0
    %v4712 = vmul.f32 %v4698, 2.0
    %v4713 = vmul.f32 %v4699, 2.0
    %4714 = vmatprep.subr.mxu0 0.0
    %4715 = vmatpush1.msra.mxu0 %v4696
    %4716 = vmatprep.subr.mxu0 0.0
    %4717 = vmatpush1.msra.mxu0 %v4697
    %4718 = vmatprep.subr.mxu0 0.0
    %4719 = vmatpush1.msra.mxu0 %v4698
    %4720 = vmatprep.subr.mxu0 0.0
    %4721 = vmatpush1.msra.mxu0 %v4699
    %4722 = vmatprep.subr.mxu0 0.0
    %4723 = vmatpush1.msra.mxu0 0.0
    %4724 = vmatprep.subr.mxu0 0.0
    %4725 = vmatpush1.msra.mxu0 0.0
    %4726 = vmatprep.subr.mxu0 0.0
    %4727 = vmatpush1.msra.mxu0 0.0
    %4728 = vmatprep.subr.mxu0 0.0
    %4729 = vmatpush1.msra.mxu0 0.0
    %4730 = vmatprep.subr.mxu0 0.0
    %4731 = vmatpush1.msra.mxu0 0.0
    %4732 = vmatprep.subr.mxu0 0.0
    %4733 = vmatpush1.msra.mxu0 0.0
    %4734 = vmatprep.subr.mxu0 0.0
    %4735 = vmatpush1.msra.mxu0 0.0
    %4736 = vmatprep.subr.mxu0 0.0
    %4737 = vmatpush1.msra.mxu0 0.0
    %4738 = vmatprep.subr.mxu0 0.0
    %4739 = vmatpush1.msra.mxu0 0.0
    %4740 = vmatprep.subr.mxu0 0.0
    %4741 = vmatpush1.msra.mxu0 0.0
    %4742 = vmatprep.subr.mxu0 0.0
    %4743 = vmatpush1.msra.mxu0 0.0
    %4744 = vmatprep.subr.mxu0 0.0
    %4745 = vmatpush1.msra.mxu0 0.0
    %4746 = vmatprep.subr.mxu0 0.0
    %4747 = vmatpush1.msra.mxu0 0.0
    %4748 = vmatprep.subr.mxu0 0.0
    %4749 = vmatpush1.msra.mxu0 0.0
    %4750 = vmatprep.subr.mxu0 0.0
    %4751 = vmatpush1.msra.mxu0 0.0
    %4752 = vmatprep.subr.mxu0 0.0
    %4753 = vmatpush1.msra.mxu0 0.0
    %4754 = vmatprep.subr.mxu0 0.0
    %4755 = vmatpush1.msra.mxu0 0.0
    %4756 = vmatprep.subr.mxu0 0.0
    %4757 = vmatpush1.msra.mxu0 0.0
    %4758 = vmatprep.subr.mxu0 0.0
    %4759 = vmatpush1.msra.mxu0 0.0
    %4760 = vmatprep.subr.mxu0 0.0
    %4761 = vmatpush1.msra.mxu0 0.0
    %4762 = vmatprep.subr.mxu0 0.0
    %4763 = vmatpush1.msra.mxu0 0.0
    %4764 = vmatprep.subr.mxu0 0.0
    %4765 = vmatpush1.msra.mxu0 0.0
    %4766 = vmatprep.subr.mxu0 0.0
    %4767 = vmatpush1.msra.mxu0 0.0
    %4768 = vmatprep.subr.mxu0 0.0
    %4769 = vmatpush1.msra.mxu0 0.0
    %4770 = vmatprep.subr.mxu0 0.0
    %4771 = vmatpush1.msra.mxu0 0.0
    %4772 = vmatprep.subr.mxu0 0.0
    %4773 = vmatpush1.msra.mxu0 0.0
    %4774 = vmatprep.subr.mxu0 0.0
    %4775 = vmatpush1.msra.mxu0 0.0
    %4776 = vmatprep.subr.mxu0 0.0
    %4777 = vmatpush1.msra.mxu0 0.0
    %4778 = vmatprep.mubr.f32.mxu0 0.0
    %4779 = vmatmul.mubr.f32.gmra.mrb[0].mxu0 %v244
    %v4780 = vpop.f32.mrb[0].mxu0
    %v4781 = vadd.f32 0.0, %v4780
    %v4782 = vpop.f32.mrb[0].mxu0
    %4783 = vmatprep.mubr.f32.mxu0 0.0
    %4784 = vmatmul.mubr.f32.gmra.mrb[0].mxu0 %v247
    %v4785 = vpop.f32.mrb[0].mxu0
    %v4786 = vadd.f32 0.0, %v4785
    %v4787 = vpop.f32.mrb[0].mxu0
    %4788 = vmatprep.mubr.f32.mxu0 0.0
    %4789 = vmatmul.mubr.f32.gmra.mrb[0].mxu0 %v250
    %v4790 = vpop.f32.mrb[0].mxu0
    %v4791 = vadd.f32 0.0, %v4790
    %v4792 = vpop.f32.mrb[0].mxu0
    %4793 = vmatprep.mubr.f32.mxu0 0.0
    %4794 = vmatmul.mubr.f32.gmra.mrb[0].mxu0 %v253
    %v4795 = vpop.f32.mrb[0].mxu0
    %v4796 = vadd.f32 0.0, %v4795
    %v4797 = vpop.f32.mrb[0].mxu0
    %4798 = vdwg.mxu0
    %v4799 = vsub.f32 %v4710, %v4781
    %v4800 = vsub.f32 %v4711, %v4786
    %v4801 = vsub.f32 %v4712, %v4791
    %v4802 = vsub.f32 %v4713, %v4796
    %s4803 = sld [smem:[#allocation8]]
    %v4804 = vstv %s4803
    %v4805 = vmul.f32 %v4804, %v4799
    %v4806 = vmul.f32 %v4804, %v4800
    %v4807 = vmul.f32 %v4804, %v4801
    %v4808 = vmul.f32 %v4804, %v4802
    %4809 = vst [vmem:[%s1806] sm:$0xff] %v4805
    %4810 = vst [vmem:[%s1806 + $0x8] sm:$0xff] %v4806
    %4811 = vst [vmem:[%s1806 + $0x10] sm:$0xff] %v4807
    %4812 = vst [vmem:[%s1806 + $0x18] sm:$0xff] %v4808
    %v4813 = vld [vmem:[#allocation2] sm:$0xff]
    %v4814 = vld [vmem:[#allocation2 + $0x8] sm:$0xff]
    %v4815 = vld [vmem:[#allocation2 + $0x10] sm:$0xff]
    %v4816 = vld [vmem:[#allocation2 + $0x18] sm:$0xff]
    %v4817 = vld [vmem:[%s350] sm:$0xff]
    %v4818 = vld [vmem:[%s350 + $0x8] sm:$0xff]
    %v4819 = vld [vmem:[%s350 + $0x10] sm:$0xff]
    %v4820 = vld [vmem:[%s350 + $0x18] sm:$0xff]
    %4821 = vmatprep.subr.mxu0 0.0
    %4822 = vmatpush1.msra.mxu0 %v4813
    %4823 = vmatprep.subr.mxu0 0.0
    %4824 = vmatpush1.msra.mxu0 %v4814
    %4825 = vmatprep.subr.mxu0 0.0
    %4826 = vmatpush1.msra.mxu0 %v4815
    %4827 = vmatprep.subr.mxu0 0.0
    %4828 = vmatpush1.msra.mxu0 %v4816
    %4829 = vmatprep.subr.mxu0 0.0
    %4830 = vmatpush1.msra.mxu0 0.0
    %4831 = vmatprep.subr.mxu0 0.0
    %4832 = vmatpush1.msra.mxu0 0.0
    %4833 = vmatprep.subr.mxu0 0.0
    %4834 = vmatpush1.msra.mxu0 0.0
    %4835 = vmatprep.subr.mxu0 0.0
    %4836 = vmatpush1.msra.mxu0 0.0
    %4837 = vmatprep.subr.mxu0 0.0
    %4838 = vmatpush1.msra.mxu0 0.0
    %4839 = vmatprep.subr.mxu0 0.0
    %4840 = vmatpush1.msra.mxu0 0.0
    %4841 = vmatprep.subr.mxu0 0.0
    %4842 = vmatpush1.msra.mxu0 0.0
    %4843 = vmatprep.subr.mxu0 0.0
    %4844 = vmatpush1.msra.mxu0 0.0
    %4845 = vmatprep.subr.mxu0 0.0
    %4846 = vmatpush1.msra.mxu0 0.0
    %4847 = vmatprep.subr.mxu0 0.0
    %4848 = vmatpush1.msra.mxu0 0.0
    %4849 = vmatprep.subr.mxu0 0.0
    %4850 = vmatpush1.msra.mxu0 0.0
    %4851 = vmatprep.subr.mxu0 0.0
    %4852 = vmatpush1.msra.mxu0 0.0
    %4853 = vmatprep.subr.mxu0 0.0
    %4854 = vmatpush1.msra.mxu0 0.0
    %4855 = vmatprep.subr.mxu0 0.0
    %4856 = vmatpush1.msra.mxu0 0.0
    %4857 = vmatprep.subr.mxu0 0.0
    %4858 = vmatpush1.msra.mxu0 0.0
    %4859 = vmatprep.subr.mxu0 0.0
    %4860 = vmatpush1.msra.mxu0 0.0
    %4861 = vmatprep.subr.mxu0 0.0
    %4862 = vmatpush1.msra.mxu0 0.0
    %4863 = vmatprep.subr.mxu0 0.0
    %4864 = vmatpush1.msra.mxu0 0.0
    %4865 = vmatprep.subr.mxu0 0.0
    %4866 = vmatpush1.msra.mxu0 0.0
    %4867 = vmatprep.subr.mxu0 0.0
    %4868 = vmatpush1.msra.mxu0 0.0
    %4869 = vmatprep.subr.mxu0 0.0
    %4870 = vmatpush1.msra.mxu0 0.0
    %4871 = vmatprep.subr.mxu0 0.0
    %4872 = vmatpush1.msra.mxu0 0.0
    %4873 = vmatprep.subr.mxu0 0.0
    %4874 = vmatpush1.msra.mxu0 0.0
    %4875 = vmatprep.subr.mxu0 0.0
    %4876 = vmatpush1.msra.mxu0 0.0
    %4877 = vmatprep.subr.mxu0 0.0
    %4878 = vmatpush1.msra.mxu0 0.0
    %4879 = vmatprep.subr.mxu0 0.0
    %4880 = vmatpush1.msra.mxu0 0.0
    %4881 = vmatprep.subr.mxu0 0.0
    %4882 = vmatpush1.msra.mxu0 0.0
    %4883 = vmatprep.subr.mxu0 0.0
    %4884 = vmatpush1.msra.mxu0 0.0
    %4885 = vmatprep.mubr.f32.mxu0 0.0
    %4886 = vmatmul.mubr.f32.gmra.mrb[0].mxu0 %v244
    %v4887 = vpop.f32.mrb[0].mxu0
    %v4888 = vadd.f32 %v4817, %v4887
    %v4889 = vpop.f32.mrb[0].mxu0
    %4890 = vmatprep.mubr.f32.mxu0 0.0
    %4891 = vmatmul.mubr.f32.gmra.mrb[0].mxu0 %v247
    %v4892 = vpop.f32.mrb[0].mxu0
    %v4893 = vadd.f32 %v4818, %v4892
    %v4894 = vpop.f32.mrb[0].mxu0
    %4895 = vmatprep.mubr.f32.mxu0 0.0
    %4896 = vmatmul.mubr.f32.gmra.mrb[0].mxu0 %v250
    %v4897 = vpop.f32.mrb[0].mxu0
    %v4898 = vadd.f32 %v4819, %v4897
    %v4899 = vpop.f32.mrb[0].mxu0
    %4900 = vmatprep.mubr.f32.mxu0 0.0
    %4901 = vmatmul.mubr.f32.gmra.mrb[0].mxu0 %v253
    %v4902 = vpop.f32.mrb[0].mxu0
    %v4903 = vadd.f32 %v4820, %v4902
    %v4904 = vpop.f32.mrb[0].mxu0
    %4905 = vdwg.mxu0
    %v4906 = vld [vmem:[%s454] sm:$0xff]
    %v4907 = vld [vmem:[%s454 + $0x8] sm:$0xff]
    %v4908 = vld [vmem:[%s454 + $0x10] sm:$0xff]
    %v4909 = vld [vmem:[%s454 + $0x18] sm:$0xff]
    %4910 = vmatprep.subr.mxu0 0.0
    %4911 = vmatpush1.msra.mxu0 %v4888
    %4912 = vmatprep.subr.mxu0 0.0
    %4913 = vmatpush1.msra.mxu0 %v4893
    %4914 = vmatprep.subr.mxu0 0.0
    %4915 = vmatpush1.msra.mxu0 %v4898
    %4916 = vmatprep.subr.mxu0 0.0
    %4917 = vmatpush1.msra.mxu0 %v4903
    %4918 = vmatprep.subr.mxu0 0.0
    %4919 = vmatpush1.msra.mxu0 0.0
    %4920 = vmatprep.subr.mxu0 0.0
    %4921 = vmatpush1.msra.mxu0 0.0
    %4922 = vmatprep.subr.mxu0 0.0
    %4923 = vmatpush1.msra.mxu0 0.0
    %4924 = vmatprep.subr.mxu0 0.0
    %4925 = vmatpush1.msra.mxu0 0.0
    %4926 = vmatprep.subr.mxu0 0.0
    %4927 = vmatpush1.msra.mxu0 0.0
    %4928 = vmatprep.subr.mxu0 0.0
    %4929 = vmatpush1.msra.mxu0 0.0
    %4930 = vmatprep.subr.mxu0 0.0
    %4931 = vmatpush1.msra.mxu0 0.0
    %4932 = vmatprep.subr.mxu0 0.0
    %4933 = vmatpush1.msra.mxu0 0.0
    %4934 = vmatprep.subr.mxu0 0.0
    %4935 = vmatpush1.msra.mxu0 0.0
    %4936 = vmatprep.subr.mxu0 0.0
    %4937 = vmatpush1.msra.mxu0 0.0
    %4938 = vmatprep.subr.mxu0 0.0
    %4939 = vmatpush1.msra.mxu0 0.0
    %4940 = vmatprep.subr.mxu0 0.0
    %4941 = vmatpush1.msra.mxu0 0.0
    %4942 = vmatprep.subr.mxu0 0.0
    %4943 = vmatpush1.msra.mxu0 0.0
    %4944 = vmatprep.subr.mxu0 0.0
    %4945 = vmatpush1.msra.mxu0 0.0
    %4946 = vmatprep.subr.mxu0 0.0
    %4947 = vmatpush1.msra.mxu0 0.0
    %4948 = vmatprep.subr.mxu0 0.0
    %4949 = vmatpush1.msra.mxu0 0.0
    %4950 = vmatprep.subr.mxu0 0.0
    %4951 = vmatpush1.msra.mxu0 0.0
    %4952 = vmatprep.subr.mxu0 0.0
    %4953 = vmatpush1.msra.mxu0 0.0
    %4954 = vmatprep.subr.mxu0 0.0
    %4955 = vmatpush1.msra.mxu0 0.0
    %4956 = vmatprep.subr.mxu0 0.0
    %4957 = vmatpush1.msra.mxu0 0.0
    %4958 = vmatprep.subr.mxu0 0.0
    %4959 = vmatpush1.msra.mxu0 0.0
    %4960 = vmatprep.subr.mxu0 0.0
    %4961 = vmatpush1.msra.mxu0 0.0
    %4962 = vmatprep.subr.mxu0 0.0
    %4963 = vmatpush1.msra.mxu0 0.0
    %4964 = vmatprep.subr.mxu0 0.0
    %4965 = vmatpush1.msra.mxu0 0.0
    %4966 = vmatprep.subr.mxu0 0.0
    %4967 = vmatpush1.msra.mxu0 0.0
    %4968 = vmatprep.subr.mxu0 0.0
    %4969 = vmatpush1.msra.mxu0 0.0
    %4970 = vmatprep.subr.mxu0 0.0
    %4971 = vmatpush1.msra.mxu0 0.0
    %4972 = vmatprep.subr.mxu0 0.0
    %4973 = vmatpush1.msra.mxu0 0.0
    %4974 = vmatprep.mubr.f32.mxu0 0.0
    %4975 = vmatmul.mubr.f32.gmra.mrb[0].mxu0 %v244
    %v4976 = vpop.f32.mrb[0].mxu0
    %v4977 = vadd.f32 %v4906, %v4976
    %v4978 = vpop.f32.mrb[0].mxu0
    %4979 = vmatprep.mubr.f32.mxu0 0.0
    %4980 = vmatmul.mubr.f32.gmra.mrb[0].mxu0 %v247
    %v4981 = vpop.f32.mrb[0].mxu0
    %v4982 = vadd.f32 %v4907, %v4981
    %v4983 = vpop.f32.mrb[0].mxu0
    %4984 = vmatprep.mubr.f32.mxu0 0.0
    %4985 = vmatmul.mubr.f32.gmra.mrb[0].mxu0 %v250
    %v4986 = vpop.f32.mrb[0].mxu0
    %v4987 = vadd.f32 %v4908, %v4986
    %v4988 = vpop.f32.mrb[0].mxu0
    %4989 = vmatprep.mubr.f32.mxu0 0.0
    %4990 = vmatmul.mubr.f32.gmra.mrb[0].mxu0 %v253
    %v4991 = vpop.f32.mrb[0].mxu0
    %v4992 = vadd.f32 %v4909, %v4991
    %v4993 = vpop.f32.mrb[0].mxu0
    %4994 = vdwg.mxu0
    %v4995 = vld [vmem:[%s558] sm:$0xff]
    %v4996 = vld [vmem:[%s558 + $0x8] sm:$0xff]
    %v4997 = vld [vmem:[%s558 + $0x10] sm:$0xff]
    %v4998 = vld [vmem:[%s558 + $0x18] sm:$0xff]
    %4999 = vmatprep.subr.mxu0 0.0
    %5000 = vmatpush1.msra.mxu0 %v4977
    %5001 = vmatprep.subr.mxu0 0.0
    %5002 = vmatpush1.msra.mxu0 %v4982
    %5003 = vmatprep.subr.mxu0 0.0
    %5004 = vmatpush1.msra.mxu0 %v4987
    %5005 = vmatprep.subr.mxu0 0.0
    %5006 = vmatpush1.msra.mxu0 %v4992
    %5007 = vmatprep.subr.mxu0 0.0
    %5008 = vmatpush1.msra.mxu0 0.0
    %5009 = vmatprep.subr.mxu0 0.0
    %5010 = vmatpush1.msra.mxu0 0.0
    %5011 = vmatprep.subr.mxu0 0.0
    %5012 = vmatpush1.msra.mxu0 0.0
    %5013 = vmatprep.subr.mxu0 0.0
    %5014 = vmatpush1.msra.mxu0 0.0
    %5015 = vmatprep.subr.mxu0 0.0
    %5016 = vmatpush1.msra.mxu0 0.0
    %5017 = vmatprep.subr.mxu0 0.0
    %5018 = vmatpush1.msra.mxu0 0.0
    %5019 = vmatprep.subr.mxu0 0.0
    %5020 = vmatpush1.msra.mxu0 0.0
    %5021 = vmatprep.subr.mxu0 0.0
    %5022 = vmatpush1.msra.mxu0 0.0
    %5023 = vmatprep.subr.mxu0 0.0
    %5024 = vmatpush1.msra.mxu0 0.0
    %5025 = vmatprep.subr.mxu0 0.0
    %5026 = vmatpush1.msra.mxu0 0.0
    %5027 = vmatprep.subr.mxu0 0.0
    %5028 = vmatpush1.msra.mxu0 0.0
    %5029 = vmatprep.subr.mxu0 0.0
    %5030 = vmatpush1.msra.mxu0 0.0
    %5031 = vmatprep.subr.mxu0 0.0
    %5032 = vmatpush1.msra.mxu0 0.0
    %5033 = vmatprep.subr.mxu0 0.0
    %5034 = vmatpush1.msra.mxu0 0.0
    %5035 = vmatprep.subr.mxu0 0.0
    %5036 = vmatpush1.msra.mxu0 0.0
    %5037 = vmatprep.subr.mxu0 0.0
    %5038 = vmatpush1.msra.mxu0 0.0
    %5039 = vmatprep.subr.mxu0 0.0
    %5040 = vmatpush1.msra.mxu0 0.0
    %5041 = vmatprep.subr.mxu0 0.0
    %5042 = vmatpush1.msra.mxu0 0.0
    %5043 = vmatprep.subr.mxu0 0.0
    %5044 = vmatpush1.msra.mxu0 0.0
    %5045 = vmatprep.subr.mxu0 0.0
    %5046 = vmatpush1.msra.mxu0 0.0
    %5047 = vmatprep.subr.mxu0 0.0
    %5048 = vmatpush1.msra.mxu0 0.0
    %5049 = vmatprep.subr.mxu0 0.0
    %5050 = vmatpush1.msra.mxu0 0.0
    %5051 = vmatprep.subr.mxu0 0.0
    %5052 = vmatpush1.msra.mxu0 0.0
    %5053 = vmatprep.subr.mxu0 0.0
    %5054 = vmatpush1.msra.mxu0 0.0
    %5055 = vmatprep.subr.mxu0 0.0
    %5056 = vmatpush1.msra.mxu0 0.0
    %5057 = vmatprep.subr.mxu0 0.0
    %5058 = vmatpush1.msra.mxu0 0.0
    %5059 = vmatprep.subr.mxu0 0.0
    %5060 = vmatpush1.msra.mxu0 0.0
    %5061 = vmatprep.subr.mxu0 0.0
    %5062 = vmatpush1.msra.mxu0 0.0
    %5063 = vmatprep.mubr.f32.mxu0 0.0
    %5064 = vmatmul.mubr.f32.gmra.mrb[0].mxu0 %v244
    %v5065 = vpop.f32.mrb[0].mxu0
    %v5066 = vadd.f32 %v4995, %v5065
    %v5067 = vpop.f32.mrb[0].mxu0
    %5068 = vmatprep.mubr.f32.mxu0 0.0
    %5069 = vmatmul.mubr.f32.gmra.mrb[0].mxu0 %v247
    %v5070 = vpop.f32.mrb[0].mxu0
    %v5071 = vadd.f32 %v4996, %v5070
    %v5072 = vpop.f32.mrb[0].mxu0
    %5073 = vmatprep.mubr.f32.mxu0 0.0
    %5074 = vmatmul.mubr.f32.gmra.mrb[0].mxu0 %v250
    %v5075 = vpop.f32.mrb[0].mxu0
    %v5076 = vadd.f32 %v4997, %v5075
    %v5077 = vpop.f32.mrb[0].mxu0
    %5078 = vmatprep.mubr.f32.mxu0 0.0
    %5079 = vmatmul.mubr.f32.gmra.mrb[0].mxu0 %v253
    %v5080 = vpop.f32.mrb[0].mxu0
    %v5081 = vadd.f32 %v4998, %v5080
    %v5082 = vpop.f32.mrb[0].mxu0
    %5083 = vdwg.mxu0
    %v5084 = vld [vmem:[%s662] sm:$0xff]
    %v5085 = vld [vmem:[%s662 + $0x8] sm:$0xff]
    %v5086 = vld [vmem:[%s662 + $0x10] sm:$0xff]
    %v5087 = vld [vmem:[%s662 + $0x18] sm:$0xff]
    %5088 = vmatprep.subr.mxu0 0.0
    %5089 = vmatpush1.msra.mxu0 %v5066
    %5090 = vmatprep.subr.mxu0 0.0
    %5091 = vmatpush1.msra.mxu0 %v5071
    %5092 = vmatprep.subr.mxu0 0.0
    %5093 = vmatpush1.msra.mxu0 %v5076
    %5094 = vmatprep.subr.mxu0 0.0
    %5095 = vmatpush1.msra.mxu0 %v5081
    %5096 = vmatprep.subr.mxu0 0.0
    %5097 = vmatpush1.msra.mxu0 0.0
    %5098 = vmatprep.subr.mxu0 0.0
    %5099 = vmatpush1.msra.mxu0 0.0
    %5100 = vmatprep.subr.mxu0 0.0
    %5101 = vmatpush1.msra.mxu0 0.0
    %5102 = vmatprep.subr.mxu0 0.0
    %5103 = vmatpush1.msra.mxu0 0.0
    %5104 = vmatprep.subr.mxu0 0.0
    %5105 = vmatpush1.msra.mxu0 0.0
    %5106 = vmatprep.subr.mxu0 0.0
    %5107 = vmatpush1.msra.mxu0 0.0
    %5108 = vmatprep.subr.mxu0 0.0
    %5109 = vmatpush1.msra.mxu0 0.0
    %5110 = vmatprep.subr.mxu0 0.0
    %5111 = vmatpush1.msra.mxu0 0.0
    %5112 = vmatprep.subr.mxu0 0.0
    %5113 = vmatpush1.msra.mxu0 0.0
    %5114 = vmatprep.subr.mxu0 0.0
    %5115 = vmatpush1.msra.mxu0 0.0
    %5116 = vmatprep.subr.mxu0 0.0
    %5117 = vmatpush1.msra.mxu0 0.0
    %5118 = vmatprep.subr.mxu0 0.0
    %5119 = vmatpush1.msra.mxu0 0.0
    %5120 = vmatprep.subr.mxu0 0.0
    %5121 = vmatpush1.msra.mxu0 0.0
    %5122 = vmatprep.subr.mxu0 0.0
    %5123 = vmatpush1.msra.mxu0 0.0
    %5124 = vmatprep.subr.mxu0 0.0
    %5125 = vmatpush1.msra.mxu0 0.0
    %5126 = vmatprep.subr.mxu0 0.0
    %5127 = vmatpush1.msra.mxu0 0.0
    %5128 = vmatprep.subr.mxu0 0.0
    %5129 = vmatpush1.msra.mxu0 0.0
    %5130 = vmatprep.subr.mxu0 0.0
    %5131 = vmatpush1.msra.mxu0 0.0
    %5132 = vmatprep.subr.mxu0 0.0
    %5133 = vmatpush1.msra.mxu0 0.0
    %5134 = vmatprep.subr.mxu0 0.0
    %5135 = vmatpush1.msra.mxu0 0.0
    %5136 = vmatprep.subr.mxu0 0.0
    %5137 = vmatpush1.msra.mxu0 0.0
    %5138 = vmatprep.subr.mxu0 0.0
    %5139 = vmatpush1.msra.mxu0 0.0
    %5140 = vmatprep.subr.mxu0 0.0
    %5141 = vmatpush1.msra.mxu0 0.0
    %5142 = vmatprep.subr.mxu0 0.0
    %5143 = vmatpush1.msra.mxu0 0.0
    %5144 = vmatprep.subr.mxu0 0.0
    %5145 = vmatpush1.msra.mxu0 0.0
    %5146 = vmatprep.subr.mxu0 0.0
    %5147 = vmatpush1.msra.mxu0 0.0
    %5148 = vmatprep.subr.mxu0 0.0
    %5149 = vmatpush1.msra.mxu0 0.0
    %5150 = vmatprep.subr.mxu0 0.0
    %5151 = vmatpush1.msra.mxu0 0.0
    %5152 = vmatprep.mubr.f32.mxu0 0.0
    %5153 = vmatmul.mubr.f32.gmra.mrb[0].mxu0 %v244
    %v5154 = vpop.f32.mrb[0].mxu0
    %v5155 = vadd.f32 %v5084, %v5154
    %v5156 = vpop.f32.mrb[0].mxu0
    %5157 = vmatprep.mubr.f32.mxu0 0.0
    %5158 = vmatmul.mubr.f32.gmra.mrb[0].mxu0 %v247
    %v5159 = vpop.f32.mrb[0].mxu0
    %v5160 = vadd.f32 %v5085, %v5159
    %v5161 = vpop.f32.mrb[0].mxu0
    %5162 = vmatprep.mubr.f32.mxu0 0.0
    %5163 = vmatmul.mubr.f32.gmra.mrb[0].mxu0 %v250
    %v5164 = vpop.f32.mrb[0].mxu0
    %v5165 = vadd.f32 %v5086, %v5164
    %v5166 = vpop.f32.mrb[0].mxu0
    %5167 = vmatprep.mubr.f32.mxu0 0.0
    %5168 = vmatmul.mubr.f32.gmra.mrb[0].mxu0 %v253
    %v5169 = vpop.f32.mrb[0].mxu0
    %v5170 = vadd.f32 %v5087, %v5169
    %v5171 = vpop.f32.mrb[0].mxu0
    %5172 = vdwg.mxu0
    %v5173 = vld [vmem:[%s766] sm:$0xff]
    %v5174 = vld [vmem:[%s766 + $0x8] sm:$0xff]
    %v5175 = vld [vmem:[%s766 + $0x10] sm:$0xff]
    %v5176 = vld [vmem:[%s766 + $0x18] sm:$0xff]
    %5177 = vmatprep.subr.mxu0 0.0
    %5178 = vmatpush1.msra.mxu0 %v5155
    %5179 = vmatprep.subr.mxu0 0.0
    %5180 = vmatpush1.msra.mxu0 %v5160
    %5181 = vmatprep.subr.mxu0 0.0
    %5182 = vmatpush1.msra.mxu0 %v5165
    %5183 = vmatprep.subr.mxu0 0.0
    %5184 = vmatpush1.msra.mxu0 %v5170
    %5185 = vmatprep.subr.mxu0 0.0
    %5186 = vmatpush1.msra.mxu0 0.0
    %5187 = vmatprep.subr.mxu0 0.0
    %5188 = vmatpush1.msra.mxu0 0.0
    %5189 = vmatprep.subr.mxu0 0.0
    %5190 = vmatpush1.msra.mxu0 0.0
    %5191 = vmatprep.subr.mxu0 0.0
    %5192 = vmatpush1.msra.mxu0 0.0
    %5193 = vmatprep.subr.mxu0 0.0
    %5194 = vmatpush1.msra.mxu0 0.0
    %5195 = vmatprep.subr.mxu0 0.0
    %5196 = vmatpush1.msra.mxu0 0.0
    %5197 = vmatprep.subr.mxu0 0.0
    %5198 = vmatpush1.msra.mxu0 0.0
    %5199 = vmatprep.subr.mxu0 0.0
    %5200 = vmatpush1.msra.mxu0 0.0
    %5201 = vmatprep.subr.mxu0 0.0
    %5202 = vmatpush1.msra.mxu0 0.0
    %5203 = vmatprep.subr.mxu0 0.0
    %5204 = vmatpush1.msra.mxu0 0.0
    %5205 = vmatprep.subr.mxu0 0.0
    %5206 = vmatpush1.msra.mxu0 0.0
    %5207 = vmatprep.subr.mxu0 0.0
    %5208 = vmatpush1.msra.mxu0 0.0
    %5209 = vmatprep.subr.mxu0 0.0
    %5210 = vmatpush1.msra.mxu0 0.0
    %5211 = vmatprep.subr.mxu0 0.0
    %5212 = vmatpush1.msra.mxu0 0.0
    %5213 = vmatprep.subr.mxu0 0.0
    %5214 = vmatpush1.msra.mxu0 0.0
    %5215 = vmatprep.subr.mxu0 0.0
    %5216 = vmatpush1.msra.mxu0 0.0
    %5217 = vmatprep.subr.mxu0 0.0
    %5218 = vmatpush1.msra.mxu0 0.0
    %5219 = vmatprep.subr.mxu0 0.0
    %5220 = vmatpush1.msra.mxu0 0.0
    %5221 = vmatprep.subr.mxu0 0.0
    %5222 = vmatpush1.msra.mxu0 0.0
    %5223 = vmatprep.subr.mxu0 0.0
    %5224 = vmatpush1.msra.mxu0 0.0
    %5225 = vmatprep.subr.mxu0 0.0
    %5226 = vmatpush1.msra.mxu0 0.0
    %5227 = vmatprep.subr.mxu0 0.0
    %5228 = vmatpush1.msra.mxu0 0.0
    %5229 = vmatprep.subr.mxu0 0.0
    %5230 = vmatpush1.msra.mxu0 0.0
    %5231 = vmatprep.subr.mxu0 0.0
    %5232 = vmatpush1.msra.mxu0 0.0
    %5233 = vmatprep.subr.mxu0 0.0
    %5234 = vmatpush1.msra.mxu0 0.0
    %5235 = vmatprep.subr.mxu0 0.0
    %5236 = vmatpush1.msra.mxu0 0.0
    %5237 = vmatprep.subr.mxu0 0.0
    %5238 = vmatpush1.msra.mxu0 0.0
    %5239 = vmatprep.subr.mxu0 0.0
    %5240 = vmatpush1.msra.mxu0 0.0
    %5241 = vmatprep.mubr.f32.mxu0 0.0
    %5242 = vmatmul.mubr.f32.gmra.mrb[0].mxu0 %v244
    %v5243 = vpop.f32.mrb[0].mxu0
    %v5244 = vadd.f32 %v5173, %v5243
    %v5245 = vpop.f32.mrb[0].mxu0
    %5246 = vmatprep.mubr.f32.mxu0 0.0
    %5247 = vmatmul.mubr.f32.gmra.mrb[0].mxu0 %v247
    %v5248 = vpop.f32.mrb[0].mxu0
    %v5249 = vadd.f32 %v5174, %v5248
    %v5250 = vpop.f32.mrb[0].mxu0
    %5251 = vmatprep.mubr.f32.mxu0 0.0
    %5252 = vmatmul.mubr.f32.gmra.mrb[0].mxu0 %v250
    %v5253 = vpop.f32.mrb[0].mxu0
    %v5254 = vadd.f32 %v5175, %v5253
    %v5255 = vpop.f32.mrb[0].mxu0
    %5256 = vmatprep.mubr.f32.mxu0 0.0
    %5257 = vmatmul.mubr.f32.gmra.mrb[0].mxu0 %v253
    %v5258 = vpop.f32.mrb[0].mxu0
    %v5259 = vadd.f32 %v5176, %v5258
    %v5260 = vpop.f32.mrb[0].mxu0
    %5261 = vdwg.mxu0
    %v5262 = vld [vmem:[%s870] sm:$0xff]
    %v5263 = vld [vmem:[%s870 + $0x8] sm:$0xff]
    %v5264 = vld [vmem:[%s870 + $0x10] sm:$0xff]
    %v5265 = vld [vmem:[%s870 + $0x18] sm:$0xff]
    %5266 = vmatprep.subr.mxu0 0.0
    %5267 = vmatpush1.msra.mxu0 %v5244
    %5268 = vmatprep.subr.mxu0 0.0
    %5269 = vmatpush1.msra.mxu0 %v5249
    %5270 = vmatprep.subr.mxu0 0.0
    %5271 = vmatpush1.msra.mxu0 %v5254
    %5272 = vmatprep.subr.mxu0 0.0
    %5273 = vmatpush1.msra.mxu0 %v5259
    %5274 = vmatprep.subr.mxu0 0.0
    %5275 = vmatpush1.msra.mxu0 0.0
    %5276 = vmatprep.subr.mxu0 0.0
    %5277 = vmatpush1.msra.mxu0 0.0
    %5278 = vmatprep.subr.mxu0 0.0
    %5279 = vmatpush1.msra.mxu0 0.0
    %5280 = vmatprep.subr.mxu0 0.0
    %5281 = vmatpush1.msra.mxu0 0.0
    %5282 = vmatprep.subr.mxu0 0.0
    %5283 = vmatpush1.msra.mxu0 0.0
    %5284 = vmatprep.subr.mxu0 0.0
    %5285 = vmatpush1.msra.mxu0 0.0
    %5286 = vmatprep.subr.mxu0 0.0
    %5287 = vmatpush1.msra.mxu0 0.0
    %5288 = vmatprep.subr.mxu0 0.0
    %5289 = vmatpush1.msra.mxu0 0.0
    %5290 = vmatprep.subr.mxu0 0.0
    %5291 = vmatpush1.msra.mxu0 0.0
    %5292 = vmatprep.subr.mxu0 0.0
    %5293 = vmatpush1.msra.mxu0 0.0
    %5294 = vmatprep.subr.mxu0 0.0
    %5295 = vmatpush1.msra.mxu0 0.0
    %5296 = vmatprep.subr.mxu0 0.0
    %5297 = vmatpush1.msra.mxu0 0.0
    %5298 = vmatprep.subr.mxu0 0.0
    %5299 = vmatpush1.msra.mxu0 0.0
    %5300 = vmatprep.subr.mxu0 0.0
    %5301 = vmatpush1.msra.mxu0 0.0
    %5302 = vmatprep.subr.mxu0 0.0
    %5303 = vmatpush1.msra.mxu0 0.0
    %5304 = vmatprep.subr.mxu0 0.0
    %5305 = vmatpush1.msra.mxu0 0.0
    %5306 = vmatprep.subr.mxu0 0.0
    %5307 = vmatpush1.msra.mxu0 0.0
    %5308 = vmatprep.subr.mxu0 0.0
    %5309 = vmatpush1.msra.mxu0 0.0
    %5310 = vmatprep.subr.mxu0 0.0
    %5311 = vmatpush1.msra.mxu0 0.0
    %5312 = vmatprep.subr.mxu0 0.0
    %5313 = vmatpush1.msra.mxu0 0.0
    %5314 = vmatprep.subr.mxu0 0.0
    %5315 = vmatpush1.msra.mxu0 0.0
    %5316 = vmatprep.subr.mxu0 0.0
    %5317 = vmatpush1.msra.mxu0 0.0
    %5318 = vmatprep.subr.mxu0 0.0
    %5319 = vmatpush1.msra.mxu0 0.0
    %5320 = vmatprep.subr.mxu0 0.0
    %5321 = vmatpush1.msra.mxu0 0.0
    %5322 = vmatprep.subr.mxu0 0.0
    %5323 = vmatpush1.msra.mxu0 0.0
    %5324 = vmatprep.subr.mxu0 0.0
    %5325 = vmatpush1.msra.mxu0 0.0
    %5326 = vmatprep.subr.mxu0 0.0
    %5327 = vmatpush1.msra.mxu0 0.0
    %5328 = vmatprep.subr.mxu0 0.0
    %5329 = vmatpush1.msra.mxu0 0.0
    %5330 = vmatprep.mubr.f32.mxu0 0.0
    %5331 = vmatmul.mubr.f32.gmra.mrb[0].mxu0 %v244
    %v5332 = vpop.f32.mrb[0].mxu0
    %v5333 = vadd.f32 %v5262, %v5332
    %v5334 = vpop.f32.mrb[0].mxu0
    %5335 = vmatprep.mubr.f32.mxu0 0.0
    %5336 = vmatmul.mubr.f32.gmra.mrb[0].mxu0 %v247
    %v5337 = vpop.f32.mrb[0].mxu0
    %v5338 = vadd.f32 %v5263, %v5337
    %v5339 = vpop.f32.mrb[0].mxu0
    %5340 = vmatprep.mubr.f32.mxu0 0.0
    %5341 = vmatmul.mubr.f32.gmra.mrb[0].mxu0 %v250
    %v5342 = vpop.f32.mrb[0].mxu0
    %v5343 = vadd.f32 %v5264, %v5342
    %v5344 = vpop.f32.mrb[0].mxu0
    %5345 = vmatprep.mubr.f32.mxu0 0.0
    %5346 = vmatmul.mubr.f32.gmra.mrb[0].mxu0 %v253
    %v5347 = vpop.f32.mrb[0].mxu0
    %v5348 = vadd.f32 %v5265, %v5347
    %v5349 = vpop.f32.mrb[0].mxu0
    %5350 = vdwg.mxu0
    %v5351 = vld [vmem:[%s974] sm:$0xff]
    %v5352 = vld [vmem:[%s974 + $0x8] sm:$0xff]
    %v5353 = vld [vmem:[%s974 + $0x10] sm:$0xff]
    %v5354 = vld [vmem:[%s974 + $0x18] sm:$0xff]
    %5355 = vmatprep.subr.mxu0 0.0
    %5356 = vmatpush1.msra.mxu0 %v5333
    %5357 = vmatprep.subr.mxu0 0.0
    %5358 = vmatpush1.msra.mxu0 %v5338
    %5359 = vmatprep.subr.mxu0 0.0
    %5360 = vmatpush1.msra.mxu0 %v5343
    %5361 = vmatprep.subr.mxu0 0.0
    %5362 = vmatpush1.msra.mxu0 %v5348
    %5363 = vmatprep.subr.mxu0 0.0
    %5364 = vmatpush1.msra.mxu0 0.0
    %5365 = vmatprep.subr.mxu0 0.0
    %5366 = vmatpush1.msra.mxu0 0.0
    %5367 = vmatprep.subr.mxu0 0.0
    %5368 = vmatpush1.msra.mxu0 0.0
    %5369 = vmatprep.subr.mxu0 0.0
    %5370 = vmatpush1.msra.mxu0 0.0
    %5371 = vmatprep.subr.mxu0 0.0
    %5372 = vmatpush1.msra.mxu0 0.0
    %5373 = vmatprep.subr.mxu0 0.0
    %5374 = vmatpush1.msra.mxu0 0.0
    %5375 = vmatprep.subr.mxu0 0.0
    %5376 = vmatpush1.msra.mxu0 0.0
    %5377 = vmatprep.subr.mxu0 0.0
    %5378 = vmatpush1.msra.mxu0 0.0
    %5379 = vmatprep.subr.mxu0 0.0
    %5380 = vmatpush1.msra.mxu0 0.0
    %5381 = vmatprep.subr.mxu0 0.0
    %5382 = vmatpush1.msra.mxu0 0.0
    %5383 = vmatprep.subr.mxu0 0.0
    %5384 = vmatpush1.msra.mxu0 0.0
    %5385 = vmatprep.subr.mxu0 0.0
    %5386 = vmatpush1.msra.mxu0 0.0
    %5387 = vmatprep.subr.mxu0 0.0
    %5388 = vmatpush1.msra.mxu0 0.0
    %5389 = vmatprep.subr.mxu0 0.0
    %5390 = vmatpush1.msra.mxu0 0.0
    %5391 = vmatprep.subr.mxu0 0.0
    %5392 = vmatpush1.msra.mxu0 0.0
    %5393 = vmatprep.subr.mxu0 0.0
    %5394 = vmatpush1.msra.mxu0 0.0
    %5395 = vmatprep.subr.mxu0 0.0
    %5396 = vmatpush1.msra.mxu0 0.0
    %5397 = vmatprep.subr.mxu0 0.0
    %5398 = vmatpush1.msra.mxu0 0.0
    %5399 = vmatprep.subr.mxu0 0.0
    %5400 = vmatpush1.msra.mxu0 0.0
    %5401 = vmatprep.subr.mxu0 0.0
    %5402 = vmatpush1.msra.mxu0 0.0
    %5403 = vmatprep.subr.mxu0 0.0
    %5404 = vmatpush1.msra.mxu0 0.0
    %5405 = vmatprep.subr.mxu0 0.0
    %5406 = vmatpush1.msra.mxu0 0.0
    %5407 = vmatprep.subr.mxu0 0.0
    %5408 = vmatpush1.msra.mxu0 0.0
    %5409 = vmatprep.subr.mxu0 0.0
    %5410 = vmatpush1.msra.mxu0 0.0
    %5411 = vmatprep.subr.mxu0 0.0
    %5412 = vmatpush1.msra.mxu0 0.0
    %5413 = vmatprep.subr.mxu0 0.0
    %5414 = vmatpush1.msra.mxu0 0.0
    %5415 = vmatprep.subr.mxu0 0.0
    %5416 = vmatpush1.msra.mxu0 0.0
    %5417 = vmatprep.subr.mxu0 0.0
    %5418 = vmatpush1.msra.mxu0 0.0
    %5419 = vmatprep.mubr.f32.mxu0 0.0
    %5420 = vmatmul.mubr.f32.gmra.mrb[0].mxu0 %v244
    %v5421 = vpop.f32.mrb[0].mxu0
    %v5422 = vadd.f32 %v5351, %v5421
    %v5423 = vpop.f32.mrb[0].mxu0
    %5424 = vmatprep.mubr.f32.mxu0 0.0
    %5425 = vmatmul.mubr.f32.gmra.mrb[0].mxu0 %v247
    %v5426 = vpop.f32.mrb[0].mxu0
    %v5427 = vadd.f32 %v5352, %v5426
    %v5428 = vpop.f32.mrb[0].mxu0
    %5429 = vmatprep.mubr.f32.mxu0 0.0
    %5430 = vmatmul.mubr.f32.gmra.mrb[0].mxu0 %v250
    %v5431 = vpop.f32.mrb[0].mxu0
    %v5432 = vadd.f32 %v5353, %v5431
    %v5433 = vpop.f32.mrb[0].mxu0
    %5434 = vmatprep.mubr.f32.mxu0 0.0
    %5435 = vmatmul.mubr.f32.gmra.mrb[0].mxu0 %v253
    %v5436 = vpop.f32.mrb[0].mxu0
    %v5437 = vadd.f32 %v5354, %v5436
    %v5438 = vpop.f32.mrb[0].mxu0
    %5439 = vdwg.mxu0
    %v5440 = vld [vmem:[%s1078] sm:$0xff]
    %v5441 = vld [vmem:[%s1078 + $0x8] sm:$0xff]
    %v5442 = vld [vmem:[%s1078 + $0x10] sm:$0xff]
    %v5443 = vld [vmem:[%s1078 + $0x18] sm:$0xff]
    %5444 = vmatprep.subr.mxu0 0.0
    %5445 = vmatpush1.msra.mxu0 %v5422
    %5446 = vmatprep.subr.mxu0 0.0
    %5447 = vmatpush1.msra.mxu0 %v5427
    %5448 = vmatprep.subr.mxu0 0.0
    %5449 = vmatpush1.msra.mxu0 %v5432
    %5450 = vmatprep.subr.mxu0 0.0
    %5451 = vmatpush1.msra.mxu0 %v5437
    %5452 = vmatprep.subr.mxu0 0.0
    %5453 = vmatpush1.msra.mxu0 0.0
    %5454 = vmatprep.subr.mxu0 0.0
    %5455 = vmatpush1.msra.mxu0 0.0
    %5456 = vmatprep.subr.mxu0 0.0
    %5457 = vmatpush1.msra.mxu0 0.0
    %5458 = vmatprep.subr.mxu0 0.0
    %5459 = vmatpush1.msra.mxu0 0.0
    %5460 = vmatprep.subr.mxu0 0.0
    %5461 = vmatpush1.msra.mxu0 0.0
    %5462 = vmatprep.subr.mxu0 0.0
    %5463 = vmatpush1.msra.mxu0 0.0
    %5464 = vmatprep.subr.mxu0 0.0
    %5465 = vmatpush1.msra.mxu0 0.0
    %5466 = vmatprep.subr.mxu0 0.0
    %5467 = vmatpush1.msra.mxu0 0.0
    %5468 = vmatprep.subr.mxu0 0.0
    %5469 = vmatpush1.msra.mxu0 0.0
    %5470 = vmatprep.subr.mxu0 0.0
    %5471 = vmatpush1.msra.mxu0 0.0
    %5472 = vmatprep.subr.mxu0 0.0
    %5473 = vmatpush1.msra.mxu0 0.0
    %5474 = vmatprep.subr.mxu0 0.0
    %5475 = vmatpush1.msra.mxu0 0.0
    %5476 = vmatprep.subr.mxu0 0.0
    %5477 = vmatpush1.msra.mxu0 0.0
    %5478 = vmatprep.subr.mxu0 0.0
    %5479 = vmatpush1.msra.mxu0 0.0
    %5480 = vmatprep.subr.mxu0 0.0
    %5481 = vmatpush1.msra.mxu0 0.0
    %5482 = vmatprep.subr.mxu0 0.0
    %5483 = vmatpush1.msra.mxu0 0.0
    %5484 = vmatprep.subr.mxu0 0.0
    %5485 = vmatpush1.msra.mxu0 0.0
    %5486 = vmatprep.subr.mxu0 0.0
    %5487 = vmatpush1.msra.mxu0 0.0
    %5488 = vmatprep.subr.mxu0 0.0
    %5489 = vmatpush1.msra.mxu0 0.0
    %5490 = vmatprep.subr.mxu0 0.0
    %5491 = vmatpush1.msra.mxu0 0.0
    %5492 = vmatprep.subr.mxu0 0.0
    %5493 = vmatpush1.msra.mxu0 0.0
    %5494 = vmatprep.subr.mxu0 0.0
    %5495 = vmatpush1.msra.mxu0 0.0
    %5496 = vmatprep.subr.mxu0 0.0
    %5497 = vmatpush1.msra.mxu0 0.0
    %5498 = vmatprep.subr.mxu0 0.0
    %5499 = vmatpush1.msra.mxu0 0.0
    %5500 = vmatprep.subr.mxu0 0.0
    %5501 = vmatpush1.msra.mxu0 0.0
    %5502 = vmatprep.subr.mxu0 0.0
    %5503 = vmatpush1.msra.mxu0 0.0
    %5504 = vmatprep.subr.mxu0 0.0
    %5505 = vmatpush1.msra.mxu0 0.0
    %5506 = vmatprep.subr.mxu0 0.0
    %5507 = vmatpush1.msra.mxu0 0.0
    %5508 = vmatprep.mubr.f32.mxu0 0.0
    %5509 = vmatmul.mubr.f32.gmra.mrb[0].mxu0 %v244
    %v5510 = vpop.f32.mrb[0].mxu0
    %v5511 = vadd.f32 %v5440, %v5510
    %v5512 = vpop.f32.mrb[0].mxu0
    %5513 = vmatprep.mubr.f32.mxu0 0.0
    %5514 = vmatmul.mubr.f32.gmra.mrb[0].mxu0 %v247
    %v5515 = vpop.f32.mrb[0].mxu0
    %v5516 = vadd.f32 %v5441, %v5515
    %v5517 = vpop.f32.mrb[0].mxu0
    %5518 = vmatprep.mubr.f32.mxu0 0.0
    %5519 = vmatmul.mubr.f32.gmra.mrb[0].mxu0 %v250
    %v5520 = vpop.f32.mrb[0].mxu0
    %v5521 = vadd.f32 %v5442, %v5520
    %v5522 = vpop.f32.mrb[0].mxu0
    %5523 = vmatprep.mubr.f32.mxu0 0.0
    %5524 = vmatmul.mubr.f32.gmra.mrb[0].mxu0 %v253
    %v5525 = vpop.f32.mrb[0].mxu0
    %v5526 = vadd.f32 %v5443, %v5525
    %v5527 = vpop.f32.mrb[0].mxu0
    %5528 = vdwg.mxu0
    %v5529 = vld [vmem:[%s1182] sm:$0xff]
    %v5530 = vld [vmem:[%s1182 + $0x8] sm:$0xff]
    %v5531 = vld [vmem:[%s1182 + $0x10] sm:$0xff]
    %v5532 = vld [vmem:[%s1182 + $0x18] sm:$0xff]
    %5533 = vmatprep.subr.mxu0 0.0
    %5534 = vmatpush1.msra.mxu0 %v5511
    %5535 = vmatprep.subr.mxu0 0.0
    %5536 = vmatpush1.msra.mxu0 %v5516
    %5537 = vmatprep.subr.mxu0 0.0
    %5538 = vmatpush1.msra.mxu0 %v5521
    %5539 = vmatprep.subr.mxu0 0.0
    %5540 = vmatpush1.msra.mxu0 %v5526
    %5541 = vmatprep.subr.mxu0 0.0
    %5542 = vmatpush1.msra.mxu0 0.0
    %5543 = vmatprep.subr.mxu0 0.0
    %5544 = vmatpush1.msra.mxu0 0.0
    %5545 = vmatprep.subr.mxu0 0.0
    %5546 = vmatpush1.msra.mxu0 0.0
    %5547 = vmatprep.subr.mxu0 0.0
    %5548 = vmatpush1.msra.mxu0 0.0
    %5549 = vmatprep.subr.mxu0 0.0
    %5550 = vmatpush1.msra.mxu0 0.0
    %5551 = vmatprep.subr.mxu0 0.0
    %5552 = vmatpush1.msra.mxu0 0.0
    %5553 = vmatprep.subr.mxu0 0.0
    %5554 = vmatpush1.msra.mxu0 0.0
    %5555 = vmatprep.subr.mxu0 0.0
    %5556 = vmatpush1.msra.mxu0 0.0
    %5557 = vmatprep.subr.mxu0 0.0
    %5558 = vmatpush1.msra.mxu0 0.0
    %5559 = vmatprep.subr.mxu0 0.0
    %5560 = vmatpush1.msra.mxu0 0.0
    %5561 = vmatprep.subr.mxu0 0.0
    %5562 = vmatpush1.msra.mxu0 0.0
    %5563 = vmatprep.subr.mxu0 0.0
    %5564 = vmatpush1.msra.mxu0 0.0
    %5565 = vmatprep.subr.mxu0 0.0
    %5566 = vmatpush1.msra.mxu0 0.0
    %5567 = vmatprep.subr.mxu0 0.0
    %5568 = vmatpush1.msra.mxu0 0.0
    %5569 = vmatprep.subr.mxu0 0.0
    %5570 = vmatpush1.msra.mxu0 0.0
    %5571 = vmatprep.subr.mxu0 0.0
    %5572 = vmatpush1.msra.mxu0 0.0
    %5573 = vmatprep.subr.mxu0 0.0
    %5574 = vmatpush1.msra.mxu0 0.0
    %5575 = vmatprep.subr.mxu0 0.0
    %5576 = vmatpush1.msra.mxu0 0.0
    %5577 = vmatprep.subr.mxu0 0.0
    %5578 = vmatpush1.msra.mxu0 0.0
    %5579 = vmatprep.subr.mxu0 0.0
    %5580 = vmatpush1.msra.mxu0 0.0
    %5581 = vmatprep.subr.mxu0 0.0
    %5582 = vmatpush1.msra.mxu0 0.0
    %5583 = vmatprep.subr.mxu0 0.0
    %5584 = vmatpush1.msra.mxu0 0.0
    %5585 = vmatprep.subr.mxu0 0.0
    %5586 = vmatpush1.msra.mxu0 0.0
    %5587 = vmatprep.subr.mxu0 0.0
    %5588 = vmatpush1.msra.mxu0 0.0
    %5589 = vmatprep.subr.mxu0 0.0
    %5590 = vmatpush1.msra.mxu0 0.0
    %5591 = vmatprep.subr.mxu0 0.0
    %5592 = vmatpush1.msra.mxu0 0.0
    %5593 = vmatprep.subr.mxu0 0.0
    %5594 = vmatpush1.msra.mxu0 0.0
    %5595 = vmatprep.subr.mxu0 0.0
    %5596 = vmatpush1.msra.mxu0 0.0
    %5597 = vmatprep.mubr.f32.mxu0 0.0
    %5598 = vmatmul.mubr.f32.gmra.mrb[0].mxu0 %v244
    %v5599 = vpop.f32.mrb[0].mxu0
    %v5600 = vadd.f32 %v5529, %v5599
    %v5601 = vpop.f32.mrb[0].mxu0
    %5602 = vmatprep.mubr.f32.mxu0 0.0
    %5603 = vmatmul.mubr.f32.gmra.mrb[0].mxu0 %v247
    %v5604 = vpop.f32.mrb[0].mxu0
    %v5605 = vadd.f32 %v5530, %v5604
    %v5606 = vpop.f32.mrb[0].mxu0
    %5607 = vmatprep.mubr.f32.mxu0 0.0
    %5608 = vmatmul.mubr.f32.gmra.mrb[0].mxu0 %v250
    %v5609 = vpop.f32.mrb[0].mxu0
    %v5610 = vadd.f32 %v5531, %v5609
    %v5611 = vpop.f32.mrb[0].mxu0
    %5612 = vmatprep.mubr.f32.mxu0 0.0
    %5613 = vmatmul.mubr.f32.gmra.mrb[0].mxu0 %v253
    %v5614 = vpop.f32.mrb[0].mxu0
    %v5615 = vadd.f32 %v5532, %v5614
    %v5616 = vpop.f32.mrb[0].mxu0
    %5617 = vdwg.mxu0
    %v5618 = vld [vmem:[%s1286] sm:$0xff]
    %v5619 = vld [vmem:[%s1286 + $0x8] sm:$0xff]
    %v5620 = vld [vmem:[%s1286 + $0x10] sm:$0xff]
    %v5621 = vld [vmem:[%s1286 + $0x18] sm:$0xff]
    %5622 = vmatprep.subr.mxu0 0.0
    %5623 = vmatpush1.msra.mxu0 %v5600
    %5624 = vmatprep.subr.mxu0 0.0
    %5625 = vmatpush1.msra.mxu0 %v5605
    %5626 = vmatprep.subr.mxu0 0.0
    %5627 = vmatpush1.msra.mxu0 %v5610
    %5628 = vmatprep.subr.mxu0 0.0
    %5629 = vmatpush1.msra.mxu0 %v5615
    %5630 = vmatprep.subr.mxu0 0.0
    %5631 = vmatpush1.msra.mxu0 0.0
    %5632 = vmatprep.subr.mxu0 0.0
    %5633 = vmatpush1.msra.mxu0 0.0
    %5634 = vmatprep.subr.mxu0 0.0
    %5635 = vmatpush1.msra.mxu0 0.0
    %5636 = vmatprep.subr.mxu0 0.0
    %5637 = vmatpush1.msra.mxu0 0.0
    %5638 = vmatprep.subr.mxu0 0.0
    %5639 = vmatpush1.msra.mxu0 0.0
    %5640 = vmatprep.subr.mxu0 0.0
    %5641 = vmatpush1.msra.mxu0 0.0
    %5642 = vmatprep.subr.mxu0 0.0
    %5643 = vmatpush1.msra.mxu0 0.0
    %5644 = vmatprep.subr.mxu0 0.0
    %5645 = vmatpush1.msra.mxu0 0.0
    %5646 = vmatprep.subr.mxu0 0.0
    %5647 = vmatpush1.msra.mxu0 0.0
    %5648 = vmatprep.subr.mxu0 0.0
    %5649 = vmatpush1.msra.mxu0 0.0
    %5650 = vmatprep.subr.mxu0 0.0
    %5651 = vmatpush1.msra.mxu0 0.0
    %5652 = vmatprep.subr.mxu0 0.0
    %5653 = vmatpush1.msra.mxu0 0.0
    %5654 = vmatprep.subr.mxu0 0.0
    %5655 = vmatpush1.msra.mxu0 0.0
    %5656 = vmatprep.subr.mxu0 0.0
    %5657 = vmatpush1.msra.mxu0 0.0
    %5658 = vmatprep.subr.mxu0 0.0
    %5659 = vmatpush1.msra.mxu0 0.0
    %5660 = vmatprep.subr.mxu0 0.0
    %5661 = vmatpush1.msra.mxu0 0.0
    %5662 = vmatprep.subr.mxu0 0.0
    %5663 = vmatpush1.msra.mxu0 0.0
    %5664 = vmatprep.subr.mxu0 0.0
    %5665 = vmatpush1.msra.mxu0 0.0
    %5666 = vmatprep.subr.mxu0 0.0
    %5667 = vmatpush1.msra.mxu0 0.0
    %5668 = vmatprep.subr.mxu0 0.0
    %5669 = vmatpush1.msra.mxu0 0.0
    %5670 = vmatprep.subr.mxu0 0.0
    %5671 = vmatpush1.msra.mxu0 0.0
    %5672 = vmatprep.subr.mxu0 0.0
    %5673 = vmatpush1.msra.mxu0 0.0
    %5674 = vmatprep.subr.mxu0 0.0
    %5675 = vmatpush1.msra.mxu0 0.0
    %5676 = vmatprep.subr.mxu0 0.0
    %5677 = vmatpush1.msra.mxu0 0.0
    %5678 = vmatprep.subr.mxu0 0.0
    %5679 = vmatpush1.msra.mxu0 0.0
    %5680 = vmatprep.subr.mxu0 0.0
    %5681 = vmatpush1.msra.mxu0 0.0
    %5682 = vmatprep.subr.mxu0 0.0
    %5683 = vmatpush1.msra.mxu0 0.0
    %5684 = vmatprep.subr.mxu0 0.0
    %5685 = vmatpush1.msra.mxu0 0.0
    %5686 = vmatprep.mubr.f32.mxu0 0.0
    %5687 = vmatmul.mubr.f32.gmra.mrb[0].mxu0 %v244
    %v5688 = vpop.f32.mrb[0].mxu0
    %v5689 = vadd.f32 %v5618, %v5688
    %v5690 = vpop.f32.mrb[0].mxu0
    %5691 = vmatprep.mubr.f32.mxu0 0.0
    %5692 = vmatmul.mubr.f32.gmra.mrb[0].mxu0 %v247
    %v5693 = vpop.f32.mrb[0].mxu0
    %v5694 = vadd.f32 %v5619, %v5693
    %v5695 = vpop.f32.mrb[0].mxu0
    %5696 = vmatprep.mubr.f32.mxu0 0.0
    %5697 = vmatmul.mubr.f32.gmra.mrb[0].mxu0 %v250
    %v5698 = vpop.f32.mrb[0].mxu0
    %v5699 = vadd.f32 %v5620, %v5698
    %v5700 = vpop.f32.mrb[0].mxu0
    %5701 = vmatprep.mubr.f32.mxu0 0.0
    %5702 = vmatmul.mubr.f32.gmra.mrb[0].mxu0 %v253
    %v5703 = vpop.f32.mrb[0].mxu0
    %v5704 = vadd.f32 %v5621, %v5703
    %v5705 = vpop.f32.mrb[0].mxu0
    %5706 = vdwg.mxu0
    %v5707 = vld [vmem:[%s1390] sm:$0xff]
    %v5708 = vld [vmem:[%s1390 + $0x8] sm:$0xff]
    %v5709 = vld [vmem:[%s1390 + $0x10] sm:$0xff]
    %v5710 = vld [vmem:[%s1390 + $0x18] sm:$0xff]
    %5711 = vmatprep.subr.mxu0 0.0
    %5712 = vmatpush1.msra.mxu0 %v5689
    %5713 = vmatprep.subr.mxu0 0.0
    %5714 = vmatpush1.msra.mxu0 %v5694
    %5715 = vmatprep.subr.mxu0 0.0
    %5716 = vmatpush1.msra.mxu0 %v5699
    %5717 = vmatprep.subr.mxu0 0.0
    %5718 = vmatpush1.msra.mxu0 %v5704
    %5719 = vmatprep.subr.mxu0 0.0
    %5720 = vmatpush1.msra.mxu0 0.0
    %5721 = vmatprep.subr.mxu0 0.0
    %5722 = vmatpush1.msra.mxu0 0.0
    %5723 = vmatprep.subr.mxu0 0.0
    %5724 = vmatpush1.msra.mxu0 0.0
    %5725 = vmatprep.subr.mxu0 0.0
    %5726 = vmatpush1.msra.mxu0 0.0
    %5727 = vmatprep.subr.mxu0 0.0
    %5728 = vmatpush1.msra.mxu0 0.0
    %5729 = vmatprep.subr.mxu0 0.0
    %5730 = vmatpush1.msra.mxu0 0.0
    %5731 = vmatprep.subr.mxu0 0.0
    %5732 = vmatpush1.msra.mxu0 0.0
    %5733 = vmatprep.subr.mxu0 0.0
    %5734 = vmatpush1.msra.mxu0 0.0
    %5735 = vmatprep.subr.mxu0 0.0
    %5736 = vmatpush1.msra.mxu0 0.0
    %5737 = vmatprep.subr.mxu0 0.0
    %5738 = vmatpush1.msra.mxu0 0.0
    %5739 = vmatprep.subr.mxu0 0.0
    %5740 = vmatpush1.msra.mxu0 0.0
    %5741 = vmatprep.subr.mxu0 0.0
    %5742 = vmatpush1.msra.mxu0 0.0
    %5743 = vmatprep.subr.mxu0 0.0
    %5744 = vmatpush1.msra.mxu0 0.0
    %5745 = vmatprep.subr.mxu0 0.0
    %5746 = vmatpush1.msra.mxu0 0.0
    %5747 = vmatprep.subr.mxu0 0.0
    %5748 = vmatpush1.msra.mxu0 0.0
    %5749 = vmatprep.subr.mxu0 0.0
    %5750 = vmatpush1.msra.mxu0 0.0
    %5751 = vmatprep.subr.mxu0 0.0
    %5752 = vmatpush1.msra.mxu0 0.0
    %5753 = vmatprep.subr.mxu0 0.0
    %5754 = vmatpush1.msra.mxu0 0.0
    %5755 = vmatprep.subr.mxu0 0.0
    %5756 = vmatpush1.msra.mxu0 0.0
    %5757 = vmatprep.subr.mxu0 0.0
    %5758 = vmatpush1.msra.mxu0 0.0
    %5759 = vmatprep.subr.mxu0 0.0
    %5760 = vmatpush1.msra.mxu0 0.0
    %5761 = vmatprep.subr.mxu0 0.0
    %5762 = vmatpush1.msra.mxu0 0.0
    %5763 = vmatprep.subr.mxu0 0.0
    %5764 = vmatpush1.msra.mxu0 0.0
    %5765 = vmatprep.subr.mxu0 0.0
    %5766 = vmatpush1.msra.mxu0 0.0
    %5767 = vmatprep.subr.mxu0 0.0
    %5768 = vmatpush1.msra.mxu0 0.0
    %5769 = vmatprep.subr.mxu0 0.0
    %5770 = vmatpush1.msra.mxu0 0.0
    %5771 = vmatprep.subr.mxu0 0.0
    %5772 = vmatpush1.msra.mxu0 0.0
    %5773 = vmatprep.subr.mxu0 0.0
    %5774 = vmatpush1.msra.mxu0 0.0
    %5775 = vmatprep.mubr.f32.mxu0 0.0
    %5776 = vmatmul.mubr.f32.gmra.mrb[0].mxu0 %v244
    %v5777 = vpop.f32.mrb[0].mxu0
    %v5778 = vadd.f32 %v5707, %v5777
    %v5779 = vpop.f32.mrb[0].mxu0
    %5780 = vmatprep.mubr.f32.mxu0 0.0
    %5781 = vmatmul.mubr.f32.gmra.mrb[0].mxu0 %v247
    %v5782 = vpop.f32.mrb[0].mxu0
    %v5783 = vadd.f32 %v5708, %v5782
    %v5784 = vpop.f32.mrb[0].mxu0
    %5785 = vmatprep.mubr.f32.mxu0 0.0
    %5786 = vmatmul.mubr.f32.gmra.mrb[0].mxu0 %v250
    %v5787 = vpop.f32.mrb[0].mxu0
    %v5788 = vadd.f32 %v5709, %v5787
    %v5789 = vpop.f32.mrb[0].mxu0
    %5790 = vmatprep.mubr.f32.mxu0 0.0
    %5791 = vmatmul.mubr.f32.gmra.mrb[0].mxu0 %v253
    %v5792 = vpop.f32.mrb[0].mxu0
    %v5793 = vadd.f32 %v5710, %v5792
    %v5794 = vpop.f32.mrb[0].mxu0
    %5795 = vdwg.mxu0
    %v5796 = vld [vmem:[%s1494] sm:$0xff]
    %v5797 = vld [vmem:[%s1494 + $0x8] sm:$0xff]
    %v5798 = vld [vmem:[%s1494 + $0x10] sm:$0xff]
    %v5799 = vld [vmem:[%s1494 + $0x18] sm:$0xff]
    %5800 = vmatprep.subr.mxu0 0.0
    %5801 = vmatpush1.msra.mxu0 %v5778
    %5802 = vmatprep.subr.mxu0 0.0
    %5803 = vmatpush1.msra.mxu0 %v5783
    %5804 = vmatprep.subr.mxu0 0.0
    %5805 = vmatpush1.msra.mxu0 %v5788
    %5806 = vmatprep.subr.mxu0 0.0
    %5807 = vmatpush1.msra.mxu0 %v5793
    %5808 = vmatprep.subr.mxu0 0.0
    %5809 = vmatpush1.msra.mxu0 0.0
    %5810 = vmatprep.subr.mxu0 0.0
    %5811 = vmatpush1.msra.mxu0 0.0
    %5812 = vmatprep.subr.mxu0 0.0
    %5813 = vmatpush1.msra.mxu0 0.0
    %5814 = vmatprep.subr.mxu0 0.0
    %5815 = vmatpush1.msra.mxu0 0.0
    %5816 = vmatprep.subr.mxu0 0.0
    %5817 = vmatpush1.msra.mxu0 0.0
    %5818 = vmatprep.subr.mxu0 0.0
    %5819 = vmatpush1.msra.mxu0 0.0
    %5820 = vmatprep.subr.mxu0 0.0
    %5821 = vmatpush1.msra.mxu0 0.0
    %5822 = vmatprep.subr.mxu0 0.0
    %5823 = vmatpush1.msra.mxu0 0.0
    %5824 = vmatprep.subr.mxu0 0.0
    %5825 = vmatpush1.msra.mxu0 0.0
    %5826 = vmatprep.subr.mxu0 0.0
    %5827 = vmatpush1.msra.mxu0 0.0
    %5828 = vmatprep.subr.mxu0 0.0
    %5829 = vmatpush1.msra.mxu0 0.0
    %5830 = vmatprep.subr.mxu0 0.0
    %5831 = vmatpush1.msra.mxu0 0.0
    %5832 = vmatprep.subr.mxu0 0.0
    %5833 = vmatpush1.msra.mxu0 0.0
    %5834 = vmatprep.subr.mxu0 0.0
    %5835 = vmatpush1.msra.mxu0 0.0
    %5836 = vmatprep.subr.mxu0 0.0
    %5837 = vmatpush1.msra.mxu0 0.0
    %5838 = vmatprep.subr.mxu0 0.0
    %5839 = vmatpush1.msra.mxu0 0.0
    %5840 = vmatprep.subr.mxu0 0.0
    %5841 = vmatpush1.msra.mxu0 0.0
    %5842 = vmatprep.subr.mxu0 0.0
    %5843 = vmatpush1.msra.mxu0 0.0
    %5844 = vmatprep.subr.mxu0 0.0
    %5845 = vmatpush1.msra.mxu0 0.0
    %5846 = vmatprep.subr.mxu0 0.0
    %5847 = vmatpush1.msra.mxu0 0.0
    %5848 = vmatprep.subr.mxu0 0.0
    %5849 = vmatpush1.msra.mxu0 0.0
    %5850 = vmatprep.subr.mxu0 0.0
    %5851 = vmatpush1.msra.mxu0 0.0
    %5852 = vmatprep.subr.mxu0 0.0
    %5853 = vmatpush1.msra.mxu0 0.0
    %5854 = vmatprep.subr.mxu0 0.0
    %5855 = vmatpush1.msra.mxu0 0.0
    %5856 = vmatprep.subr.mxu0 0.0
    %5857 = vmatpush1.msra.mxu0 0.0
    %5858 = vmatprep.subr.mxu0 0.0
    %5859 = vmatpush1.msra.mxu0 0.0
    %5860 = vmatprep.subr.mxu0 0.0
    %5861 = vmatpush1.msra.mxu0 0.0
    %5862 = vmatprep.subr.mxu0 0.0
    %5863 = vmatpush1.msra.mxu0 0.0
    %5864 = vmatprep.mubr.f32.mxu0 0.0
    %5865 = vmatmul.mubr.f32.gmra.mrb[0].mxu0 %v244
    %v5866 = vpop.f32.mrb[0].mxu0
    %v5867 = vadd.f32 %v5796, %v5866
    %v5868 = vpop.f32.mrb[0].mxu0
    %5869 = vmatprep.mubr.f32.mxu0 0.0
    %5870 = vmatmul.mubr.f32.gmra.mrb[0].mxu0 %v247
    %v5871 = vpop.f32.mrb[0].mxu0
    %v5872 = vadd.f32 %v5797, %v5871
    %v5873 = vpop.f32.mrb[0].mxu0
    %5874 = vmatprep.mubr.f32.mxu0 0.0
    %5875 = vmatmul.mubr.f32.gmra.mrb[0].mxu0 %v250
    %v5876 = vpop.f32.mrb[0].mxu0
    %v5877 = vadd.f32 %v5798, %v5876
    %v5878 = vpop.f32.mrb[0].mxu0
    %5879 = vmatprep.mubr.f32.mxu0 0.0
    %5880 = vmatmul.mubr.f32.gmra.mrb[0].mxu0 %v253
    %v5881 = vpop.f32.mrb[0].mxu0
    %v5882 = vadd.f32 %v5799, %v5881
    %v5883 = vpop.f32.mrb[0].mxu0
    %5884 = vdwg.mxu0
    %v5885 = vld [vmem:[%s1598] sm:$0xff]
    %v5886 = vld [vmem:[%s1598 + $0x8] sm:$0xff]
    %v5887 = vld [vmem:[%s1598 + $0x10] sm:$0xff]
    %v5888 = vld [vmem:[%s1598 + $0x18] sm:$0xff]
    %5889 = vmatprep.subr.mxu0 0.0
    %5890 = vmatpush1.msra.mxu0 %v5867
    %5891 = vmatprep.subr.mxu0 0.0
    %5892 = vmatpush1.msra.mxu0 %v5872
    %5893 = vmatprep.subr.mxu0 0.0
    %5894 = vmatpush1.msra.mxu0 %v5877
    %5895 = vmatprep.subr.mxu0 0.0
    %5896 = vmatpush1.msra.mxu0 %v5882
    %5897 = vmatprep.subr.mxu0 0.0
    %5898 = vmatpush1.msra.mxu0 0.0
    %5899 = vmatprep.subr.mxu0 0.0
    %5900 = vmatpush1.msra.mxu0 0.0
    %5901 = vmatprep.subr.mxu0 0.0
    %5902 = vmatpush1.msra.mxu0 0.0
    %5903 = vmatprep.subr.mxu0 0.0
    %5904 = vmatpush1.msra.mxu0 0.0
    %5905 = vmatprep.subr.mxu0 0.0
    %5906 = vmatpush1.msra.mxu0 0.0
    %5907 = vmatprep.subr.mxu0 0.0
    %5908 = vmatpush1.msra.mxu0 0.0
    %5909 = vmatprep.subr.mxu0 0.0
    %5910 = vmatpush1.msra.mxu0 0.0
    %5911 = vmatprep.subr.mxu0 0.0
    %5912 = vmatpush1.msra.mxu0 0.0
    %5913 = vmatprep.subr.mxu0 0.0
    %5914 = vmatpush1.msra.mxu0 0.0
    %5915 = vmatprep.subr.mxu0 0.0
    %5916 = vmatpush1.msra.mxu0 0.0
    %5917 = vmatprep.subr.mxu0 0.0
    %5918 = vmatpush1.msra.mxu0 0.0
    %5919 = vmatprep.subr.mxu0 0.0
    %5920 = vmatpush1.msra.mxu0 0.0
    %5921 = vmatprep.subr.mxu0 0.0
    %5922 = vmatpush1.msra.mxu0 0.0
    %5923 = vmatprep.subr.mxu0 0.0
    %5924 = vmatpush1.msra.mxu0 0.0
    %5925 = vmatprep.subr.mxu0 0.0
    %5926 = vmatpush1.msra.mxu0 0.0
    %5927 = vmatprep.subr.mxu0 0.0
    %5928 = vmatpush1.msra.mxu0 0.0
    %5929 = vmatprep.subr.mxu0 0.0
    %5930 = vmatpush1.msra.mxu0 0.0
    %5931 = vmatprep.subr.mxu0 0.0
    %5932 = vmatpush1.msra.mxu0 0.0
    %5933 = vmatprep.subr.mxu0 0.0
    %5934 = vmatpush1.msra.mxu0 0.0
    %5935 = vmatprep.subr.mxu0 0.0
    %5936 = vmatpush1.msra.mxu0 0.0
    %5937 = vmatprep.subr.mxu0 0.0
    %5938 = vmatpush1.msra.mxu0 0.0
    %5939 = vmatprep.subr.mxu0 0.0
    %5940 = vmatpush1.msra.mxu0 0.0
    %5941 = vmatprep.subr.mxu0 0.0
    %5942 = vmatpush1.msra.mxu0 0.0
    %5943 = vmatprep.subr.mxu0 0.0
    %5944 = vmatpush1.msra.mxu0 0.0
    %5945 = vmatprep.subr.mxu0 0.0
    %5946 = vmatpush1.msra.mxu0 0.0
    %5947 = vmatprep.subr.mxu0 0.0
    %5948 = vmatpush1.msra.mxu0 0.0
    %5949 = vmatprep.subr.mxu0 0.0
    %5950 = vmatpush1.msra.mxu0 0.0
    %5951 = vmatprep.subr.mxu0 0.0
    %5952 = vmatpush1.msra.mxu0 0.0
    %5953 = vmatprep.mubr.f32.mxu0 0.0
    %5954 = vmatmul.mubr.f32.gmra.mrb[0].mxu0 %v244
    %v5955 = vpop.f32.mrb[0].mxu0
    %v5956 = vadd.f32 %v5885, %v5955
    %v5957 = vpop.f32.mrb[0].mxu0
    %5958 = vmatprep.mubr.f32.mxu0 0.0
    %5959 = vmatmul.mubr.f32.gmra.mrb[0].mxu0 %v247
    %v5960 = vpop.f32.mrb[0].mxu0
    %v5961 = vadd.f32 %v5886, %v5960
    %v5962 = vpop.f32.mrb[0].mxu0
    %5963 = vmatprep.mubr.f32.mxu0 0.0
    %5964 = vmatmul.mubr.f32.gmra.mrb[0].mxu0 %v250
    %v5965 = vpop.f32.mrb[0].mxu0
    %v5966 = vadd.f32 %v5887, %v5965
    %v5967 = vpop.f32.mrb[0].mxu0
    %5968 = vmatprep.mubr.f32.mxu0 0.0
    %5969 = vmatmul.mubr.f32.gmra.mrb[0].mxu0 %v253
    %v5970 = vpop.f32.mrb[0].mxu0
    %v5971 = vadd.f32 %v5888, %v5970
    %v5972 = vpop.f32.mrb[0].mxu0
    %5973 = vdwg.mxu0
    %v5974 = vld [vmem:[%s1702] sm:$0xff]
    %v5975 = vld [vmem:[%s1702 + $0x8] sm:$0xff]
    %v5976 = vld [vmem:[%s1702 + $0x10] sm:$0xff]
    %v5977 = vld [vmem:[%s1702 + $0x18] sm:$0xff]
    %5978 = vmatprep.subr.mxu0 0.0
    %5979 = vmatpush1.msra.mxu0 %v5956
    %5980 = vmatprep.subr.mxu0 0.0
    %5981 = vmatpush1.msra.mxu0 %v5961
    %5982 = vmatprep.subr.mxu0 0.0
    %5983 = vmatpush1.msra.mxu0 %v5966
    %5984 = vmatprep.subr.mxu0 0.0
    %5985 = vmatpush1.msra.mxu0 %v5971
    %5986 = vmatprep.subr.mxu0 0.0
    %5987 = vmatpush1.msra.mxu0 0.0
    %5988 = vmatprep.subr.mxu0 0.0
    %5989 = vmatpush1.msra.mxu0 0.0
    %5990 = vmatprep.subr.mxu0 0.0
    %5991 = vmatpush1.msra.mxu0 0.0
    %5992 = vmatprep.subr.mxu0 0.0
    %5993 = vmatpush1.msra.mxu0 0.0
    %5994 = vmatprep.subr.mxu0 0.0
    %5995 = vmatpush1.msra.mxu0 0.0
    %5996 = vmatprep.subr.mxu0 0.0
    %5997 = vmatpush1.msra.mxu0 0.0
    %5998 = vmatprep.subr.mxu0 0.0
    %5999 = vmatpush1.msra.mxu0 0.0
    %6000 = vmatprep.subr.mxu0 0.0
    %6001 = vmatpush1.msra.mxu0 0.0
    %6002 = vmatprep.subr.mxu0 0.0
    %6003 = vmatpush1.msra.mxu0 0.0
    %6004 = vmatprep.subr.mxu0 0.0
    %6005 = vmatpush1.msra.mxu0 0.0
    %6006 = vmatprep.subr.mxu0 0.0
    %6007 = vmatpush1.msra.mxu0 0.0
    %6008 = vmatprep.subr.mxu0 0.0
    %6009 = vmatpush1.msra.mxu0 0.0
    %6010 = vmatprep.subr.mxu0 0.0
    %6011 = vmatpush1.msra.mxu0 0.0
    %6012 = vmatprep.subr.mxu0 0.0
    %6013 = vmatpush1.msra.mxu0 0.0
    %6014 = vmatprep.subr.mxu0 0.0
    %6015 = vmatpush1.msra.mxu0 0.0
    %6016 = vmatprep.subr.mxu0 0.0
    %6017 = vmatpush1.msra.mxu0 0.0
    %6018 = vmatprep.subr.mxu0 0.0
    %6019 = vmatpush1.msra.mxu0 0.0
    %6020 = vmatprep.subr.mxu0 0.0
    %6021 = vmatpush1.msra.mxu0 0.0
    %6022 = vmatprep.subr.mxu0 0.0
    %6023 = vmatpush1.msra.mxu0 0.0
    %6024 = vmatprep.subr.mxu0 0.0
    %6025 = vmatpush1.msra.mxu0 0.0
    %6026 = vmatprep.subr.mxu0 0.0
    %6027 = vmatpush1.msra.mxu0 0.0
    %6028 = vmatprep.subr.mxu0 0.0
    %6029 = vmatpush1.msra.mxu0 0.0
    %6030 = vmatprep.subr.mxu0 0.0
    %6031 = vmatpush1.msra.mxu0 0.0
    %6032 = vmatprep.subr.mxu0 0.0
    %6033 = vmatpush1.msra.mxu0 0.0
    %6034 = vmatprep.subr.mxu0 0.0
    %6035 = vmatpush1.msra.mxu0 0.0
    %6036 = vmatprep.subr.mxu0 0.0
    %6037 = vmatpush1.msra.mxu0 0.0
    %6038 = vmatprep.subr.mxu0 0.0
    %6039 = vmatpush1.msra.mxu0 0.0
    %6040 = vmatprep.subr.mxu0 0.0
    %6041 = vmatpush1.msra.mxu0 0.0
    %6042 = vmatprep.mubr.f32.mxu0 0.0
    %6043 = vmatmul.mubr.f32.gmra.mrb[0].mxu0 %v244
    %v6044 = vpop.f32.mrb[0].mxu0
    %v6045 = vadd.f32 %v5974, %v6044
    %v6046 = vpop.f32.mrb[0].mxu0
    %6047 = vmatprep.mubr.f32.mxu0 0.0
    %6048 = vmatmul.mubr.f32.gmra.mrb[0].mxu0 %v247
    %v6049 = vpop.f32.mrb[0].mxu0
    %v6050 = vadd.f32 %v5975, %v6049
    %v6051 = vpop.f32.mrb[0].mxu0
    %6052 = vmatprep.mubr.f32.mxu0 0.0
    %6053 = vmatmul.mubr.f32.gmra.mrb[0].mxu0 %v250
    %v6054 = vpop.f32.mrb[0].mxu0
    %v6055 = vadd.f32 %v5976, %v6054
    %v6056 = vpop.f32.mrb[0].mxu0
    %6057 = vmatprep.mubr.f32.mxu0 0.0
    %6058 = vmatmul.mubr.f32.gmra.mrb[0].mxu0 %v253
    %v6059 = vpop.f32.mrb[0].mxu0
    %v6060 = vadd.f32 %v5977, %v6059
    %v6061 = vpop.f32.mrb[0].mxu0
    %6062 = vdwg.mxu0
    %v6063 = vld [vmem:[%s1806] sm:$0xff]
    %v6064 = vld [vmem:[%s1806 + $0x8] sm:$0xff]
    %v6065 = vld [vmem:[%s1806 + $0x10] sm:$0xff]
    %v6066 = vld [vmem:[%s1806 + $0x18] sm:$0xff]
    %6067 = vmatprep.subr.mxu0 0.0
    %6068 = vmatpush1.msra.mxu0 %v6045
    %6069 = vmatprep.subr.mxu0 0.0
    %6070 = vmatpush1.msra.mxu0 %v6050
    %6071 = vmatprep.subr.mxu0 0.0
    %6072 = vmatpush1.msra.mxu0 %v6055
    %6073 = vmatprep.subr.mxu0 0.0
    %6074 = vmatpush1.msra.mxu0 %v6060
    %6075 = vmatprep.subr.mxu0 0.0
    %6076 = vmatpush1.msra.mxu0 0.0
    %6077 = vmatprep.subr.mxu0 0.0
    %6078 = vmatpush1.msra.mxu0 0.0
    %6079 = vmatprep.subr.mxu0 0.0
    %6080 = vmatpush1.msra.mxu0 0.0
    %6081 = vmatprep.subr.mxu0 0.0
    %6082 = vmatpush1.msra.mxu0 0.0
    %6083 = vmatprep.subr.mxu0 0.0
    %6084 = vmatpush1.msra.mxu0 0.0
    %6085 = vmatprep.subr.mxu0 0.0
    %6086 = vmatpush1.msra.mxu0 0.0
    %6087 = vmatprep.subr.mxu0 0.0
    %6088 = vmatpush1.msra.mxu0 0.0
    %6089 = vmatprep.subr.mxu0 0.0
    %6090 = vmatpush1.msra.mxu0 0.0
    %6091 = vmatprep.subr.mxu0 0.0
    %6092 = vmatpush1.msra.mxu0 0.0
    %6093 = vmatprep.subr.mxu0 0.0
    %6094 = vmatpush1.msra.mxu0 0.0
    %6095 = vmatprep.subr.mxu0 0.0
    %6096 = vmatpush1.msra.mxu0 0.0
    %6097 = vmatprep.subr.mxu0 0.0
    %6098 = vmatpush1.msra.mxu0 0.0
    %6099 = vmatprep.subr.mxu0 0.0
    %6100 = vmatpush1.msra.mxu0 0.0
    %6101 = vmatprep.subr.mxu0 0.0
    %6102 = vmatpush1.msra.mxu0 0.0
    %6103 = vmatprep.subr.mxu0 0.0
    %6104 = vmatpush1.msra.mxu0 0.0
    %6105 = vmatprep.subr.mxu0 0.0
    %6106 = vmatpush1.msra.mxu0 0.0
    %6107 = vmatprep.subr.mxu0 0.0
    %6108 = vmatpush1.msra.mxu0 0.0
    %6109 = vmatprep.subr.mxu0 0.0
    %6110 = vmatpush1.msra.mxu0 0.0
    %6111 = vmatprep.subr.mxu0 0.0
    %6112 = vmatpush1.msra.mxu0 0.0
    %6113 = vmatprep.subr.mxu0 0.0
    %6114 = vmatpush1.msra.mxu0 0.0
    %6115 = vmatprep.subr.mxu0 0.0
    %6116 = vmatpush1.msra.mxu0 0.0
    %6117 = vmatprep.subr.mxu0 0.0
    %6118 = vmatpush1.msra.mxu0 0.0
    %6119 = vmatprep.subr.mxu0 0.0
    %6120 = vmatpush1.msra.mxu0 0.0
    %6121 = vmatprep.subr.mxu0 0.0
    %6122 = vmatpush1.msra.mxu0 0.0
    %6123 = vmatprep.subr.mxu0 0.0
    %6124 = vmatpush1.msra.mxu0 0.0
    %6125 = vmatprep.subr.mxu0 0.0
    %6126 = vmatpush1.msra.mxu0 0.0
    %6127 = vmatprep.subr.mxu0 0.0
    %6128 = vmatpush1.msra.mxu0 0.0
    %6129 = vmatprep.subr.mxu0 0.0
    %6130 = vmatpush1.msra.mxu0 0.0
    %6131 = vmatprep.mubr.f32.mxu0 0.0
    %6132 = vmatmul.mubr.f32.gmra.mrb[0].mxu0 %v244
    %v6133 = vpop.f32.mrb[0].mxu0
    %v6134 = vadd.f32 %v6063, %v6133
    %v6135 = vpop.f32.mrb[0].mxu0
    %6136 = vmatprep.mubr.f32.mxu0 0.0
    %6137 = vmatmul.mubr.f32.gmra.mrb[0].mxu0 %v247
    %v6138 = vpop.f32.mrb[0].mxu0
    %v6139 = vadd.f32 %v6064, %v6138
    %v6140 = vpop.f32.mrb[0].mxu0
    %6141 = vmatprep.mubr.f32.mxu0 0.0
    %6142 = vmatmul.mubr.f32.gmra.mrb[0].mxu0 %v250
    %v6143 = vpop.f32.mrb[0].mxu0
    %v6144 = vadd.f32 %v6065, %v6143
    %v6145 = vpop.f32.mrb[0].mxu0
    %6146 = vmatprep.mubr.f32.mxu0 0.0
    %6147 = vmatmul.mubr.f32.gmra.mrb[0].mxu0 %v253
    %v6148 = vpop.f32.mrb[0].mxu0
    %v6149 = vadd.f32 %v6066, %v6148
    %v6150 = vpop.f32.mrb[0].mxu0
    %6151 = vdwg.mxu0
    %6152 = vst [vmem:[#allocation15] sm:$0xff] %v6134
    %6153 = vst [vmem:[#allocation15 + $0x8] sm:$0xff] %v6139
    %6154 = vst [vmem:[#allocation15 + $0x10] sm:$0xff] %v6144
    %6155 = vst [vmem:[#allocation15 + $0x18] sm:$0xff] %v6149
    // Predicated region
    $region58: #{tpu_custom_call.1} parent=1 // pred_check
      _
    $region59: #{tpu_custom_call.1} parent=1 // pred_check_branch
      %6157 = sbr.rel (0) target = $region61
    $region60: #{tpu_custom_call.1} parent=1 // pred_region
      %s6159 = ssub.s32 512, 512
      %6160 = vsyncadd [#allocation5], %s6159
      %s6161 = sshll.u32 [#allocation15], 4
      %s6162 = int_to_ptr.vmem [resolvable:$true] %s6161
      %6167 = dma.vmem_to_hbm [thread:$0]  %s6162, 512, %s8, [#allocation5], 128, 128, 8
    $region61: #{tpu_custom_call.1} parent=1 // pred_fallthru
      _
    // Predicated region
    $region62: #{tpu_custom_call.1} parent=1 // pred_check
      _
    $region63: #{tpu_custom_call.1} parent=1 // pred_check_branch
      %6169 = sbr.rel (0) target = $region65
    $region64: #{tpu_custom_call.1} parent=1 // pred_region
      %6170 = dma.done [#allocation5], 512
    $region65: #{tpu_custom_call.1} parent=1 // pred_fallthru
      _
    %6171 = vsyncpa [#allocation4], 1
    %6172 = vsyncpa [#allocation11], 1
    %6173 = vsyncpa [#allocation14], 1
    %6174 = vsyncpa [#allocation5], 1
    %6175 = vsyncpa [#allocation6], 1
    %6176 = vsyncpa [#allocation7], 1

</llo_original>
